<compile_context>
chip_gen: v6e
topology: v6e:2x2x1
jax: 0.10.0
libtpu: 0.0.40
codegen_flags: <defaults>
</compile_context>

<pallas_src>
import functools

import jax
import jax.numpy as jnp
from jax.experimental import pallas as pl
from jax.experimental.pallas import tpu as pltpu

LANE = 128                      # channel padding / lane width
TM_MAX = 512                    # max rows per M tile
VMEM_LIMIT = 32 * 1024 * 1024   # safe on v5e/v6e/v7x (<= scoped default)


def _round_up(v, m):
    return (v + m - 1) // m * m


def _choose_tm(M):
    """Row-tile size: <=512, 8-aligned, >=2 tiles on large calls (v7x 2xTC)."""
    if M >= 2 * TM_MAX:
        return TM_MAX
    if M >= 256:
        return _round_up((M + 1) // 2, 8)
    return max(8, _round_up(M, 8))


# ----------------------------------------------------------------------------
# Pallas kernels
# ----------------------------------------------------------------------------
def _conv_bn_kernel(a_ref, w_ref, s_ref, b_ref, o_ref, *, apply_relu):
    """One M tile of a conv (taps collapsed into K) + folded BN + optional ReLU."""
    y = jnp.dot(a_ref[...], w_ref[...], preferred_element_type=jnp.float32)
    y = y * s_ref[...] + b_ref[...]
    if apply_relu:
        y = jnp.maximum(y, 0.0)
    o_ref[...] = y.astype(o_ref.dtype)


def _conv_conv1x1_kernel(a_ref, w3_ref, s3_ref, b3_ref,
                         w1_ref, s1_ref, b1_ref, o_ref):
    """Fused: 3x3 conv + BN + ReLU  ->  1x1 conv (+bias); intermediate in VMEM."""
    y = jnp.dot(a_ref[...], w3_ref[...], preferred_element_type=jnp.float32)
    y = jnp.maximum(y * s3_ref[...] + b3_ref[...], 0.0)
    z = jnp.dot(y.astype(jnp.bfloat16), w1_ref[...],
                preferred_element_type=jnp.float32)
    z = z * s1_ref[...] + b1_ref[...]
    o_ref[...] = z.astype(o_ref.dtype)


def _fused_aspp_kernel(x_ref, xp_ref, wbr_ref, sbr_ref, bbr_ref,
                       wpr_ref, spr_ref, bpr_ref, o_ref):
    """All 5 ASPP branches + projection in one kernel (degenerate-dilation regime).

    x_ref : (M, Cp)  high-level feature rows (bf16)
    xp_ref: (M, Cp)  per-batch global-mean feature broadcast back to rows (bf16)
    wbr   : (5, Cp, Coutp) branch 1x1-equivalent weights (aspp1, center taps of
            aspp2/3/4, image-pool conv); sbr/bbr: folded-BN affine per branch.
    wpr   : (5, Coutp, Coutp) projection weight split by branch block.
    """
    x = x_ref[...]
    xp = xp_ref[...]
    acc = jnp.zeros((x.shape[0], o_ref.shape[-1]), jnp.float32)
    for b in range(5):
        inp = xp if b == 4 else x
        y = jnp.dot(inp, wbr_ref[b], preferred_element_type=jnp.float32)
        y = jnp.maximum(y * sbr_ref[b] + bbr_ref[b], 0.0)        # branch BN+ReLU
        acc = acc + jnp.dot(y.astype(jnp.bfloat16), wpr_ref[b],
                            preferred_element_type=jnp.float32)
    out = jnp.maximum(acc * spr_ref[...] + bpr_ref[...], 0.0)    # proj BN+ReLU
    o_ref[...] = out.astype(o_ref.dtype)


def _global_pool_conv_kernel(x_ref, w_ref, scale_ref, bias_ref, o_ref):
    """Global average pool over spatial axis + 1x1 conv + BN + ReLU (general path)."""
    pooled = jnp.mean(x_ref[...].astype(jnp.float32), axis=1)           # (N, Cp)
    y = jnp.dot(pooled.astype(jnp.bfloat16), w_ref[...],
                preferred_element_type=jnp.float32)
    y = y * scale_ref[...] + bias_ref[...]
    o_ref[...] = jnp.maximum(y, 0.0).astype(o_ref.dtype)


def _resize_matmul_kernel(mk_ref, x_ref, o_ref):
    """One row-tile of the combined (H,W) bilinear interpolation matmul (bf16 ops)."""
    o_ref[...] = jnp.dot(mk_ref[...], x_ref[...],
                         preferred_element_type=jnp.float32).astype(o_ref.dtype)


# ----------------------------------------------------------------------------
# Conv wrappers
# ----------------------------------------------------------------------------
def _im2col(x, kh, kw, stride, dilation):
    """x: (N,H,W,Cp) bf16 -> (N*Ho*Wo, T*Cp) tap-collapsed im2col slab."""
    N, H, W, C = x.shape
    ph = dilation * (kh - 1) // 2
    pw = dilation * (kw - 1) // 2
    xp = jnp.pad(x, ((0, 0), (ph, ph), (pw, pw), (0, 0)))
    Hp, Wp = H + 2 * ph, W + 2 * pw
    Ho = (Hp - dilation * (kh - 1) - 1) // stride + 1
    Wo = (Wp - dilation * (kw - 1) - 1) // stride + 1
    taps = []
    for i in range(kh):
        for j in range(kw):
            taps.append(xp[
                :,
                i * dilation: i * dilation + stride * (Ho - 1) + 1: stride,
                j * dilation: j * dilation + stride * (Wo - 1) + 1: stride,
                :,
            ])
    A = jnp.concatenate(taps, axis=-1).reshape(N * Ho * Wo, kh * kw * C)
    return A, (N, Ho, Wo)


def conv_bn_relu(x, layer, stride=1, dilation=1, relu=True):
    """Conv2d (+ folded eval-mode BN or bias) + optional ReLU; NHWC, lane-dense."""
    w = layer["w"]                                  # (T, Cinp, Coutp) bf16
    T, Cinp, Coutp = w.shape
    k = int(round(T ** 0.5))                        # square kernels (1x1 / 3x3)
    if x.dtype != jnp.bfloat16:
        x = x.astype(jnp.bfloat16)
    N, H, W, Cp = x.shape

    # Dilated taps that only ever read zero padding contribute nothing: the
    # conv reduces exactly to its center tap (a 1x1 conv).
    if T > 1 and dilation > 1 and dilation >= H and dilation >= W:
        T, k, w = 1, 1, w[T // 2][None]

    if T == 1 and stride == 1:
        A = x.reshape(N * H * W, Cp)
        Ho, Wo = H, W
        wflat = w[0]
    else:
        A, (N, Ho, Wo) = _im2col(x, k, k, stride, dilation)
        wflat = w.reshape(T * Cinp, Coutp)

    M, K = A.shape
    tm = _choose_tm(M)
    Mpad = _round_up(M, tm)
    if Mpad != M:
        A = jnp.pad(A, ((0, Mpad - M), (0, 0)))

    out = pl.pallas_call(
        functools.partial(_conv_bn_kernel, apply_relu=relu),
        out_shape=jax.ShapeDtypeStruct((Mpad, Coutp), jnp.bfloat16),
        grid=(Mpad // tm,),
        in_specs=[
            pl.BlockSpec((tm, K), lambda m: (m, 0)),
            pl.BlockSpec((K, Coutp), lambda m: (0, 0)),
            pl.BlockSpec((1, Coutp), lambda m: (0, 0)),
            pl.BlockSpec((1, Coutp), lambda m: (0, 0)),
        ],
        out_specs=pl.BlockSpec((tm, Coutp), lambda m: (m, 0)),
        compiler_params=pltpu.CompilerParams(
            dimension_semantics=("parallel",), vmem_limit_bytes=VMEM_LIMIT),
    )(A, wflat, layer["scale"], layer["bias"])
    return out[:M].reshape(N, Ho, Wo, Coutp)


def conv3x3_then_1x1(x, layer3, layer1):
    """dec2 (3x3 conv + BN + ReLU) -> dec_cls (1x1 conv + bias), single kernel."""
    w3 = layer3["w"]
    T, Cinp, Coutp = w3.shape
    A, (N, Ho, Wo) = _im2col(x.astype(jnp.bfloat16), 3, 3, 1, 1)
    wflat = w3.reshape(T * Cinp, Coutp)
    w1 = layer1["w"][0]                              # (Coutp, Cout2p)
    Cout2p = w1.shape[-1]
    M, K = A.shape
    tm = _choose_tm(M)
    Mpad = _round_up(M, tm)
    if Mpad != M:
        A = jnp.pad(A, ((0, Mpad - M), (0, 0)))
    out = pl.pallas_call(
        _conv_conv1x1_kernel,
        out_shape=jax.ShapeDtypeStruct((Mpad, Cout2p), jnp.bfloat16),
        grid=(Mpad // tm,),
        in_specs=[
            pl.BlockSpec((tm, K), lambda m: (m, 0)),
            pl.BlockSpec((K, Coutp), lambda m: (0, 0)),
            pl.BlockSpec((1, Coutp), lambda m: (0, 0)),
            pl.BlockSpec((1, Coutp), lambda m: (0, 0)),
            pl.BlockSpec((Coutp, Cout2p), lambda m: (0, 0)),
            pl.BlockSpec((1, Cout2p), lambda m: (0, 0)),
            pl.BlockSpec((1, Cout2p), lambda m: (0, 0)),
        ],
        out_specs=pl.BlockSpec((tm, Cout2p), lambda m: (m, 0)),
        compiler_params=pltpu.CompilerParams(
            dimension_semantics=("parallel",), vmem_limit_bytes=VMEM_LIMIT),
    )(A, wflat, layer3["scale"], layer3["bias"],
      w1, layer1["scale"], layer1["bias"])
    return out[:M].reshape(N, Ho, Wo, Cout2p)


def fused_aspp(f, bundle):
    """Entire ASPP block (4 branches + image pool + projection) in one kernel."""
    N, H, W, Cp = f.shape
    M, HW = N * H * W, H * W
    x = f.reshape(M, Cp).astype(jnp.bfloat16)
    # image-pool branch input: per-batch spatial mean broadcast back over rows
    pooled = jnp.mean(f.astype(jnp.float32).reshape(N, HW, Cp), axis=1)
    xp = jnp.broadcast_to(pooled[:, None, :], (N, HW, Cp)).reshape(M, Cp)
    xp = xp.astype(jnp.bfloat16)
    Coutp = bundle["w_proj"].shape[-1]
    out = pl.pallas_call(
        _fused_aspp_kernel,
        out_shape=jax.ShapeDtypeStruct((M, Coutp), jnp.bfloat16),
        in_specs=[
            pl.BlockSpec((M, Cp), lambda: (0, 0)),
            pl.BlockSpec((M, Cp), lambda: (0, 0)),
            pl.BlockSpec(bundle["w_br"].shape, lambda: (0, 0, 0)),
            pl.BlockSpec(bundle["s_br"].shape, lambda: (0, 0, 0)),
            pl.BlockSpec(bundle["b_br"].shape, lambda: (0, 0, 0)),
            pl.BlockSpec(bundle["w_proj"].shape, lambda: (0, 0, 0)),
            pl.BlockSpec((1, Coutp), lambda: (0, 0)),
            pl.BlockSpec((1, Coutp), lambda: (0, 0)),
        ],
        out_specs=pl.BlockSpec((M, Coutp), lambda: (0, 0)),
        compiler_params=pltpu.CompilerParams(vmem_limit_bytes=VMEM_LIMIT),
    )(x, xp, bundle["w_br"], bundle["s_br"], bundle["b_br"],
      bundle["w_proj"], bundle["s_proj"], bundle["b_proj"])
    return out.reshape(N, H, W, Coutp)


def global_pool_conv(x, layer):
    """General-path ASPP image-pool branch: global mean + 1x1 conv + BN + ReLU."""
    N, H, W, Cp = x.shape
    xf = x.astype(jnp.bfloat16).reshape(N, H * W, Cp)
    w = layer["w"][0]
    Coutp = w.shape[-1]
    return pl.pallas_call(
        _global_pool_conv_kernel,
        out_shape=jax.ShapeDtypeStruct((N, Coutp), jnp.bfloat16),
        in_specs=[
            pl.BlockSpec((N, H * W, Cp), lambda: (0, 0, 0)),
            pl.BlockSpec((Cp, Coutp), lambda: (0, 0)),
            pl.BlockSpec((1, Coutp), lambda: (0, 0)),
            pl.BlockSpec((1, Coutp), lambda: (0, 0)),
        ],
        out_specs=pl.BlockSpec((N, Coutp), lambda: (0, 0)),
        compiler_params=pltpu.CompilerParams(vmem_limit_bytes=VMEM_LIMIT),
    )(xf, w, layer["scale"], layer["bias"])


# ----------------------------------------------------------------------------
# Bilinear resize (align_corners=True) as a row-tiled bf16 matmul kernel
# ----------------------------------------------------------------------------
def _interp_matrix(out_size, in_size):
    """Row-stochastic 1-D bilinear interpolation matrix, align_corners=True."""
    if out_size == 1 or in_size == 1:
        coords = jnp.zeros((out_size,), jnp.float32)
    else:
        coords = jnp.arange(out_size, dtype=jnp.float32) * (in_size - 1) / (out_size - 1)
    lo = jnp.floor(coords).astype(jnp.int32)
    hi = jnp.minimum(lo + 1, in_size - 1)
    frac = coords - lo.astype(jnp.float32)
    mat = jnp.zeros((out_size, in_size), jnp.float32)
    rows = jnp.arange(out_size)
    mat = mat.at[rows, lo].add(1.0 - frac)
    mat = mat.at[rows, hi].add(frac)
    return mat


def bilinear_upsample(x, out_h, out_w, out_dtype=jnp.float32):
    """F.interpolate(..., mode='bilinear', align_corners=True); NHWC, no transposes."""
    N, H, W, C = x.shape
    if (H, W) == (out_h, out_w):
        return x.astype(out_dtype)
    Mk = jnp.kron(_interp_matrix(out_h, H), _interp_matrix(out_w, W))
    Mk = Mk.astype(jnp.bfloat16)
    P, Q = out_h * out_w, H * W
    tr = _choose_tm(P)
    Ppad = _round_up(P, tr)
    if Ppad != P:
        Mk = jnp.pad(Mk, ((0, Ppad - P), (0, 0)))
    x2 = x.reshape(N, Q, C).astype(jnp.bfloat16)
    out = pl.pallas_call(
        _resize_matmul_kernel,
        out_shape=jax.ShapeDtypeStruct((N, Ppad, C), out_dtype),
        grid=(N, Ppad // tr),
        in_specs=[
            pl.BlockSpec((tr, Q), lambda n, r: (r, 0)),
            pl.BlockSpec((None, Q, C), lambda n, r: (n, 0, 0)),
        ],
        out_specs=pl.BlockSpec((None, tr, C), lambda n, r: (n, r, 0)),
        compiler_params=pltpu.CompilerParams(
            dimension_semantics=("parallel", "parallel"),
            vmem_limit_bytes=VMEM_LIMIT,
        ),
    )(Mk, x2)
    return out[:, :P, :].reshape(N, out_h, out_w, C)


# ----------------------------------------------------------------------------
# Parameters (deterministic synthetic init, channel-padded / lane-dense)
# ----------------------------------------------------------------------------
def init_conv(key, kh, kw, cin, cout, cin_pad=None, placements=None,
              cout_offset=0, with_bn=True, with_bias=False):
    if cin_pad is None:
        cin_pad = _round_up(cin, LANE)
    cout_pad = _round_up(cout_offset + cout, LANE)
    if placements is None:
        placements = [(0, 0, cin)]   # (dst offset in padded cin, src offset, len)
    k0, k1, k2, k3 = jax.random.split(key, 4)
    fan_in = kh * kw * cin
    w_true = jax.random.normal(k0, (kh * kw, cin, cout), jnp.float32) / jnp.sqrt(fan_in)
    w = jnp.zeros((kh * kw, cin_pad, cout_pad), jnp.float32)
    for dst, src, ln in placements:
        w = w.at[:, dst:dst + ln, cout_offset:cout_offset + cout].set(
            w_true[:, src:src + ln, :])
    if with_bn:
        eps = 1e-5
        gamma = 1.0 + 0.1 * jax.random.normal(k1, (cout,), jnp.float32)
        beta = 0.1 * jax.random.normal(k2, (cout,), jnp.float32)
        mean = 0.05 * jax.random.normal(k3, (cout,), jnp.float32)
        var = jnp.ones((cout,), jnp.float32)
        s = gamma / jnp.sqrt(var + eps)
        b = beta - mean * s
    elif with_bias:
        s = jnp.ones((cout,), jnp.float32)
        b = 0.1 * jax.random.normal(k1, (cout,), jnp.float32)
    else:
        s = jnp.ones((cout,), jnp.float32)
        b = jnp.zeros((cout,), jnp.float32)
    scale = jnp.zeros((1, cout_pad), jnp.float32)
    scale = scale.at[0, cout_offset:cout_offset + cout].set(s)
    bias = jnp.zeros((1, cout_pad), jnp.float32)
    bias = bias.at[0, cout_offset:cout_offset + cout].set(b)
    return {"w": w.astype(jnp.bfloat16), "scale": scale, "bias": bias}


def _build_fused_aspp_bundle(p):
    """Per-branch 1x1-equivalent weights + projection blocks for the fused kernel."""
    w_br = jnp.stack([p["aspp1"]["w"][0], p["aspp2"]["w"][4], p["aspp3"]["w"][4],
                      p["aspp4"]["w"][4], p["aspp_pool"]["w"][0]], axis=0)
    names = ("aspp1", "aspp2", "aspp3", "aspp4", "aspp_pool")
    s_br = jnp.stack([p[n]["scale"] for n in names], axis=0)        # (5,1,128)
    b_br = jnp.stack([p[n]["bias"] for n in names], axis=0)
    w_proj = p["aspp_proj"]["w"][0].reshape(5, LANE, LANE)
    return {"w_br": w_br, "s_br": s_br, "b_br": b_br, "w_proj": w_proj,
            "s_proj": p["aspp_proj"]["scale"], "b_proj": p["aspp_proj"]["bias"]}


def init_params(key, in_channels=3, n_classes=9):
    ks = jax.random.split(key, 14)
    p = {}
    # miniature backbone (ResNet-style conv stack): stride-2 conv x4
    p["b1"] = init_conv(ks[0], 3, 3, in_channels, 16)   # /2
    p["b2"] = init_conv(ks[1], 3, 3, 16, 24)            # /4  -> low_level_feat
    p["b3"] = init_conv(ks[2], 3, 3, 24, 32)            # /8
    p["b4"] = init_conv(ks[3], 3, 3, 32, 64)            # /16 -> high-level feat
    # ASPP (output_stride=16 -> dilations 1, 6, 12, 18) + image pooling branch
    p["aspp1"] = init_conv(ks[4], 1, 1, 64, 32)
    p["aspp2"] = init_conv(ks[5], 3, 3, 64, 32)
    p["aspp3"] = init_conv(ks[6], 3, 3, 64, 32)
    p["aspp4"] = init_conv(ks[7], 3, 3, 64, 32)
    p["aspp_pool"] = init_conv(ks[8], 1, 1, 64, 32)
    p["aspp_proj"] = init_conv(ks[9], 1, 1, 5 * 32, 32, cin_pad=5 * LANE,
                               placements=[(k * LANE, k * 32, 32) for k in range(5)])
    # decoder: dec_low outputs land at lanes 32:48 so the concat with the
    # upsampled ASPP feature (lanes 0:32) is a lane-disjoint add of one slab.
    p["dec_low"] = init_conv(ks[10], 1, 1, 24, 16, cout_offset=32)
    p["dec1"] = init_conv(ks[11], 3, 3, 48, 32)          # lanes 0:32=aspp, 32:48=low
    p["dec2"] = init_conv(ks[12], 3, 3, 32, 32)
    p["dec_cls"] = init_conv(ks[13], 1, 1, 32, n_classes,
                             with_bn=False, with_bias=True)
    p["aspp_fused"] = _build_fused_aspp_bundle(p)
    return p


# ----------------------------------------------------------------------------
# DeepLab forward (eval-mode semantics); x is NHWC with channels padded to 128
# ----------------------------------------------------------------------------
def deeplab_forward(params, x_nhwc_pad):
    N, H, W, _ = x_nhwc_pad.shape
    x = x_nhwc_pad.astype(jnp.bfloat16)

    # backbone -> (high-level feat @ stride 16, low_level_feat @ stride 4)
    f = conv_bn_relu(x, params["b1"], stride=2)
    low = conv_bn_relu(f, params["b2"], stride=2)
    f = conv_bn_relu(low, params["b3"], stride=2)
    f = conv_bn_relu(f, params["b4"], stride=2)

    # ASPP (dropout(0.5) is an eval-mode identity)
    Nb, Hf, Wf, _ = f.shape
    if 6 >= Hf and 6 >= Wf and Nb * Hf * Wf <= TM_MAX:
        # every dilated 3x3 reduces exactly to its center tap -> fully fused
        f = fused_aspp(f, params["aspp_fused"])
    else:
        a1 = conv_bn_relu(f, params["aspp1"])
        a2 = conv_bn_relu(f, params["aspp2"], dilation=6)
        a3 = conv_bn_relu(f, params["aspp3"], dilation=12)
        a4 = conv_bn_relu(f, params["aspp4"], dilation=18)
        a5 = global_pool_conv(f, params["aspp_pool"])          # (N, 128)
        a5 = jnp.broadcast_to(a5[:, None, None, :], (Nb, Hf, Wf, a5.shape[-1]))
        f = jnp.concatenate([a1, a2, a3, a4, a5], axis=-1)
        f = conv_bn_relu(f, params["aspp_proj"])

    # decoder
    low = conv_bn_relu(low, params["dec_low"])                 # lanes 32:48
    f = bilinear_upsample(f, low.shape[1], low.shape[2], out_dtype=jnp.bfloat16)
    f = f + low                                                # packed "concat"
    f = conv_bn_relu(f, params["dec1"])
    logits = conv3x3_then_1x1(f, params["dec2"], params["dec_cls"])

    # final upsample back to the input resolution (bilinear, align_corners=True)
    return bilinear_upsample(logits, H, W, out_dtype=jnp.float32)


# ----------------------------------------------------------------------------
if __name__ == "__main__":
    key = jax.random.PRNGKey(0)
    pkey, xkey = jax.random.split(key)

    n_classes = 9
    params = init_params(pkey, in_channels=3, n_classes=n_classes)

    # PyTorch-convention input: NCHW (2, 3, 32, 32)
    x_nchw = jax.random.normal(xkey, (2, 3, 32, 32), jnp.float32)
    x_nhwc = jnp.transpose(x_nchw, (0, 2, 3, 1))
    x_pad = jnp.pad(x_nhwc, ((0, 0), (0, 0), (0, 0), (0, LANE - x_nhwc.shape[-1])))

    fwd = jax.jit(deeplab_forward)
    out_pad = fwd(params, x_pad)                   # (2, 32, 32, 128) f32
    out_nhwc = out_pad[..., :n_classes]
    out_nchw = jnp.transpose(out_nhwc, (0, 3, 1, 2))
    out_nchw = jax.block_until_ready(out_nchw)

    assert out_nchw.shape == (2, 9, 32, 32), out_nchw.shape
    assert bool(jnp.all(jnp.isfinite(out_nchw)))
    print("KERNEL_OK")
</pallas_src>

<mosaic_0001>
module attributes {stable_mosaic.version = 11 : i64} {
  func.func private @main(%arg0: i32) attributes {dimension_semantics = [#tpu.dimension_semantics<core_parallel>], iteration_bounds = array<i64: 2>, tpu.core_type = #tpu.core_type<sc_scalar_subcore>, window_params = []} {
    return
  }
}

module attributes {stable_mosaic.version = 11 : i64} {
  func.func private @main(%arg0: i32) attributes {dimension_semantics = [#tpu.dimension_semantics<core_parallel>], iteration_bounds = array<i64: 2>, tpu.core_type = #tpu.core_type<sc_scalar_subcore>, window_params = []} {
    return
  }
}

module attributes {stable_mosaic.version = 11 : i64} {
  func.func @_conv_bn_kernel(%arg0: i32, %arg1: memref<256x1152xbf16, #tpu.memory_space<vmem>>, %arg2: memref<1152x128xbf16, #tpu.memory_space<vmem>>, %arg3: memref<1x128xf32, #tpu.memory_space<vmem>>, %arg4: memref<1x128xf32, #tpu.memory_space<vmem>>, %arg5: memref<256x128xbf16, #tpu.memory_space<vmem>>) attributes {dimension_semantics = [#tpu.dimension_semantics<parallel>], iteration_bounds = array<i64: 2>, scalar_prefetch = 0 : i64, scratch_operands = 0 : i64, tpu.core_type = #tpu.core_type<tc>, window_params = [{transform_indices = @transform_0, window_bounds = array<i64: 256, 1152>}, {pipeline_mode = #tpu.pipeline_mode<synchronous>, transform_indices = @transform_1, window_bounds = array<i64: 1152, 128>}, {pipeline_mode = #tpu.pipeline_mode<synchronous>, transform_indices = @transform_2, window_bounds = array<i64: 1, 128>}, {pipeline_mode = #tpu.pipeline_mode<synchronous>, transform_indices = @transform_3, window_bounds = array<i64: 1, 128>}, {transform_indices = @transform_4, window_bounds = array<i64: 256, 128>}]} {
    %c0 = arith.constant 0 : index
    %c0_0 = arith.constant 0 : index
    %0 = vector.load %arg1[%c0, %c0_0] : memref<256x1152xbf16, #tpu.memory_space<vmem>>, vector<256x1152xbf16>
    %c0_1 = arith.constant 0 : index
    %c0_2 = arith.constant 0 : index
    %1 = vector.load %arg2[%c0_1, %c0_2] : memref<1152x128xbf16, #tpu.memory_space<vmem>>, vector<1152x128xbf16>
    %cst = arith.constant dense<0.000000e+00> : vector<256x128xf32>
    %2 = tpu.matmul %0, %1, %cst {dimension_numbers = #tpu.dot_dimension_numbers<[1], [0], [0], [1], [0, 0, 1, 1], [], []>} : vector<256x1152xbf16>, vector<1152x128xbf16>, vector<256x128xf32> -> vector<256x128xf32>
    %c0_3 = arith.constant 0 : index
    %c0_4 = arith.constant 0 : index
    %3 = vector.load %arg3[%c0_3, %c0_4] : memref<1x128xf32, #tpu.memory_space<vmem>>, vector<1x128xf32>
    %4 = vector.broadcast %3 : vector<1x128xf32> to vector<256x128xf32>
    %5 = arith.mulf %2, %4 : vector<256x128xf32>
    %c0_5 = arith.constant 0 : index
    %c0_6 = arith.constant 0 : index
    %6 = vector.load %arg4[%c0_5, %c0_6] : memref<1x128xf32, #tpu.memory_space<vmem>>, vector<1x128xf32>
    %7 = vector.broadcast %6 : vector<1x128xf32> to vector<256x128xf32>
    %8 = arith.addf %5, %7 : vector<256x128xf32>
    %cst_7 = arith.constant 0.000000e+00 : f32
    %9 = vector.broadcast %cst_7 : f32 to vector<256x128xf32>
    %10 = arith.maximumf %8, %9 : vector<256x128xf32>
    %11 = arith.truncf %10 : vector<256x128xf32> to vector<256x128xbf16>
    %c0_8 = arith.constant 0 : index
    %c0_9 = arith.constant 0 : index
    %12 = vector.load %arg5[%c0_8, %c0_9] : memref<256x128xbf16, #tpu.memory_space<vmem>>, vector<256x128xbf16>
    tpu.vector_store %arg5[%c0_8, %c0_9], %11 {strides = array<i32>} : memref<256x128xbf16, #tpu.memory_space<vmem>>, vector<256x128xbf16>,
    return
  }
  func.func @transform_0(%arg0: i32) -> (i32, i32) {
    %c0_i32 = arith.constant 0 : i32
    %c0_i32_0 = arith.constant 0 : i32
    return %arg0, %c0_i32 : i32, i32
  }
  func.func @transform_1(%arg0: i32) -> (i32, i32) {
    %c0_i32 = arith.constant 0 : i32
    %c0_i32_0 = arith.constant 0 : i32
    %c0_i32_1 = arith.constant 0 : i32
    return %c0_i32, %c0_i32_0 : i32, i32
  }
  func.func @transform_2(%arg0: i32) -> (i32, i32) {
    %c0_i32 = arith.constant 0 : i32
    %c0_i32_0 = arith.constant 0 : i32
    %c0_i32_1 = arith.constant 0 : i32
    return %c0_i32, %c0_i32_0 : i32, i32
  }
  func.func @transform_3(%arg0: i32) -> (i32, i32) {
    %c0_i32 = arith.constant 0 : i32
    %c0_i32_0 = arith.constant 0 : i32
    %c0_i32_1 = arith.constant 0 : i32
    return %c0_i32, %c0_i32_0 : i32, i32
  }
  func.func @transform_4(%arg0: i32) -> (i32, i32) {
    %c0_i32 = arith.constant 0 : i32
    %c0_i32_0 = arith.constant 0 : i32
    return %arg0, %c0_i32 : i32, i32
  }
}

module attributes {stable_mosaic.version = 11 : i64} {
  func.func @_conv_bn_kernel(%arg0: i32, %arg1: memref<128x1152xbf16, #tpu.memory_space<vmem>>, %arg2: memref<1152x128xbf16, #tpu.memory_space<vmem>>, %arg3: memref<1x128xf32, #tpu.memory_space<vmem>>, %arg4: memref<1x128xf32, #tpu.memory_space<vmem>>, %arg5: memref<128x128xbf16, #tpu.memory_space<vmem>>) attributes {dimension_semantics = [#tpu.dimension_semantics<parallel>], iteration_bounds = array<i64: 1>, scalar_prefetch = 0 : i64, scratch_operands = 0 : i64, tpu.core_type = #tpu.core_type<tc>, window_params = [{transform_indices = @transform_0, window_bounds = array<i64: 128, 1152>}, {pipeline_mode = #tpu.pipeline_mode<synchronous>, transform_indices = @transform_1, window_bounds = array<i64: 1152, 128>}, {pipeline_mode = #tpu.pipeline_mode<synchronous>, transform_indices = @transform_2, window_bounds = array<i64: 1, 128>}, {pipeline_mode = #tpu.pipeline_mode<synchronous>, transform_indices = @transform_3, window_bounds = array<i64: 1, 128>}, {transform_indices = @transform_4, window_bounds = array<i64: 128, 128>}]} {
    %c0 = arith.constant 0 : index
    %c0_0 = arith.constant 0 : index
    %0 = vector.load %arg1[%c0, %c0_0] : memref<128x1152xbf16, #tpu.memory_space<vmem>>, vector<128x1152xbf16>
    %c0_1 = arith.constant 0 : index
    %c0_2 = arith.constant 0 : index
    %1 = vector.load %arg2[%c0_1, %c0_2] : memref<1152x128xbf16, #tpu.memory_space<vmem>>, vector<1152x128xbf16>
    %cst = arith.constant dense<0.000000e+00> : vector<128x128xf32>
    %2 = tpu.matmul %0, %1, %cst {dimension_numbers = #tpu.dot_dimension_numbers<[1], [0], [0], [1], [0, 0, 1, 1], [], []>} : vector<128x1152xbf16>, vector<1152x128xbf16>, vector<128x128xf32> -> vector<128x128xf32>
    %c0_3 = arith.constant 0 : index
    %c0_4 = arith.constant 0 : index
    %3 = vector.load %arg3[%c0_3, %c0_4] : memref<1x128xf32, #tpu.memory_space<vmem>>, vector<1x128xf32>
    %4 = vector.broadcast %3 : vector<1x128xf32> to vector<128x128xf32>
    %5 = arith.mulf %2, %4 : vector<128x128xf32>
    %c0_5 = arith.constant 0 : index
    %c0_6 = arith.constant 0 : index
    %6 = vector.load %arg4[%c0_5, %c0_6] : memref<1x128xf32, #tpu.memory_space<vmem>>, vector<1x128xf32>
    %7 = vector.broadcast %6 : vector<1x128xf32> to vector<128x128xf32>
    %8 = arith.addf %5, %7 : vector<128x128xf32>
    %cst_7 = arith.constant 0.000000e+00 : f32
    %9 = vector.broadcast %cst_7 : f32 to vector<128x128xf32>
    %10 = arith.maximumf %8, %9 : vector<128x128xf32>
    %11 = arith.truncf %10 : vector<128x128xf32> to vector<128x128xbf16>
    %c0_8 = arith.constant 0 : index
    %c0_9 = arith.constant 0 : index
    %12 = vector.load %arg5[%c0_8, %c0_9] : memref<128x128xbf16, #tpu.memory_space<vmem>>, vector<128x128xbf16>
    tpu.vector_store %arg5[%c0_8, %c0_9], %11 {strides = array<i32>} : memref<128x128xbf16, #tpu.memory_space<vmem>>, vector<128x128xbf16>,
    return
  }
  func.func @transform_0(%arg0: i32) -> (i32, i32) {
    %c0_i32 = arith.constant 0 : i32
    %c0_i32_0 = arith.constant 0 : i32
    return %arg0, %c0_i32 : i32, i32
  }
  func.func @transform_1(%arg0: i32) -> (i32, i32) {
    %c0_i32 = arith.constant 0 : i32
    %c0_i32_0 = arith.constant 0 : i32
    %c0_i32_1 = arith.constant 0 : i32
    return %c0_i32, %c0_i32_0 : i32, i32
  }
  func.func @transform_2(%arg0: i32) -> (i32, i32) {
    %c0_i32 = arith.constant 0 : i32
    %c0_i32_0 = arith.constant 0 : i32
    %c0_i32_1 = arith.constant 0 : i32
    return %c0_i32, %c0_i32_0 : i32, i32
  }
  func.func @transform_3(%arg0: i32) -> (i32, i32) {
    %c0_i32 = arith.constant 0 : i32
    %c0_i32_0 = arith.constant 0 : i32
    %c0_i32_1 = arith.constant 0 : i32
    return %c0_i32, %c0_i32_0 : i32, i32
  }
  func.func @transform_4(%arg0: i32) -> (i32, i32) {
    %c0_i32 = arith.constant 0 : i32
    %c0_i32_0 = arith.constant 0 : i32
    return %arg0, %c0_i32 : i32, i32
  }
}

module attributes {stable_mosaic.version = 11 : i64} {
  func.func @_conv_bn_kernel(%arg0: i32, %arg1: memref<32x1152xbf16, #tpu.memory_space<vmem>>, %arg2: memref<1152x128xbf16, #tpu.memory_space<vmem>>, %arg3: memref<1x128xf32, #tpu.memory_space<vmem>>, %arg4: memref<1x128xf32, #tpu.memory_space<vmem>>, %arg5: memref<32x128xbf16, #tpu.memory_space<vmem>>) attributes {dimension_semantics = [#tpu.dimension_semantics<parallel>], iteration_bounds = array<i64: 1>, scalar_prefetch = 0 : i64, scratch_operands = 0 : i64, tpu.core_type = #tpu.core_type<tc>, window_params = [{transform_indices = @transform_0, window_bounds = array<i64: 32, 1152>}, {pipeline_mode = #tpu.pipeline_mode<synchronous>, transform_indices = @transform_1, window_bounds = array<i64: 1152, 128>}, {pipeline_mode = #tpu.pipeline_mode<synchronous>, transform_indices = @transform_2, window_bounds = array<i64: 1, 128>}, {pipeline_mode = #tpu.pipeline_mode<synchronous>, transform_indices = @transform_3, window_bounds = array<i64: 1, 128>}, {transform_indices = @transform_4, window_bounds = array<i64: 32, 128>}]} {
    %c0 = arith.constant 0 : index
    %c0_0 = arith.constant 0 : index
    %0 = vector.load %arg1[%c0, %c0_0] : memref<32x1152xbf16, #tpu.memory_space<vmem>>, vector<32x1152xbf16>
    %c0_1 = arith.constant 0 : index
    %c0_2 = arith.constant 0 : index
    %1 = vector.load %arg2[%c0_1, %c0_2] : memref<1152x128xbf16, #tpu.memory_space<vmem>>, vector<1152x128xbf16>
    %cst = arith.constant dense<0.000000e+00> : vector<32x128xf32>
    %2 = tpu.matmul %0, %1, %cst {dimension_numbers = #tpu.dot_dimension_numbers<[1], [0], [0], [1], [0, 0, 1, 1], [], []>} : vector<32x1152xbf16>, vector<1152x128xbf16>, vector<32x128xf32> -> vector<32x128xf32>
    %c0_3 = arith.constant 0 : index
    %c0_4 = arith.constant 0 : index
    %3 = vector.load %arg3[%c0_3, %c0_4] : memref<1x128xf32, #tpu.memory_space<vmem>>, vector<1x128xf32>
    %4 = vector.broadcast %3 : vector<1x128xf32> to vector<32x128xf32>
    %5 = arith.mulf %2, %4 : vector<32x128xf32>
    %c0_5 = arith.constant 0 : index
    %c0_6 = arith.constant 0 : index
    %6 = vector.load %arg4[%c0_5, %c0_6] : memref<1x128xf32, #tpu.memory_space<vmem>>, vector<1x128xf32>
    %7 = vector.broadcast %6 : vector<1x128xf32> to vector<32x128xf32>
    %8 = arith.addf %5, %7 : vector<32x128xf32>
    %cst_7 = arith.constant 0.000000e+00 : f32
    %9 = vector.broadcast %cst_7 : f32 to vector<32x128xf32>
    %10 = arith.maximumf %8, %9 : vector<32x128xf32>
    %11 = arith.truncf %10 : vector<32x128xf32> to vector<32x128xbf16>
    %c0_8 = arith.constant 0 : index
    %c0_9 = arith.constant 0 : index
    %12 = vector.load %arg5[%c0_8, %c0_9] : memref<32x128xbf16, #tpu.memory_space<vmem>>, vector<32x128xbf16>
    tpu.vector_store %arg5[%c0_8, %c0_9], %11 {strides = array<i32>} : memref<32x128xbf16, #tpu.memory_space<vmem>>, vector<32x128xbf16>,
    return
  }
  func.func @transform_0(%arg0: i32) -> (i32, i32) {
    %c0_i32 = arith.constant 0 : i32
    %c0_i32_0 = arith.constant 0 : i32
    return %arg0, %c0_i32 : i32, i32
  }
  func.func @transform_1(%arg0: i32) -> (i32, i32) {
    %c0_i32 = arith.constant 0 : i32
    %c0_i32_0 = arith.constant 0 : i32
    %c0_i32_1 = arith.constant 0 : i32
    return %c0_i32, %c0_i32_0 : i32, i32
  }
  func.func @transform_2(%arg0: i32) -> (i32, i32) {
    %c0_i32 = arith.constant 0 : i32
    %c0_i32_0 = arith.constant 0 : i32
    %c0_i32_1 = arith.constant 0 : i32
    return %c0_i32, %c0_i32_0 : i32, i32
  }
  func.func @transform_3(%arg0: i32) -> (i32, i32) {
    %c0_i32 = arith.constant 0 : i32
    %c0_i32_0 = arith.constant 0 : i32
    %c0_i32_1 = arith.constant 0 : i32
    return %c0_i32, %c0_i32_0 : i32, i32
  }
  func.func @transform_4(%arg0: i32) -> (i32, i32) {
    %c0_i32 = arith.constant 0 : i32
    %c0_i32_0 = arith.constant 0 : i32
    return %arg0, %c0_i32 : i32, i32
  }
}

module attributes {stable_mosaic.version = 11 : i64} {
  func.func @_conv_bn_kernel(%arg0: i32, %arg1: memref<128x128xbf16, #tpu.memory_space<vmem>>, %arg2: memref<128x128xbf16, #tpu.memory_space<vmem>>, %arg3: memref<1x128xf32, #tpu.memory_space<vmem>>, %arg4: memref<1x128xf32, #tpu.memory_space<vmem>>, %arg5: memref<128x128xbf16, #tpu.memory_space<vmem>>) attributes {dimension_semantics = [#tpu.dimension_semantics<parallel>], iteration_bounds = array<i64: 1>, scalar_prefetch = 0 : i64, scratch_operands = 0 : i64, tpu.core_type = #tpu.core_type<tc>, window_params = [{transform_indices = @transform_0, window_bounds = array<i64: 128, 128>}, {pipeline_mode = #tpu.pipeline_mode<synchronous>, transform_indices = @transform_1, window_bounds = array<i64: 128, 128>}, {pipeline_mode = #tpu.pipeline_mode<synchronous>, transform_indices = @transform_2, window_bounds = array<i64: 1, 128>}, {pipeline_mode = #tpu.pipeline_mode<synchronous>, transform_indices = @transform_3, window_bounds = array<i64: 1, 128>}, {transform_indices = @transform_4, window_bounds = array<i64: 128, 128>}]} {
    %c0 = arith.constant 0 : index
    %c0_0 = arith.constant 0 : index
    %0 = vector.load %arg1[%c0, %c0_0] : memref<128x128xbf16, #tpu.memory_space<vmem>>, vector<128x128xbf16>
    %c0_1 = arith.constant 0 : index
    %c0_2 = arith.constant 0 : index
    %1 = vector.load %arg2[%c0_1, %c0_2] : memref<128x128xbf16, #tpu.memory_space<vmem>>, vector<128x128xbf16>
    %cst = arith.constant dense<0.000000e+00> : vector<128x128xf32>
    %2 = tpu.matmul %0, %1, %cst {dimension_numbers = #tpu.dot_dimension_numbers<[1], [0], [0], [1], [0, 0, 1, 1], [], []>} : vector<128x128xbf16>, vector<128x128xbf16>, vector<128x128xf32> -> vector<128x128xf32>
    %c0_3 = arith.constant 0 : index
    %c0_4 = arith.constant 0 : index
    %3 = vector.load %arg3[%c0_3, %c0_4] : memref<1x128xf32, #tpu.memory_space<vmem>>, vector<1x128xf32>
    %4 = vector.broadcast %3 : vector<1x128xf32> to vector<128x128xf32>
    %5 = arith.mulf %2, %4 : vector<128x128xf32>
    %c0_5 = arith.constant 0 : index
    %c0_6 = arith.constant 0 : index
    %6 = vector.load %arg4[%c0_5, %c0_6] : memref<1x128xf32, #tpu.memory_space<vmem>>, vector<1x128xf32>
    %7 = vector.broadcast %6 : vector<1x128xf32> to vector<128x128xf32>
    %8 = arith.addf %5, %7 : vector<128x128xf32>
    %cst_7 = arith.constant 0.000000e+00 : f32
    %9 = vector.broadcast %cst_7 : f32 to vector<128x128xf32>
    %10 = arith.maximumf %8, %9 : vector<128x128xf32>
    %11 = arith.truncf %10 : vector<128x128xf32> to vector<128x128xbf16>
    %c0_8 = arith.constant 0 : index
    %c0_9 = arith.constant 0 : index
    %12 = vector.load %arg5[%c0_8, %c0_9] : memref<128x128xbf16, #tpu.memory_space<vmem>>, vector<128x128xbf16>
    tpu.vector_store %arg5[%c0_8, %c0_9], %11 {strides = array<i32>} : memref<128x128xbf16, #tpu.memory_space<vmem>>, vector<128x128xbf16>,
    return
  }
  func.func @transform_0(%arg0: i32) -> (i32, i32) {
    %c0_i32 = arith.constant 0 : i32
    %c0_i32_0 = arith.constant 0 : i32
    return %arg0, %c0_i32 : i32, i32
  }
  func.func @transform_1(%arg0: i32) -> (i32, i32) {
    %c0_i32 = arith.constant 0 : i32
    %c0_i32_0 = arith.constant 0 : i32
    %c0_i32_1 = arith.constant 0 : i32
    return %c0_i32, %c0_i32_0 : i32, i32
  }
  func.func @transform_2(%arg0: i32) -> (i32, i32) {
    %c0_i32 = arith.constant 0 : i32
    %c0_i32_0 = arith.constant 0 : i32
    %c0_i32_1 = arith.constant 0 : i32
    return %c0_i32, %c0_i32_0 : i32, i32
  }
  func.func @transform_3(%arg0: i32) -> (i32, i32) {
    %c0_i32 = arith.constant 0 : i32
    %c0_i32_0 = arith.constant 0 : i32
    %c0_i32_1 = arith.constant 0 : i32
    return %c0_i32, %c0_i32_0 : i32, i32
  }
  func.func @transform_4(%arg0: i32) -> (i32, i32) {
    %c0_i32 = arith.constant 0 : i32
    %c0_i32_0 = arith.constant 0 : i32
    return %arg0, %c0_i32 : i32, i32
  }
}

module attributes {stable_mosaic.version = 11 : i64} {
  func.func @_conv_bn_kernel(%arg0: i32, %arg1: memref<8x1152xbf16, #tpu.memory_space<vmem>>, %arg2: memref<1152x128xbf16, #tpu.memory_space<vmem>>, %arg3: memref<1x128xf32, #tpu.memory_space<vmem>>, %arg4: memref<1x128xf32, #tpu.memory_space<vmem>>, %arg5: memref<8x128xbf16, #tpu.memory_space<vmem>>) attributes {dimension_semantics = [#tpu.dimension_semantics<parallel>], iteration_bounds = array<i64: 1>, scalar_prefetch = 0 : i64, scratch_operands = 0 : i64, tpu.core_type = #tpu.core_type<tc>, window_params = [{transform_indices = @transform_0, window_bounds = array<i64: 8, 1152>}, {pipeline_mode = #tpu.pipeline_mode<synchronous>, transform_indices = @transform_1, window_bounds = array<i64: 1152, 128>}, {pipeline_mode = #tpu.pipeline_mode<synchronous>, transform_indices = @transform_2, window_bounds = array<i64: 1, 128>}, {pipeline_mode = #tpu.pipeline_mode<synchronous>, transform_indices = @transform_3, window_bounds = array<i64: 1, 128>}, {transform_indices = @transform_4, window_bounds = array<i64: 8, 128>}]} {
    %c0 = arith.constant 0 : index
    %c0_0 = arith.constant 0 : index
    %0 = vector.load %arg1[%c0, %c0_0] : memref<8x1152xbf16, #tpu.memory_space<vmem>>, vector<8x1152xbf16>
    %c0_1 = arith.constant 0 : index
    %c0_2 = arith.constant 0 : index
    %1 = vector.load %arg2[%c0_1, %c0_2] : memref<1152x128xbf16, #tpu.memory_space<vmem>>, vector<1152x128xbf16>
    %cst = arith.constant dense<0.000000e+00> : vector<8x128xf32>
    %2 = tpu.matmul %0, %1, %cst {dimension_numbers = #tpu.dot_dimension_numbers<[1], [0], [0], [1], [0, 0, 1, 1], [], []>} : vector<8x1152xbf16>, vector<1152x128xbf16>, vector<8x128xf32> -> vector<8x128xf32>
    %c0_3 = arith.constant 0 : index
    %c0_4 = arith.constant 0 : index
    %3 = vector.load %arg3[%c0_3, %c0_4] : memref<1x128xf32, #tpu.memory_space<vmem>>, vector<1x128xf32>
    %4 = vector.broadcast %3 : vector<1x128xf32> to vector<8x128xf32>
    %5 = arith.mulf %2, %4 : vector<8x128xf32>
    %c0_5 = arith.constant 0 : index
    %c0_6 = arith.constant 0 : index
    %6 = vector.load %arg4[%c0_5, %c0_6] : memref<1x128xf32, #tpu.memory_space<vmem>>, vector<1x128xf32>
    %7 = vector.broadcast %6 : vector<1x128xf32> to vector<8x128xf32>
    %8 = arith.addf %5, %7 : vector<8x128xf32>
    %cst_7 = arith.constant 0.000000e+00 : f32
    %9 = vector.broadcast %cst_7 : f32 to vector<8x128xf32>
    %10 = arith.maximumf %8, %9 : vector<8x128xf32>
    %11 = arith.truncf %10 : vector<8x128xf32> to vector<8x128xbf16>
    %c0_8 = arith.constant 0 : index
    %c0_9 = arith.constant 0 : index
    %12 = vector.load %arg5[%c0_8, %c0_9] : memref<8x128xbf16, #tpu.memory_space<vmem>>, vector<8x128xbf16>
    tpu.vector_store %arg5[%c0_8, %c0_9], %11 {strides = array<i32>} : memref<8x128xbf16, #tpu.memory_space<vmem>>, vector<8x128xbf16>,
    return
  }
  func.func @transform_0(%arg0: i32) -> (i32, i32) {
    %c0_i32 = arith.constant 0 : i32
    %c0_i32_0 = arith.constant 0 : i32
    return %arg0, %c0_i32 : i32, i32
  }
  func.func @transform_1(%arg0: i32) -> (i32, i32) {
    %c0_i32 = arith.constant 0 : i32
    %c0_i32_0 = arith.constant 0 : i32
    %c0_i32_1 = arith.constant 0 : i32
    return %c0_i32, %c0_i32_0 : i32, i32
  }
  func.func @transform_2(%arg0: i32) -> (i32, i32) {
    %c0_i32 = arith.constant 0 : i32
    %c0_i32_0 = arith.constant 0 : i32
    %c0_i32_1 = arith.constant 0 : i32
    return %c0_i32, %c0_i32_0 : i32, i32
  }
  func.func @transform_3(%arg0: i32) -> (i32, i32) {
    %c0_i32 = arith.constant 0 : i32
    %c0_i32_0 = arith.constant 0 : i32
    %c0_i32_1 = arith.constant 0 : i32
    return %c0_i32, %c0_i32_0 : i32, i32
  }
  func.func @transform_4(%arg0: i32) -> (i32, i32) {
    %c0_i32 = arith.constant 0 : i32
    %c0_i32_0 = arith.constant 0 : i32
    return %arg0, %c0_i32 : i32, i32
  }
}

module attributes {stable_mosaic.version = 11 : i64} {
  func.func @_resize_matmul_kernel(%arg0: i32, %arg1: i32, %arg2: memref<64x4xbf16, #tpu.memory_space<vmem>>, %arg3: memref<1x4x128xbf16, #tpu.memory_space<vmem>>, %arg4: memref<1x64x128xbf16, #tpu.memory_space<vmem>>) attributes {dimension_semantics = [#tpu.dimension_semantics<parallel>, #tpu.dimension_semantics<parallel>], iteration_bounds = array<i64: 2, 1>, scalar_prefetch = 0 : i64, scratch_operands = 0 : i64, tpu.core_type = #tpu.core_type<tc>, window_params = [{transform_indices = @transform_0, window_bounds = array<i64: 64, 4>}, {transform_indices = @transform_1, window_bounds = array<i64: 1, 4, 128>}, {transform_indices = @transform_2, window_bounds = array<i64: 1, 64, 128>}]} {
    %c0 = arith.constant 0 : index
    %c0_0 = arith.constant 0 : index
    %0 = vector.load %arg2[%c0, %c0_0] : memref<64x4xbf16, #tpu.memory_space<vmem>>, vector<64x4xbf16>
    %c0_1 = arith.constant 0 : index
    %c0_2 = arith.constant 0 : index
    %c0_3 = arith.constant 0 : index
    %1 = vector.load %arg3[%c0_1, %c0_2, %c0_3] : memref<1x4x128xbf16, #tpu.memory_space<vmem>>, vector<1x4x128xbf16>
    %2 = vector.shape_cast %1 : vector<1x4x128xbf16> to vector<4x128xbf16>
    %cst = arith.constant dense<0.000000e+00> : vector<64x128xf32>
    %3 = tpu.matmul %0, %2, %cst {dimension_numbers = #tpu.dot_dimension_numbers<[1], [0], [0], [1], [0, 0, 1, 1], [], []>} : vector<64x4xbf16>, vector<4x128xbf16>, vector<64x128xf32> -> vector<64x128xf32>
    %4 = arith.truncf %3 : vector<64x128xf32> to vector<64x128xbf16>
    %c0_4 = arith.constant 0 : index
    %c0_5 = arith.constant 0 : index
    %c0_6 = arith.constant 0 : index
    %5 = vector.load %arg4[%c0_4, %c0_5, %c0_6] : memref<1x64x128xbf16, #tpu.memory_space<vmem>>, vector<1x64x128xbf16>
    %6 = vector.shape_cast %5 : vector<1x64x128xbf16> to vector<64x128xbf16>
    %7 = vector.shape_cast %4 : vector<64x128xbf16> to vector<1x64x128xbf16>
    tpu.vector_store %arg4[%c0_4, %c0_5, %c0_6], %7 {strides = array<i32>} : memref<1x64x128xbf16, #tpu.memory_space<vmem>>, vector<1x64x128xbf16>,
    return
  }
  func.func @transform_0(%arg0: i32, %arg1: i32) -> (i32, i32) {
    %c0_i32 = arith.constant 0 : i32
    %c0_i32_0 = arith.constant 0 : i32
    return %arg1, %c0_i32 : i32, i32
  }
  func.func @transform_1(%arg0: i32, %arg1: i32) -> (i32, i32, i32) {
    %c0_i32 = arith.constant 0 : i32
    %c0_i32_0 = arith.constant 0 : i32
    %c0_i32_1 = arith.constant 0 : i32
    return %arg0, %c0_i32, %c0_i32_0 : i32, i32, i32
  }
  func.func @transform_2(%arg0: i32, %arg1: i32) -> (i32, i32, i32) {
    %c0_i32 = arith.constant 0 : i32
    %c0_i32_0 = arith.constant 0 : i32
    return %arg0, %arg1, %c0_i32 : i32, i32, i32
  }
}

module attributes {stable_mosaic.version = 11 : i64} {
  func.func @_fused_aspp_kernel(%arg0: memref<8x128xbf16, #tpu.memory_space<vmem>>, %arg1: memref<8x128xbf16, #tpu.memory_space<vmem>>, %arg2: memref<5x128x128xbf16, #tpu.memory_space<vmem>>, %arg3: memref<5x1x128xf32, #tpu.memory_space<vmem>>, %arg4: memref<5x1x128xf32, #tpu.memory_space<vmem>>, %arg5: memref<5x128x128xbf16, #tpu.memory_space<vmem>>, %arg6: memref<1x128xf32, #tpu.memory_space<vmem>>, %arg7: memref<1x128xf32, #tpu.memory_space<vmem>>, %arg8: memref<8x128xbf16, #tpu.memory_space<vmem>>) attributes {dimension_semantics = [], scalar_prefetch = 0 : i64, scratch_operands = 0 : i64, tpu.core_type = #tpu.core_type<tc>} {
    %c0 = arith.constant 0 : index
    %c0_0 = arith.constant 0 : index
    %0 = vector.load %arg0[%c0, %c0_0] : memref<8x128xbf16, #tpu.memory_space<vmem>>, vector<8x128xbf16>
    %c0_1 = arith.constant 0 : index
    %c0_2 = arith.constant 0 : index
    %1 = vector.load %arg1[%c0_1, %c0_2] : memref<8x128xbf16, #tpu.memory_space<vmem>>, vector<8x128xbf16>
    %cst = arith.constant 0.000000e+00 : f32
    %2 = vector.broadcast %cst : f32 to vector<8x128xf32>
    %c0_3 = arith.constant 0 : index
    %c0_4 = arith.constant 0 : index
    %c0_5 = arith.constant 0 : index
    %3 = vector.load %arg2[%c0_3, %c0_4, %c0_5] : memref<5x128x128xbf16, #tpu.memory_space<vmem>>, vector<1x128x128xbf16>
    %4 = vector.shape_cast %3 : vector<1x128x128xbf16> to vector<128x128xbf16>
    %cst_6 = arith.constant dense<0.000000e+00> : vector<8x128xf32>
    %5 = tpu.matmul %0, %4, %cst_6 {dimension_numbers = #tpu.dot_dimension_numbers<[1], [0], [0], [1], [0, 0, 1, 1], [], []>} : vector<8x128xbf16>, vector<128x128xbf16>, vector<8x128xf32> -> vector<8x128xf32>
    %c0_7 = arith.constant 0 : index
    %c0_8 = arith.constant 0 : index
    %c0_9 = arith.constant 0 : index
    %6 = vector.load %arg3[%c0_7, %c0_8, %c0_9] : memref<5x1x128xf32, #tpu.memory_space<vmem>>, vector<1x1x128xf32>
    %7 = vector.shape_cast %6 : vector<1x1x128xf32> to vector<1x128xf32>
    %8 = vector.broadcast %7 : vector<1x128xf32> to vector<8x128xf32>
    %9 = arith.mulf %5, %8 : vector<8x128xf32>
    %c0_10 = arith.constant 0 : index
    %c0_11 = arith.constant 0 : index
    %c0_12 = arith.constant 0 : index
    %10 = vector.load %arg4[%c0_10, %c0_11, %c0_12] : memref<5x1x128xf32, #tpu.memory_space<vmem>>, vector<1x1x128xf32>
    %11 = vector.shape_cast %10 : vector<1x1x128xf32> to vector<1x128xf32>
    %12 = vector.broadcast %11 : vector<1x128xf32> to vector<8x128xf32>
    %13 = arith.addf %9, %12 : vector<8x128xf32>
    %cst_13 = arith.constant 0.000000e+00 : f32
    %14 = vector.broadcast %cst_13 : f32 to vector<8x128xf32>
    %15 = arith.maximumf %13, %14 : vector<8x128xf32>
    %16 = arith.truncf %15 : vector<8x128xf32> to vector<8x128xbf16>
    %c0_14 = arith.constant 0 : index
    %c0_15 = arith.constant 0 : index
    %c0_16 = arith.constant 0 : index
    %17 = vector.load %arg5[%c0_14, %c0_15, %c0_16] : memref<5x128x128xbf16, #tpu.memory_space<vmem>>, vector<1x128x128xbf16>
    %18 = vector.shape_cast %17 : vector<1x128x128xbf16> to vector<128x128xbf16>
    %cst_17 = arith.constant dense<0.000000e+00> : vector<8x128xf32>
    %19 = tpu.matmul %16, %18, %cst_17 {dimension_numbers = #tpu.dot_dimension_numbers<[1], [0], [0], [1], [0, 0, 1, 1], [], []>} : vector<8x128xbf16>, vector<128x128xbf16>, vector<8x128xf32> -> vector<8x128xf32>
    %20 = arith.addf %2, %19 : vector<8x128xf32>
    %c1 = arith.constant 1 : index
    %c0_18 = arith.constant 0 : index
    %c0_19 = arith.constant 0 : index
    %21 = vector.load %arg2[%c1, %c0_18, %c0_19] : memref<5x128x128xbf16, #tpu.memory_space<vmem>>, vector<1x128x128xbf16>
    %22 = vector.shape_cast %21 : vector<1x128x128xbf16> to vector<128x128xbf16>
    %cst_20 = arith.constant dense<0.000000e+00> : vector<8x128xf32>
    %23 = tpu.matmul %0, %22, %cst_20 {dimension_numbers = #tpu.dot_dimension_numbers<[1], [0], [0], [1], [0, 0, 1, 1], [], []>} : vector<8x128xbf16>, vector<128x128xbf16>, vector<8x128xf32> -> vector<8x128xf32>
    %c1_21 = arith.constant 1 : index
    %c0_22 = arith.constant 0 : index
    %c0_23 = arith.constant 0 : index
    %24 = vector.load %arg3[%c1_21, %c0_22, %c0_23] : memref<5x1x128xf32, #tpu.memory_space<vmem>>, vector<1x1x128xf32>
    %25 = vector.shape_cast %24 : vector<1x1x128xf32> to vector<1x128xf32>
    %26 = vector.broadcast %25 : vector<1x128xf32> to vector<8x128xf32>
    %27 = arith.mulf %23, %26 : vector<8x128xf32>
    %c1_24 = arith.constant 1 : index
    %c0_25 = arith.constant 0 : index
    %c0_26 = arith.constant 0 : index
    %28 = vector.load %arg4[%c1_24, %c0_25, %c0_26] : memref<5x1x128xf32, #tpu.memory_space<vmem>>, vector<1x1x128xf32>
    %29 = vector.shape_cast %28 : vector<1x1x128xf32> to vector<1x128xf32>
    %30 = vector.broadcast %29 : vector<1x128xf32> to vector<8x128xf32>
    %31 = arith.addf %27, %30 : vector<8x128xf32>
    %cst_27 = arith.constant 0.000000e+00 : f32
    %32 = vector.broadcast %cst_27 : f32 to vector<8x128xf32>
    %33 = arith.maximumf %31, %32 : vector<8x128xf32>
    %34 = arith.truncf %33 : vector<8x128xf32> to vector<8x128xbf16>
    %c1_28 = arith.constant 1 : index
    %c0_29 = arith.constant 0 : index
    %c0_30 = arith.constant 0 : index
    %35 = vector.load %arg5[%c1_28, %c0_29, %c0_30] : memref<5x128x128xbf16, #tpu.memory_space<vmem>>, vector<1x128x128xbf16>
    %36 = vector.shape_cast %35 : vector<1x128x128xbf16> to vector<128x128xbf16>
    %cst_31 = arith.constant dense<0.000000e+00> : vector<8x128xf32>
    %37 = tpu.matmul %34, %36, %cst_31 {dimension_numbers = #tpu.dot_dimension_numbers<[1], [0], [0], [1], [0, 0, 1, 1], [], []>} : vector<8x128xbf16>, vector<128x128xbf16>, vector<8x128xf32> -> vector<8x128xf32>
    %38 = arith.addf %20, %37 : vector<8x128xf32>
    %c2 = arith.constant 2 : index
    %c0_32 = arith.constant 0 : index
    %c0_33 = arith.constant 0 : index
    %39 = vector.load %arg2[%c2, %c0_32, %c0_33] : memref<5x128x128xbf16, #tpu.memory_space<vmem>>, vector<1x128x128xbf16>
    %40 = vector.shape_cast %39 : vector<1x128x128xbf16> to vector<128x128xbf16>
    %cst_34 = arith.constant dense<0.000000e+00> : vector<8x128xf32>
    %41 = tpu.matmul %0, %40, %cst_34 {dimension_numbers = #tpu.dot_dimension_numbers<[1], [0], [0], [1], [0, 0, 1, 1], [], []>} : vector<8x128xbf16>, vector<128x128xbf16>, vector<8x128xf32> -> vector<8x128xf32>
    %c2_35 = arith.constant 2 : index
    %c0_36 = arith.constant 0 : index
    %c0_37 = arith.constant 0 : index
    %42 = vector.load %arg3[%c2_35, %c0_36, %c0_37] : memref<5x1x128xf32, #tpu.memory_space<vmem>>, vector<1x1x128xf32>
    %43 = vector.shape_cast %42 : vector<1x1x128xf32> to vector<1x128xf32>
    %44 = vector.broadcast %43 : vector<1x128xf32> to vector<8x128xf32>
    %45 = arith.mulf %41, %44 : vector<8x128xf32>
    %c2_38 = arith.constant 2 : index
    %c0_39 = arith.constant 0 : index
    %c0_40 = arith.constant 0 : index
    %46 = vector.load %arg4[%c2_38, %c0_39, %c0_40] : memref<5x1x128xf32, #tpu.memory_space<vmem>>, vector<1x1x128xf32>
    %47 = vector.shape_cast %46 : vector<1x1x128xf32> to vector<1x128xf32>
    %48 = vector.broadcast %47 : vector<1x128xf32> to vector<8x128xf32>
    %49 = arith.addf %45, %48 : vector<8x128xf32>
    %cst_41 = arith.constant 0.000000e+00 : f32
    %50 = vector.broadcast %cst_41 : f32 to vector<8x128xf32>
    %51 = arith.maximumf %49, %50 : vector<8x128xf32>
    %52 = arith.truncf %51 : vector<8x128xf32> to vector<8x128xbf16>
    %c2_42 = arith.constant 2 : index
    %c0_43 = arith.constant 0 : index
    %c0_44 = arith.constant 0 : index
    %53 = vector.load %arg5[%c2_42, %c0_43, %c0_44] : memref<5x128x128xbf16, #tpu.memory_space<vmem>>, vector<1x128x128xbf16>
    %54 = vector.shape_cast %53 : vector<1x128x128xbf16> to vector<128x128xbf16>
    %cst_45 = arith.constant dense<0.000000e+00> : vector<8x128xf32>
    %55 = tpu.matmul %52, %54, %cst_45 {dimension_numbers = #tpu.dot_dimension_numbers<[1], [0], [0], [1], [0, 0, 1, 1], [], []>} : vector<8x128xbf16>, vector<128x128xbf16>, vector<8x128xf32> -> vector<8x128xf32>
    %56 = arith.addf %38, %55 : vector<8x128xf32>
    %c3 = arith.constant 3 : index
    %c0_46 = arith.constant 0 : index
    %c0_47 = arith.constant 0 : index
    %57 = vector.load %arg2[%c3, %c0_46, %c0_47] : memref<5x128x128xbf16, #tpu.memory_space<vmem>>, vector<1x128x128xbf16>
    %58 = vector.shape_cast %57 : vector<1x128x128xbf16> to vector<128x128xbf16>
    %cst_48 = arith.constant dense<0.000000e+00> : vector<8x128xf32>
    %59 = tpu.matmul %0, %58, %cst_48 {dimension_numbers = #tpu.dot_dimension_numbers<[1], [0], [0], [1], [0, 0, 1, 1], [], []>} : vector<8x128xbf16>, vector<128x128xbf16>, vector<8x128xf32> -> vector<8x128xf32>
    %c3_49 = arith.constant 3 : index
    %c0_50 = arith.constant 0 : index
    %c0_51 = arith.constant 0 : index
    %60 = vector.load %arg3[%c3_49, %c0_50, %c0_51] : memref<5x1x128xf32, #tpu.memory_space<vmem>>, vector<1x1x128xf32>
    %61 = vector.shape_cast %60 : vector<1x1x128xf32> to vector<1x128xf32>
    %62 = vector.broadcast %61 : vector<1x128xf32> to vector<8x128xf32>
    %63 = arith.mulf %59, %62 : vector<8x128xf32>
    %c3_52 = arith.constant 3 : index
    %c0_53 = arith.constant 0 : index
    %c0_54 = arith.constant 0 : index
    %64 = vector.load %arg4[%c3_52, %c0_53, %c0_54] : memref<5x1x128xf32, #tpu.memory_space<vmem>>, vector<1x1x128xf32>
    %65 = vector.shape_cast %64 : vector<1x1x128xf32> to vector<1x128xf32>
    %66 = vector.broadcast %65 : vector<1x128xf32> to vector<8x128xf32>
    %67 = arith.addf %63, %66 : vector<8x128xf32>
    %cst_55 = arith.constant 0.000000e+00 : f32
    %68 = vector.broadcast %cst_55 : f32 to vector<8x128xf32>
    %69 = arith.maximumf %67, %68 : vector<8x128xf32>
    %70 = arith.truncf %69 : vector<8x128xf32> to vector<8x128xbf16>
    %c3_56 = arith.constant 3 : index
    %c0_57 = arith.constant 0 : index
    %c0_58 = arith.constant 0 : index
    %71 = vector.load %arg5[%c3_56, %c0_57, %c0_58] : memref<5x128x128xbf16, #tpu.memory_space<vmem>>, vector<1x128x128xbf16>
    %72 = vector.shape_cast %71 : vector<1x128x128xbf16> to vector<128x128xbf16>
    %cst_59 = arith.constant dense<0.000000e+00> : vector<8x128xf32>
    %73 = tpu.matmul %70, %72, %cst_59 {dimension_numbers = #tpu.dot_dimension_numbers<[1], [0], [0], [1], [0, 0, 1, 1], [], []>} : vector<8x128xbf16>, vector<128x128xbf16>, vector<8x128xf32> -> vector<8x128xf32>
    %74 = arith.addf %56, %73 : vector<8x128xf32>
    %c4 = arith.constant 4 : index
    %c0_60 = arith.constant 0 : index
    %c0_61 = arith.constant 0 : index
    %75 = vector.load %arg2[%c4, %c0_60, %c0_61] : memref<5x128x128xbf16, #tpu.memory_space<vmem>>, vector<1x128x128xbf16>
    %76 = vector.shape_cast %75 : vector<1x128x128xbf16> to vector<128x128xbf16>
    %cst_62 = arith.constant dense<0.000000e+00> : vector<8x128xf32>
    %77 = tpu.matmul %1, %76, %cst_62 {dimension_numbers = #tpu.dot_dimension_numbers<[1], [0], [0], [1], [0, 0, 1, 1], [], []>} : vector<8x128xbf16>, vector<128x128xbf16>, vector<8x128xf32> -> vector<8x128xf32>
    %c4_63 = arith.constant 4 : index
    %c0_64 = arith.constant 0 : index
    %c0_65 = arith.constant 0 : index
    %78 = vector.load %arg3[%c4_63, %c0_64, %c0_65] : memref<5x1x128xf32, #tpu.memory_space<vmem>>, vector<1x1x128xf32>
    %79 = vector.shape_cast %78 : vector<1x1x128xf32> to vector<1x128xf32>
    %80 = vector.broadcast %79 : vector<1x128xf32> to vector<8x128xf32>
    %81 = arith.mulf %77, %80 : vector<8x128xf32>
    %c4_66 = arith.constant 4 : index
    %c0_67 = arith.constant 0 : index
    %c0_68 = arith.constant 0 : index
    %82 = vector.load %arg4[%c4_66, %c0_67, %c0_68] : memref<5x1x128xf32, #tpu.memory_space<vmem>>, vector<1x1x128xf32>
    %83 = vector.shape_cast %82 : vector<1x1x128xf32> to vector<1x128xf32>
    %84 = vector.broadcast %83 : vector<1x128xf32> to vector<8x128xf32>
    %85 = arith.addf %81, %84 : vector<8x128xf32>
    %cst_69 = arith.constant 0.000000e+00 : f32
    %86 = vector.broadcast %cst_69 : f32 to vector<8x128xf32>
    %87 = arith.maximumf %85, %86 : vector<8x128xf32>
    %88 = arith.truncf %87 : vector<8x128xf32> to vector<8x128xbf16>
    %c4_70 = arith.constant 4 : index
    %c0_71 = arith.constant 0 : index
    %c0_72 = arith.constant 0 : index
    %89 = vector.load %arg5[%c4_70, %c0_71, %c0_72] : memref<5x128x128xbf16, #tpu.memory_space<vmem>>, vector<1x128x128xbf16>
    %90 = vector.shape_cast %89 : vector<1x128x128xbf16> to vector<128x128xbf16>
    %cst_73 = arith.constant dense<0.000000e+00> : vector<8x128xf32>
    %91 = tpu.matmul %88, %90, %cst_73 {dimension_numbers = #tpu.dot_dimension_numbers<[1], [0], [0], [1], [0, 0, 1, 1], [], []>} : vector<8x128xbf16>, vector<128x128xbf16>, vector<8x128xf32> -> vector<8x128xf32>
    %92 = arith.addf %74, %91 : vector<8x128xf32>
    %c0_74 = arith.constant 0 : index
    %c0_75 = arith.constant 0 : index
    %93 = vector.load %arg6[%c0_74, %c0_75] : memref<1x128xf32, #tpu.memory_space<vmem>>, vector<1x128xf32>
    %94 = vector.broadcast %93 : vector<1x128xf32> to vector<8x128xf32>
    %95 = arith.mulf %92, %94 : vector<8x128xf32>
    %c0_76 = arith.constant 0 : index
    %c0_77 = arith.constant 0 : index
    %96 = vector.load %arg7[%c0_76, %c0_77] : memref<1x128xf32, #tpu.memory_space<vmem>>, vector<1x128xf32>
    %97 = vector.broadcast %96 : vector<1x128xf32> to vector<8x128xf32>
    %98 = arith.addf %95, %97 : vector<8x128xf32>
    %cst_78 = arith.constant 0.000000e+00 : f32
    %99 = vector.broadcast %cst_78 : f32 to vector<8x128xf32>
    %100 = arith.maximumf %98, %99 : vector<8x128xf32>
    %101 = arith.truncf %100 : vector<8x128xf32> to vector<8x128xbf16>
    %c0_79 = arith.constant 0 : index
    %c0_80 = arith.constant 0 : index
    %102 = vector.load %arg8[%c0_79, %c0_80] : memref<8x128xbf16, #tpu.memory_space<vmem>>, vector<8x128xbf16>
    tpu.vector_store %arg8[%c0_79, %c0_80], %101 {strides = array<i32>} : memref<8x128xbf16, #tpu.memory_space<vmem>>, vector<8x128xbf16>,
    return
  }
}

module attributes {stable_mosaic.version = 11 : i64} {
  func.func @_resize_matmul_kernel(%arg0: i32, %arg1: i32, %arg2: memref<512x64xbf16, #tpu.memory_space<vmem>>, %arg3: memref<1x64x128xbf16, #tpu.memory_space<vmem>>, %arg4: memref<1x512x128xf32, #tpu.memory_space<vmem>>) attributes {dimension_semantics = [#tpu.dimension_semantics<parallel>, #tpu.dimension_semantics<parallel>], iteration_bounds = array<i64: 2, 2>, scalar_prefetch = 0 : i64, scratch_operands = 0 : i64, tpu.core_type = #tpu.core_type<tc>, window_params = [{transform_indices = @transform_0, window_bounds = array<i64: 512, 64>}, {transform_indices = @transform_1, window_bounds = array<i64: 1, 64, 128>}, {transform_indices = @transform_2, window_bounds = array<i64: 1, 512, 128>}]} {
    %c0 = arith.constant 0 : index
    %c0_0 = arith.constant 0 : index
    %0 = vector.load %arg2[%c0, %c0_0] : memref<512x64xbf16, #tpu.memory_space<vmem>>, vector<512x64xbf16>
    %c0_1 = arith.constant 0 : index
    %c0_2 = arith.constant 0 : index
    %c0_3 = arith.constant 0 : index
    %1 = vector.load %arg3[%c0_1, %c0_2, %c0_3] : memref<1x64x128xbf16, #tpu.memory_space<vmem>>, vector<1x64x128xbf16>
    %2 = vector.shape_cast %1 : vector<1x64x128xbf16> to vector<64x128xbf16>
    %cst = arith.constant dense<0.000000e+00> : vector<512x128xf32>
    %3 = tpu.matmul %0, %2, %cst {dimension_numbers = #tpu.dot_dimension_numbers<[1], [0], [0], [1], [0, 0, 1, 1], [], []>} : vector<512x64xbf16>, vector<64x128xbf16>, vector<512x128xf32> -> vector<512x128xf32>
    %c0_4 = arith.constant 0 : index
    %c0_5 = arith.constant 0 : index
    %c0_6 = arith.constant 0 : index
    %4 = vector.load %arg4[%c0_4, %c0_5, %c0_6] : memref<1x512x128xf32, #tpu.memory_space<vmem>>, vector<1x512x128xf32>
    %5 = vector.shape_cast %4 : vector<1x512x128xf32> to vector<512x128xf32>
    %6 = vector.shape_cast %3 : vector<512x128xf32> to vector<1x512x128xf32>
    tpu.vector_store %arg4[%c0_4, %c0_5, %c0_6], %6 {strides = array<i32>} : memref<1x512x128xf32, #tpu.memory_space<vmem>>, vector<1x512x128xf32>,
    return
  }
  func.func @transform_0(%arg0: i32, %arg1: i32) -> (i32, i32) {
    %c0_i32 = arith.constant 0 : i32
    %c0_i32_0 = arith.constant 0 : i32
    return %arg1, %c0_i32 : i32, i32
  }
  func.func @transform_1(%arg0: i32, %arg1: i32) -> (i32, i32, i32) {
    %c0_i32 = arith.constant 0 : i32
    %c0_i32_0 = arith.constant 0 : i32
    %c0_i32_1 = arith.constant 0 : i32
    return %arg0, %c0_i32, %c0_i32_0 : i32, i32, i32
  }
  func.func @transform_2(%arg0: i32, %arg1: i32) -> (i32, i32, i32) {
    %c0_i32 = arith.constant 0 : i32
    %c0_i32_0 = arith.constant 0 : i32
    return %arg0, %arg1, %c0_i32 : i32, i32, i32
  }
}

module attributes {stable_mosaic.version = 11 : i64} {
  func.func @_conv_conv1x1_kernel(%arg0: i32, %arg1: memref<128x1152xbf16, #tpu.memory_space<vmem>>, %arg2: memref<1152x128xbf16, #tpu.memory_space<vmem>>, %arg3: memref<1x128xf32, #tpu.memory_space<vmem>>, %arg4: memref<1x128xf32, #tpu.memory_space<vmem>>, %arg5: memref<128x128xbf16, #tpu.memory_space<vmem>>, %arg6: memref<1x128xf32, #tpu.memory_space<vmem>>, %arg7: memref<1x128xf32, #tpu.memory_space<vmem>>, %arg8: memref<128x128xbf16, #tpu.memory_space<vmem>>) attributes {dimension_semantics = [#tpu.dimension_semantics<parallel>], iteration_bounds = array<i64: 1>, scalar_prefetch = 0 : i64, scratch_operands = 0 : i64, tpu.core_type = #tpu.core_type<tc>, window_params = [{transform_indices = @transform_0, window_bounds = array<i64: 128, 1152>}, {pipeline_mode = #tpu.pipeline_mode<synchronous>, transform_indices = @transform_1, window_bounds = array<i64: 1152, 128>}, {pipeline_mode = #tpu.pipeline_mode<synchronous>, transform_indices = @transform_2, window_bounds = array<i64: 1, 128>}, {pipeline_mode = #tpu.pipeline_mode<synchronous>, transform_indices = @transform_3, window_bounds = array<i64: 1, 128>}, {pipeline_mode = #tpu.pipeline_mode<synchronous>, transform_indices = @transform_4, window_bounds = array<i64: 128, 128>}, {pipeline_mode = #tpu.pipeline_mode<synchronous>, transform_indices = @transform_5, window_bounds = array<i64: 1, 128>}, {pipeline_mode = #tpu.pipeline_mode<synchronous>, transform_indices = @transform_6, window_bounds = array<i64: 1, 128>}, {transform_indices = @transform_7, window_bounds = array<i64: 128, 128>}]} {
    %c0 = arith.constant 0 : index
    %c0_0 = arith.constant 0 : index
    %0 = vector.load %arg1[%c0, %c0_0] : memref<128x1152xbf16, #tpu.memory_space<vmem>>, vector<128x1152xbf16>
    %c0_1 = arith.constant 0 : index
    %c0_2 = arith.constant 0 : index
    %1 = vector.load %arg2[%c0_1, %c0_2] : memref<1152x128xbf16, #tpu.memory_space<vmem>>, vector<1152x128xbf16>
    %cst = arith.constant dense<0.000000e+00> : vector<128x128xf32>
    %2 = tpu.matmul %0, %1, %cst {dimension_numbers = #tpu.dot_dimension_numbers<[1], [0], [0], [1], [0, 0, 1, 1], [], []>} : vector<128x1152xbf16>, vector<1152x128xbf16>, vector<128x128xf32> -> vector<128x128xf32>
    %c0_3 = arith.constant 0 : index
    %c0_4 = arith.constant 0 : index
    %3 = vector.load %arg3[%c0_3, %c0_4] : memref<1x128xf32, #tpu.memory_space<vmem>>, vector<1x128xf32>
    %4 = vector.broadcast %3 : vector<1x128xf32> to vector<128x128xf32>
    %5 = arith.mulf %2, %4 : vector<128x128xf32>
    %c0_5 = arith.constant 0 : index
    %c0_6 = arith.constant 0 : index
    %6 = vector.load %arg4[%c0_5, %c0_6] : memref<1x128xf32, #tpu.memory_space<vmem>>, vector<1x128xf32>
    %7 = vector.broadcast %6 : vector<1x128xf32> to vector<128x128xf32>
    %8 = arith.addf %5, %7 : vector<128x128xf32>
    %cst_7 = arith.constant 0.000000e+00 : f32
    %9 = vector.broadcast %cst_7 : f32 to vector<128x128xf32>
    %10 = arith.maximumf %8, %9 : vector<128x128xf32>
    %11 = arith.truncf %10 : vector<128x128xf32> to vector<128x128xbf16>
    %c0_8 = arith.constant 0 : index
    %c0_9 = arith.constant 0 : index
    %12 = vector.load %arg5[%c0_8, %c0_9] : memref<128x128xbf16, #tpu.memory_space<vmem>>, vector<128x128xbf16>
    %cst_10 = arith.constant dense<0.000000e+00> : vector<128x128xf32>
    %13 = tpu.matmul %11, %12, %cst_10 {dimension_numbers = #tpu.dot_dimension_numbers<[1], [0], [0], [1], [0, 0, 1, 1], [], []>} : vector<128x128xbf16>, vector<128x128xbf16>, vector<128x128xf32> -> vector<128x128xf32>
    %c0_11 = arith.constant 0 : index
    %c0_12 = arith.constant 0 : index
    %14 = vector.load %arg6[%c0_11, %c0_12] : memref<1x128xf32, #tpu.memory_space<vmem>>, vector<1x128xf32>
    %15 = vector.broadcast %14 : vector<1x128xf32> to vector<128x128xf32>
    %16 = arith.mulf %13, %15 : vector<128x128xf32>
    %c0_13 = arith.constant 0 : index
    %c0_14 = arith.constant 0 : index
    %17 = vector.load %arg7[%c0_13, %c0_14] : memref<1x128xf32, #tpu.memory_space<vmem>>, vector<1x128xf32>
    %18 = vector.broadcast %17 : vector<1x128xf32> to vector<128x128xf32>
    %19 = arith.addf %16, %18 : vector<128x128xf32>
    %20 = arith.truncf %19 : vector<128x128xf32> to vector<128x128xbf16>
    %c0_15 = arith.constant 0 : index
    %c0_16 = arith.constant 0 : index
    %21 = vector.load %arg8[%c0_15, %c0_16] : memref<128x128xbf16, #tpu.memory_space<vmem>>, vector<128x128xbf16>
    tpu.vector_store %arg8[%c0_15, %c0_16], %20 {strides = array<i32>} : memref<128x128xbf16, #tpu.memory_space<vmem>>, vector<128x128xbf16>,
    return
  }
  func.func @transform_0(%arg0: i32) -> (i32, i32) {
    %c0_i32 = arith.constant 0 : i32
    %c0_i32_0 = arith.constant 0 : i32
    return %arg0, %c0_i32 : i32, i32
  }
  func.func @transform_1(%arg0: i32) -> (i32, i32) {
    %c0_i32 = arith.constant 0 : i32
    %c0_i32_0 = arith.constant 0 : i32
    %c0_i32_1 = arith.constant 0 : i32
    return %c0_i32, %c0_i32_0 : i32, i32
  }
  func.func @transform_2(%arg0: i32) -> (i32, i32) {
    %c0_i32 = arith.constant 0 : i32
    %c0_i32_0 = arith.constant 0 : i32
    %c0_i32_1 = arith.constant 0 : i32
    return %c0_i32, %c0_i32_0 : i32, i32
  }
  func.func @transform_3(%arg0: i32) -> (i32, i32) {
    %c0_i32 = arith.constant 0 : i32
    %c0_i32_0 = arith.constant 0 : i32
    %c0_i32_1 = arith.constant 0 : i32
    return %c0_i32, %c0_i32_0 : i32, i32
  }
  func.func @transform_4(%arg0: i32) -> (i32, i32) {
    %c0_i32 = arith.constant 0 : i32
    %c0_i32_0 = arith.constant 0 : i32
    %c0_i32_1 = arith.constant 0 : i32
    return %c0_i32, %c0_i32_0 : i32, i32
  }
  func.func @transform_5(%arg0: i32) -> (i32, i32) {
    %c0_i32 = arith.constant 0 : i32
    %c0_i32_0 = arith.constant 0 : i32
    %c0_i32_1 = arith.constant 0 : i32
    return %c0_i32, %c0_i32_0 : i32, i32
  }
  func.func @transform_6(%arg0: i32) -> (i32, i32) {
    %c0_i32 = arith.constant 0 : i32
    %c0_i32_0 = arith.constant 0 : i32
    %c0_i32_1 = arith.constant 0 : i32
    return %c0_i32, %c0_i32_0 : i32, i32
  }
  func.func @transform_7(%arg0: i32) -> (i32, i32) {
    %c0_i32 = arith.constant 0 : i32
    %c0_i32_0 = arith.constant 0 : i32
    return %arg0, %c0_i32 : i32, i32
  }
}

</mosaic_0001>

<llo_original>
// kernel: deeplab_forward.11
$region0: #{deeplab_forward.11}
  #allocation0 [shape = 'u32[]', space=smem, size = 0x4, offset = 0x4, fixed_abs, tag = 'smem constant byte address 0x4 - core index']
  #allocation1 [shape = 'u32[144,128]{1,0:T(1,128)}', space=vmem, size = 0x12000, scoped, tag = 'internal scratch']
  %s0 = inlined_call_operand.vmem [shape: bf16[128,1152], index: 0, kind: input, shape index: {}]
  %s1 = inlined_call_operand.vmem [shape: bf16[1152,128], index: 1, kind: input, shape index: {}]
  %s2 = inlined_call_operand.vmem [shape: f32[1,128], index: 2, kind: input, shape index: {}]
  %s3 = inlined_call_operand.vmem [shape: f32[1,128], index: 3, kind: input, shape index: {}]
  %s4 = inlined_call_operand.vmem [shape: bf16[128,128], index: 4, kind: output, shape index: {}]
  %s5 = sld [smem:[#allocation0]]
  $region26: #{deeplab_forward.11} parent=0
    _
  %s7 = ssub.s32 1, %s5
  %s8 = scalar_select 0, %s7, %s5
  // Predicated region
  $region2: #{deeplab_forward.11} parent=0 // pred_check
    _
  $region3: #{deeplab_forward.11} parent=0 // pred_check_branch
    %10 = sbr.rel (0) target = $region5
  $region4: #{deeplab_forward.11} parent=0 // pred_region
    _
  $region5: #{deeplab_forward.11} parent=0 // pred_fallthru
    _
  // Predicated region
  $region6: #{deeplab_forward.11} parent=0 // pred_check
    _
  $region7: #{deeplab_forward.11} parent=0 // pred_check_branch
    %12 = sbr.rel (0) target = $region9
  $region8: #{deeplab_forward.11} parent=0 // pred_region
    _
  $region9: #{deeplab_forward.11} parent=0 // pred_fallthru
    _
  // Predicated region
  $region10: #{deeplab_forward.11} parent=0 // pred_check
    _
  $region11: #{deeplab_forward.11} parent=0 // pred_check_branch
    %14 = sbr.rel (0) target = $region13
  $region12: #{deeplab_forward.11} parent=0 // pred_region
    _
  $region13: #{deeplab_forward.11} parent=0 // pred_fallthru
    _
  // Predicated region
  $region14: #{deeplab_forward.11} parent=0 // pred_check
    _
  $region15: #{deeplab_forward.11} parent=0 // pred_check_branch
    %16 = sbr.rel (0) target = $region17
  $region16: #{deeplab_forward.11} parent=0 // pred_region
    _
  $region17: #{deeplab_forward.11} parent=0 // pred_fallthru
    _
  %v18 = vld [vmem:[%s0] sm:$0xff]
  %v19 = vld [vmem:[%s0 + $0x8] sm:$0xff]
  %v20 = vld [vmem:[%s0 + $0x10] sm:$0xff]
  %v21 = vld [vmem:[%s0 + $0x18] sm:$0xff]
  %v22 = vld [vmem:[%s0 + $0x20] sm:$0xf]
  %v23 = vld [vmem:[%s0 + $0x24] sm:$0xff]
  %v24 = vld [vmem:[%s0 + $0x2c] sm:$0xff]
  %v25 = vld [vmem:[%s0 + $0x34] sm:$0xff]
  %v26 = vld [vmem:[%s0 + $0x3c] sm:$0xff]
  %v27 = vld [vmem:[%s0 + $0x44] sm:$0xf]
  %v28 = vld [vmem:[%s0 + $0x48] sm:$0xff]
  %v29 = vld [vmem:[%s0 + $0x50] sm:$0xff]
  %v30 = vld [vmem:[%s0 + $0x58] sm:$0xff]
  %v31 = vld [vmem:[%s0 + $0x60] sm:$0xff]
  %v32 = vld [vmem:[%s0 + $0x68] sm:$0xf]
  %v33 = vld [vmem:[%s0 + $0x6c] sm:$0xff]
  %v34 = vld [vmem:[%s0 + $0x74] sm:$0xff]
  %v35 = vld [vmem:[%s0 + $0x7c] sm:$0xff]
  %v36 = vld [vmem:[%s0 + $0x84] sm:$0xff]
  %v37 = vld [vmem:[%s0 + $0x8c] sm:$0xf]
  %v38 = vld [vmem:[%s0 + $0x90] sm:$0xff]
  %v39 = vld [vmem:[%s0 + $0x98] sm:$0xff]
  %v40 = vld [vmem:[%s0 + $0xa0] sm:$0xff]
  %v41 = vld [vmem:[%s0 + $0xa8] sm:$0xff]
  %v42 = vld [vmem:[%s0 + $0xb0] sm:$0xf]
  %v43 = vld [vmem:[%s0 + $0xb4] sm:$0xff]
  %v44 = vld [vmem:[%s0 + $0xbc] sm:$0xff]
  %v45 = vld [vmem:[%s0 + $0xc4] sm:$0xff]
  %v46 = vld [vmem:[%s0 + $0xcc] sm:$0xff]
  %v47 = vld [vmem:[%s0 + $0xd4] sm:$0xf]
  %v48 = vld [vmem:[%s0 + $0xd8] sm:$0xff]
  %v49 = vld [vmem:[%s0 + $0xe0] sm:$0xff]
  %v50 = vld [vmem:[%s0 + $0xe8] sm:$0xff]
  %v51 = vld [vmem:[%s0 + $0xf0] sm:$0xff]
  %v52 = vld [vmem:[%s0 + $0xf8] sm:$0xf]
  %v53 = vld [vmem:[%s0 + $0xfc] sm:$0xff]
  %v54 = vld [vmem:[%s0 + $0x104] sm:$0xff]
  %v55 = vld [vmem:[%s0 + $0x10c] sm:$0xff]
  %v56 = vld [vmem:[%s0 + $0x114] sm:$0xff]
  %v57 = vld [vmem:[%s0 + $0x11c] sm:$0xf]
  %v58 = vld [vmem:[%s0 + $0x120] sm:$0xff]
  %v59 = vld [vmem:[%s0 + $0x128] sm:$0xff]
  %v60 = vld [vmem:[%s0 + $0x130] sm:$0xff]
  %v61 = vld [vmem:[%s0 + $0x138] sm:$0xff]
  %v62 = vld [vmem:[%s0 + $0x140] sm:$0xf]
  %v63 = vld [vmem:[%s0 + $0x144] sm:$0xff]
  %v64 = vld [vmem:[%s0 + $0x14c] sm:$0xff]
  %v65 = vld [vmem:[%s0 + $0x154] sm:$0xff]
  %v66 = vld [vmem:[%s0 + $0x15c] sm:$0xff]
  %v67 = vld [vmem:[%s0 + $0x164] sm:$0xf]
  %v68 = vld [vmem:[%s0 + $0x168] sm:$0xff]
  %v69 = vld [vmem:[%s0 + $0x170] sm:$0xff]
  %v70 = vld [vmem:[%s0 + $0x178] sm:$0xff]
  %v71 = vld [vmem:[%s0 + $0x180] sm:$0xff]
  %v72 = vld [vmem:[%s0 + $0x188] sm:$0xf]
  %v73 = vld [vmem:[%s0 + $0x18c] sm:$0xff]
  %v74 = vld [vmem:[%s0 + $0x194] sm:$0xff]
  %v75 = vld [vmem:[%s0 + $0x19c] sm:$0xff]
  %v76 = vld [vmem:[%s0 + $0x1a4] sm:$0xff]
  %v77 = vld [vmem:[%s0 + $0x1ac] sm:$0xf]
  %v78 = vld [vmem:[%s0 + $0x1b0] sm:$0xff]
  %v79 = vld [vmem:[%s0 + $0x1b8] sm:$0xff]
  %v80 = vld [vmem:[%s0 + $0x1c0] sm:$0xff]
  %v81 = vld [vmem:[%s0 + $0x1c8] sm:$0xff]
  %v82 = vld [vmem:[%s0 + $0x1d0] sm:$0xf]
  %v83 = vld [vmem:[%s0 + $0x1d4] sm:$0xff]
  %v84 = vld [vmem:[%s0 + $0x1dc] sm:$0xff]
  %v85 = vld [vmem:[%s0 + $0x1e4] sm:$0xff]
  %v86 = vld [vmem:[%s0 + $0x1ec] sm:$0xff]
  %v87 = vld [vmem:[%s0 + $0x1f4] sm:$0xf]
  %v88 = vld [vmem:[%s0 + $0x1f8] sm:$0xff]
  %v89 = vld [vmem:[%s0 + $0x200] sm:$0xff]
  %v90 = vld [vmem:[%s0 + $0x208] sm:$0xff]
  %v91 = vld [vmem:[%s0 + $0x210] sm:$0xff]
  %v92 = vld [vmem:[%s0 + $0x218] sm:$0xf]
  %v93 = vld [vmem:[%s0 + $0x21c] sm:$0xff]
  %v94 = vld [vmem:[%s0 + $0x224] sm:$0xff]
  %v95 = vld [vmem:[%s0 + $0x22c] sm:$0xff]
  %v96 = vld [vmem:[%s0 + $0x234] sm:$0xff]
  %v97 = vld [vmem:[%s0 + $0x23c] sm:$0xf]
  %v98 = vld [vmem:[%s1] sm:$0xf]
  %v99 = vld [vmem:[%s1 + $0x4] sm:$0xf]
  %v100 = vld [vmem:[%s1 + $0x8] sm:$0xf]
  %v101 = vld [vmem:[%s1 + $0xc] sm:$0xf]
  %v102 = vld [vmem:[%s1 + $0x10] sm:$0xf]
  %v103 = vld [vmem:[%s1 + $0x14] sm:$0xf]
  %v104 = vld [vmem:[%s1 + $0x18] sm:$0xf]
  %v105 = vld [vmem:[%s1 + $0x1c] sm:$0xf]
  %v106 = vld [vmem:[%s1 + $0x20] sm:$0xf]
  %v107 = vld [vmem:[%s1 + $0x24] sm:$0xf]
  %v108 = vld [vmem:[%s1 + $0x28] sm:$0xf]
  %v109 = vld [vmem:[%s1 + $0x2c] sm:$0xf]
  %v110 = vld [vmem:[%s1 + $0x30] sm:$0xf]
  %v111 = vld [vmem:[%s1 + $0x34] sm:$0xf]
  %v112 = vld [vmem:[%s1 + $0x38] sm:$0xf]
  %v113 = vld [vmem:[%s1 + $0x3c] sm:$0xf]
  %v114 = vld [vmem:[%s1 + $0x40] sm:$0xf]
  %v115 = vld [vmem:[%s1 + $0x44] sm:$0xf]
  %v116 = vld [vmem:[%s1 + $0x48] sm:$0xf]
  %v117 = vld [vmem:[%s1 + $0x4c] sm:$0xf]
  %v118 = vld [vmem:[%s1 + $0x50] sm:$0xf]
  %v119 = vld [vmem:[%s1 + $0x54] sm:$0xf]
  %v120 = vld [vmem:[%s1 + $0x58] sm:$0xf]
  %v121 = vld [vmem:[%s1 + $0x5c] sm:$0xf]
  %v122 = vld [vmem:[%s1 + $0x60] sm:$0xf]
  %v123 = vld [vmem:[%s1 + $0x64] sm:$0xf]
  %v124 = vld [vmem:[%s1 + $0x68] sm:$0xf]
  %v125 = vld [vmem:[%s1 + $0x6c] sm:$0xf]
  %v126 = vld [vmem:[%s1 + $0x70] sm:$0xf]
  %v127 = vld [vmem:[%s1 + $0x74] sm:$0xf]
  %v128 = vld [vmem:[%s1 + $0x78] sm:$0xf]
  %v129 = vld [vmem:[%s1 + $0x7c] sm:$0xf]
  %v130 = vld [vmem:[%s1 + $0x80] sm:$0xf]
  %v131 = vld [vmem:[%s1 + $0x84] sm:$0xf]
  %v132 = vld [vmem:[%s1 + $0x88] sm:$0xf]
  %v133 = vld [vmem:[%s1 + $0x8c] sm:$0xf]
  %v134 = vld [vmem:[%s1 + $0x90] sm:$0xf]
  %v135 = vld [vmem:[%s1 + $0x94] sm:$0xf]
  %v136 = vld [vmem:[%s1 + $0x98] sm:$0xf]
  %v137 = vld [vmem:[%s1 + $0x9c] sm:$0xf]
  %v138 = vld [vmem:[%s1 + $0xa0] sm:$0xf]
  %v139 = vld [vmem:[%s1 + $0xa4] sm:$0xf]
  %v140 = vld [vmem:[%s1 + $0xa8] sm:$0xf]
  %v141 = vld [vmem:[%s1 + $0xac] sm:$0xf]
  %v142 = vld [vmem:[%s1 + $0xb0] sm:$0xf]
  %v143 = vld [vmem:[%s1 + $0xb4] sm:$0xf]
  %v144 = vld [vmem:[%s1 + $0xb8] sm:$0xf]
  %v145 = vld [vmem:[%s1 + $0xbc] sm:$0xf]
  %v146 = vld [vmem:[%s1 + $0xc0] sm:$0xf]
  %v147 = vld [vmem:[%s1 + $0xc4] sm:$0xf]
  %v148 = vld [vmem:[%s1 + $0xc8] sm:$0xf]
  %v149 = vld [vmem:[%s1 + $0xcc] sm:$0xf]
  %v150 = vld [vmem:[%s1 + $0xd0] sm:$0xf]
  %v151 = vld [vmem:[%s1 + $0xd4] sm:$0xf]
  %v152 = vld [vmem:[%s1 + $0xd8] sm:$0xf]
  %v153 = vld [vmem:[%s1 + $0xdc] sm:$0xf]
  %v154 = vld [vmem:[%s1 + $0xe0] sm:$0xf]
  %v155 = vld [vmem:[%s1 + $0xe4] sm:$0xf]
  %v156 = vld [vmem:[%s1 + $0xe8] sm:$0xf]
  %v157 = vld [vmem:[%s1 + $0xec] sm:$0xf]
  %v158 = vld [vmem:[%s1 + $0xf0] sm:$0xf]
  %v159 = vld [vmem:[%s1 + $0xf4] sm:$0xf]
  %v160 = vld [vmem:[%s1 + $0xf8] sm:$0xf]
  %v161 = vld [vmem:[%s1 + $0xfc] sm:$0xf]
  %v162 = vld [vmem:[%s1 + $0x100] sm:$0xf]
  %v163 = vld [vmem:[%s1 + $0x104] sm:$0xf]
  %v164 = vld [vmem:[%s1 + $0x108] sm:$0xf]
  %v165 = vld [vmem:[%s1 + $0x10c] sm:$0xf]
  %v166 = vld [vmem:[%s1 + $0x110] sm:$0xf]
  %v167 = vld [vmem:[%s1 + $0x114] sm:$0xf]
  %v168 = vld [vmem:[%s1 + $0x118] sm:$0xf]
  %v169 = vld [vmem:[%s1 + $0x11c] sm:$0xf]
  %v170 = vld [vmem:[%s1 + $0x120] sm:$0xf]
  %v171 = vld [vmem:[%s1 + $0x124] sm:$0xf]
  %v172 = vld [vmem:[%s1 + $0x128] sm:$0xf]
  %v173 = vld [vmem:[%s1 + $0x12c] sm:$0xf]
  %v174 = vld [vmem:[%s1 + $0x130] sm:$0xf]
  %v175 = vld [vmem:[%s1 + $0x134] sm:$0xf]
  %v176 = vld [vmem:[%s1 + $0x138] sm:$0xf]
  %v177 = vld [vmem:[%s1 + $0x13c] sm:$0xf]
  %v178 = vld [vmem:[%s1 + $0x140] sm:$0xf]
  %v179 = vld [vmem:[%s1 + $0x144] sm:$0xf]
  %v180 = vld [vmem:[%s1 + $0x148] sm:$0xf]
  %v181 = vld [vmem:[%s1 + $0x14c] sm:$0xf]
  %v182 = vld [vmem:[%s1 + $0x150] sm:$0xf]
  %v183 = vld [vmem:[%s1 + $0x154] sm:$0xf]
  %v184 = vld [vmem:[%s1 + $0x158] sm:$0xf]
  %v185 = vld [vmem:[%s1 + $0x15c] sm:$0xf]
  %v186 = vld [vmem:[%s1 + $0x160] sm:$0xf]
  %v187 = vld [vmem:[%s1 + $0x164] sm:$0xf]
  %v188 = vld [vmem:[%s1 + $0x168] sm:$0xf]
  %v189 = vld [vmem:[%s1 + $0x16c] sm:$0xf]
  %v190 = vld [vmem:[%s1 + $0x170] sm:$0xf]
  %v191 = vld [vmem:[%s1 + $0x174] sm:$0xf]
  %v192 = vld [vmem:[%s1 + $0x178] sm:$0xf]
  %v193 = vld [vmem:[%s1 + $0x17c] sm:$0xf]
  %v194 = vld [vmem:[%s1 + $0x180] sm:$0xf]
  %v195 = vld [vmem:[%s1 + $0x184] sm:$0xf]
  %v196 = vld [vmem:[%s1 + $0x188] sm:$0xf]
  %v197 = vld [vmem:[%s1 + $0x18c] sm:$0xf]
  %v198 = vld [vmem:[%s1 + $0x190] sm:$0xf]
  %v199 = vld [vmem:[%s1 + $0x194] sm:$0xf]
  %v200 = vld [vmem:[%s1 + $0x198] sm:$0xf]
  %v201 = vld [vmem:[%s1 + $0x19c] sm:$0xf]
  %v202 = vld [vmem:[%s1 + $0x1a0] sm:$0xf]
  %v203 = vld [vmem:[%s1 + $0x1a4] sm:$0xf]
  %v204 = vld [vmem:[%s1 + $0x1a8] sm:$0xf]
  %v205 = vld [vmem:[%s1 + $0x1ac] sm:$0xf]
  %v206 = vld [vmem:[%s1 + $0x1b0] sm:$0xf]
  %v207 = vld [vmem:[%s1 + $0x1b4] sm:$0xf]
  %v208 = vld [vmem:[%s1 + $0x1b8] sm:$0xf]
  %v209 = vld [vmem:[%s1 + $0x1bc] sm:$0xf]
  %v210 = vld [vmem:[%s1 + $0x1c0] sm:$0xf]
  %v211 = vld [vmem:[%s1 + $0x1c4] sm:$0xf]
  %v212 = vld [vmem:[%s1 + $0x1c8] sm:$0xf]
  %v213 = vld [vmem:[%s1 + $0x1cc] sm:$0xf]
  %v214 = vld [vmem:[%s1 + $0x1d0] sm:$0xf]
  %v215 = vld [vmem:[%s1 + $0x1d4] sm:$0xf]
  %v216 = vld [vmem:[%s1 + $0x1d8] sm:$0xf]
  %v217 = vld [vmem:[%s1 + $0x1dc] sm:$0xf]
  %v218 = vld [vmem:[%s1 + $0x1e0] sm:$0xf]
  %v219 = vld [vmem:[%s1 + $0x1e4] sm:$0xf]
  %v220 = vld [vmem:[%s1 + $0x1e8] sm:$0xf]
  %v221 = vld [vmem:[%s1 + $0x1ec] sm:$0xf]
  %v222 = vld [vmem:[%s1 + $0x1f0] sm:$0xf]
  %v223 = vld [vmem:[%s1 + $0x1f4] sm:$0xf]
  %v224 = vld [vmem:[%s1 + $0x1f8] sm:$0xf]
  %v225 = vld [vmem:[%s1 + $0x1fc] sm:$0xf]
  %v226 = vld [vmem:[%s1 + $0x200] sm:$0xf]
  %v227 = vld [vmem:[%s1 + $0x204] sm:$0xf]
  %v228 = vld [vmem:[%s1 + $0x208] sm:$0xf]
  %v229 = vld [vmem:[%s1 + $0x20c] sm:$0xf]
  %v230 = vld [vmem:[%s1 + $0x210] sm:$0xf]
  %v231 = vld [vmem:[%s1 + $0x214] sm:$0xf]
  %v232 = vld [vmem:[%s1 + $0x218] sm:$0xf]
  %v233 = vld [vmem:[%s1 + $0x21c] sm:$0xf]
  %v234 = vld [vmem:[%s1 + $0x220] sm:$0xf]
  %v235 = vld [vmem:[%s1 + $0x224] sm:$0xf]
  %v236 = vld [vmem:[%s1 + $0x228] sm:$0xf]
  %v237 = vld [vmem:[%s1 + $0x22c] sm:$0xf]
  %v238 = vld [vmem:[%s1 + $0x230] sm:$0xf]
  %v239 = vld [vmem:[%s1 + $0x234] sm:$0xf]
  %v240 = vld [vmem:[%s1 + $0x238] sm:$0xf]
  %v241 = vld [vmem:[%s1 + $0x23c] sm:$0xf]
  %v322 = vunpack.c.l.b16 %v18
  %v323 = vunpack.c.h.b16 %v18
  %v324 = vunpack.c.l.b16 %v19
  %v325 = vunpack.c.h.b16 %v19
  %v326 = vunpack.c.l.b16 %v20
  %v327 = vunpack.c.h.b16 %v20
  %v328 = vunpack.c.l.b16 %v21
  %v329 = vunpack.c.h.b16 %v21
  %v330 = vunpack.c.l.b16 %v22
  %v331 = vunpack.c.l.b16 %v23
  %v332 = vunpack.c.h.b16 %v23
  %v333 = vunpack.c.l.b16 %v24
  %v334 = vunpack.c.h.b16 %v24
  %v335 = vunpack.c.l.b16 %v25
  %v336 = vunpack.c.h.b16 %v25
  %v337 = vunpack.c.l.b16 %v26
  %v338 = vunpack.c.h.b16 %v26
  %v339 = vunpack.c.l.b16 %v27
  %v340 = vunpack.c.l.b16 %v28
  %v341 = vunpack.c.h.b16 %v28
  %v342 = vunpack.c.l.b16 %v29
  %v343 = vunpack.c.h.b16 %v29
  %v344 = vunpack.c.l.b16 %v30
  %v345 = vunpack.c.h.b16 %v30
  %v346 = vunpack.c.l.b16 %v31
  %v347 = vunpack.c.h.b16 %v31
  %v348 = vunpack.c.l.b16 %v32
  %v349 = vunpack.c.l.b16 %v33
  %v350 = vunpack.c.h.b16 %v33
  %v351 = vunpack.c.l.b16 %v34
  %v352 = vunpack.c.h.b16 %v34
  %v353 = vunpack.c.l.b16 %v35
  %v354 = vunpack.c.h.b16 %v35
  %v355 = vunpack.c.l.b16 %v36
  %v356 = vunpack.c.h.b16 %v36
  %v357 = vunpack.c.l.b16 %v37
  %v358 = vunpack.c.l.b16 %v38
  %v359 = vunpack.c.h.b16 %v38
  %v360 = vunpack.c.l.b16 %v39
  %v361 = vunpack.c.h.b16 %v39
  %v362 = vunpack.c.l.b16 %v40
  %v363 = vunpack.c.h.b16 %v40
  %v364 = vunpack.c.l.b16 %v41
  %v365 = vunpack.c.h.b16 %v41
  %v366 = vunpack.c.l.b16 %v42
  %v367 = vunpack.c.l.b16 %v43
  %v368 = vunpack.c.h.b16 %v43
  %v369 = vunpack.c.l.b16 %v44
  %v370 = vunpack.c.h.b16 %v44
  %v371 = vunpack.c.l.b16 %v45
  %v372 = vunpack.c.h.b16 %v45
  %v373 = vunpack.c.l.b16 %v46
  %v374 = vunpack.c.h.b16 %v46
  %v375 = vunpack.c.l.b16 %v47
  %v376 = vunpack.c.l.b16 %v48
  %v377 = vunpack.c.h.b16 %v48
  %v378 = vunpack.c.l.b16 %v49
  %v379 = vunpack.c.h.b16 %v49
  %v380 = vunpack.c.l.b16 %v50
  %v381 = vunpack.c.h.b16 %v50
  %v382 = vunpack.c.l.b16 %v51
  %v383 = vunpack.c.h.b16 %v51
  %v384 = vunpack.c.l.b16 %v52
  %v385 = vunpack.c.l.b16 %v53
  %v386 = vunpack.c.h.b16 %v53
  %v387 = vunpack.c.l.b16 %v54
  %v388 = vunpack.c.h.b16 %v54
  %v389 = vunpack.c.l.b16 %v55
  %v390 = vunpack.c.h.b16 %v55
  %v391 = vunpack.c.l.b16 %v56
  %v392 = vunpack.c.h.b16 %v56
  %v393 = vunpack.c.l.b16 %v57
  %v394 = vunpack.c.l.b16 %v58
  %v395 = vunpack.c.h.b16 %v58
  %v396 = vunpack.c.l.b16 %v59
  %v397 = vunpack.c.h.b16 %v59
  %v398 = vunpack.c.l.b16 %v60
  %v399 = vunpack.c.h.b16 %v60
  %v400 = vunpack.c.l.b16 %v61
  %v401 = vunpack.c.h.b16 %v61
  %v402 = vunpack.c.l.b16 %v62
  %v403 = vunpack.c.l.b16 %v63
  %v404 = vunpack.c.h.b16 %v63
  %v405 = vunpack.c.l.b16 %v64
  %v406 = vunpack.c.h.b16 %v64
  %v407 = vunpack.c.l.b16 %v65
  %v408 = vunpack.c.h.b16 %v65
  %v409 = vunpack.c.l.b16 %v66
  %v410 = vunpack.c.h.b16 %v66
  %v411 = vunpack.c.l.b16 %v67
  %v412 = vunpack.c.l.b16 %v68
  %v413 = vunpack.c.h.b16 %v68
  %v414 = vunpack.c.l.b16 %v69
  %v415 = vunpack.c.h.b16 %v69
  %v416 = vunpack.c.l.b16 %v70
  %v417 = vunpack.c.h.b16 %v70
  %v418 = vunpack.c.l.b16 %v71
  %v419 = vunpack.c.h.b16 %v71
  %v420 = vunpack.c.l.b16 %v72
  %v421 = vunpack.c.l.b16 %v73
  %v422 = vunpack.c.h.b16 %v73
  %v423 = vunpack.c.l.b16 %v74
  %v424 = vunpack.c.h.b16 %v74
  %v425 = vunpack.c.l.b16 %v75
  %v426 = vunpack.c.h.b16 %v75
  %v427 = vunpack.c.l.b16 %v76
  %v428 = vunpack.c.h.b16 %v76
  %v429 = vunpack.c.l.b16 %v77
  %v430 = vunpack.c.l.b16 %v78
  %v431 = vunpack.c.h.b16 %v78
  %v432 = vunpack.c.l.b16 %v79
  %v433 = vunpack.c.h.b16 %v79
  %v434 = vunpack.c.l.b16 %v80
  %v435 = vunpack.c.h.b16 %v80
  %v436 = vunpack.c.l.b16 %v81
  %v437 = vunpack.c.h.b16 %v81
  %v438 = vunpack.c.l.b16 %v82
  %v439 = vunpack.c.l.b16 %v83
  %v440 = vunpack.c.h.b16 %v83
  %v441 = vunpack.c.l.b16 %v84
  %v442 = vunpack.c.h.b16 %v84
  %v443 = vunpack.c.l.b16 %v85
  %v444 = vunpack.c.h.b16 %v85
  %v445 = vunpack.c.l.b16 %v86
  %v446 = vunpack.c.h.b16 %v86
  %v447 = vunpack.c.l.b16 %v87
  %v448 = vunpack.c.l.b16 %v88
  %v449 = vunpack.c.h.b16 %v88
  %v450 = vunpack.c.l.b16 %v89
  %v451 = vunpack.c.h.b16 %v89
  %v452 = vunpack.c.l.b16 %v90
  %v453 = vunpack.c.h.b16 %v90
  %v454 = vunpack.c.l.b16 %v91
  %v455 = vunpack.c.h.b16 %v91
  %v456 = vunpack.c.l.b16 %v92
  %v457 = vunpack.c.l.b16 %v93
  %v458 = vunpack.c.h.b16 %v93
  %v459 = vunpack.c.l.b16 %v94
  %v460 = vunpack.c.h.b16 %v94
  %v461 = vunpack.c.l.b16 %v95
  %v462 = vunpack.c.h.b16 %v95
  %v463 = vunpack.c.l.b16 %v96
  %v464 = vunpack.c.h.b16 %v96
  %v465 = vunpack.c.l.b16 %v97
  %v466 = vpack.c.b16 %v331, %v322
  %v467 = vpack.c.b16 %v332, %v323
  %v468 = vpack.c.b16 %v333, %v324
  %v469 = vpack.c.b16 %v334, %v325
  %v470 = vpack.c.b16 %v335, %v326
  %v471 = vpack.c.b16 %v336, %v327
  %v472 = vpack.c.b16 %v337, %v328
  %v473 = vpack.c.b16 %v338, %v329
  %v474 = vpack.c.b16 %v339, %v330
  %v475 = vpack.c.b16 %v349, %v340
  %v476 = vpack.c.b16 %v350, %v341
  %v477 = vpack.c.b16 %v351, %v342
  %v478 = vpack.c.b16 %v352, %v343
  %v479 = vpack.c.b16 %v353, %v344
  %v480 = vpack.c.b16 %v354, %v345
  %v481 = vpack.c.b16 %v355, %v346
  %v482 = vpack.c.b16 %v356, %v347
  %v483 = vpack.c.b16 %v357, %v348
  %v484 = vpack.c.b16 %v367, %v358
  %v485 = vpack.c.b16 %v368, %v359
  %v486 = vpack.c.b16 %v369, %v360
  %v487 = vpack.c.b16 %v370, %v361
  %v488 = vpack.c.b16 %v371, %v362
  %v489 = vpack.c.b16 %v372, %v363
  %v490 = vpack.c.b16 %v373, %v364
  %v491 = vpack.c.b16 %v374, %v365
  %v492 = vpack.c.b16 %v375, %v366
  %v493 = vpack.c.b16 %v385, %v376
  %v494 = vpack.c.b16 %v386, %v377
  %v495 = vpack.c.b16 %v387, %v378
  %v496 = vpack.c.b16 %v388, %v379
  %v497 = vpack.c.b16 %v389, %v380
  %v498 = vpack.c.b16 %v390, %v381
  %v499 = vpack.c.b16 %v391, %v382
  %v500 = vpack.c.b16 %v392, %v383
  %v501 = vpack.c.b16 %v393, %v384
  %v502 = vpack.c.b16 %v403, %v394
  %v503 = vpack.c.b16 %v404, %v395
  %v504 = vpack.c.b16 %v405, %v396
  %v505 = vpack.c.b16 %v406, %v397
  %v506 = vpack.c.b16 %v407, %v398
  %v507 = vpack.c.b16 %v408, %v399
  %v508 = vpack.c.b16 %v409, %v400
  %v509 = vpack.c.b16 %v410, %v401
  %v510 = vpack.c.b16 %v411, %v402
  %v511 = vpack.c.b16 %v421, %v412
  %v512 = vpack.c.b16 %v422, %v413
  %v513 = vpack.c.b16 %v423, %v414
  %v514 = vpack.c.b16 %v424, %v415
  %v515 = vpack.c.b16 %v425, %v416
  %v516 = vpack.c.b16 %v426, %v417
  %v517 = vpack.c.b16 %v427, %v418
  %v518 = vpack.c.b16 %v428, %v419
  %v519 = vpack.c.b16 %v429, %v420
  %v520 = vpack.c.b16 %v439, %v430
  %v521 = vpack.c.b16 %v440, %v431
  %v522 = vpack.c.b16 %v441, %v432
  %v523 = vpack.c.b16 %v442, %v433
  %v524 = vpack.c.b16 %v443, %v434
  %v525 = vpack.c.b16 %v444, %v435
  %v526 = vpack.c.b16 %v445, %v436
  %v527 = vpack.c.b16 %v446, %v437
  %v528 = vpack.c.b16 %v447, %v438
  %v529 = vpack.c.b16 %v457, %v448
  %v530 = vpack.c.b16 %v458, %v449
  %v531 = vpack.c.b16 %v459, %v450
  %v532 = vpack.c.b16 %v460, %v451
  %v533 = vpack.c.b16 %v461, %v452
  %v534 = vpack.c.b16 %v462, %v453
  %v535 = vpack.c.b16 %v463, %v454
  %v536 = vpack.c.b16 %v464, %v455
  %v537 = vpack.c.b16 %v465, %v456
  %v754 = vunpack.c.l.b16 %v98
  %v755 = vunpack.c.l.b16 %v99
  %v756 = vunpack.c.l.b16 %v100
  %v757 = vunpack.c.l.b16 %v101
  %v758 = vunpack.c.l.b16 %v102
  %v759 = vunpack.c.l.b16 %v103
  %v760 = vunpack.c.l.b16 %v104
  %v761 = vunpack.c.l.b16 %v105
  %v762 = vunpack.c.l.b16 %v106
  %v763 = vunpack.c.l.b16 %v107
  %v764 = vunpack.c.l.b16 %v108
  %v765 = vunpack.c.l.b16 %v109
  %v766 = vunpack.c.l.b16 %v110
  %v767 = vunpack.c.l.b16 %v111
  %v768 = vunpack.c.l.b16 %v112
  %v769 = vunpack.c.l.b16 %v113
  %v770 = vunpack.c.l.b16 %v114
  %v771 = vunpack.c.l.b16 %v115
  %v772 = vunpack.c.l.b16 %v116
  %v773 = vunpack.c.l.b16 %v117
  %v774 = vunpack.c.l.b16 %v118
  %v775 = vunpack.c.l.b16 %v119
  %v776 = vunpack.c.l.b16 %v120
  %v777 = vunpack.c.l.b16 %v121
  %v778 = vunpack.c.l.b16 %v122
  %v779 = vunpack.c.l.b16 %v123
  %v780 = vunpack.c.l.b16 %v124
  %v781 = vunpack.c.l.b16 %v125
  %v782 = vunpack.c.l.b16 %v126
  %v783 = vunpack.c.l.b16 %v127
  %v784 = vunpack.c.l.b16 %v128
  %v785 = vunpack.c.l.b16 %v129
  %v786 = vunpack.c.l.b16 %v130
  %v787 = vunpack.c.l.b16 %v131
  %v788 = vunpack.c.l.b16 %v132
  %v789 = vunpack.c.l.b16 %v133
  %v790 = vunpack.c.l.b16 %v134
  %v791 = vunpack.c.l.b16 %v135
  %v792 = vunpack.c.l.b16 %v136
  %v793 = vunpack.c.l.b16 %v137
  %v794 = vunpack.c.l.b16 %v138
  %v795 = vunpack.c.l.b16 %v139
  %v796 = vunpack.c.l.b16 %v140
  %v797 = vunpack.c.l.b16 %v141
  %v798 = vunpack.c.l.b16 %v142
  %v799 = vunpack.c.l.b16 %v143
  %v800 = vunpack.c.l.b16 %v144
  %v801 = vunpack.c.l.b16 %v145
  %v802 = vunpack.c.l.b16 %v146
  %v803 = vunpack.c.l.b16 %v147
  %v804 = vunpack.c.l.b16 %v148
  %v805 = vunpack.c.l.b16 %v149
  %v806 = vunpack.c.l.b16 %v150
  %v807 = vunpack.c.l.b16 %v151
  %v808 = vunpack.c.l.b16 %v152
  %v809 = vunpack.c.l.b16 %v153
  %v810 = vunpack.c.l.b16 %v154
  %v811 = vunpack.c.l.b16 %v155
  %v812 = vunpack.c.l.b16 %v156
  %v813 = vunpack.c.l.b16 %v157
  %v814 = vunpack.c.l.b16 %v158
  %v815 = vunpack.c.l.b16 %v159
  %v816 = vunpack.c.l.b16 %v160
  %v817 = vunpack.c.l.b16 %v161
  %v818 = vunpack.c.l.b16 %v162
  %v819 = vunpack.c.l.b16 %v163
  %v820 = vunpack.c.l.b16 %v164
  %v821 = vunpack.c.l.b16 %v165
  %v822 = vunpack.c.l.b16 %v166
  %v823 = vunpack.c.l.b16 %v167
  %v824 = vunpack.c.l.b16 %v168
  %v825 = vunpack.c.l.b16 %v169
  %v826 = vunpack.c.l.b16 %v170
  %v827 = vunpack.c.l.b16 %v171
  %v828 = vunpack.c.l.b16 %v172
  %v829 = vunpack.c.l.b16 %v173
  %v830 = vunpack.c.l.b16 %v174
  %v831 = vunpack.c.l.b16 %v175
  %v832 = vunpack.c.l.b16 %v176
  %v833 = vunpack.c.l.b16 %v177
  %v834 = vunpack.c.l.b16 %v178
  %v835 = vunpack.c.l.b16 %v179
  %v836 = vunpack.c.l.b16 %v180
  %v837 = vunpack.c.l.b16 %v181
  %v838 = vunpack.c.l.b16 %v182
  %v839 = vunpack.c.l.b16 %v183
  %v840 = vunpack.c.l.b16 %v184
  %v841 = vunpack.c.l.b16 %v185
  %v842 = vunpack.c.l.b16 %v186
  %v843 = vunpack.c.l.b16 %v187
  %v844 = vunpack.c.l.b16 %v188
  %v845 = vunpack.c.l.b16 %v189
  %v846 = vunpack.c.l.b16 %v190
  %v847 = vunpack.c.l.b16 %v191
  %v848 = vunpack.c.l.b16 %v192
  %v849 = vunpack.c.l.b16 %v193
  %v850 = vunpack.c.l.b16 %v194
  %v851 = vunpack.c.l.b16 %v195
  %v852 = vunpack.c.l.b16 %v196
  %v853 = vunpack.c.l.b16 %v197
  %v854 = vunpack.c.l.b16 %v198
  %v855 = vunpack.c.l.b16 %v199
  %v856 = vunpack.c.l.b16 %v200
  %v857 = vunpack.c.l.b16 %v201
  %v858 = vunpack.c.l.b16 %v202
  %v859 = vunpack.c.l.b16 %v203
  %v860 = vunpack.c.l.b16 %v204
  %v861 = vunpack.c.l.b16 %v205
  %v862 = vunpack.c.l.b16 %v206
  %v863 = vunpack.c.l.b16 %v207
  %v864 = vunpack.c.l.b16 %v208
  %v865 = vunpack.c.l.b16 %v209
  %v866 = vunpack.c.l.b16 %v210
  %v867 = vunpack.c.l.b16 %v211
  %v868 = vunpack.c.l.b16 %v212
  %v869 = vunpack.c.l.b16 %v213
  %v870 = vunpack.c.l.b16 %v214
  %v871 = vunpack.c.l.b16 %v215
  %v872 = vunpack.c.l.b16 %v216
  %v873 = vunpack.c.l.b16 %v217
  %v874 = vunpack.c.l.b16 %v218
  %v875 = vunpack.c.l.b16 %v219
  %v876 = vunpack.c.l.b16 %v220
  %v877 = vunpack.c.l.b16 %v221
  %v878 = vunpack.c.l.b16 %v222
  %v879 = vunpack.c.l.b16 %v223
  %v880 = vunpack.c.l.b16 %v224
  %v881 = vunpack.c.l.b16 %v225
  %v882 = vunpack.c.l.b16 %v226
  %v883 = vunpack.c.l.b16 %v227
  %v884 = vunpack.c.l.b16 %v228
  %v885 = vunpack.c.l.b16 %v229
  %v886 = vunpack.c.l.b16 %v230
  %v887 = vunpack.c.l.b16 %v231
  %v888 = vunpack.c.l.b16 %v232
  %v889 = vunpack.c.l.b16 %v233
  %v890 = vunpack.c.l.b16 %v234
  %v891 = vunpack.c.l.b16 %v235
  %v892 = vunpack.c.l.b16 %v236
  %v893 = vunpack.c.l.b16 %v237
  %v894 = vunpack.c.l.b16 %v238
  %v895 = vunpack.c.l.b16 %v239
  %v896 = vunpack.c.l.b16 %v240
  %v897 = vunpack.c.l.b16 %v241
  %v898 = vpack.c.b16 %v755, %v754
  %v899 = vpack.c.b16 %v757, %v756
  %v900 = vpack.c.b16 %v759, %v758
  %v901 = vpack.c.b16 %v761, %v760
  %v902 = vpack.c.b16 %v763, %v762
  %v903 = vpack.c.b16 %v765, %v764
  %v904 = vpack.c.b16 %v767, %v766
  %v905 = vpack.c.b16 %v769, %v768
  %v906 = vpack.c.b16 %v771, %v770
  %v907 = vpack.c.b16 %v773, %v772
  %v908 = vpack.c.b16 %v775, %v774
  %v909 = vpack.c.b16 %v777, %v776
  %v910 = vpack.c.b16 %v779, %v778
  %v911 = vpack.c.b16 %v781, %v780
  %v912 = vpack.c.b16 %v783, %v782
  %v913 = vpack.c.b16 %v785, %v784
  %v914 = vpack.c.b16 %v787, %v786
  %v915 = vpack.c.b16 %v789, %v788
  %v916 = vpack.c.b16 %v791, %v790
  %v917 = vpack.c.b16 %v793, %v792
  %v918 = vpack.c.b16 %v795, %v794
  %v919 = vpack.c.b16 %v797, %v796
  %v920 = vpack.c.b16 %v799, %v798
  %v921 = vpack.c.b16 %v801, %v800
  %v922 = vpack.c.b16 %v803, %v802
  %v923 = vpack.c.b16 %v805, %v804
  %v924 = vpack.c.b16 %v807, %v806
  %v925 = vpack.c.b16 %v809, %v808
  %v926 = vpack.c.b16 %v811, %v810
  %v927 = vpack.c.b16 %v813, %v812
  %v928 = vpack.c.b16 %v815, %v814
  %v929 = vpack.c.b16 %v817, %v816
  %v930 = vpack.c.b16 %v819, %v818
  %v931 = vpack.c.b16 %v821, %v820
  %v932 = vpack.c.b16 %v823, %v822
  %v933 = vpack.c.b16 %v825, %v824
  %v934 = vpack.c.b16 %v827, %v826
  %v935 = vpack.c.b16 %v829, %v828
  %v936 = vpack.c.b16 %v831, %v830
  %v937 = vpack.c.b16 %v833, %v832
  %v938 = vpack.c.b16 %v835, %v834
  %v939 = vpack.c.b16 %v837, %v836
  %v940 = vpack.c.b16 %v839, %v838
  %v941 = vpack.c.b16 %v841, %v840
  %v942 = vpack.c.b16 %v843, %v842
  %v943 = vpack.c.b16 %v845, %v844
  %v944 = vpack.c.b16 %v847, %v846
  %v945 = vpack.c.b16 %v849, %v848
  %v946 = vpack.c.b16 %v851, %v850
  %v947 = vpack.c.b16 %v853, %v852
  %v948 = vpack.c.b16 %v855, %v854
  %v949 = vpack.c.b16 %v857, %v856
  %v950 = vpack.c.b16 %v859, %v858
  %v951 = vpack.c.b16 %v861, %v860
  %v952 = vpack.c.b16 %v863, %v862
  %v953 = vpack.c.b16 %v865, %v864
  %v954 = vpack.c.b16 %v867, %v866
  %v955 = vpack.c.b16 %v869, %v868
  %v956 = vpack.c.b16 %v871, %v870
  %v957 = vpack.c.b16 %v873, %v872
  %v958 = vpack.c.b16 %v875, %v874
  %v959 = vpack.c.b16 %v877, %v876
  %v960 = vpack.c.b16 %v879, %v878
  %v961 = vpack.c.b16 %v881, %v880
  %v962 = vpack.c.b16 %v883, %v882
  %v963 = vpack.c.b16 %v885, %v884
  %v964 = vpack.c.b16 %v887, %v886
  %v965 = vpack.c.b16 %v889, %v888
  %v966 = vpack.c.b16 %v891, %v890
  %v967 = vpack.c.b16 %v893, %v892
  %v968 = vpack.c.b16 %v895, %v894
  %v969 = vpack.c.b16 %v897, %v896
  %1042 = vmatprep.subr.bf16.mxu0 0
  %1043 = vmatpush1.bf16.msra.mxu0 %v905
  %1044 = vmatprep.subr.bf16.mxu0 0
  %1045 = vmatpush1.bf16.msra.mxu0 %v904
  %1046 = vmatprep.subr.bf16.mxu0 0
  %1047 = vmatpush1.bf16.msra.mxu0 %v903
  %1048 = vmatprep.subr.bf16.mxu0 0
  %1049 = vmatpush1.bf16.msra.mxu0 %v902
  %1050 = vmatprep.subr.bf16.mxu0 0
  %1051 = vmatpush1.bf16.msra.mxu0 %v901
  %1052 = vmatprep.subr.bf16.mxu0 0
  %1053 = vmatpush1.bf16.msra.mxu0 %v900
  %1054 = vmatprep.subr.bf16.mxu0 0
  %1055 = vmatpush1.bf16.msra.mxu0 %v899
  %1056 = vmatprep.subr.bf16.mxu0 0
  %1057 = vmatpush1.bf16.msra.mxu0 %v898
  %1058 = vmatprep.subr.bf16.mxu0 0
  %1059 = vmatpush2.bf16.msra.mxu0 %v913
  %1060 = vmatprep.subr.bf16.mxu0 0
  %1061 = vmatpush2.bf16.msra.mxu0 %v912
  %1062 = vmatprep.subr.bf16.mxu0 0
  %1063 = vmatpush2.bf16.msra.mxu0 %v911
  %1064 = vmatprep.subr.bf16.mxu0 0
  %1065 = vmatpush2.bf16.msra.mxu0 %v910
  %1066 = vmatprep.subr.bf16.mxu0 0
  %1067 = vmatpush2.bf16.msra.mxu0 %v909
  %1068 = vmatprep.subr.bf16.mxu0 0
  %1069 = vmatpush2.bf16.msra.mxu0 %v908
  %1070 = vmatprep.subr.bf16.mxu0 0
  %1071 = vmatpush2.bf16.msra.mxu0 %v907
  %1072 = vmatprep.subr.bf16.mxu0 0
  %1073 = vmatpush2.bf16.msra.mxu0 %v906
  %1074 = vmatprep.mubr.bf16.mxu0 %v467
  %1075 = vmatmul.mubr.bf16.gmra.mxu0 %v466
  %v1076 = vpop.f32.mrf.mxu0
  %v1077 = vadd.f32 0.0, %v1076
  %v1078 = vpop.f32.mrf.mxu0
  %v1079 = vpop.f32.mrf.mxu0
  %v1080 = vadd.f32 0.0, %v1079
  %v1081 = vpop.f32.mrf.mxu0
  %1082 = vmatprep.mubr.bf16.mxu0 %v476
  %1083 = vmatmul.mubr.bf16.gmra.mxu0 %v475
  %v1084 = vpop.f32.mrf.mxu0
  %v1085 = vadd.f32 0.0, %v1084
  %v1086 = vpop.f32.mrf.mxu0
  %v1087 = vpop.f32.mrf.mxu0
  %v1088 = vadd.f32 0.0, %v1087
  %v1089 = vpop.f32.mrf.mxu0
  %1090 = vmatprep.mubr.bf16.mxu0 %v485
  %1091 = vmatmul.mubr.bf16.gmra.mxu0 %v484
  %v1092 = vpop.f32.mrf.mxu0
  %v1093 = vadd.f32 0.0, %v1092
  %v1094 = vpop.f32.mrf.mxu0
  %v1095 = vpop.f32.mrf.mxu0
  %v1096 = vadd.f32 0.0, %v1095
  %v1097 = vpop.f32.mrf.mxu0
  %1098 = vmatprep.mubr.bf16.mxu0 %v494
  %1099 = vmatmul.mubr.bf16.gmra.mxu0 %v493
  %v1100 = vpop.f32.mrf.mxu0
  %v1101 = vadd.f32 0.0, %v1100
  %v1102 = vpop.f32.mrf.mxu0
  %v1103 = vpop.f32.mrf.mxu0
  %v1104 = vadd.f32 0.0, %v1103
  %v1105 = vpop.f32.mrf.mxu0
  %1106 = vmatprep.mubr.bf16.mxu0 %v503
  %1107 = vmatmul.mubr.bf16.gmra.mxu0 %v502
  %v1108 = vpop.f32.mrf.mxu0
  %v1109 = vadd.f32 0.0, %v1108
  %v1110 = vpop.f32.mrf.mxu0
  %v1111 = vpop.f32.mrf.mxu0
  %v1112 = vadd.f32 0.0, %v1111
  %v1113 = vpop.f32.mrf.mxu0
  %1114 = vmatprep.mubr.bf16.mxu0 %v512
  %1115 = vmatmul.mubr.bf16.gmra.mxu0 %v511
  %v1116 = vpop.f32.mrf.mxu0
  %v1117 = vadd.f32 0.0, %v1116
  %v1118 = vpop.f32.mrf.mxu0
  %v1119 = vpop.f32.mrf.mxu0
  %v1120 = vadd.f32 0.0, %v1119
  %v1121 = vpop.f32.mrf.mxu0
  %1122 = vmatprep.mubr.bf16.mxu0 %v521
  %1123 = vmatmul.mubr.bf16.gmra.mxu0 %v520
  %v1124 = vpop.f32.mrf.mxu0
  %v1125 = vadd.f32 0.0, %v1124
  %v1126 = vpop.f32.mrf.mxu0
  %v1127 = vpop.f32.mrf.mxu0
  %v1128 = vadd.f32 0.0, %v1127
  %v1129 = vpop.f32.mrf.mxu0
  %1130 = vmatprep.mubr.bf16.mxu0 %v530
  %1131 = vmatmul.mubr.bf16.gmra.mxu0 %v529
  %v1132 = vpop.f32.mrf.mxu0
  %v1133 = vadd.f32 0.0, %v1132
  %v1134 = vpop.f32.mrf.mxu0
  %v1135 = vpop.f32.mrf.mxu0
  %v1136 = vadd.f32 0.0, %v1135
  %v1137 = vpop.f32.mrf.mxu0
  %1138 = vdwg.mxu0
  %1139 = vmatprep.subr.bf16.mxu0 0
  %1140 = vmatpush1.bf16.msra.mxu0 %v921
  %1141 = vmatprep.subr.bf16.mxu0 0
  %1142 = vmatpush1.bf16.msra.mxu0 %v920
  %1143 = vmatprep.subr.bf16.mxu0 0
  %1144 = vmatpush1.bf16.msra.mxu0 %v919
  %1145 = vmatprep.subr.bf16.mxu0 0
  %1146 = vmatpush1.bf16.msra.mxu0 %v918
  %1147 = vmatprep.subr.bf16.mxu0 0
  %1148 = vmatpush1.bf16.msra.mxu0 %v917
  %1149 = vmatprep.subr.bf16.mxu0 0
  %1150 = vmatpush1.bf16.msra.mxu0 %v916
  %1151 = vmatprep.subr.bf16.mxu0 0
  %1152 = vmatpush1.bf16.msra.mxu0 %v915
  %1153 = vmatprep.subr.bf16.mxu0 0
  %1154 = vmatpush1.bf16.msra.mxu0 %v914
  %1155 = vmatprep.subr.bf16.mxu0 0
  %1156 = vmatpush2.bf16.msra.mxu0 %v929
  %1157 = vmatprep.subr.bf16.mxu0 0
  %1158 = vmatpush2.bf16.msra.mxu0 %v928
  %1159 = vmatprep.subr.bf16.mxu0 0
  %1160 = vmatpush2.bf16.msra.mxu0 %v927
  %1161 = vmatprep.subr.bf16.mxu0 0
  %1162 = vmatpush2.bf16.msra.mxu0 %v926
  %1163 = vmatprep.subr.bf16.mxu0 0
  %1164 = vmatpush2.bf16.msra.mxu0 %v925
  %1165 = vmatprep.subr.bf16.mxu0 0
  %1166 = vmatpush2.bf16.msra.mxu0 %v924
  %1167 = vmatprep.subr.bf16.mxu0 0
  %1168 = vmatpush2.bf16.msra.mxu0 %v923
  %1169 = vmatprep.subr.bf16.mxu0 0
  %1170 = vmatpush2.bf16.msra.mxu0 %v922
  %1171 = vmatprep.mubr.bf16.mxu0 %v469
  %1172 = vmatmul.mubr.bf16.gmra.mxu0 %v468
  %v1173 = vpop.f32.mrf.mxu0
  %v1174 = vadd.f32 %v1077, %v1173
  %v1175 = vpop.f32.mrf.mxu0
  %v1176 = vpop.f32.mrf.mxu0
  %v1177 = vadd.f32 %v1080, %v1176
  %v1178 = vpop.f32.mrf.mxu0
  %1179 = vmatprep.mubr.bf16.mxu0 %v478
  %1180 = vmatmul.mubr.bf16.gmra.mxu0 %v477
  %v1181 = vpop.f32.mrf.mxu0
  %v1182 = vadd.f32 %v1085, %v1181
  %v1183 = vpop.f32.mrf.mxu0
  %v1184 = vpop.f32.mrf.mxu0
  %v1185 = vadd.f32 %v1088, %v1184
  %v1186 = vpop.f32.mrf.mxu0
  %1187 = vmatprep.mubr.bf16.mxu0 %v487
  %1188 = vmatmul.mubr.bf16.gmra.mxu0 %v486
  %v1189 = vpop.f32.mrf.mxu0
  %v1190 = vadd.f32 %v1093, %v1189
  %v1191 = vpop.f32.mrf.mxu0
  %v1192 = vpop.f32.mrf.mxu0
  %v1193 = vadd.f32 %v1096, %v1192
  %v1194 = vpop.f32.mrf.mxu0
  %1195 = vmatprep.mubr.bf16.mxu0 %v496
  %1196 = vmatmul.mubr.bf16.gmra.mxu0 %v495
  %v1197 = vpop.f32.mrf.mxu0
  %v1198 = vadd.f32 %v1101, %v1197
  %v1199 = vpop.f32.mrf.mxu0
  %v1200 = vpop.f32.mrf.mxu0
  %v1201 = vadd.f32 %v1104, %v1200
  %v1202 = vpop.f32.mrf.mxu0
  %1203 = vmatprep.mubr.bf16.mxu0 %v505
  %1204 = vmatmul.mubr.bf16.gmra.mxu0 %v504
  %v1205 = vpop.f32.mrf.mxu0
  %v1206 = vadd.f32 %v1109, %v1205
  %v1207 = vpop.f32.mrf.mxu0
  %v1208 = vpop.f32.mrf.mxu0
  %v1209 = vadd.f32 %v1112, %v1208
  %v1210 = vpop.f32.mrf.mxu0
  %1211 = vmatprep.mubr.bf16.mxu0 %v514
  %1212 = vmatmul.mubr.bf16.gmra.mxu0 %v513
  %v1213 = vpop.f32.mrf.mxu0
  %v1214 = vadd.f32 %v1117, %v1213
  %v1215 = vpop.f32.mrf.mxu0
  %v1216 = vpop.f32.mrf.mxu0
  %v1217 = vadd.f32 %v1120, %v1216
  %v1218 = vpop.f32.mrf.mxu0
  %1219 = vmatprep.mubr.bf16.mxu0 %v523
  %1220 = vmatmul.mubr.bf16.gmra.mxu0 %v522
  %v1221 = vpop.f32.mrf.mxu0
  %v1222 = vadd.f32 %v1125, %v1221
  %v1223 = vpop.f32.mrf.mxu0
  %v1224 = vpop.f32.mrf.mxu0
  %v1225 = vadd.f32 %v1128, %v1224
  %v1226 = vpop.f32.mrf.mxu0
  %1227 = vmatprep.mubr.bf16.mxu0 %v532
  %1228 = vmatmul.mubr.bf16.gmra.mxu0 %v531
  %v1229 = vpop.f32.mrf.mxu0
  %v1230 = vadd.f32 %v1133, %v1229
  %v1231 = vpop.f32.mrf.mxu0
  %v1232 = vpop.f32.mrf.mxu0
  %v1233 = vadd.f32 %v1136, %v1232
  %v1234 = vpop.f32.mrf.mxu0
  %1235 = vdwg.mxu0
  %1236 = vmatprep.subr.bf16.mxu0 0
  %1237 = vmatpush1.bf16.msra.mxu0 %v937
  %1238 = vmatprep.subr.bf16.mxu0 0
  %1239 = vmatpush1.bf16.msra.mxu0 %v936
  %1240 = vmatprep.subr.bf16.mxu0 0
  %1241 = vmatpush1.bf16.msra.mxu0 %v935
  %1242 = vmatprep.subr.bf16.mxu0 0
  %1243 = vmatpush1.bf16.msra.mxu0 %v934
  %1244 = vmatprep.subr.bf16.mxu0 0
  %1245 = vmatpush1.bf16.msra.mxu0 %v933
  %1246 = vmatprep.subr.bf16.mxu0 0
  %1247 = vmatpush1.bf16.msra.mxu0 %v932
  %1248 = vmatprep.subr.bf16.mxu0 0
  %1249 = vmatpush1.bf16.msra.mxu0 %v931
  %1250 = vmatprep.subr.bf16.mxu0 0
  %1251 = vmatpush1.bf16.msra.mxu0 %v930
  %1252 = vmatprep.subr.bf16.mxu0 0
  %1253 = vmatpush2.bf16.msra.mxu0 %v945
  %1254 = vmatprep.subr.bf16.mxu0 0
  %1255 = vmatpush2.bf16.msra.mxu0 %v944
  %1256 = vmatprep.subr.bf16.mxu0 0
  %1257 = vmatpush2.bf16.msra.mxu0 %v943
  %1258 = vmatprep.subr.bf16.mxu0 0
  %1259 = vmatpush2.bf16.msra.mxu0 %v942
  %1260 = vmatprep.subr.bf16.mxu0 0
  %1261 = vmatpush2.bf16.msra.mxu0 %v941
  %1262 = vmatprep.subr.bf16.mxu0 0
  %1263 = vmatpush2.bf16.msra.mxu0 %v940
  %1264 = vmatprep.subr.bf16.mxu0 0
  %1265 = vmatpush2.bf16.msra.mxu0 %v939
  %1266 = vmatprep.subr.bf16.mxu0 0
  %1267 = vmatpush2.bf16.msra.mxu0 %v938
  %1268 = vmatprep.mubr.bf16.mxu0 %v471
  %1269 = vmatmul.mubr.bf16.gmra.mxu0 %v470
  %v1270 = vpop.f32.mrf.mxu0
  %v1271 = vadd.f32 %v1174, %v1270
  %v1272 = vpop.f32.mrf.mxu0
  %v1273 = vpop.f32.mrf.mxu0
  %v1274 = vadd.f32 %v1177, %v1273
  %v1275 = vpop.f32.mrf.mxu0
  %1276 = vmatprep.mubr.bf16.mxu0 %v480
  %1277 = vmatmul.mubr.bf16.gmra.mxu0 %v479
  %v1278 = vpop.f32.mrf.mxu0
  %v1279 = vadd.f32 %v1182, %v1278
  %v1280 = vpop.f32.mrf.mxu0
  %v1281 = vpop.f32.mrf.mxu0
  %v1282 = vadd.f32 %v1185, %v1281
  %v1283 = vpop.f32.mrf.mxu0
  %1284 = vmatprep.mubr.bf16.mxu0 %v489
  %1285 = vmatmul.mubr.bf16.gmra.mxu0 %v488
  %v1286 = vpop.f32.mrf.mxu0
  %v1287 = vadd.f32 %v1190, %v1286
  %v1288 = vpop.f32.mrf.mxu0
  %v1289 = vpop.f32.mrf.mxu0
  %v1290 = vadd.f32 %v1193, %v1289
  %v1291 = vpop.f32.mrf.mxu0
  %1292 = vmatprep.mubr.bf16.mxu0 %v498
  %1293 = vmatmul.mubr.bf16.gmra.mxu0 %v497
  %v1294 = vpop.f32.mrf.mxu0
  %v1295 = vadd.f32 %v1198, %v1294
  %v1296 = vpop.f32.mrf.mxu0
  %v1297 = vpop.f32.mrf.mxu0
  %v1298 = vadd.f32 %v1201, %v1297
  %v1299 = vpop.f32.mrf.mxu0
  %1300 = vmatprep.mubr.bf16.mxu0 %v507
  %1301 = vmatmul.mubr.bf16.gmra.mxu0 %v506
  %v1302 = vpop.f32.mrf.mxu0
  %v1303 = vadd.f32 %v1206, %v1302
  %v1304 = vpop.f32.mrf.mxu0
  %v1305 = vpop.f32.mrf.mxu0
  %v1306 = vadd.f32 %v1209, %v1305
  %v1307 = vpop.f32.mrf.mxu0
  %1308 = vmatprep.mubr.bf16.mxu0 %v516
  %1309 = vmatmul.mubr.bf16.gmra.mxu0 %v515
  %v1310 = vpop.f32.mrf.mxu0
  %v1311 = vadd.f32 %v1214, %v1310
  %v1312 = vpop.f32.mrf.mxu0
  %v1313 = vpop.f32.mrf.mxu0
  %v1314 = vadd.f32 %v1217, %v1313
  %v1315 = vpop.f32.mrf.mxu0
  %1316 = vmatprep.mubr.bf16.mxu0 %v525
  %1317 = vmatmul.mubr.bf16.gmra.mxu0 %v524
  %v1318 = vpop.f32.mrf.mxu0
  %v1319 = vadd.f32 %v1222, %v1318
  %v1320 = vpop.f32.mrf.mxu0
  %v1321 = vpop.f32.mrf.mxu0
  %v1322 = vadd.f32 %v1225, %v1321
  %v1323 = vpop.f32.mrf.mxu0
  %1324 = vmatprep.mubr.bf16.mxu0 %v534
  %1325 = vmatmul.mubr.bf16.gmra.mxu0 %v533
  %v1326 = vpop.f32.mrf.mxu0
  %v1327 = vadd.f32 %v1230, %v1326
  %v1328 = vpop.f32.mrf.mxu0
  %v1329 = vpop.f32.mrf.mxu0
  %v1330 = vadd.f32 %v1233, %v1329
  %v1331 = vpop.f32.mrf.mxu0
  %1332 = vdwg.mxu0
  %1333 = vmatprep.subr.bf16.mxu0 0
  %1334 = vmatpush1.bf16.msra.mxu0 %v953
  %1335 = vmatprep.subr.bf16.mxu0 0
  %1336 = vmatpush1.bf16.msra.mxu0 %v952
  %1337 = vmatprep.subr.bf16.mxu0 0
  %1338 = vmatpush1.bf16.msra.mxu0 %v951
  %1339 = vmatprep.subr.bf16.mxu0 0
  %1340 = vmatpush1.bf16.msra.mxu0 %v950
  %1341 = vmatprep.subr.bf16.mxu0 0
  %1342 = vmatpush1.bf16.msra.mxu0 %v949
  %1343 = vmatprep.subr.bf16.mxu0 0
  %1344 = vmatpush1.bf16.msra.mxu0 %v948
  %1345 = vmatprep.subr.bf16.mxu0 0
  %1346 = vmatpush1.bf16.msra.mxu0 %v947
  %1347 = vmatprep.subr.bf16.mxu0 0
  %1348 = vmatpush1.bf16.msra.mxu0 %v946
  %1349 = vmatprep.subr.bf16.mxu0 0
  %1350 = vmatpush2.bf16.msra.mxu0 %v961
  %1351 = vmatprep.subr.bf16.mxu0 0
  %1352 = vmatpush2.bf16.msra.mxu0 %v960
  %1353 = vmatprep.subr.bf16.mxu0 0
  %1354 = vmatpush2.bf16.msra.mxu0 %v959
  %1355 = vmatprep.subr.bf16.mxu0 0
  %1356 = vmatpush2.bf16.msra.mxu0 %v958
  %1357 = vmatprep.subr.bf16.mxu0 0
  %1358 = vmatpush2.bf16.msra.mxu0 %v957
  %1359 = vmatprep.subr.bf16.mxu0 0
  %1360 = vmatpush2.bf16.msra.mxu0 %v956
  %1361 = vmatprep.subr.bf16.mxu0 0
  %1362 = vmatpush2.bf16.msra.mxu0 %v955
  %1363 = vmatprep.subr.bf16.mxu0 0
  %1364 = vmatpush2.bf16.msra.mxu0 %v954
  %1365 = vmatprep.mubr.bf16.mxu0 %v473
  %1366 = vmatmul.mubr.bf16.gmra.mxu0 %v472
  %v1367 = vpop.f32.mrf.mxu0
  %v1368 = vadd.f32 %v1271, %v1367
  %v1369 = vpop.f32.mrf.mxu0
  %v1370 = vpop.f32.mrf.mxu0
  %v1371 = vadd.f32 %v1274, %v1370
  %v1372 = vpop.f32.mrf.mxu0
  %1373 = vmatprep.mubr.bf16.mxu0 %v482
  %1374 = vmatmul.mubr.bf16.gmra.mxu0 %v481
  %v1375 = vpop.f32.mrf.mxu0
  %v1376 = vadd.f32 %v1279, %v1375
  %v1377 = vpop.f32.mrf.mxu0
  %v1378 = vpop.f32.mrf.mxu0
  %v1379 = vadd.f32 %v1282, %v1378
  %v1380 = vpop.f32.mrf.mxu0
  %1381 = vmatprep.mubr.bf16.mxu0 %v491
  %1382 = vmatmul.mubr.bf16.gmra.mxu0 %v490
  %v1383 = vpop.f32.mrf.mxu0
  %v1384 = vadd.f32 %v1287, %v1383
  %v1385 = vpop.f32.mrf.mxu0
  %v1386 = vpop.f32.mrf.mxu0
  %v1387 = vadd.f32 %v1290, %v1386
  %v1388 = vpop.f32.mrf.mxu0
  %1389 = vmatprep.mubr.bf16.mxu0 %v500
  %1390 = vmatmul.mubr.bf16.gmra.mxu0 %v499
  %v1391 = vpop.f32.mrf.mxu0
  %v1392 = vadd.f32 %v1295, %v1391
  %v1393 = vpop.f32.mrf.mxu0
  %v1394 = vpop.f32.mrf.mxu0
  %v1395 = vadd.f32 %v1298, %v1394
  %v1396 = vpop.f32.mrf.mxu0
  %1397 = vmatprep.mubr.bf16.mxu0 %v509
  %1398 = vmatmul.mubr.bf16.gmra.mxu0 %v508
  %v1399 = vpop.f32.mrf.mxu0
  %v1400 = vadd.f32 %v1303, %v1399
  %v1401 = vpop.f32.mrf.mxu0
  %v1402 = vpop.f32.mrf.mxu0
  %v1403 = vadd.f32 %v1306, %v1402
  %v1404 = vpop.f32.mrf.mxu0
  %1405 = vmatprep.mubr.bf16.mxu0 %v518
  %1406 = vmatmul.mubr.bf16.gmra.mxu0 %v517
  %v1407 = vpop.f32.mrf.mxu0
  %v1408 = vadd.f32 %v1311, %v1407
  %v1409 = vpop.f32.mrf.mxu0
  %v1410 = vpop.f32.mrf.mxu0
  %v1411 = vadd.f32 %v1314, %v1410
  %v1412 = vpop.f32.mrf.mxu0
  %1413 = vmatprep.mubr.bf16.mxu0 %v527
  %1414 = vmatmul.mubr.bf16.gmra.mxu0 %v526
  %v1415 = vpop.f32.mrf.mxu0
  %v1416 = vadd.f32 %v1319, %v1415
  %v1417 = vpop.f32.mrf.mxu0
  %v1418 = vpop.f32.mrf.mxu0
  %v1419 = vadd.f32 %v1322, %v1418
  %v1420 = vpop.f32.mrf.mxu0
  %1421 = vmatprep.mubr.bf16.mxu0 %v536
  %1422 = vmatmul.mubr.bf16.gmra.mxu0 %v535
  %v1423 = vpop.f32.mrf.mxu0
  %v1424 = vadd.f32 %v1327, %v1423
  %v1425 = vpop.f32.mrf.mxu0
  %v1426 = vpop.f32.mrf.mxu0
  %v1427 = vadd.f32 %v1330, %v1426
  %v1428 = vpop.f32.mrf.mxu0
  %1429 = vdwg.mxu0
  %1430 = vmatprep.subr.bf16.mxu0 0
  %1431 = vmatpush1.bf16.msra.mxu0 %v969
  %1432 = vmatprep.subr.bf16.mxu0 0
  %1433 = vmatpush1.bf16.msra.mxu0 %v968
  %1434 = vmatprep.subr.bf16.mxu0 0
  %1435 = vmatpush1.bf16.msra.mxu0 %v967
  %1436 = vmatprep.subr.bf16.mxu0 0
  %1437 = vmatpush1.bf16.msra.mxu0 %v966
  %1438 = vmatprep.subr.bf16.mxu0 0
  %1439 = vmatpush1.bf16.msra.mxu0 %v965
  %1440 = vmatprep.subr.bf16.mxu0 0
  %1441 = vmatpush1.bf16.msra.mxu0 %v964
  %1442 = vmatprep.subr.bf16.mxu0 0
  %1443 = vmatpush1.bf16.msra.mxu0 %v963
  %1444 = vmatprep.subr.bf16.mxu0 0
  %1445 = vmatpush1.bf16.msra.mxu0 %v962
  %1446 = vmatprep.subr.bf16.mxu0 0
  %1447 = vmatpush2.bf16.msra.mxu0 0
  %1448 = vmatprep.subr.bf16.mxu0 0
  %1449 = vmatpush2.bf16.msra.mxu0 0
  %1450 = vmatprep.subr.bf16.mxu0 0
  %1451 = vmatpush2.bf16.msra.mxu0 0
  %1452 = vmatprep.subr.bf16.mxu0 0
  %1453 = vmatpush2.bf16.msra.mxu0 0
  %1454 = vmatprep.subr.bf16.mxu0 0
  %1455 = vmatpush2.bf16.msra.mxu0 0
  %1456 = vmatprep.subr.bf16.mxu0 0
  %1457 = vmatpush2.bf16.msra.mxu0 0
  %1458 = vmatprep.subr.bf16.mxu0 0
  %1459 = vmatpush2.bf16.msra.mxu0 0
  %1460 = vmatprep.subr.bf16.mxu0 0
  %1461 = vmatpush2.bf16.msra.mxu0 0
  %1462 = vmatprep.mubr.bf16.mxu0 0
  %1463 = vmatmul.mubr.bf16.gmra.mxu0 %v474
  %v1464 = vpop.f32.mrf.mxu0
  %v1465 = vadd.f32 %v1368, %v1464
  %v1466 = vpop.f32.mrf.mxu0
  %v1467 = vpop.f32.mrf.mxu0
  %v1468 = vadd.f32 %v1371, %v1467
  %v1469 = vpop.f32.mrf.mxu0
  %1470 = vmatprep.mubr.bf16.mxu0 0
  %1471 = vmatmul.mubr.bf16.gmra.mxu0 %v483
  %v1472 = vpop.f32.mrf.mxu0
  %v1473 = vadd.f32 %v1376, %v1472
  %v1474 = vpop.f32.mrf.mxu0
  %v1475 = vpop.f32.mrf.mxu0
  %v1476 = vadd.f32 %v1379, %v1475
  %v1477 = vpop.f32.mrf.mxu0
  %1478 = vmatprep.mubr.bf16.mxu0 0
  %1479 = vmatmul.mubr.bf16.gmra.mxu0 %v492
  %v1480 = vpop.f32.mrf.mxu0
  %v1481 = vadd.f32 %v1384, %v1480
  %v1482 = vpop.f32.mrf.mxu0
  %v1483 = vpop.f32.mrf.mxu0
  %v1484 = vadd.f32 %v1387, %v1483
  %v1485 = vpop.f32.mrf.mxu0
  %1486 = vmatprep.mubr.bf16.mxu0 0
  %1487 = vmatmul.mubr.bf16.gmra.mxu0 %v501
  %v1488 = vpop.f32.mrf.mxu0
  %v1489 = vadd.f32 %v1392, %v1488
  %v1490 = vpop.f32.mrf.mxu0
  %v1491 = vpop.f32.mrf.mxu0
  %v1492 = vadd.f32 %v1395, %v1491
  %v1493 = vpop.f32.mrf.mxu0
  %1494 = vmatprep.mubr.bf16.mxu0 0
  %1495 = vmatmul.mubr.bf16.gmra.mxu0 %v510
  %v1496 = vpop.f32.mrf.mxu0
  %v1497 = vadd.f32 %v1400, %v1496
  %v1498 = vpop.f32.mrf.mxu0
  %v1499 = vpop.f32.mrf.mxu0
  %v1500 = vadd.f32 %v1403, %v1499
  %v1501 = vpop.f32.mrf.mxu0
  %1502 = vmatprep.mubr.bf16.mxu0 0
  %1503 = vmatmul.mubr.bf16.gmra.mxu0 %v519
  %v1504 = vpop.f32.mrf.mxu0
  %v1505 = vadd.f32 %v1408, %v1504
  %v1506 = vpop.f32.mrf.mxu0
  %v1507 = vpop.f32.mrf.mxu0
  %v1508 = vadd.f32 %v1411, %v1507
  %v1509 = vpop.f32.mrf.mxu0
  %1510 = vmatprep.mubr.bf16.mxu0 0
  %1511 = vmatmul.mubr.bf16.gmra.mxu0 %v528
  %v1512 = vpop.f32.mrf.mxu0
  %v1513 = vadd.f32 %v1416, %v1512
  %v1514 = vpop.f32.mrf.mxu0
  %v1515 = vpop.f32.mrf.mxu0
  %v1516 = vadd.f32 %v1419, %v1515
  %v1517 = vpop.f32.mrf.mxu0
  %1518 = vmatprep.mubr.bf16.mxu0 0
  %1519 = vmatmul.mubr.bf16.gmra.mxu0 %v537
  %v1520 = vpop.f32.mrf.mxu0
  %v1521 = vadd.f32 %v1424, %v1520
  %v1522 = vpop.f32.mrf.mxu0
  %v1523 = vpop.f32.mrf.mxu0
  %v1524 = vadd.f32 %v1427, %v1523
  %v1525 = vpop.f32.mrf.mxu0
  %1526 = vdwg.mxu0
  %v1527 = vld [vmem:[%s2] sm:$0x1]
  %v1529 = vlaneseq
  %v1530 = vshrl.u32 %v1529, 7
  %v1531 = vsub.s32 0, %v1530
  %v1532 = vrot.slane %v1527, %v1531
  %v1534 = vmul.f32 %v1465, %v1532
  %v1535 = vmul.f32 %v1468, %v1532
  %v1536 = vmul.f32 %v1473, %v1532
  %v1537 = vmul.f32 %v1476, %v1532
  %v1538 = vmul.f32 %v1481, %v1532
  %v1539 = vmul.f32 %v1484, %v1532
  %v1540 = vmul.f32 %v1489, %v1532
  %v1541 = vmul.f32 %v1492, %v1532
  %v1542 = vmul.f32 %v1497, %v1532
  %v1543 = vmul.f32 %v1500, %v1532
  %v1544 = vmul.f32 %v1505, %v1532
  %v1545 = vmul.f32 %v1508, %v1532
  %v1546 = vmul.f32 %v1513, %v1532
  %v1547 = vmul.f32 %v1516, %v1532
  %v1548 = vmul.f32 %v1521, %v1532
  %v1549 = vmul.f32 %v1524, %v1532
  %v1550 = vld [vmem:[%s3] sm:$0x1]
  %v1552 = vlaneseq
  %v1553 = vshrl.u32 %v1552, 7
  %v1554 = vsub.s32 0, %v1553
  %v1555 = vrot.slane %v1550, %v1554
  %v1557 = vadd.f32 %v1534, %v1555
  %v1558 = vadd.f32 %v1535, %v1555
  %v1559 = vadd.f32 %v1536, %v1555
  %v1560 = vadd.f32 %v1537, %v1555
  %v1561 = vadd.f32 %v1538, %v1555
  %v1562 = vadd.f32 %v1539, %v1555
  %v1563 = vadd.f32 %v1540, %v1555
  %v1564 = vadd.f32 %v1541, %v1555
  %v1565 = vadd.f32 %v1542, %v1555
  %v1566 = vadd.f32 %v1543, %v1555
  %v1567 = vadd.f32 %v1544, %v1555
  %v1568 = vadd.f32 %v1545, %v1555
  %v1569 = vadd.f32 %v1546, %v1555
  %v1570 = vadd.f32 %v1547, %v1555
  %v1571 = vadd.f32 %v1548, %v1555
  %v1572 = vadd.f32 %v1549, %v1555
  %v1573 = vmax.f32 %v1557, 0.0
  %v1574 = vmax.f32 %v1558, 0.0
  %v1575 = vmax.f32 %v1559, 0.0
  %v1576 = vmax.f32 %v1560, 0.0
  %v1577 = vmax.f32 %v1561, 0.0
  %v1578 = vmax.f32 %v1562, 0.0
  %v1579 = vmax.f32 %v1563, 0.0
  %v1580 = vmax.f32 %v1564, 0.0
  %v1581 = vmax.f32 %v1565, 0.0
  %v1582 = vmax.f32 %v1566, 0.0
  %v1583 = vmax.f32 %v1567, 0.0
  %v1584 = vmax.f32 %v1568, 0.0
  %v1585 = vmax.f32 %v1569, 0.0
  %v1586 = vmax.f32 %v1570, 0.0
  %v1587 = vmax.f32 %v1571, 0.0
  %v1588 = vmax.f32 %v1572, 0.0
  %v1589 = vpack.c.bf16 %v1574, %v1573
  %v1590 = vpack.c.bf16 %v1576, %v1575
  %v1591 = vpack.c.bf16 %v1578, %v1577
  %v1592 = vpack.c.bf16 %v1580, %v1579
  %v1593 = vpack.c.bf16 %v1582, %v1581
  %v1594 = vpack.c.bf16 %v1584, %v1583
  %v1595 = vpack.c.bf16 %v1586, %v1585
  %v1596 = vpack.c.bf16 %v1588, %v1587
  %v1605 = vunpack.c.l.b16 %v1589
  %v1606 = vunpack.c.h.b16 %v1589
  %v1607 = vunpack.c.l.b16 %v1590
  %v1608 = vunpack.c.h.b16 %v1590
  %v1609 = vunpack.c.l.b16 %v1591
  %v1610 = vunpack.c.h.b16 %v1591
  %v1611 = vunpack.c.l.b16 %v1592
  %v1612 = vunpack.c.h.b16 %v1592
  %v1613 = vunpack.c.l.b16 %v1593
  %v1614 = vunpack.c.h.b16 %v1593
  %v1615 = vunpack.c.l.b16 %v1594
  %v1616 = vunpack.c.h.b16 %v1594
  %v1617 = vunpack.c.l.b16 %v1595
  %v1618 = vunpack.c.h.b16 %v1595
  %v1619 = vunpack.c.l.b16 %v1596
  %v1620 = vunpack.c.h.b16 %v1596
  %v1621 = vpack.c.b16 %v1605, %v1605
  %v1622 = vpack.c.b16 %v1606, %v1606
  %v1623 = vpack.c.b16 %v1607, %v1607
  %v1624 = vpack.c.b16 %v1608, %v1608
  %v1625 = vpack.c.b16 %v1609, %v1609
  %v1626 = vpack.c.b16 %v1610, %v1610
  %v1627 = vpack.c.b16 %v1611, %v1611
  %v1628 = vpack.c.b16 %v1612, %v1612
  %v1629 = vpack.c.b16 %v1613, %v1613
  %v1630 = vpack.c.b16 %v1614, %v1614
  %v1631 = vpack.c.b16 %v1615, %v1615
  %v1632 = vpack.c.b16 %v1616, %v1616
  %v1633 = vpack.c.b16 %v1617, %v1617
  %v1634 = vpack.c.b16 %v1618, %v1618
  %v1635 = vpack.c.b16 %v1619, %v1619
  %v1636 = vpack.c.b16 %v1620, %v1620
  %1653 = vst [vmem:[%s4] sm:$0xf] %v1621
  %1654 = vst [vmem:[%s4 + $0x4] sm:$0xf] %v1622
  %1655 = vst [vmem:[%s4 + $0x8] sm:$0xf] %v1623
  %1656 = vst [vmem:[%s4 + $0xc] sm:$0xf] %v1624
  %1657 = vst [vmem:[%s4 + $0x10] sm:$0xf] %v1625
  %1658 = vst [vmem:[%s4 + $0x14] sm:$0xf] %v1626
  %1659 = vst [vmem:[%s4 + $0x18] sm:$0xf] %v1627
  %1660 = vst [vmem:[%s4 + $0x1c] sm:$0xf] %v1628
  %1661 = vst [vmem:[%s4 + $0x20] sm:$0xf] %v1629
  %1662 = vst [vmem:[%s4 + $0x24] sm:$0xf] %v1630
  %1663 = vst [vmem:[%s4 + $0x28] sm:$0xf] %v1631
  %1664 = vst [vmem:[%s4 + $0x2c] sm:$0xf] %v1632
  %1665 = vst [vmem:[%s4 + $0x30] sm:$0xf] %v1633
  %1666 = vst [vmem:[%s4 + $0x34] sm:$0xf] %v1634
  %1667 = vst [vmem:[%s4 + $0x38] sm:$0xf] %v1635
  %1668 = vst [vmem:[%s4 + $0x3c] sm:$0xf] %v1636
  // Predicated region
  $region18: #{deeplab_forward.11} parent=0 // pred_check
    _
  $region19: #{deeplab_forward.11} parent=0 // pred_check_branch
    %1670 = sbr.rel (0) target = $region21
  $region20: #{deeplab_forward.11} parent=0 // pred_region
    _
  $region21: #{deeplab_forward.11} parent=0 // pred_fallthru
    _
  // Predicated region
  $region22: #{deeplab_forward.11} parent=0 // pred_check
    _
  $region23: #{deeplab_forward.11} parent=0 // pred_check_branch
    %1672 = sbr.rel (0) target = $region25
  $region24: #{deeplab_forward.11} parent=0 // pred_region
    _
  $region25: #{deeplab_forward.11} parent=0 // pred_fallthru
    _

// kernel: deeplab_forward.10
$region0: #{deeplab_forward.10}
  #allocation0 [shape = 'u32[]', space=smem, size = 0x4, offset = 0x4, fixed_abs, tag = 'smem constant byte address 0x4 - core index']
  #allocation1 [shape = 'u32[144,128]{1,0:T(1,128)}', space=vmem, size = 0x12000, scoped, tag = 'internal scratch']
  %s0 = inlined_call_operand.vmem [shape: bf16[512,1152], index: 0, kind: input, shape index: {}]
  %s1 = inlined_call_operand.vmem [shape: bf16[1152,128], index: 1, kind: input, shape index: {}]
  %s2 = inlined_call_operand.vmem [shape: f32[1,128], index: 2, kind: input, shape index: {}]
  %s3 = inlined_call_operand.vmem [shape: f32[1,128], index: 3, kind: input, shape index: {}]
  %s4 = inlined_call_operand.vmem [shape: bf16[512,128], index: 4, kind: output, shape index: {}]
  %s5 = sld [smem:[#allocation0]]
  $region49: #{deeplab_forward.10} parent=0
    _
  %s7 = ssub.s32 1, %s5
  %s8 = scalar_select 0, %s7, %s5
  loop: start=0, step=1, limit=4
  $region2: #{deeplab_forward.10} parent=0 // loop_pre_header
    _
  $region3: #{deeplab_forward.10} parent=0 // loop_header
    %s10 = sphi 0, %s14
    %p11 = scmp.ge.s32.totalorder %s10, 4
    %s20 = sphi 0, %s22
    %s23 = sphi 0, %s20
    %s24 = sphi 0, %s23
    %s40 = sphi 0, %s24
    %s44 = sphi 0, %s44
    %s46 = sphi 0, %s44
    %s47 = sphi 0, %s46
    %s61 = sphi 0, %s47
    %s65 = sphi 0, %s65
    %s67 = sphi 0, %s65
    %s68 = sphi 0, %s67
    %s82 = sphi 0, %s68
    %s86 = sphi 0, %s86
    %s88 = sphi 0, %s86
    %s89 = sphi 0, %s88
    %s103 = sphi 0, %s89
    %s109 = sphi 0, %s111
    %s112 = sphi 0, %s109
    %s113 = sphi 0, %s112
    %s129 = sphi 0, %s113
  $region4: #{deeplab_forward.10} parent=0 // loop_header_branch
    %13 = sbr.rel (%p11) target = $region8
  $region5: #{deeplab_forward.10} parent=0 // loop_body
    %s15 = ssub.s32 %s10, 1
    %s16 = ssub.s32 %s10, 2
    %s17 = sadd.s32 %s10, 1
    %s18 = ssub.s32 %s10, %s17
    %p19 = scmp.eq.s32.totalorder %s18, 0
    %s21 = sadd.s32 %s20, 1
    %s22 = scalar_select %p19, %s20, %s21
    %p25 = pneg %p19
    %p26 = scmp.eq.s32.totalorder %s10, 1
    %p27 = por %p25, %p26
    %p28 = scmp.ne.s32.totalorder %s20, %s23
    %p29 = scmp.eq.s32.totalorder %s10, 0
    %p30 = por %p28, %p29
    %p31 = scmp.ne.s32.totalorder %s20, %s23
    %p32 = scmp.eq.s32.totalorder %s15, 1
    %p33 = por %p31, %p32
    %p34 = scmp.ne.s32.totalorder %s23, %s24
    %p35 = scmp.eq.s32.totalorder %s15, 0
    %p36 = por %p34, %p35
    %p37 = scmp.ne.s32.totalorder %s23, %s24
    %p38 = scmp.eq.s32.totalorder %s16, 1
    %p39 = por %p37, %p38
    %p41 = scmp.ne.s32.totalorder %s24, %s40
    %p42 = scmp.eq.s32.totalorder %s16, 0
    %p43 = por %p41, %p42
    %s45 = sadd.s32 %s44, 1
    %p48 = scmp.eq.s32.totalorder %s10, 1
    %p49 = scmp.ne.s32.totalorder %s44, %s46
    %p50 = scmp.eq.s32.totalorder %s10, 0
    %p51 = por %p49, %p50
    %p52 = scmp.ne.s32.totalorder %s44, %s46
    %p53 = scmp.eq.s32.totalorder %s15, 1
    %p54 = por %p52, %p53
    %p55 = scmp.ne.s32.totalorder %s46, %s47
    %p56 = scmp.eq.s32.totalorder %s15, 0
    %p57 = por %p55, %p56
    %p58 = scmp.ne.s32.totalorder %s46, %s47
    %p59 = scmp.eq.s32.totalorder %s16, 1
    %p60 = por %p58, %p59
    %p62 = scmp.ne.s32.totalorder %s47, %s61
    %p63 = scmp.eq.s32.totalorder %s16, 0
    %p64 = por %p62, %p63
    %s66 = sadd.s32 %s65, 1
    %p69 = scmp.eq.s32.totalorder %s10, 1
    %p70 = scmp.ne.s32.totalorder %s65, %s67
    %p71 = scmp.eq.s32.totalorder %s10, 0
    %p72 = por %p70, %p71
    %p73 = scmp.ne.s32.totalorder %s65, %s67
    %p74 = scmp.eq.s32.totalorder %s15, 1
    %p75 = por %p73, %p74
    %p76 = scmp.ne.s32.totalorder %s67, %s68
    %p77 = scmp.eq.s32.totalorder %s15, 0
    %p78 = por %p76, %p77
    %p79 = scmp.ne.s32.totalorder %s67, %s68
    %p80 = scmp.eq.s32.totalorder %s16, 1
    %p81 = por %p79, %p80
    %p83 = scmp.ne.s32.totalorder %s68, %s82
    %p84 = scmp.eq.s32.totalorder %s16, 0
    %p85 = por %p83, %p84
    %s87 = sadd.s32 %s86, 1
    %p90 = scmp.eq.s32.totalorder %s10, 1
    %p91 = scmp.ne.s32.totalorder %s86, %s88
    %p92 = scmp.eq.s32.totalorder %s10, 0
    %p93 = por %p91, %p92
    %p94 = scmp.ne.s32.totalorder %s86, %s88
    %p95 = scmp.eq.s32.totalorder %s15, 1
    %p96 = por %p94, %p95
    %p97 = scmp.ne.s32.totalorder %s88, %s89
    %p98 = scmp.eq.s32.totalorder %s15, 0
    %p99 = por %p97, %p98
    %p100 = scmp.ne.s32.totalorder %s88, %s89
    %p101 = scmp.eq.s32.totalorder %s16, 1
    %p102 = por %p100, %p101
    %p104 = scmp.ne.s32.totalorder %s89, %s103
    %p105 = scmp.eq.s32.totalorder %s16, 0
    %p106 = por %p104, %p105
    %s107 = ssub.s32 %s10, %s17
    %p108 = scmp.eq.s32.totalorder %s107, 0
    %s110 = sadd.s32 %s109, 1
    %s111 = scalar_select %p108, %s109, %s110
    %p114 = pneg %p108
    %p115 = scmp.eq.s32.totalorder %s10, 1
    %p116 = por %p114, %p115
    %p117 = scmp.ne.s32.totalorder %s109, %s112
    %p118 = scmp.eq.s32.totalorder %s10, 0
    %p119 = por %p117, %p118
    %p120 = scmp.ne.s32.totalorder %s109, %s112
    %p121 = scmp.eq.s32.totalorder %s15, 1
    %p122 = por %p120, %p121
    %p123 = scmp.ne.s32.totalorder %s112, %s113
    %p124 = scmp.eq.s32.totalorder %s15, 0
    %p125 = por %p123, %p124
    %p126 = scmp.ne.s32.totalorder %s112, %s113
    %p127 = scmp.eq.s32.totalorder %s16, 1
    %p128 = por %p126, %p127
    %p130 = scmp.ne.s32.totalorder %s113, %s129
    %p131 = scmp.eq.s32.totalorder %s16, 0
    %p132 = por %p130, %p131
    %p133 = scmp.le.s32.totalorder 1, %s10
    %p134 = scmp.lt.s32.totalorder %s10, 3
    %p135 = pnand %p133, %p134
    %p136 = pneg %p135
    // Predicated region
    $region9: #{deeplab_forward.10} parent=5 // pred_check
      _
    $region10: #{deeplab_forward.10} parent=5 // pred_check_branch
      %138 = sbr.rel (%p135) target = $region12
    $region11: #{deeplab_forward.10} parent=5 // pred_region
      %s139 = ssub.s32 %s10, 1
      // Predicated region
      $region13: #{deeplab_forward.10} parent=11 // pred_check
        %p140 = pneg %p57
      $region14: #{deeplab_forward.10} parent=11 // pred_check_branch
        %142 = sbr.rel (%p140) target = $region16
      $region15: #{deeplab_forward.10} parent=11 // pred_region
        _
      $region16: #{deeplab_forward.10} parent=11 // pred_fallthru
        _
      // Predicated region
      $region17: #{deeplab_forward.10} parent=11 // pred_check
        %p143 = pneg %p78
      $region18: #{deeplab_forward.10} parent=11 // pred_check_branch
        %145 = sbr.rel (%p143) target = $region20
      $region19: #{deeplab_forward.10} parent=11 // pred_region
        _
      $region20: #{deeplab_forward.10} parent=11 // pred_fallthru
        _
      // Predicated region
      $region21: #{deeplab_forward.10} parent=11 // pred_check
        %p146 = pneg %p99
      $region22: #{deeplab_forward.10} parent=11 // pred_check_branch
        %148 = sbr.rel (%p146) target = $region24
      $region23: #{deeplab_forward.10} parent=11 // pred_region
        _
      $region24: #{deeplab_forward.10} parent=11 // pred_fallthru
        _
    $region12: #{deeplab_forward.10} parent=5 // pred_fallthru
      _
    %p149 = scmp.lt.s32.totalorder %s10, 2
    // Predicated region
    $region25: #{deeplab_forward.10} parent=5 // pred_check
      %p150 = pneg %p149
    $region26: #{deeplab_forward.10} parent=5 // pred_check_branch
      %152 = sbr.rel (%p150) target = $region28
    $region27: #{deeplab_forward.10} parent=5 // pred_region
      // Predicated region
      $region29: #{deeplab_forward.10} parent=27 // pred_check
        %p153 = pneg %p30
      $region30: #{deeplab_forward.10} parent=27 // pred_check_branch
        %155 = sbr.rel (%p153) target = $region32
      $region31: #{deeplab_forward.10} parent=27 // pred_region
        %s156 = smul.u32 32, %s10
        %p157 = scmp.lt.s32.totalorder %s156, 63
        %s158 = scalar_select %p157, %s156, 63
        %s159 = smul.addr %s158, 9
        %s160 = smul.addr %s159, 4
        %s161 = scalar_lea.vmem %s0, %s160
        %s162 = smul.u32 32, %s10
      $region32: #{deeplab_forward.10} parent=27 // pred_fallthru
        _
    $region28: #{deeplab_forward.10} parent=5 // pred_fallthru
      _
    %p163 = scmp.le.s32.totalorder 1, %s10
    %p164 = scmp.lt.s32.totalorder %s10, 3
    %p165 = pnand %p163, %p164
    %p166 = pneg %p165
    // Predicated region
    $region33: #{deeplab_forward.10} parent=5 // pred_check
      _
    $region34: #{deeplab_forward.10} parent=5 // pred_check_branch
      %168 = sbr.rel (%p165) target = $region36
    $region35: #{deeplab_forward.10} parent=5 // pred_region
      %s169 = ssub.s32 %s10, 1
      %s170 = smul.u32 32, %s15
      %p171 = scmp.lt.s32.totalorder %s170, 63
      %s172 = scalar_select %p171, %s170, 63
      %s173 = smul.addr %s172, 9
      %s174 = smul.addr %s173, 4
      %s175 = scalar_lea.vmem %s0, %s174
      %p176 = pneg %p36
      %p177 = pneg %p33
      %p178 = pneg %p57
      %p179 = pneg %p54
      %p180 = pneg %p78
      %p181 = pneg %p75
      %p182 = pneg %p99
      %p183 = pneg %p96
      %p184 = pneg %p125
      %p185 = pneg %p122
      %s186 = smul.u32 32, %s15
      %p187 = scmp.lt.s32.totalorder %s186, 63
      %s188 = scalar_select %p187, %s186, 63
      %s189 = smul.addr %s188, 4
      %s190 = scalar_lea.vmem %s4, %s189
      %s191 = smul.u32 32, %s15
      %p192 = scmp.lt.s32.totalorder %s191, 63
      %s193 = scalar_select %p192, %s191, 63
      %s194 = smul.addr %s193, 9
      %s195 = smul.addr %s194, 4
      %s196 = scalar_lea.vmem %s0, %s195
      %s197 = smul.u32 32, %s15
      %s198 = smul.u32 32, %s15
      %p199 = scmp.lt.s32.totalorder %s198, 63
      %s200 = scalar_select %p199, %s198, 63
      %s201 = smul.addr %s200, 4
      %s202 = scalar_lea.vmem %s4, %s201
      %s203 = smul.u32 32, %s15
      %v205 = vld [vmem:[%s196] sm:$0xff]
      %v206 = vld [vmem:[%s196 + $0x8] sm:$0xff]
      %v207 = vld [vmem:[%s196 + $0x10] sm:$0xff]
      %v208 = vld [vmem:[%s196 + $0x18] sm:$0xff]
      %v209 = vld [vmem:[%s196 + $0x20] sm:$0xf]
      %v210 = vld [vmem:[%s196 + $0x24] sm:$0xff]
      %v211 = vld [vmem:[%s196 + $0x2c] sm:$0xff]
      %v212 = vld [vmem:[%s196 + $0x34] sm:$0xff]
      %v213 = vld [vmem:[%s196 + $0x3c] sm:$0xff]
      %v214 = vld [vmem:[%s196 + $0x44] sm:$0xf]
      %v215 = vld [vmem:[%s196 + $0x48] sm:$0xff]
      %v216 = vld [vmem:[%s196 + $0x50] sm:$0xff]
      %v217 = vld [vmem:[%s196 + $0x58] sm:$0xff]
      %v218 = vld [vmem:[%s196 + $0x60] sm:$0xff]
      %v219 = vld [vmem:[%s196 + $0x68] sm:$0xf]
      %v220 = vld [vmem:[%s196 + $0x6c] sm:$0xff]
      %v221 = vld [vmem:[%s196 + $0x74] sm:$0xff]
      %v222 = vld [vmem:[%s196 + $0x7c] sm:$0xff]
      %v223 = vld [vmem:[%s196 + $0x84] sm:$0xff]
      %v224 = vld [vmem:[%s196 + $0x8c] sm:$0xf]
      %v225 = vld [vmem:[%s196 + $0x90] sm:$0xff]
      %v226 = vld [vmem:[%s196 + $0x98] sm:$0xff]
      %v227 = vld [vmem:[%s196 + $0xa0] sm:$0xff]
      %v228 = vld [vmem:[%s196 + $0xa8] sm:$0xff]
      %v229 = vld [vmem:[%s196 + $0xb0] sm:$0xf]
      %v230 = vld [vmem:[%s196 + $0xb4] sm:$0xff]
      %v231 = vld [vmem:[%s196 + $0xbc] sm:$0xff]
      %v232 = vld [vmem:[%s196 + $0xc4] sm:$0xff]
      %v233 = vld [vmem:[%s196 + $0xcc] sm:$0xff]
      %v234 = vld [vmem:[%s196 + $0xd4] sm:$0xf]
      %v235 = vld [vmem:[%s196 + $0xd8] sm:$0xff]
      %v236 = vld [vmem:[%s196 + $0xe0] sm:$0xff]
      %v237 = vld [vmem:[%s196 + $0xe8] sm:$0xff]
      %v238 = vld [vmem:[%s196 + $0xf0] sm:$0xff]
      %v239 = vld [vmem:[%s196 + $0xf8] sm:$0xf]
      %v240 = vld [vmem:[%s196 + $0xfc] sm:$0xff]
      %v241 = vld [vmem:[%s196 + $0x104] sm:$0xff]
      %v242 = vld [vmem:[%s196 + $0x10c] sm:$0xff]
      %v243 = vld [vmem:[%s196 + $0x114] sm:$0xff]
      %v244 = vld [vmem:[%s196 + $0x11c] sm:$0xf]
      %v245 = vld [vmem:[%s196 + $0x120] sm:$0xff]
      %v246 = vld [vmem:[%s196 + $0x128] sm:$0xff]
      %v247 = vld [vmem:[%s196 + $0x130] sm:$0xff]
      %v248 = vld [vmem:[%s196 + $0x138] sm:$0xff]
      %v249 = vld [vmem:[%s196 + $0x140] sm:$0xf]
      %v250 = vld [vmem:[%s196 + $0x144] sm:$0xff]
      %v251 = vld [vmem:[%s196 + $0x14c] sm:$0xff]
      %v252 = vld [vmem:[%s196 + $0x154] sm:$0xff]
      %v253 = vld [vmem:[%s196 + $0x15c] sm:$0xff]
      %v254 = vld [vmem:[%s196 + $0x164] sm:$0xf]
      %v255 = vld [vmem:[%s196 + $0x168] sm:$0xff]
      %v256 = vld [vmem:[%s196 + $0x170] sm:$0xff]
      %v257 = vld [vmem:[%s196 + $0x178] sm:$0xff]
      %v258 = vld [vmem:[%s196 + $0x180] sm:$0xff]
      %v259 = vld [vmem:[%s196 + $0x188] sm:$0xf]
      %v260 = vld [vmem:[%s196 + $0x18c] sm:$0xff]
      %v261 = vld [vmem:[%s196 + $0x194] sm:$0xff]
      %v262 = vld [vmem:[%s196 + $0x19c] sm:$0xff]
      %v263 = vld [vmem:[%s196 + $0x1a4] sm:$0xff]
      %v264 = vld [vmem:[%s196 + $0x1ac] sm:$0xf]
      %v265 = vld [vmem:[%s196 + $0x1b0] sm:$0xff]
      %v266 = vld [vmem:[%s196 + $0x1b8] sm:$0xff]
      %v267 = vld [vmem:[%s196 + $0x1c0] sm:$0xff]
      %v268 = vld [vmem:[%s196 + $0x1c8] sm:$0xff]
      %v269 = vld [vmem:[%s196 + $0x1d0] sm:$0xf]
      %v270 = vld [vmem:[%s196 + $0x1d4] sm:$0xff]
      %v271 = vld [vmem:[%s196 + $0x1dc] sm:$0xff]
      %v272 = vld [vmem:[%s196 + $0x1e4] sm:$0xff]
      %v273 = vld [vmem:[%s196 + $0x1ec] sm:$0xff]
      %v274 = vld [vmem:[%s196 + $0x1f4] sm:$0xf]
      %v275 = vld [vmem:[%s196 + $0x1f8] sm:$0xff]
      %v276 = vld [vmem:[%s196 + $0x200] sm:$0xff]
      %v277 = vld [vmem:[%s196 + $0x208] sm:$0xff]
      %v278 = vld [vmem:[%s196 + $0x210] sm:$0xff]
      %v279 = vld [vmem:[%s196 + $0x218] sm:$0xf]
      %v280 = vld [vmem:[%s196 + $0x21c] sm:$0xff]
      %v281 = vld [vmem:[%s196 + $0x224] sm:$0xff]
      %v282 = vld [vmem:[%s196 + $0x22c] sm:$0xff]
      %v283 = vld [vmem:[%s196 + $0x234] sm:$0xff]
      %v284 = vld [vmem:[%s196 + $0x23c] sm:$0xf]
      %v285 = vld [vmem:[%s196 + $0x240] sm:$0xff]
      %v286 = vld [vmem:[%s196 + $0x248] sm:$0xff]
      %v287 = vld [vmem:[%s196 + $0x250] sm:$0xff]
      %v288 = vld [vmem:[%s196 + $0x258] sm:$0xff]
      %v289 = vld [vmem:[%s196 + $0x260] sm:$0xf]
      %v290 = vld [vmem:[%s196 + $0x264] sm:$0xff]
      %v291 = vld [vmem:[%s196 + $0x26c] sm:$0xff]
      %v292 = vld [vmem:[%s196 + $0x274] sm:$0xff]
      %v293 = vld [vmem:[%s196 + $0x27c] sm:$0xff]
      %v294 = vld [vmem:[%s196 + $0x284] sm:$0xf]
      %v295 = vld [vmem:[%s196 + $0x288] sm:$0xff]
      %v296 = vld [vmem:[%s196 + $0x290] sm:$0xff]
      %v297 = vld [vmem:[%s196 + $0x298] sm:$0xff]
      %v298 = vld [vmem:[%s196 + $0x2a0] sm:$0xff]
      %v299 = vld [vmem:[%s196 + $0x2a8] sm:$0xf]
      %v300 = vld [vmem:[%s196 + $0x2ac] sm:$0xff]
      %v301 = vld [vmem:[%s196 + $0x2b4] sm:$0xff]
      %v302 = vld [vmem:[%s196 + $0x2bc] sm:$0xff]
      %v303 = vld [vmem:[%s196 + $0x2c4] sm:$0xff]
      %v304 = vld [vmem:[%s196 + $0x2cc] sm:$0xf]
      %v305 = vld [vmem:[%s196 + $0x2d0] sm:$0xff]
      %v306 = vld [vmem:[%s196 + $0x2d8] sm:$0xff]
      %v307 = vld [vmem:[%s196 + $0x2e0] sm:$0xff]
      %v308 = vld [vmem:[%s196 + $0x2e8] sm:$0xff]
      %v309 = vld [vmem:[%s196 + $0x2f0] sm:$0xf]
      %v310 = vld [vmem:[%s196 + $0x2f4] sm:$0xff]
      %v311 = vld [vmem:[%s196 + $0x2fc] sm:$0xff]
      %v312 = vld [vmem:[%s196 + $0x304] sm:$0xff]
      %v313 = vld [vmem:[%s196 + $0x30c] sm:$0xff]
      %v314 = vld [vmem:[%s196 + $0x314] sm:$0xf]
      %v315 = vld [vmem:[%s196 + $0x318] sm:$0xff]
      %v316 = vld [vmem:[%s196 + $0x320] sm:$0xff]
      %v317 = vld [vmem:[%s196 + $0x328] sm:$0xff]
      %v318 = vld [vmem:[%s196 + $0x330] sm:$0xff]
      %v319 = vld [vmem:[%s196 + $0x338] sm:$0xf]
      %v320 = vld [vmem:[%s196 + $0x33c] sm:$0xff]
      %v321 = vld [vmem:[%s196 + $0x344] sm:$0xff]
      %v322 = vld [vmem:[%s196 + $0x34c] sm:$0xff]
      %v323 = vld [vmem:[%s196 + $0x354] sm:$0xff]
      %v324 = vld [vmem:[%s196 + $0x35c] sm:$0xf]
      %v325 = vld [vmem:[%s196 + $0x360] sm:$0xff]
      %v326 = vld [vmem:[%s196 + $0x368] sm:$0xff]
      %v327 = vld [vmem:[%s196 + $0x370] sm:$0xff]
      %v328 = vld [vmem:[%s196 + $0x378] sm:$0xff]
      %v329 = vld [vmem:[%s196 + $0x380] sm:$0xf]
      %v330 = vld [vmem:[%s196 + $0x384] sm:$0xff]
      %v331 = vld [vmem:[%s196 + $0x38c] sm:$0xff]
      %v332 = vld [vmem:[%s196 + $0x394] sm:$0xff]
      %v333 = vld [vmem:[%s196 + $0x39c] sm:$0xff]
      %v334 = vld [vmem:[%s196 + $0x3a4] sm:$0xf]
      %v335 = vld [vmem:[%s196 + $0x3a8] sm:$0xff]
      %v336 = vld [vmem:[%s196 + $0x3b0] sm:$0xff]
      %v337 = vld [vmem:[%s196 + $0x3b8] sm:$0xff]
      %v338 = vld [vmem:[%s196 + $0x3c0] sm:$0xff]
      %v339 = vld [vmem:[%s196 + $0x3c8] sm:$0xf]
      %v340 = vld [vmem:[%s196 + $0x3cc] sm:$0xff]
      %v341 = vld [vmem:[%s196 + $0x3d4] sm:$0xff]
      %v342 = vld [vmem:[%s196 + $0x3dc] sm:$0xff]
      %v343 = vld [vmem:[%s196 + $0x3e4] sm:$0xff]
      %v344 = vld [vmem:[%s196 + $0x3ec] sm:$0xf]
      %v345 = vld [vmem:[%s196 + $0x3f0] sm:$0xff]
      %v346 = vld [vmem:[%s196 + $0x3f8] sm:$0xff]
      %v347 = vld [vmem:[%s196 + $0x400] sm:$0xff]
      %v348 = vld [vmem:[%s196 + $0x408] sm:$0xff]
      %v349 = vld [vmem:[%s196 + $0x410] sm:$0xf]
      %v350 = vld [vmem:[%s196 + $0x414] sm:$0xff]
      %v351 = vld [vmem:[%s196 + $0x41c] sm:$0xff]
      %v352 = vld [vmem:[%s196 + $0x424] sm:$0xff]
      %v353 = vld [vmem:[%s196 + $0x42c] sm:$0xff]
      %v354 = vld [vmem:[%s196 + $0x434] sm:$0xf]
      %v355 = vld [vmem:[%s196 + $0x438] sm:$0xff]
      %v356 = vld [vmem:[%s196 + $0x440] sm:$0xff]
      %v357 = vld [vmem:[%s196 + $0x448] sm:$0xff]
      %v358 = vld [vmem:[%s196 + $0x450] sm:$0xff]
      %v359 = vld [vmem:[%s196 + $0x458] sm:$0xf]
      %v360 = vld [vmem:[%s196 + $0x45c] sm:$0xff]
      %v361 = vld [vmem:[%s196 + $0x464] sm:$0xff]
      %v362 = vld [vmem:[%s196 + $0x46c] sm:$0xff]
      %v363 = vld [vmem:[%s196 + $0x474] sm:$0xff]
      %v364 = vld [vmem:[%s196 + $0x47c] sm:$0xf]
      %v365 = vld [vmem:[%s1] sm:$0xf]
      %v366 = vld [vmem:[%s1 + $0x4] sm:$0xf]
      %v367 = vld [vmem:[%s1 + $0x8] sm:$0xf]
      %v368 = vld [vmem:[%s1 + $0xc] sm:$0xf]
      %v369 = vld [vmem:[%s1 + $0x10] sm:$0xf]
      %v370 = vld [vmem:[%s1 + $0x14] sm:$0xf]
      %v371 = vld [vmem:[%s1 + $0x18] sm:$0xf]
      %v372 = vld [vmem:[%s1 + $0x1c] sm:$0xf]
      %v373 = vld [vmem:[%s1 + $0x20] sm:$0xf]
      %v374 = vld [vmem:[%s1 + $0x24] sm:$0xf]
      %v375 = vld [vmem:[%s1 + $0x28] sm:$0xf]
      %v376 = vld [vmem:[%s1 + $0x2c] sm:$0xf]
      %v377 = vld [vmem:[%s1 + $0x30] sm:$0xf]
      %v378 = vld [vmem:[%s1 + $0x34] sm:$0xf]
      %v379 = vld [vmem:[%s1 + $0x38] sm:$0xf]
      %v380 = vld [vmem:[%s1 + $0x3c] sm:$0xf]
      %v381 = vld [vmem:[%s1 + $0x40] sm:$0xf]
      %v382 = vld [vmem:[%s1 + $0x44] sm:$0xf]
      %v383 = vld [vmem:[%s1 + $0x48] sm:$0xf]
      %v384 = vld [vmem:[%s1 + $0x4c] sm:$0xf]
      %v385 = vld [vmem:[%s1 + $0x50] sm:$0xf]
      %v386 = vld [vmem:[%s1 + $0x54] sm:$0xf]
      %v387 = vld [vmem:[%s1 + $0x58] sm:$0xf]
      %v388 = vld [vmem:[%s1 + $0x5c] sm:$0xf]
      %v389 = vld [vmem:[%s1 + $0x60] sm:$0xf]
      %v390 = vld [vmem:[%s1 + $0x64] sm:$0xf]
      %v391 = vld [vmem:[%s1 + $0x68] sm:$0xf]
      %v392 = vld [vmem:[%s1 + $0x6c] sm:$0xf]
      %v393 = vld [vmem:[%s1 + $0x70] sm:$0xf]
      %v394 = vld [vmem:[%s1 + $0x74] sm:$0xf]
      %v395 = vld [vmem:[%s1 + $0x78] sm:$0xf]
      %v396 = vld [vmem:[%s1 + $0x7c] sm:$0xf]
      %v397 = vld [vmem:[%s1 + $0x80] sm:$0xf]
      %v398 = vld [vmem:[%s1 + $0x84] sm:$0xf]
      %v399 = vld [vmem:[%s1 + $0x88] sm:$0xf]
      %v400 = vld [vmem:[%s1 + $0x8c] sm:$0xf]
      %v401 = vld [vmem:[%s1 + $0x90] sm:$0xf]
      %v402 = vld [vmem:[%s1 + $0x94] sm:$0xf]
      %v403 = vld [vmem:[%s1 + $0x98] sm:$0xf]
      %v404 = vld [vmem:[%s1 + $0x9c] sm:$0xf]
      %v405 = vld [vmem:[%s1 + $0xa0] sm:$0xf]
      %v406 = vld [vmem:[%s1 + $0xa4] sm:$0xf]
      %v407 = vld [vmem:[%s1 + $0xa8] sm:$0xf]
      %v408 = vld [vmem:[%s1 + $0xac] sm:$0xf]
      %v409 = vld [vmem:[%s1 + $0xb0] sm:$0xf]
      %v410 = vld [vmem:[%s1 + $0xb4] sm:$0xf]
      %v411 = vld [vmem:[%s1 + $0xb8] sm:$0xf]
      %v412 = vld [vmem:[%s1 + $0xbc] sm:$0xf]
      %v413 = vld [vmem:[%s1 + $0xc0] sm:$0xf]
      %v414 = vld [vmem:[%s1 + $0xc4] sm:$0xf]
      %v415 = vld [vmem:[%s1 + $0xc8] sm:$0xf]
      %v416 = vld [vmem:[%s1 + $0xcc] sm:$0xf]
      %v417 = vld [vmem:[%s1 + $0xd0] sm:$0xf]
      %v418 = vld [vmem:[%s1 + $0xd4] sm:$0xf]
      %v419 = vld [vmem:[%s1 + $0xd8] sm:$0xf]
      %v420 = vld [vmem:[%s1 + $0xdc] sm:$0xf]
      %v421 = vld [vmem:[%s1 + $0xe0] sm:$0xf]
      %v422 = vld [vmem:[%s1 + $0xe4] sm:$0xf]
      %v423 = vld [vmem:[%s1 + $0xe8] sm:$0xf]
      %v424 = vld [vmem:[%s1 + $0xec] sm:$0xf]
      %v425 = vld [vmem:[%s1 + $0xf0] sm:$0xf]
      %v426 = vld [vmem:[%s1 + $0xf4] sm:$0xf]
      %v427 = vld [vmem:[%s1 + $0xf8] sm:$0xf]
      %v428 = vld [vmem:[%s1 + $0xfc] sm:$0xf]
      %v429 = vld [vmem:[%s1 + $0x100] sm:$0xf]
      %v430 = vld [vmem:[%s1 + $0x104] sm:$0xf]
      %v431 = vld [vmem:[%s1 + $0x108] sm:$0xf]
      %v432 = vld [vmem:[%s1 + $0x10c] sm:$0xf]
      %v433 = vld [vmem:[%s1 + $0x110] sm:$0xf]
      %v434 = vld [vmem:[%s1 + $0x114] sm:$0xf]
      %v435 = vld [vmem:[%s1 + $0x118] sm:$0xf]
      %v436 = vld [vmem:[%s1 + $0x11c] sm:$0xf]
      %v437 = vld [vmem:[%s1 + $0x120] sm:$0xf]
      %v438 = vld [vmem:[%s1 + $0x124] sm:$0xf]
      %v439 = vld [vmem:[%s1 + $0x128] sm:$0xf]
      %v440 = vld [vmem:[%s1 + $0x12c] sm:$0xf]
      %v441 = vld [vmem:[%s1 + $0x130] sm:$0xf]
      %v442 = vld [vmem:[%s1 + $0x134] sm:$0xf]
      %v443 = vld [vmem:[%s1 + $0x138] sm:$0xf]
      %v444 = vld [vmem:[%s1 + $0x13c] sm:$0xf]
      %v445 = vld [vmem:[%s1 + $0x140] sm:$0xf]
      %v446 = vld [vmem:[%s1 + $0x144] sm:$0xf]
      %v447 = vld [vmem:[%s1 + $0x148] sm:$0xf]
      %v448 = vld [vmem:[%s1 + $0x14c] sm:$0xf]
      %v449 = vld [vmem:[%s1 + $0x150] sm:$0xf]
      %v450 = vld [vmem:[%s1 + $0x154] sm:$0xf]
      %v451 = vld [vmem:[%s1 + $0x158] sm:$0xf]
      %v452 = vld [vmem:[%s1 + $0x15c] sm:$0xf]
      %v453 = vld [vmem:[%s1 + $0x160] sm:$0xf]
      %v454 = vld [vmem:[%s1 + $0x164] sm:$0xf]
      %v455 = vld [vmem:[%s1 + $0x168] sm:$0xf]
      %v456 = vld [vmem:[%s1 + $0x16c] sm:$0xf]
      %v457 = vld [vmem:[%s1 + $0x170] sm:$0xf]
      %v458 = vld [vmem:[%s1 + $0x174] sm:$0xf]
      %v459 = vld [vmem:[%s1 + $0x178] sm:$0xf]
      %v460 = vld [vmem:[%s1 + $0x17c] sm:$0xf]
      %v461 = vld [vmem:[%s1 + $0x180] sm:$0xf]
      %v462 = vld [vmem:[%s1 + $0x184] sm:$0xf]
      %v463 = vld [vmem:[%s1 + $0x188] sm:$0xf]
      %v464 = vld [vmem:[%s1 + $0x18c] sm:$0xf]
      %v465 = vld [vmem:[%s1 + $0x190] sm:$0xf]
      %v466 = vld [vmem:[%s1 + $0x194] sm:$0xf]
      %v467 = vld [vmem:[%s1 + $0x198] sm:$0xf]
      %v468 = vld [vmem:[%s1 + $0x19c] sm:$0xf]
      %v469 = vld [vmem:[%s1 + $0x1a0] sm:$0xf]
      %v470 = vld [vmem:[%s1 + $0x1a4] sm:$0xf]
      %v471 = vld [vmem:[%s1 + $0x1a8] sm:$0xf]
      %v472 = vld [vmem:[%s1 + $0x1ac] sm:$0xf]
      %v473 = vld [vmem:[%s1 + $0x1b0] sm:$0xf]
      %v474 = vld [vmem:[%s1 + $0x1b4] sm:$0xf]
      %v475 = vld [vmem:[%s1 + $0x1b8] sm:$0xf]
      %v476 = vld [vmem:[%s1 + $0x1bc] sm:$0xf]
      %v477 = vld [vmem:[%s1 + $0x1c0] sm:$0xf]
      %v478 = vld [vmem:[%s1 + $0x1c4] sm:$0xf]
      %v479 = vld [vmem:[%s1 + $0x1c8] sm:$0xf]
      %v480 = vld [vmem:[%s1 + $0x1cc] sm:$0xf]
      %v481 = vld [vmem:[%s1 + $0x1d0] sm:$0xf]
      %v482 = vld [vmem:[%s1 + $0x1d4] sm:$0xf]
      %v483 = vld [vmem:[%s1 + $0x1d8] sm:$0xf]
      %v484 = vld [vmem:[%s1 + $0x1dc] sm:$0xf]
      %v485 = vld [vmem:[%s1 + $0x1e0] sm:$0xf]
      %v486 = vld [vmem:[%s1 + $0x1e4] sm:$0xf]
      %v487 = vld [vmem:[%s1 + $0x1e8] sm:$0xf]
      %v488 = vld [vmem:[%s1 + $0x1ec] sm:$0xf]
      %v489 = vld [vmem:[%s1 + $0x1f0] sm:$0xf]
      %v490 = vld [vmem:[%s1 + $0x1f4] sm:$0xf]
      %v491 = vld [vmem:[%s1 + $0x1f8] sm:$0xf]
      %v492 = vld [vmem:[%s1 + $0x1fc] sm:$0xf]
      %v493 = vld [vmem:[%s1 + $0x200] sm:$0xf]
      %v494 = vld [vmem:[%s1 + $0x204] sm:$0xf]
      %v495 = vld [vmem:[%s1 + $0x208] sm:$0xf]
      %v496 = vld [vmem:[%s1 + $0x20c] sm:$0xf]
      %v497 = vld [vmem:[%s1 + $0x210] sm:$0xf]
      %v498 = vld [vmem:[%s1 + $0x214] sm:$0xf]
      %v499 = vld [vmem:[%s1 + $0x218] sm:$0xf]
      %v500 = vld [vmem:[%s1 + $0x21c] sm:$0xf]
      %v501 = vld [vmem:[%s1 + $0x220] sm:$0xf]
      %v502 = vld [vmem:[%s1 + $0x224] sm:$0xf]
      %v503 = vld [vmem:[%s1 + $0x228] sm:$0xf]
      %v504 = vld [vmem:[%s1 + $0x22c] sm:$0xf]
      %v505 = vld [vmem:[%s1 + $0x230] sm:$0xf]
      %v506 = vld [vmem:[%s1 + $0x234] sm:$0xf]
      %v507 = vld [vmem:[%s1 + $0x238] sm:$0xf]
      %v508 = vld [vmem:[%s1 + $0x23c] sm:$0xf]
      %v669 = vunpack.c.l.b16 %v205
      %v670 = vunpack.c.h.b16 %v205
      %v671 = vunpack.c.l.b16 %v206
      %v672 = vunpack.c.h.b16 %v206
      %v673 = vunpack.c.l.b16 %v207
      %v674 = vunpack.c.h.b16 %v207
      %v675 = vunpack.c.l.b16 %v208
      %v676 = vunpack.c.h.b16 %v208
      %v677 = vunpack.c.l.b16 %v209
      %v678 = vunpack.c.l.b16 %v210
      %v679 = vunpack.c.h.b16 %v210
      %v680 = vunpack.c.l.b16 %v211
      %v681 = vunpack.c.h.b16 %v211
      %v682 = vunpack.c.l.b16 %v212
      %v683 = vunpack.c.h.b16 %v212
      %v684 = vunpack.c.l.b16 %v213
      %v685 = vunpack.c.h.b16 %v213
      %v686 = vunpack.c.l.b16 %v214
      %v687 = vunpack.c.l.b16 %v215
      %v688 = vunpack.c.h.b16 %v215
      %v689 = vunpack.c.l.b16 %v216
      %v690 = vunpack.c.h.b16 %v216
      %v691 = vunpack.c.l.b16 %v217
      %v692 = vunpack.c.h.b16 %v217
      %v693 = vunpack.c.l.b16 %v218
      %v694 = vunpack.c.h.b16 %v218
      %v695 = vunpack.c.l.b16 %v219
      %v696 = vunpack.c.l.b16 %v220
      %v697 = vunpack.c.h.b16 %v220
      %v698 = vunpack.c.l.b16 %v221
      %v699 = vunpack.c.h.b16 %v221
      %v700 = vunpack.c.l.b16 %v222
      %v701 = vunpack.c.h.b16 %v222
      %v702 = vunpack.c.l.b16 %v223
      %v703 = vunpack.c.h.b16 %v223
      %v704 = vunpack.c.l.b16 %v224
      %v705 = vunpack.c.l.b16 %v225
      %v706 = vunpack.c.h.b16 %v225
      %v707 = vunpack.c.l.b16 %v226
      %v708 = vunpack.c.h.b16 %v226
      %v709 = vunpack.c.l.b16 %v227
      %v710 = vunpack.c.h.b16 %v227
      %v711 = vunpack.c.l.b16 %v228
      %v712 = vunpack.c.h.b16 %v228
      %v713 = vunpack.c.l.b16 %v229
      %v714 = vunpack.c.l.b16 %v230
      %v715 = vunpack.c.h.b16 %v230
      %v716 = vunpack.c.l.b16 %v231
      %v717 = vunpack.c.h.b16 %v231
      %v718 = vunpack.c.l.b16 %v232
      %v719 = vunpack.c.h.b16 %v232
      %v720 = vunpack.c.l.b16 %v233
      %v721 = vunpack.c.h.b16 %v233
      %v722 = vunpack.c.l.b16 %v234
      %v723 = vunpack.c.l.b16 %v235
      %v724 = vunpack.c.h.b16 %v235
      %v725 = vunpack.c.l.b16 %v236
      %v726 = vunpack.c.h.b16 %v236
      %v727 = vunpack.c.l.b16 %v237
      %v728 = vunpack.c.h.b16 %v237
      %v729 = vunpack.c.l.b16 %v238
      %v730 = vunpack.c.h.b16 %v238
      %v731 = vunpack.c.l.b16 %v239
      %v732 = vunpack.c.l.b16 %v240
      %v733 = vunpack.c.h.b16 %v240
      %v734 = vunpack.c.l.b16 %v241
      %v735 = vunpack.c.h.b16 %v241
      %v736 = vunpack.c.l.b16 %v242
      %v737 = vunpack.c.h.b16 %v242
      %v738 = vunpack.c.l.b16 %v243
      %v739 = vunpack.c.h.b16 %v243
      %v740 = vunpack.c.l.b16 %v244
      %v741 = vunpack.c.l.b16 %v245
      %v742 = vunpack.c.h.b16 %v245
      %v743 = vunpack.c.l.b16 %v246
      %v744 = vunpack.c.h.b16 %v246
      %v745 = vunpack.c.l.b16 %v247
      %v746 = vunpack.c.h.b16 %v247
      %v747 = vunpack.c.l.b16 %v248
      %v748 = vunpack.c.h.b16 %v248
      %v749 = vunpack.c.l.b16 %v249
      %v750 = vunpack.c.l.b16 %v250
      %v751 = vunpack.c.h.b16 %v250
      %v752 = vunpack.c.l.b16 %v251
      %v753 = vunpack.c.h.b16 %v251
      %v754 = vunpack.c.l.b16 %v252
      %v755 = vunpack.c.h.b16 %v252
      %v756 = vunpack.c.l.b16 %v253
      %v757 = vunpack.c.h.b16 %v253
      %v758 = vunpack.c.l.b16 %v254
      %v759 = vunpack.c.l.b16 %v255
      %v760 = vunpack.c.h.b16 %v255
      %v761 = vunpack.c.l.b16 %v256
      %v762 = vunpack.c.h.b16 %v256
      %v763 = vunpack.c.l.b16 %v257
      %v764 = vunpack.c.h.b16 %v257
      %v765 = vunpack.c.l.b16 %v258
      %v766 = vunpack.c.h.b16 %v258
      %v767 = vunpack.c.l.b16 %v259
      %v768 = vunpack.c.l.b16 %v260
      %v769 = vunpack.c.h.b16 %v260
      %v770 = vunpack.c.l.b16 %v261
      %v771 = vunpack.c.h.b16 %v261
      %v772 = vunpack.c.l.b16 %v262
      %v773 = vunpack.c.h.b16 %v262
      %v774 = vunpack.c.l.b16 %v263
      %v775 = vunpack.c.h.b16 %v263
      %v776 = vunpack.c.l.b16 %v264
      %v777 = vunpack.c.l.b16 %v265
      %v778 = vunpack.c.h.b16 %v265
      %v779 = vunpack.c.l.b16 %v266
      %v780 = vunpack.c.h.b16 %v266
      %v781 = vunpack.c.l.b16 %v267
      %v782 = vunpack.c.h.b16 %v267
      %v783 = vunpack.c.l.b16 %v268
      %v784 = vunpack.c.h.b16 %v268
      %v785 = vunpack.c.l.b16 %v269
      %v786 = vunpack.c.l.b16 %v270
      %v787 = vunpack.c.h.b16 %v270
      %v788 = vunpack.c.l.b16 %v271
      %v789 = vunpack.c.h.b16 %v271
      %v790 = vunpack.c.l.b16 %v272
      %v791 = vunpack.c.h.b16 %v272
      %v792 = vunpack.c.l.b16 %v273
      %v793 = vunpack.c.h.b16 %v273
      %v794 = vunpack.c.l.b16 %v274
      %v795 = vunpack.c.l.b16 %v275
      %v796 = vunpack.c.h.b16 %v275
      %v797 = vunpack.c.l.b16 %v276
      %v798 = vunpack.c.h.b16 %v276
      %v799 = vunpack.c.l.b16 %v277
      %v800 = vunpack.c.h.b16 %v277
      %v801 = vunpack.c.l.b16 %v278
      %v802 = vunpack.c.h.b16 %v278
      %v803 = vunpack.c.l.b16 %v279
      %v804 = vunpack.c.l.b16 %v280
      %v805 = vunpack.c.h.b16 %v280
      %v806 = vunpack.c.l.b16 %v281
      %v807 = vunpack.c.h.b16 %v281
      %v808 = vunpack.c.l.b16 %v282
      %v809 = vunpack.c.h.b16 %v282
      %v810 = vunpack.c.l.b16 %v283
      %v811 = vunpack.c.h.b16 %v283
      %v812 = vunpack.c.l.b16 %v284
      %v813 = vunpack.c.l.b16 %v285
      %v814 = vunpack.c.h.b16 %v285
      %v815 = vunpack.c.l.b16 %v286
      %v816 = vunpack.c.h.b16 %v286
      %v817 = vunpack.c.l.b16 %v287
      %v818 = vunpack.c.h.b16 %v287
      %v819 = vunpack.c.l.b16 %v288
      %v820 = vunpack.c.h.b16 %v288
      %v821 = vunpack.c.l.b16 %v289
      %v822 = vunpack.c.l.b16 %v290
      %v823 = vunpack.c.h.b16 %v290
      %v824 = vunpack.c.l.b16 %v291
      %v825 = vunpack.c.h.b16 %v291
      %v826 = vunpack.c.l.b16 %v292
      %v827 = vunpack.c.h.b16 %v292
      %v828 = vunpack.c.l.b16 %v293
      %v829 = vunpack.c.h.b16 %v293
      %v830 = vunpack.c.l.b16 %v294
      %v831 = vunpack.c.l.b16 %v295
      %v832 = vunpack.c.h.b16 %v295
      %v833 = vunpack.c.l.b16 %v296
      %v834 = vunpack.c.h.b16 %v296
      %v835 = vunpack.c.l.b16 %v297
      %v836 = vunpack.c.h.b16 %v297
      %v837 = vunpack.c.l.b16 %v298
      %v838 = vunpack.c.h.b16 %v298
      %v839 = vunpack.c.l.b16 %v299
      %v840 = vunpack.c.l.b16 %v300
      %v841 = vunpack.c.h.b16 %v300
      %v842 = vunpack.c.l.b16 %v301
      %v843 = vunpack.c.h.b16 %v301
      %v844 = vunpack.c.l.b16 %v302
      %v845 = vunpack.c.h.b16 %v302
      %v846 = vunpack.c.l.b16 %v303
      %v847 = vunpack.c.h.b16 %v303
      %v848 = vunpack.c.l.b16 %v304
      %v849 = vunpack.c.l.b16 %v305
      %v850 = vunpack.c.h.b16 %v305
      %v851 = vunpack.c.l.b16 %v306
      %v852 = vunpack.c.h.b16 %v306
      %v853 = vunpack.c.l.b16 %v307
      %v854 = vunpack.c.h.b16 %v307
      %v855 = vunpack.c.l.b16 %v308
      %v856 = vunpack.c.h.b16 %v308
      %v857 = vunpack.c.l.b16 %v309
      %v858 = vunpack.c.l.b16 %v310
      %v859 = vunpack.c.h.b16 %v310
      %v860 = vunpack.c.l.b16 %v311
      %v861 = vunpack.c.h.b16 %v311
      %v862 = vunpack.c.l.b16 %v312
      %v863 = vunpack.c.h.b16 %v312
      %v864 = vunpack.c.l.b16 %v313
      %v865 = vunpack.c.h.b16 %v313
      %v866 = vunpack.c.l.b16 %v314
      %v867 = vunpack.c.l.b16 %v315
      %v868 = vunpack.c.h.b16 %v315
      %v869 = vunpack.c.l.b16 %v316
      %v870 = vunpack.c.h.b16 %v316
      %v871 = vunpack.c.l.b16 %v317
      %v872 = vunpack.c.h.b16 %v317
      %v873 = vunpack.c.l.b16 %v318
      %v874 = vunpack.c.h.b16 %v318
      %v875 = vunpack.c.l.b16 %v319
      %v876 = vunpack.c.l.b16 %v320
      %v877 = vunpack.c.h.b16 %v320
      %v878 = vunpack.c.l.b16 %v321
      %v879 = vunpack.c.h.b16 %v321
      %v880 = vunpack.c.l.b16 %v322
      %v881 = vunpack.c.h.b16 %v322
      %v882 = vunpack.c.l.b16 %v323
      %v883 = vunpack.c.h.b16 %v323
      %v884 = vunpack.c.l.b16 %v324
      %v885 = vunpack.c.l.b16 %v325
      %v886 = vunpack.c.h.b16 %v325
      %v887 = vunpack.c.l.b16 %v326
      %v888 = vunpack.c.h.b16 %v326
      %v889 = vunpack.c.l.b16 %v327
      %v890 = vunpack.c.h.b16 %v327
      %v891 = vunpack.c.l.b16 %v328
      %v892 = vunpack.c.h.b16 %v328
      %v893 = vunpack.c.l.b16 %v329
      %v894 = vunpack.c.l.b16 %v330
      %v895 = vunpack.c.h.b16 %v330
      %v896 = vunpack.c.l.b16 %v331
      %v897 = vunpack.c.h.b16 %v331
      %v898 = vunpack.c.l.b16 %v332
      %v899 = vunpack.c.h.b16 %v332
      %v900 = vunpack.c.l.b16 %v333
      %v901 = vunpack.c.h.b16 %v333
      %v902 = vunpack.c.l.b16 %v334
      %v903 = vunpack.c.l.b16 %v335
      %v904 = vunpack.c.h.b16 %v335
      %v905 = vunpack.c.l.b16 %v336
      %v906 = vunpack.c.h.b16 %v336
      %v907 = vunpack.c.l.b16 %v337
      %v908 = vunpack.c.h.b16 %v337
      %v909 = vunpack.c.l.b16 %v338
      %v910 = vunpack.c.h.b16 %v338
      %v911 = vunpack.c.l.b16 %v339
      %v912 = vunpack.c.l.b16 %v340
      %v913 = vunpack.c.h.b16 %v340
      %v914 = vunpack.c.l.b16 %v341
      %v915 = vunpack.c.h.b16 %v341
      %v916 = vunpack.c.l.b16 %v342
      %v917 = vunpack.c.h.b16 %v342
      %v918 = vunpack.c.l.b16 %v343
      %v919 = vunpack.c.h.b16 %v343
      %v920 = vunpack.c.l.b16 %v344
      %v921 = vunpack.c.l.b16 %v345
      %v922 = vunpack.c.h.b16 %v345
      %v923 = vunpack.c.l.b16 %v346
      %v924 = vunpack.c.h.b16 %v346
      %v925 = vunpack.c.l.b16 %v347
      %v926 = vunpack.c.h.b16 %v347
      %v927 = vunpack.c.l.b16 %v348
      %v928 = vunpack.c.h.b16 %v348
      %v929 = vunpack.c.l.b16 %v349
      %v930 = vunpack.c.l.b16 %v350
      %v931 = vunpack.c.h.b16 %v350
      %v932 = vunpack.c.l.b16 %v351
      %v933 = vunpack.c.h.b16 %v351
      %v934 = vunpack.c.l.b16 %v352
      %v935 = vunpack.c.h.b16 %v352
      %v936 = vunpack.c.l.b16 %v353
      %v937 = vunpack.c.h.b16 %v353
      %v938 = vunpack.c.l.b16 %v354
      %v939 = vunpack.c.l.b16 %v355
      %v940 = vunpack.c.h.b16 %v355
      %v941 = vunpack.c.l.b16 %v356
      %v942 = vunpack.c.h.b16 %v356
      %v943 = vunpack.c.l.b16 %v357
      %v944 = vunpack.c.h.b16 %v357
      %v945 = vunpack.c.l.b16 %v358
      %v946 = vunpack.c.h.b16 %v358
      %v947 = vunpack.c.l.b16 %v359
      %v948 = vunpack.c.l.b16 %v360
      %v949 = vunpack.c.h.b16 %v360
      %v950 = vunpack.c.l.b16 %v361
      %v951 = vunpack.c.h.b16 %v361
      %v952 = vunpack.c.l.b16 %v362
      %v953 = vunpack.c.h.b16 %v362
      %v954 = vunpack.c.l.b16 %v363
      %v955 = vunpack.c.h.b16 %v363
      %v956 = vunpack.c.l.b16 %v364
      %v957 = vpack.c.b16 %v678, %v669
      %v958 = vpack.c.b16 %v679, %v670
      %v959 = vpack.c.b16 %v680, %v671
      %v960 = vpack.c.b16 %v681, %v672
      %v961 = vpack.c.b16 %v682, %v673
      %v962 = vpack.c.b16 %v683, %v674
      %v963 = vpack.c.b16 %v684, %v675
      %v964 = vpack.c.b16 %v685, %v676
      %v965 = vpack.c.b16 %v686, %v677
      %v966 = vpack.c.b16 %v696, %v687
      %v967 = vpack.c.b16 %v697, %v688
      %v968 = vpack.c.b16 %v698, %v689
      %v969 = vpack.c.b16 %v699, %v690
      %v970 = vpack.c.b16 %v700, %v691
      %v971 = vpack.c.b16 %v701, %v692
      %v972 = vpack.c.b16 %v702, %v693
      %v973 = vpack.c.b16 %v703, %v694
      %v974 = vpack.c.b16 %v704, %v695
      %v975 = vpack.c.b16 %v714, %v705
      %v976 = vpack.c.b16 %v715, %v706
      %v977 = vpack.c.b16 %v716, %v707
      %v978 = vpack.c.b16 %v717, %v708
      %v979 = vpack.c.b16 %v718, %v709
      %v980 = vpack.c.b16 %v719, %v710
      %v981 = vpack.c.b16 %v720, %v711
      %v982 = vpack.c.b16 %v721, %v712
      %v983 = vpack.c.b16 %v722, %v713
      %v984 = vpack.c.b16 %v732, %v723
      %v985 = vpack.c.b16 %v733, %v724
      %v986 = vpack.c.b16 %v734, %v725
      %v987 = vpack.c.b16 %v735, %v726
      %v988 = vpack.c.b16 %v736, %v727
      %v989 = vpack.c.b16 %v737, %v728
      %v990 = vpack.c.b16 %v738, %v729
      %v991 = vpack.c.b16 %v739, %v730
      %v992 = vpack.c.b16 %v740, %v731
      %v993 = vpack.c.b16 %v750, %v741
      %v994 = vpack.c.b16 %v751, %v742
      %v995 = vpack.c.b16 %v752, %v743
      %v996 = vpack.c.b16 %v753, %v744
      %v997 = vpack.c.b16 %v754, %v745
      %v998 = vpack.c.b16 %v755, %v746
      %v999 = vpack.c.b16 %v756, %v747
      %v1000 = vpack.c.b16 %v757, %v748
      %v1001 = vpack.c.b16 %v758, %v749
      %v1002 = vpack.c.b16 %v768, %v759
      %v1003 = vpack.c.b16 %v769, %v760
      %v1004 = vpack.c.b16 %v770, %v761
      %v1005 = vpack.c.b16 %v771, %v762
      %v1006 = vpack.c.b16 %v772, %v763
      %v1007 = vpack.c.b16 %v773, %v764
      %v1008 = vpack.c.b16 %v774, %v765
      %v1009 = vpack.c.b16 %v775, %v766
      %v1010 = vpack.c.b16 %v776, %v767
      %v1011 = vpack.c.b16 %v786, %v777
      %v1012 = vpack.c.b16 %v787, %v778
      %v1013 = vpack.c.b16 %v788, %v779
      %v1014 = vpack.c.b16 %v789, %v780
      %v1015 = vpack.c.b16 %v790, %v781
      %v1016 = vpack.c.b16 %v791, %v782
      %v1017 = vpack.c.b16 %v792, %v783
      %v1018 = vpack.c.b16 %v793, %v784
      %v1019 = vpack.c.b16 %v794, %v785
      %v1020 = vpack.c.b16 %v804, %v795
      %v1021 = vpack.c.b16 %v805, %v796
      %v1022 = vpack.c.b16 %v806, %v797
      %v1023 = vpack.c.b16 %v807, %v798
      %v1024 = vpack.c.b16 %v808, %v799
      %v1025 = vpack.c.b16 %v809, %v800
      %v1026 = vpack.c.b16 %v810, %v801
      %v1027 = vpack.c.b16 %v811, %v802
      %v1028 = vpack.c.b16 %v812, %v803
      %v1029 = vpack.c.b16 %v822, %v813
      %v1030 = vpack.c.b16 %v823, %v814
      %v1031 = vpack.c.b16 %v824, %v815
      %v1032 = vpack.c.b16 %v825, %v816
      %v1033 = vpack.c.b16 %v826, %v817
      %v1034 = vpack.c.b16 %v827, %v818
      %v1035 = vpack.c.b16 %v828, %v819
      %v1036 = vpack.c.b16 %v829, %v820
      %v1037 = vpack.c.b16 %v830, %v821
      %v1038 = vpack.c.b16 %v840, %v831
      %v1039 = vpack.c.b16 %v841, %v832
      %v1040 = vpack.c.b16 %v842, %v833
      %v1041 = vpack.c.b16 %v843, %v834
      %v1042 = vpack.c.b16 %v844, %v835
      %v1043 = vpack.c.b16 %v845, %v836
      %v1044 = vpack.c.b16 %v846, %v837
      %v1045 = vpack.c.b16 %v847, %v838
      %v1046 = vpack.c.b16 %v848, %v839
      %v1047 = vpack.c.b16 %v858, %v849
      %v1048 = vpack.c.b16 %v859, %v850
      %v1049 = vpack.c.b16 %v860, %v851
      %v1050 = vpack.c.b16 %v861, %v852
      %v1051 = vpack.c.b16 %v862, %v853
      %v1052 = vpack.c.b16 %v863, %v854
      %v1053 = vpack.c.b16 %v864, %v855
      %v1054 = vpack.c.b16 %v865, %v856
      %v1055 = vpack.c.b16 %v866, %v857
      %v1056 = vpack.c.b16 %v876, %v867
      %v1057 = vpack.c.b16 %v877, %v868
      %v1058 = vpack.c.b16 %v878, %v869
      %v1059 = vpack.c.b16 %v879, %v870
      %v1060 = vpack.c.b16 %v880, %v871
      %v1061 = vpack.c.b16 %v881, %v872
      %v1062 = vpack.c.b16 %v882, %v873
      %v1063 = vpack.c.b16 %v883, %v874
      %v1064 = vpack.c.b16 %v884, %v875
      %v1065 = vpack.c.b16 %v894, %v885
      %v1066 = vpack.c.b16 %v895, %v886
      %v1067 = vpack.c.b16 %v896, %v887
      %v1068 = vpack.c.b16 %v897, %v888
      %v1069 = vpack.c.b16 %v898, %v889
      %v1070 = vpack.c.b16 %v899, %v890
      %v1071 = vpack.c.b16 %v900, %v891
      %v1072 = vpack.c.b16 %v901, %v892
      %v1073 = vpack.c.b16 %v902, %v893
      %v1074 = vpack.c.b16 %v912, %v903
      %v1075 = vpack.c.b16 %v913, %v904
      %v1076 = vpack.c.b16 %v914, %v905
      %v1077 = vpack.c.b16 %v915, %v906
      %v1078 = vpack.c.b16 %v916, %v907
      %v1079 = vpack.c.b16 %v917, %v908
      %v1080 = vpack.c.b16 %v918, %v909
      %v1081 = vpack.c.b16 %v919, %v910
      %v1082 = vpack.c.b16 %v920, %v911
      %v1083 = vpack.c.b16 %v930, %v921
      %v1084 = vpack.c.b16 %v931, %v922
      %v1085 = vpack.c.b16 %v932, %v923
      %v1086 = vpack.c.b16 %v933, %v924
      %v1087 = vpack.c.b16 %v934, %v925
      %v1088 = vpack.c.b16 %v935, %v926
      %v1089 = vpack.c.b16 %v936, %v927
      %v1090 = vpack.c.b16 %v937, %v928
      %v1091 = vpack.c.b16 %v938, %v929
      %v1092 = vpack.c.b16 %v948, %v939
      %v1093 = vpack.c.b16 %v949, %v940
      %v1094 = vpack.c.b16 %v950, %v941
      %v1095 = vpack.c.b16 %v951, %v942
      %v1096 = vpack.c.b16 %v952, %v943
      %v1097 = vpack.c.b16 %v953, %v944
      %v1098 = vpack.c.b16 %v954, %v945
      %v1099 = vpack.c.b16 %v955, %v946
      %v1100 = vpack.c.b16 %v956, %v947
      %v1389 = vunpack.c.l.b16 %v365
      %v1390 = vunpack.c.l.b16 %v366
      %v1391 = vunpack.c.l.b16 %v367
      %v1392 = vunpack.c.l.b16 %v368
      %v1393 = vunpack.c.l.b16 %v369
      %v1394 = vunpack.c.l.b16 %v370
      %v1395 = vunpack.c.l.b16 %v371
      %v1396 = vunpack.c.l.b16 %v372
      %v1397 = vunpack.c.l.b16 %v373
      %v1398 = vunpack.c.l.b16 %v374
      %v1399 = vunpack.c.l.b16 %v375
      %v1400 = vunpack.c.l.b16 %v376
      %v1401 = vunpack.c.l.b16 %v377
      %v1402 = vunpack.c.l.b16 %v378
      %v1403 = vunpack.c.l.b16 %v379
      %v1404 = vunpack.c.l.b16 %v380
      %v1405 = vunpack.c.l.b16 %v381
      %v1406 = vunpack.c.l.b16 %v382
      %v1407 = vunpack.c.l.b16 %v383
      %v1408 = vunpack.c.l.b16 %v384
      %v1409 = vunpack.c.l.b16 %v385
      %v1410 = vunpack.c.l.b16 %v386
      %v1411 = vunpack.c.l.b16 %v387
      %v1412 = vunpack.c.l.b16 %v388
      %v1413 = vunpack.c.l.b16 %v389
      %v1414 = vunpack.c.l.b16 %v390
      %v1415 = vunpack.c.l.b16 %v391
      %v1416 = vunpack.c.l.b16 %v392
      %v1417 = vunpack.c.l.b16 %v393
      %v1418 = vunpack.c.l.b16 %v394
      %v1419 = vunpack.c.l.b16 %v395
      %v1420 = vunpack.c.l.b16 %v396
      %v1421 = vunpack.c.l.b16 %v397
      %v1422 = vunpack.c.l.b16 %v398
      %v1423 = vunpack.c.l.b16 %v399
      %v1424 = vunpack.c.l.b16 %v400
      %v1425 = vunpack.c.l.b16 %v401
      %v1426 = vunpack.c.l.b16 %v402
      %v1427 = vunpack.c.l.b16 %v403
      %v1428 = vunpack.c.l.b16 %v404
      %v1429 = vunpack.c.l.b16 %v405
      %v1430 = vunpack.c.l.b16 %v406
      %v1431 = vunpack.c.l.b16 %v407
      %v1432 = vunpack.c.l.b16 %v408
      %v1433 = vunpack.c.l.b16 %v409
      %v1434 = vunpack.c.l.b16 %v410
      %v1435 = vunpack.c.l.b16 %v411
      %v1436 = vunpack.c.l.b16 %v412
      %v1437 = vunpack.c.l.b16 %v413
      %v1438 = vunpack.c.l.b16 %v414
      %v1439 = vunpack.c.l.b16 %v415
      %v1440 = vunpack.c.l.b16 %v416
      %v1441 = vunpack.c.l.b16 %v417
      %v1442 = vunpack.c.l.b16 %v418
      %v1443 = vunpack.c.l.b16 %v419
      %v1444 = vunpack.c.l.b16 %v420
      %v1445 = vunpack.c.l.b16 %v421
      %v1446 = vunpack.c.l.b16 %v422
      %v1447 = vunpack.c.l.b16 %v423
      %v1448 = vunpack.c.l.b16 %v424
      %v1449 = vunpack.c.l.b16 %v425
      %v1450 = vunpack.c.l.b16 %v426
      %v1451 = vunpack.c.l.b16 %v427
      %v1452 = vunpack.c.l.b16 %v428
      %v1453 = vunpack.c.l.b16 %v429
      %v1454 = vunpack.c.l.b16 %v430
      %v1455 = vunpack.c.l.b16 %v431
      %v1456 = vunpack.c.l.b16 %v432
      %v1457 = vunpack.c.l.b16 %v433
      %v1458 = vunpack.c.l.b16 %v434
      %v1459 = vunpack.c.l.b16 %v435
      %v1460 = vunpack.c.l.b16 %v436
      %v1461 = vunpack.c.l.b16 %v437
      %v1462 = vunpack.c.l.b16 %v438
      %v1463 = vunpack.c.l.b16 %v439
      %v1464 = vunpack.c.l.b16 %v440
      %v1465 = vunpack.c.l.b16 %v441
      %v1466 = vunpack.c.l.b16 %v442
      %v1467 = vunpack.c.l.b16 %v443
      %v1468 = vunpack.c.l.b16 %v444
      %v1469 = vunpack.c.l.b16 %v445
      %v1470 = vunpack.c.l.b16 %v446
      %v1471 = vunpack.c.l.b16 %v447
      %v1472 = vunpack.c.l.b16 %v448
      %v1473 = vunpack.c.l.b16 %v449
      %v1474 = vunpack.c.l.b16 %v450
      %v1475 = vunpack.c.l.b16 %v451
      %v1476 = vunpack.c.l.b16 %v452
      %v1477 = vunpack.c.l.b16 %v453
      %v1478 = vunpack.c.l.b16 %v454
      %v1479 = vunpack.c.l.b16 %v455
      %v1480 = vunpack.c.l.b16 %v456
      %v1481 = vunpack.c.l.b16 %v457
      %v1482 = vunpack.c.l.b16 %v458
      %v1483 = vunpack.c.l.b16 %v459
      %v1484 = vunpack.c.l.b16 %v460
      %v1485 = vunpack.c.l.b16 %v461
      %v1486 = vunpack.c.l.b16 %v462
      %v1487 = vunpack.c.l.b16 %v463
      %v1488 = vunpack.c.l.b16 %v464
      %v1489 = vunpack.c.l.b16 %v465
      %v1490 = vunpack.c.l.b16 %v466
      %v1491 = vunpack.c.l.b16 %v467
      %v1492 = vunpack.c.l.b16 %v468
      %v1493 = vunpack.c.l.b16 %v469
      %v1494 = vunpack.c.l.b16 %v470
      %v1495 = vunpack.c.l.b16 %v471
      %v1496 = vunpack.c.l.b16 %v472
      %v1497 = vunpack.c.l.b16 %v473
      %v1498 = vunpack.c.l.b16 %v474
      %v1499 = vunpack.c.l.b16 %v475
      %v1500 = vunpack.c.l.b16 %v476
      %v1501 = vunpack.c.l.b16 %v477
      %v1502 = vunpack.c.l.b16 %v478
      %v1503 = vunpack.c.l.b16 %v479
      %v1504 = vunpack.c.l.b16 %v480
      %v1505 = vunpack.c.l.b16 %v481
      %v1506 = vunpack.c.l.b16 %v482
      %v1507 = vunpack.c.l.b16 %v483
      %v1508 = vunpack.c.l.b16 %v484
      %v1509 = vunpack.c.l.b16 %v485
      %v1510 = vunpack.c.l.b16 %v486
      %v1511 = vunpack.c.l.b16 %v487
      %v1512 = vunpack.c.l.b16 %v488
      %v1513 = vunpack.c.l.b16 %v489
      %v1514 = vunpack.c.l.b16 %v490
      %v1515 = vunpack.c.l.b16 %v491
      %v1516 = vunpack.c.l.b16 %v492
      %v1517 = vunpack.c.l.b16 %v493
      %v1518 = vunpack.c.l.b16 %v494
      %v1519 = vunpack.c.l.b16 %v495
      %v1520 = vunpack.c.l.b16 %v496
      %v1521 = vunpack.c.l.b16 %v497
      %v1522 = vunpack.c.l.b16 %v498
      %v1523 = vunpack.c.l.b16 %v499
      %v1524 = vunpack.c.l.b16 %v500
      %v1525 = vunpack.c.l.b16 %v501
      %v1526 = vunpack.c.l.b16 %v502
      %v1527 = vunpack.c.l.b16 %v503
      %v1528 = vunpack.c.l.b16 %v504
      %v1529 = vunpack.c.l.b16 %v505
      %v1530 = vunpack.c.l.b16 %v506
      %v1531 = vunpack.c.l.b16 %v507
      %v1532 = vunpack.c.l.b16 %v508
      %v1533 = vpack.c.b16 %v1390, %v1389
      %v1534 = vpack.c.b16 %v1392, %v1391
      %v1535 = vpack.c.b16 %v1394, %v1393
      %v1536 = vpack.c.b16 %v1396, %v1395
      %v1537 = vpack.c.b16 %v1398, %v1397
      %v1538 = vpack.c.b16 %v1400, %v1399
      %v1539 = vpack.c.b16 %v1402, %v1401
      %v1540 = vpack.c.b16 %v1404, %v1403
      %v1541 = vpack.c.b16 %v1406, %v1405
      %v1542 = vpack.c.b16 %v1408, %v1407
      %v1543 = vpack.c.b16 %v1410, %v1409
      %v1544 = vpack.c.b16 %v1412, %v1411
      %v1545 = vpack.c.b16 %v1414, %v1413
      %v1546 = vpack.c.b16 %v1416, %v1415
      %v1547 = vpack.c.b16 %v1418, %v1417
      %v1548 = vpack.c.b16 %v1420, %v1419
      %v1549 = vpack.c.b16 %v1422, %v1421
      %v1550 = vpack.c.b16 %v1424, %v1423
      %v1551 = vpack.c.b16 %v1426, %v1425
      %v1552 = vpack.c.b16 %v1428, %v1427
      %v1553 = vpack.c.b16 %v1430, %v1429
      %v1554 = vpack.c.b16 %v1432, %v1431
      %v1555 = vpack.c.b16 %v1434, %v1433
      %v1556 = vpack.c.b16 %v1436, %v1435
      %v1557 = vpack.c.b16 %v1438, %v1437
      %v1558 = vpack.c.b16 %v1440, %v1439
      %v1559 = vpack.c.b16 %v1442, %v1441
      %v1560 = vpack.c.b16 %v1444, %v1443
      %v1561 = vpack.c.b16 %v1446, %v1445
      %v1562 = vpack.c.b16 %v1448, %v1447
      %v1563 = vpack.c.b16 %v1450, %v1449
      %v1564 = vpack.c.b16 %v1452, %v1451
      %v1565 = vpack.c.b16 %v1454, %v1453
      %v1566 = vpack.c.b16 %v1456, %v1455
      %v1567 = vpack.c.b16 %v1458, %v1457
      %v1568 = vpack.c.b16 %v1460, %v1459
      %v1569 = vpack.c.b16 %v1462, %v1461
      %v1570 = vpack.c.b16 %v1464, %v1463
      %v1571 = vpack.c.b16 %v1466, %v1465
      %v1572 = vpack.c.b16 %v1468, %v1467
      %v1573 = vpack.c.b16 %v1470, %v1469
      %v1574 = vpack.c.b16 %v1472, %v1471
      %v1575 = vpack.c.b16 %v1474, %v1473
      %v1576 = vpack.c.b16 %v1476, %v1475
      %v1577 = vpack.c.b16 %v1478, %v1477
      %v1578 = vpack.c.b16 %v1480, %v1479
      %v1579 = vpack.c.b16 %v1482, %v1481
      %v1580 = vpack.c.b16 %v1484, %v1483
      %v1581 = vpack.c.b16 %v1486, %v1485
      %v1582 = vpack.c.b16 %v1488, %v1487
      %v1583 = vpack.c.b16 %v1490, %v1489
      %v1584 = vpack.c.b16 %v1492, %v1491
      %v1585 = vpack.c.b16 %v1494, %v1493
      %v1586 = vpack.c.b16 %v1496, %v1495
      %v1587 = vpack.c.b16 %v1498, %v1497
      %v1588 = vpack.c.b16 %v1500, %v1499
      %v1589 = vpack.c.b16 %v1502, %v1501
      %v1590 = vpack.c.b16 %v1504, %v1503
      %v1591 = vpack.c.b16 %v1506, %v1505
      %v1592 = vpack.c.b16 %v1508, %v1507
      %v1593 = vpack.c.b16 %v1510, %v1509
      %v1594 = vpack.c.b16 %v1512, %v1511
      %v1595 = vpack.c.b16 %v1514, %v1513
      %v1596 = vpack.c.b16 %v1516, %v1515
      %v1597 = vpack.c.b16 %v1518, %v1517
      %v1598 = vpack.c.b16 %v1520, %v1519
      %v1599 = vpack.c.b16 %v1522, %v1521
      %v1600 = vpack.c.b16 %v1524, %v1523
      %v1601 = vpack.c.b16 %v1526, %v1525
      %v1602 = vpack.c.b16 %v1528, %v1527
      %v1603 = vpack.c.b16 %v1530, %v1529
      %v1604 = vpack.c.b16 %v1532, %v1531
      %1677 = vmatprep.subr.bf16.mxu0 0
      %1678 = vmatpush1.bf16.msra.mxu0 %v1540
      %1679 = vmatprep.subr.bf16.mxu0 0
      %1680 = vmatpush1.bf16.msra.mxu0 %v1539
      %1681 = vmatprep.subr.bf16.mxu0 0
      %1682 = vmatpush1.bf16.msra.mxu0 %v1538
      %1683 = vmatprep.subr.bf16.mxu0 0
      %1684 = vmatpush1.bf16.msra.mxu0 %v1537
      %1685 = vmatprep.subr.bf16.mxu0 0
      %1686 = vmatpush1.bf16.msra.mxu0 %v1536
      %1687 = vmatprep.subr.bf16.mxu0 0
      %1688 = vmatpush1.bf16.msra.mxu0 %v1535
      %1689 = vmatprep.subr.bf16.mxu0 0
      %1690 = vmatpush1.bf16.msra.mxu0 %v1534
      %1691 = vmatprep.subr.bf16.mxu0 0
      %1692 = vmatpush1.bf16.msra.mxu0 %v1533
      %1693 = vmatprep.subr.bf16.mxu0 0
      %1694 = vmatpush2.bf16.msra.mxu0 %v1548
      %1695 = vmatprep.subr.bf16.mxu0 0
      %1696 = vmatpush2.bf16.msra.mxu0 %v1547
      %1697 = vmatprep.subr.bf16.mxu0 0
      %1698 = vmatpush2.bf16.msra.mxu0 %v1546
      %1699 = vmatprep.subr.bf16.mxu0 0
      %1700 = vmatpush2.bf16.msra.mxu0 %v1545
      %1701 = vmatprep.subr.bf16.mxu0 0
      %1702 = vmatpush2.bf16.msra.mxu0 %v1544
      %1703 = vmatprep.subr.bf16.mxu0 0
      %1704 = vmatpush2.bf16.msra.mxu0 %v1543
      %1705 = vmatprep.subr.bf16.mxu0 0
      %1706 = vmatpush2.bf16.msra.mxu0 %v1542
      %1707 = vmatprep.subr.bf16.mxu0 0
      %1708 = vmatpush2.bf16.msra.mxu0 %v1541
      %1709 = vmatprep.mubr.bf16.mxu0 %v958
      %1710 = vmatmul.mubr.bf16.gmra.mxu0 %v957
      %v1711 = vpop.f32.mrf.mxu0
      %v1712 = vadd.f32 0.0, %v1711
      %v1713 = vpop.f32.mrf.mxu0
      %v1714 = vpop.f32.mrf.mxu0
      %v1715 = vadd.f32 0.0, %v1714
      %v1716 = vpop.f32.mrf.mxu0
      %1717 = vmatprep.mubr.bf16.mxu0 %v967
      %1718 = vmatmul.mubr.bf16.gmra.mxu0 %v966
      %v1719 = vpop.f32.mrf.mxu0
      %v1720 = vadd.f32 0.0, %v1719
      %v1721 = vpop.f32.mrf.mxu0
      %v1722 = vpop.f32.mrf.mxu0
      %v1723 = vadd.f32 0.0, %v1722
      %v1724 = vpop.f32.mrf.mxu0
      %1725 = vmatprep.mubr.bf16.mxu0 %v976
      %1726 = vmatmul.mubr.bf16.gmra.mxu0 %v975
      %v1727 = vpop.f32.mrf.mxu0
      %v1728 = vadd.f32 0.0, %v1727
      %v1729 = vpop.f32.mrf.mxu0
      %v1730 = vpop.f32.mrf.mxu0
      %v1731 = vadd.f32 0.0, %v1730
      %v1732 = vpop.f32.mrf.mxu0
      %1733 = vmatprep.mubr.bf16.mxu0 %v985
      %1734 = vmatmul.mubr.bf16.gmra.mxu0 %v984
      %v1735 = vpop.f32.mrf.mxu0
      %v1736 = vadd.f32 0.0, %v1735
      %v1737 = vpop.f32.mrf.mxu0
      %v1738 = vpop.f32.mrf.mxu0
      %v1739 = vadd.f32 0.0, %v1738
      %v1740 = vpop.f32.mrf.mxu0
      %1741 = vmatprep.mubr.bf16.mxu0 %v994
      %1742 = vmatmul.mubr.bf16.gmra.mxu0 %v993
      %v1743 = vpop.f32.mrf.mxu0
      %v1744 = vadd.f32 0.0, %v1743
      %v1745 = vpop.f32.mrf.mxu0
      %v1746 = vpop.f32.mrf.mxu0
      %v1747 = vadd.f32 0.0, %v1746
      %v1748 = vpop.f32.mrf.mxu0
      %1749 = vmatprep.mubr.bf16.mxu0 %v1003
      %1750 = vmatmul.mubr.bf16.gmra.mxu0 %v1002
      %v1751 = vpop.f32.mrf.mxu0
      %v1752 = vadd.f32 0.0, %v1751
      %v1753 = vpop.f32.mrf.mxu0
      %v1754 = vpop.f32.mrf.mxu0
      %v1755 = vadd.f32 0.0, %v1754
      %v1756 = vpop.f32.mrf.mxu0
      %1757 = vmatprep.mubr.bf16.mxu0 %v1012
      %1758 = vmatmul.mubr.bf16.gmra.mxu0 %v1011
      %v1759 = vpop.f32.mrf.mxu0
      %v1760 = vadd.f32 0.0, %v1759
      %v1761 = vpop.f32.mrf.mxu0
      %v1762 = vpop.f32.mrf.mxu0
      %v1763 = vadd.f32 0.0, %v1762
      %v1764 = vpop.f32.mrf.mxu0
      %1765 = vmatprep.mubr.bf16.mxu0 %v1021
      %1766 = vmatmul.mubr.bf16.gmra.mxu0 %v1020
      %v1767 = vpop.f32.mrf.mxu0
      %v1768 = vadd.f32 0.0, %v1767
      %v1769 = vpop.f32.mrf.mxu0
      %v1770 = vpop.f32.mrf.mxu0
      %v1771 = vadd.f32 0.0, %v1770
      %v1772 = vpop.f32.mrf.mxu0
      %1773 = vmatprep.mubr.bf16.mxu0 %v1030
      %1774 = vmatmul.mubr.bf16.gmra.mxu0 %v1029
      %v1775 = vpop.f32.mrf.mxu0
      %v1776 = vadd.f32 0.0, %v1775
      %v1777 = vpop.f32.mrf.mxu0
      %v1778 = vpop.f32.mrf.mxu0
      %v1779 = vadd.f32 0.0, %v1778
      %v1780 = vpop.f32.mrf.mxu0
      %1781 = vmatprep.mubr.bf16.mxu0 %v1039
      %1782 = vmatmul.mubr.bf16.gmra.mxu0 %v1038
      %v1783 = vpop.f32.mrf.mxu0
      %v1784 = vadd.f32 0.0, %v1783
      %v1785 = vpop.f32.mrf.mxu0
      %v1786 = vpop.f32.mrf.mxu0
      %v1787 = vadd.f32 0.0, %v1786
      %v1788 = vpop.f32.mrf.mxu0
      %1789 = vmatprep.mubr.bf16.mxu0 %v1048
      %1790 = vmatmul.mubr.bf16.gmra.mxu0 %v1047
      %v1791 = vpop.f32.mrf.mxu0
      %v1792 = vadd.f32 0.0, %v1791
      %v1793 = vpop.f32.mrf.mxu0
      %v1794 = vpop.f32.mrf.mxu0
      %v1795 = vadd.f32 0.0, %v1794
      %v1796 = vpop.f32.mrf.mxu0
      %1797 = vmatprep.mubr.bf16.mxu0 %v1057
      %1798 = vmatmul.mubr.bf16.gmra.mxu0 %v1056
      %v1799 = vpop.f32.mrf.mxu0
      %v1800 = vadd.f32 0.0, %v1799
      %v1801 = vpop.f32.mrf.mxu0
      %v1802 = vpop.f32.mrf.mxu0
      %v1803 = vadd.f32 0.0, %v1802
      %v1804 = vpop.f32.mrf.mxu0
      %1805 = vmatprep.mubr.bf16.mxu0 %v1066
      %1806 = vmatmul.mubr.bf16.gmra.mxu0 %v1065
      %v1807 = vpop.f32.mrf.mxu0
      %v1808 = vadd.f32 0.0, %v1807
      %v1809 = vpop.f32.mrf.mxu0
      %v1810 = vpop.f32.mrf.mxu0
      %v1811 = vadd.f32 0.0, %v1810
      %v1812 = vpop.f32.mrf.mxu0
      %1813 = vmatprep.mubr.bf16.mxu0 %v1075
      %1814 = vmatmul.mubr.bf16.gmra.mxu0 %v1074
      %v1815 = vpop.f32.mrf.mxu0
      %v1816 = vadd.f32 0.0, %v1815
      %v1817 = vpop.f32.mrf.mxu0
      %v1818 = vpop.f32.mrf.mxu0
      %v1819 = vadd.f32 0.0, %v1818
      %v1820 = vpop.f32.mrf.mxu0
      %1821 = vmatprep.mubr.bf16.mxu0 %v1084
      %1822 = vmatmul.mubr.bf16.gmra.mxu0 %v1083
      %v1823 = vpop.f32.mrf.mxu0
      %v1824 = vadd.f32 0.0, %v1823
      %v1825 = vpop.f32.mrf.mxu0
      %v1826 = vpop.f32.mrf.mxu0
      %v1827 = vadd.f32 0.0, %v1826
      %v1828 = vpop.f32.mrf.mxu0
      %1829 = vmatprep.mubr.bf16.mxu0 %v1093
      %1830 = vmatmul.mubr.bf16.gmra.mxu0 %v1092
      %v1831 = vpop.f32.mrf.mxu0
      %v1832 = vadd.f32 0.0, %v1831
      %v1833 = vpop.f32.mrf.mxu0
      %v1834 = vpop.f32.mrf.mxu0
      %v1835 = vadd.f32 0.0, %v1834
      %v1836 = vpop.f32.mrf.mxu0
      %1837 = vdwg.mxu0
      %1838 = vmatprep.subr.bf16.mxu0 0
      %1839 = vmatpush1.bf16.msra.mxu0 %v1556
      %1840 = vmatprep.subr.bf16.mxu0 0
      %1841 = vmatpush1.bf16.msra.mxu0 %v1555
      %1842 = vmatprep.subr.bf16.mxu0 0
      %1843 = vmatpush1.bf16.msra.mxu0 %v1554
      %1844 = vmatprep.subr.bf16.mxu0 0
      %1845 = vmatpush1.bf16.msra.mxu0 %v1553
      %1846 = vmatprep.subr.bf16.mxu0 0
      %1847 = vmatpush1.bf16.msra.mxu0 %v1552
      %1848 = vmatprep.subr.bf16.mxu0 0
      %1849 = vmatpush1.bf16.msra.mxu0 %v1551
      %1850 = vmatprep.subr.bf16.mxu0 0
      %1851 = vmatpush1.bf16.msra.mxu0 %v1550
      %1852 = vmatprep.subr.bf16.mxu0 0
      %1853 = vmatpush1.bf16.msra.mxu0 %v1549
      %1854 = vmatprep.subr.bf16.mxu0 0
      %1855 = vmatpush2.bf16.msra.mxu0 %v1564
      %1856 = vmatprep.subr.bf16.mxu0 0
      %1857 = vmatpush2.bf16.msra.mxu0 %v1563
      %1858 = vmatprep.subr.bf16.mxu0 0
      %1859 = vmatpush2.bf16.msra.mxu0 %v1562
      %1860 = vmatprep.subr.bf16.mxu0 0
      %1861 = vmatpush2.bf16.msra.mxu0 %v1561
      %1862 = vmatprep.subr.bf16.mxu0 0
      %1863 = vmatpush2.bf16.msra.mxu0 %v1560
      %1864 = vmatprep.subr.bf16.mxu0 0
      %1865 = vmatpush2.bf16.msra.mxu0 %v1559
      %1866 = vmatprep.subr.bf16.mxu0 0
      %1867 = vmatpush2.bf16.msra.mxu0 %v1558
      %1868 = vmatprep.subr.bf16.mxu0 0
      %1869 = vmatpush2.bf16.msra.mxu0 %v1557
      %1870 = vmatprep.mubr.bf16.mxu0 %v960
      %1871 = vmatmul.mubr.bf16.gmra.mxu0 %v959
      %v1872 = vpop.f32.mrf.mxu0
      %v1873 = vadd.f32 %v1712, %v1872
      %v1874 = vpop.f32.mrf.mxu0
      %v1875 = vpop.f32.mrf.mxu0
      %v1876 = vadd.f32 %v1715, %v1875
      %v1877 = vpop.f32.mrf.mxu0
      %1878 = vmatprep.mubr.bf16.mxu0 %v969
      %1879 = vmatmul.mubr.bf16.gmra.mxu0 %v968
      %v1880 = vpop.f32.mrf.mxu0
      %v1881 = vadd.f32 %v1720, %v1880
      %v1882 = vpop.f32.mrf.mxu0
      %v1883 = vpop.f32.mrf.mxu0
      %v1884 = vadd.f32 %v1723, %v1883
      %v1885 = vpop.f32.mrf.mxu0
      %1886 = vmatprep.mubr.bf16.mxu0 %v978
      %1887 = vmatmul.mubr.bf16.gmra.mxu0 %v977
      %v1888 = vpop.f32.mrf.mxu0
      %v1889 = vadd.f32 %v1728, %v1888
      %v1890 = vpop.f32.mrf.mxu0
      %v1891 = vpop.f32.mrf.mxu0
      %v1892 = vadd.f32 %v1731, %v1891
      %v1893 = vpop.f32.mrf.mxu0
      %1894 = vmatprep.mubr.bf16.mxu0 %v987
      %1895 = vmatmul.mubr.bf16.gmra.mxu0 %v986
      %v1896 = vpop.f32.mrf.mxu0
      %v1897 = vadd.f32 %v1736, %v1896
      %v1898 = vpop.f32.mrf.mxu0
      %v1899 = vpop.f32.mrf.mxu0
      %v1900 = vadd.f32 %v1739, %v1899
      %v1901 = vpop.f32.mrf.mxu0
      %1902 = vmatprep.mubr.bf16.mxu0 %v996
      %1903 = vmatmul.mubr.bf16.gmra.mxu0 %v995
      %v1904 = vpop.f32.mrf.mxu0
      %v1905 = vadd.f32 %v1744, %v1904
      %v1906 = vpop.f32.mrf.mxu0
      %v1907 = vpop.f32.mrf.mxu0
      %v1908 = vadd.f32 %v1747, %v1907
      %v1909 = vpop.f32.mrf.mxu0
      %1910 = vmatprep.mubr.bf16.mxu0 %v1005
      %1911 = vmatmul.mubr.bf16.gmra.mxu0 %v1004
      %v1912 = vpop.f32.mrf.mxu0
      %v1913 = vadd.f32 %v1752, %v1912
      %v1914 = vpop.f32.mrf.mxu0
      %v1915 = vpop.f32.mrf.mxu0
      %v1916 = vadd.f32 %v1755, %v1915
      %v1917 = vpop.f32.mrf.mxu0
      %1918 = vmatprep.mubr.bf16.mxu0 %v1014
      %1919 = vmatmul.mubr.bf16.gmra.mxu0 %v1013
      %v1920 = vpop.f32.mrf.mxu0
      %v1921 = vadd.f32 %v1760, %v1920
      %v1922 = vpop.f32.mrf.mxu0
      %v1923 = vpop.f32.mrf.mxu0
      %v1924 = vadd.f32 %v1763, %v1923
      %v1925 = vpop.f32.mrf.mxu0
      %1926 = vmatprep.mubr.bf16.mxu0 %v1023
      %1927 = vmatmul.mubr.bf16.gmra.mxu0 %v1022
      %v1928 = vpop.f32.mrf.mxu0
      %v1929 = vadd.f32 %v1768, %v1928
      %v1930 = vpop.f32.mrf.mxu0
      %v1931 = vpop.f32.mrf.mxu0
      %v1932 = vadd.f32 %v1771, %v1931
      %v1933 = vpop.f32.mrf.mxu0
      %1934 = vmatprep.mubr.bf16.mxu0 %v1032
      %1935 = vmatmul.mubr.bf16.gmra.mxu0 %v1031
      %v1936 = vpop.f32.mrf.mxu0
      %v1937 = vadd.f32 %v1776, %v1936
      %v1938 = vpop.f32.mrf.mxu0
      %v1939 = vpop.f32.mrf.mxu0
      %v1940 = vadd.f32 %v1779, %v1939
      %v1941 = vpop.f32.mrf.mxu0
      %1942 = vmatprep.mubr.bf16.mxu0 %v1041
      %1943 = vmatmul.mubr.bf16.gmra.mxu0 %v1040
      %v1944 = vpop.f32.mrf.mxu0
      %v1945 = vadd.f32 %v1784, %v1944
      %v1946 = vpop.f32.mrf.mxu0
      %v1947 = vpop.f32.mrf.mxu0
      %v1948 = vadd.f32 %v1787, %v1947
      %v1949 = vpop.f32.mrf.mxu0
      %1950 = vmatprep.mubr.bf16.mxu0 %v1050
      %1951 = vmatmul.mubr.bf16.gmra.mxu0 %v1049
      %v1952 = vpop.f32.mrf.mxu0
      %v1953 = vadd.f32 %v1792, %v1952
      %v1954 = vpop.f32.mrf.mxu0
      %v1955 = vpop.f32.mrf.mxu0
      %v1956 = vadd.f32 %v1795, %v1955
      %v1957 = vpop.f32.mrf.mxu0
      %1958 = vmatprep.mubr.bf16.mxu0 %v1059
      %1959 = vmatmul.mubr.bf16.gmra.mxu0 %v1058
      %v1960 = vpop.f32.mrf.mxu0
      %v1961 = vadd.f32 %v1800, %v1960
      %v1962 = vpop.f32.mrf.mxu0
      %v1963 = vpop.f32.mrf.mxu0
      %v1964 = vadd.f32 %v1803, %v1963
      %v1965 = vpop.f32.mrf.mxu0
      %1966 = vmatprep.mubr.bf16.mxu0 %v1068
      %1967 = vmatmul.mubr.bf16.gmra.mxu0 %v1067
      %v1968 = vpop.f32.mrf.mxu0
      %v1969 = vadd.f32 %v1808, %v1968
      %v1970 = vpop.f32.mrf.mxu0
      %v1971 = vpop.f32.mrf.mxu0
      %v1972 = vadd.f32 %v1811, %v1971
      %v1973 = vpop.f32.mrf.mxu0
      %1974 = vmatprep.mubr.bf16.mxu0 %v1077
      %1975 = vmatmul.mubr.bf16.gmra.mxu0 %v1076
      %v1976 = vpop.f32.mrf.mxu0
      %v1977 = vadd.f32 %v1816, %v1976
      %v1978 = vpop.f32.mrf.mxu0
      %v1979 = vpop.f32.mrf.mxu0
      %v1980 = vadd.f32 %v1819, %v1979
      %v1981 = vpop.f32.mrf.mxu0
      %1982 = vmatprep.mubr.bf16.mxu0 %v1086
      %1983 = vmatmul.mubr.bf16.gmra.mxu0 %v1085
      %v1984 = vpop.f32.mrf.mxu0
      %v1985 = vadd.f32 %v1824, %v1984
      %v1986 = vpop.f32.mrf.mxu0
      %v1987 = vpop.f32.mrf.mxu0
      %v1988 = vadd.f32 %v1827, %v1987
      %v1989 = vpop.f32.mrf.mxu0
      %1990 = vmatprep.mubr.bf16.mxu0 %v1095
      %1991 = vmatmul.mubr.bf16.gmra.mxu0 %v1094
      %v1992 = vpop.f32.mrf.mxu0
      %v1993 = vadd.f32 %v1832, %v1992
      %v1994 = vpop.f32.mrf.mxu0
      %v1995 = vpop.f32.mrf.mxu0
      %v1996 = vadd.f32 %v1835, %v1995
      %v1997 = vpop.f32.mrf.mxu0
      %1998 = vdwg.mxu0
      %1999 = vmatprep.subr.bf16.mxu0 0
      %2000 = vmatpush1.bf16.msra.mxu0 %v1572
      %2001 = vmatprep.subr.bf16.mxu0 0
      %2002 = vmatpush1.bf16.msra.mxu0 %v1571
      %2003 = vmatprep.subr.bf16.mxu0 0
      %2004 = vmatpush1.bf16.msra.mxu0 %v1570
      %2005 = vmatprep.subr.bf16.mxu0 0
      %2006 = vmatpush1.bf16.msra.mxu0 %v1569
      %2007 = vmatprep.subr.bf16.mxu0 0
      %2008 = vmatpush1.bf16.msra.mxu0 %v1568
      %2009 = vmatprep.subr.bf16.mxu0 0
      %2010 = vmatpush1.bf16.msra.mxu0 %v1567
      %2011 = vmatprep.subr.bf16.mxu0 0
      %2012 = vmatpush1.bf16.msra.mxu0 %v1566
      %2013 = vmatprep.subr.bf16.mxu0 0
      %2014 = vmatpush1.bf16.msra.mxu0 %v1565
      %2015 = vmatprep.subr.bf16.mxu0 0
      %2016 = vmatpush2.bf16.msra.mxu0 %v1580
      %2017 = vmatprep.subr.bf16.mxu0 0
      %2018 = vmatpush2.bf16.msra.mxu0 %v1579
      %2019 = vmatprep.subr.bf16.mxu0 0
      %2020 = vmatpush2.bf16.msra.mxu0 %v1578
      %2021 = vmatprep.subr.bf16.mxu0 0
      %2022 = vmatpush2.bf16.msra.mxu0 %v1577
      %2023 = vmatprep.subr.bf16.mxu0 0
      %2024 = vmatpush2.bf16.msra.mxu0 %v1576
      %2025 = vmatprep.subr.bf16.mxu0 0
      %2026 = vmatpush2.bf16.msra.mxu0 %v1575
      %2027 = vmatprep.subr.bf16.mxu0 0
      %2028 = vmatpush2.bf16.msra.mxu0 %v1574
      %2029 = vmatprep.subr.bf16.mxu0 0
      %2030 = vmatpush2.bf16.msra.mxu0 %v1573
      %2031 = vmatprep.mubr.bf16.mxu0 %v962
      %2032 = vmatmul.mubr.bf16.gmra.mxu0 %v961
      %v2033 = vpop.f32.mrf.mxu0
      %v2034 = vadd.f32 %v1873, %v2033
      %v2035 = vpop.f32.mrf.mxu0
      %v2036 = vpop.f32.mrf.mxu0
      %v2037 = vadd.f32 %v1876, %v2036
      %v2038 = vpop.f32.mrf.mxu0
      %2039 = vmatprep.mubr.bf16.mxu0 %v971
      %2040 = vmatmul.mubr.bf16.gmra.mxu0 %v970
      %v2041 = vpop.f32.mrf.mxu0
      %v2042 = vadd.f32 %v1881, %v2041
      %v2043 = vpop.f32.mrf.mxu0
      %v2044 = vpop.f32.mrf.mxu0
      %v2045 = vadd.f32 %v1884, %v2044
      %v2046 = vpop.f32.mrf.mxu0
      %2047 = vmatprep.mubr.bf16.mxu0 %v980
      %2048 = vmatmul.mubr.bf16.gmra.mxu0 %v979
      %v2049 = vpop.f32.mrf.mxu0
      %v2050 = vadd.f32 %v1889, %v2049
      %v2051 = vpop.f32.mrf.mxu0
      %v2052 = vpop.f32.mrf.mxu0
      %v2053 = vadd.f32 %v1892, %v2052
      %v2054 = vpop.f32.mrf.mxu0
      %2055 = vmatprep.mubr.bf16.mxu0 %v989
      %2056 = vmatmul.mubr.bf16.gmra.mxu0 %v988
      %v2057 = vpop.f32.mrf.mxu0
      %v2058 = vadd.f32 %v1897, %v2057
      %v2059 = vpop.f32.mrf.mxu0
      %v2060 = vpop.f32.mrf.mxu0
      %v2061 = vadd.f32 %v1900, %v2060
      %v2062 = vpop.f32.mrf.mxu0
      %2063 = vmatprep.mubr.bf16.mxu0 %v998
      %2064 = vmatmul.mubr.bf16.gmra.mxu0 %v997
      %v2065 = vpop.f32.mrf.mxu0
      %v2066 = vadd.f32 %v1905, %v2065
      %v2067 = vpop.f32.mrf.mxu0
      %v2068 = vpop.f32.mrf.mxu0
      %v2069 = vadd.f32 %v1908, %v2068
      %v2070 = vpop.f32.mrf.mxu0
      %2071 = vmatprep.mubr.bf16.mxu0 %v1007
      %2072 = vmatmul.mubr.bf16.gmra.mxu0 %v1006
      %v2073 = vpop.f32.mrf.mxu0
      %v2074 = vadd.f32 %v1913, %v2073
      %v2075 = vpop.f32.mrf.mxu0
      %v2076 = vpop.f32.mrf.mxu0
      %v2077 = vadd.f32 %v1916, %v2076
      %v2078 = vpop.f32.mrf.mxu0
      %2079 = vmatprep.mubr.bf16.mxu0 %v1016
      %2080 = vmatmul.mubr.bf16.gmra.mxu0 %v1015
      %v2081 = vpop.f32.mrf.mxu0
      %v2082 = vadd.f32 %v1921, %v2081
      %v2083 = vpop.f32.mrf.mxu0
      %v2084 = vpop.f32.mrf.mxu0
      %v2085 = vadd.f32 %v1924, %v2084
      %v2086 = vpop.f32.mrf.mxu0
      %2087 = vmatprep.mubr.bf16.mxu0 %v1025
      %2088 = vmatmul.mubr.bf16.gmra.mxu0 %v1024
      %v2089 = vpop.f32.mrf.mxu0
      %v2090 = vadd.f32 %v1929, %v2089
      %v2091 = vpop.f32.mrf.mxu0
      %v2092 = vpop.f32.mrf.mxu0
      %v2093 = vadd.f32 %v1932, %v2092
      %v2094 = vpop.f32.mrf.mxu0
      %2095 = vmatprep.mubr.bf16.mxu0 %v1034
      %2096 = vmatmul.mubr.bf16.gmra.mxu0 %v1033
      %v2097 = vpop.f32.mrf.mxu0
      %v2098 = vadd.f32 %v1937, %v2097
      %v2099 = vpop.f32.mrf.mxu0
      %v2100 = vpop.f32.mrf.mxu0
      %v2101 = vadd.f32 %v1940, %v2100
      %v2102 = vpop.f32.mrf.mxu0
      %2103 = vmatprep.mubr.bf16.mxu0 %v1043
      %2104 = vmatmul.mubr.bf16.gmra.mxu0 %v1042
      %v2105 = vpop.f32.mrf.mxu0
      %v2106 = vadd.f32 %v1945, %v2105
      %v2107 = vpop.f32.mrf.mxu0
      %v2108 = vpop.f32.mrf.mxu0
      %v2109 = vadd.f32 %v1948, %v2108
      %v2110 = vpop.f32.mrf.mxu0
      %2111 = vmatprep.mubr.bf16.mxu0 %v1052
      %2112 = vmatmul.mubr.bf16.gmra.mxu0 %v1051
      %v2113 = vpop.f32.mrf.mxu0
      %v2114 = vadd.f32 %v1953, %v2113
      %v2115 = vpop.f32.mrf.mxu0
      %v2116 = vpop.f32.mrf.mxu0
      %v2117 = vadd.f32 %v1956, %v2116
      %v2118 = vpop.f32.mrf.mxu0
      %2119 = vmatprep.mubr.bf16.mxu0 %v1061
      %2120 = vmatmul.mubr.bf16.gmra.mxu0 %v1060
      %v2121 = vpop.f32.mrf.mxu0
      %v2122 = vadd.f32 %v1961, %v2121
      %v2123 = vpop.f32.mrf.mxu0
      %v2124 = vpop.f32.mrf.mxu0
      %v2125 = vadd.f32 %v1964, %v2124
      %v2126 = vpop.f32.mrf.mxu0
      %2127 = vmatprep.mubr.bf16.mxu0 %v1070
      %2128 = vmatmul.mubr.bf16.gmra.mxu0 %v1069
      %v2129 = vpop.f32.mrf.mxu0
      %v2130 = vadd.f32 %v1969, %v2129
      %v2131 = vpop.f32.mrf.mxu0
      %v2132 = vpop.f32.mrf.mxu0
      %v2133 = vadd.f32 %v1972, %v2132
      %v2134 = vpop.f32.mrf.mxu0
      %2135 = vmatprep.mubr.bf16.mxu0 %v1079
      %2136 = vmatmul.mubr.bf16.gmra.mxu0 %v1078
      %v2137 = vpop.f32.mrf.mxu0
      %v2138 = vadd.f32 %v1977, %v2137
      %v2139 = vpop.f32.mrf.mxu0
      %v2140 = vpop.f32.mrf.mxu0
      %v2141 = vadd.f32 %v1980, %v2140
      %v2142 = vpop.f32.mrf.mxu0
      %2143 = vmatprep.mubr.bf16.mxu0 %v1088
      %2144 = vmatmul.mubr.bf16.gmra.mxu0 %v1087
      %v2145 = vpop.f32.mrf.mxu0
      %v2146 = vadd.f32 %v1985, %v2145
      %v2147 = vpop.f32.mrf.mxu0
      %v2148 = vpop.f32.mrf.mxu0
      %v2149 = vadd.f32 %v1988, %v2148
      %v2150 = vpop.f32.mrf.mxu0
      %2151 = vmatprep.mubr.bf16.mxu0 %v1097
      %2152 = vmatmul.mubr.bf16.gmra.mxu0 %v1096
      %v2153 = vpop.f32.mrf.mxu0
      %v2154 = vadd.f32 %v1993, %v2153
      %v2155 = vpop.f32.mrf.mxu0
      %v2156 = vpop.f32.mrf.mxu0
      %v2157 = vadd.f32 %v1996, %v2156
      %v2158 = vpop.f32.mrf.mxu0
      %2159 = vdwg.mxu0
      %2160 = vmatprep.subr.bf16.mxu0 0
      %2161 = vmatpush1.bf16.msra.mxu0 %v1588
      %2162 = vmatprep.subr.bf16.mxu0 0
      %2163 = vmatpush1.bf16.msra.mxu0 %v1587
      %2164 = vmatprep.subr.bf16.mxu0 0
      %2165 = vmatpush1.bf16.msra.mxu0 %v1586
      %2166 = vmatprep.subr.bf16.mxu0 0
      %2167 = vmatpush1.bf16.msra.mxu0 %v1585
      %2168 = vmatprep.subr.bf16.mxu0 0
      %2169 = vmatpush1.bf16.msra.mxu0 %v1584
      %2170 = vmatprep.subr.bf16.mxu0 0
      %2171 = vmatpush1.bf16.msra.mxu0 %v1583
      %2172 = vmatprep.subr.bf16.mxu0 0
      %2173 = vmatpush1.bf16.msra.mxu0 %v1582
      %2174 = vmatprep.subr.bf16.mxu0 0
      %2175 = vmatpush1.bf16.msra.mxu0 %v1581
      %2176 = vmatprep.subr.bf16.mxu0 0
      %2177 = vmatpush2.bf16.msra.mxu0 %v1596
      %2178 = vmatprep.subr.bf16.mxu0 0
      %2179 = vmatpush2.bf16.msra.mxu0 %v1595
      %2180 = vmatprep.subr.bf16.mxu0 0
      %2181 = vmatpush2.bf16.msra.mxu0 %v1594
      %2182 = vmatprep.subr.bf16.mxu0 0
      %2183 = vmatpush2.bf16.msra.mxu0 %v1593
      %2184 = vmatprep.subr.bf16.mxu0 0
      %2185 = vmatpush2.bf16.msra.mxu0 %v1592
      %2186 = vmatprep.subr.bf16.mxu0 0
      %2187 = vmatpush2.bf16.msra.mxu0 %v1591
      %2188 = vmatprep.subr.bf16.mxu0 0
      %2189 = vmatpush2.bf16.msra.mxu0 %v1590
      %2190 = vmatprep.subr.bf16.mxu0 0
      %2191 = vmatpush2.bf16.msra.mxu0 %v1589
      %2192 = vmatprep.mubr.bf16.mxu0 %v964
      %2193 = vmatmul.mubr.bf16.gmra.mxu0 %v963
      %v2194 = vpop.f32.mrf.mxu0
      %v2195 = vadd.f32 %v2034, %v2194
      %v2196 = vpop.f32.mrf.mxu0
      %v2197 = vpop.f32.mrf.mxu0
      %v2198 = vadd.f32 %v2037, %v2197
      %v2199 = vpop.f32.mrf.mxu0
      %2200 = vmatprep.mubr.bf16.mxu0 %v973
      %2201 = vmatmul.mubr.bf16.gmra.mxu0 %v972
      %v2202 = vpop.f32.mrf.mxu0
      %v2203 = vadd.f32 %v2042, %v2202
      %v2204 = vpop.f32.mrf.mxu0
      %v2205 = vpop.f32.mrf.mxu0
      %v2206 = vadd.f32 %v2045, %v2205
      %v2207 = vpop.f32.mrf.mxu0
      %2208 = vmatprep.mubr.bf16.mxu0 %v982
      %2209 = vmatmul.mubr.bf16.gmra.mxu0 %v981
      %v2210 = vpop.f32.mrf.mxu0
      %v2211 = vadd.f32 %v2050, %v2210
      %v2212 = vpop.f32.mrf.mxu0
      %v2213 = vpop.f32.mrf.mxu0
      %v2214 = vadd.f32 %v2053, %v2213
      %v2215 = vpop.f32.mrf.mxu0
      %2216 = vmatprep.mubr.bf16.mxu0 %v991
      %2217 = vmatmul.mubr.bf16.gmra.mxu0 %v990
      %v2218 = vpop.f32.mrf.mxu0
      %v2219 = vadd.f32 %v2058, %v2218
      %v2220 = vpop.f32.mrf.mxu0
      %v2221 = vpop.f32.mrf.mxu0
      %v2222 = vadd.f32 %v2061, %v2221
      %v2223 = vpop.f32.mrf.mxu0
      %2224 = vmatprep.mubr.bf16.mxu0 %v1000
      %2225 = vmatmul.mubr.bf16.gmra.mxu0 %v999
      %v2226 = vpop.f32.mrf.mxu0
      %v2227 = vadd.f32 %v2066, %v2226
      %v2228 = vpop.f32.mrf.mxu0
      %v2229 = vpop.f32.mrf.mxu0
      %v2230 = vadd.f32 %v2069, %v2229
      %v2231 = vpop.f32.mrf.mxu0
      %2232 = vmatprep.mubr.bf16.mxu0 %v1009
      %2233 = vmatmul.mubr.bf16.gmra.mxu0 %v1008
      %v2234 = vpop.f32.mrf.mxu0
      %v2235 = vadd.f32 %v2074, %v2234
      %v2236 = vpop.f32.mrf.mxu0
      %v2237 = vpop.f32.mrf.mxu0
      %v2238 = vadd.f32 %v2077, %v2237
      %v2239 = vpop.f32.mrf.mxu0
      %2240 = vmatprep.mubr.bf16.mxu0 %v1018
      %2241 = vmatmul.mubr.bf16.gmra.mxu0 %v1017
      %v2242 = vpop.f32.mrf.mxu0
      %v2243 = vadd.f32 %v2082, %v2242
      %v2244 = vpop.f32.mrf.mxu0
      %v2245 = vpop.f32.mrf.mxu0
      %v2246 = vadd.f32 %v2085, %v2245
      %v2247 = vpop.f32.mrf.mxu0
      %2248 = vmatprep.mubr.bf16.mxu0 %v1027
      %2249 = vmatmul.mubr.bf16.gmra.mxu0 %v1026
      %v2250 = vpop.f32.mrf.mxu0
      %v2251 = vadd.f32 %v2090, %v2250
      %v2252 = vpop.f32.mrf.mxu0
      %v2253 = vpop.f32.mrf.mxu0
      %v2254 = vadd.f32 %v2093, %v2253
      %v2255 = vpop.f32.mrf.mxu0
      %2256 = vmatprep.mubr.bf16.mxu0 %v1036
      %2257 = vmatmul.mubr.bf16.gmra.mxu0 %v1035
      %v2258 = vpop.f32.mrf.mxu0
      %v2259 = vadd.f32 %v2098, %v2258
      %v2260 = vpop.f32.mrf.mxu0
      %v2261 = vpop.f32.mrf.mxu0
      %v2262 = vadd.f32 %v2101, %v2261
      %v2263 = vpop.f32.mrf.mxu0
      %2264 = vmatprep.mubr.bf16.mxu0 %v1045
      %2265 = vmatmul.mubr.bf16.gmra.mxu0 %v1044
      %v2266 = vpop.f32.mrf.mxu0
      %v2267 = vadd.f32 %v2106, %v2266
      %v2268 = vpop.f32.mrf.mxu0
      %v2269 = vpop.f32.mrf.mxu0
      %v2270 = vadd.f32 %v2109, %v2269
      %v2271 = vpop.f32.mrf.mxu0
      %2272 = vmatprep.mubr.bf16.mxu0 %v1054
      %2273 = vmatmul.mubr.bf16.gmra.mxu0 %v1053
      %v2274 = vpop.f32.mrf.mxu0
      %v2275 = vadd.f32 %v2114, %v2274
      %v2276 = vpop.f32.mrf.mxu0
      %v2277 = vpop.f32.mrf.mxu0
      %v2278 = vadd.f32 %v2117, %v2277
      %v2279 = vpop.f32.mrf.mxu0
      %2280 = vmatprep.mubr.bf16.mxu0 %v1063
      %2281 = vmatmul.mubr.bf16.gmra.mxu0 %v1062
      %v2282 = vpop.f32.mrf.mxu0
      %v2283 = vadd.f32 %v2122, %v2282
      %v2284 = vpop.f32.mrf.mxu0
      %v2285 = vpop.f32.mrf.mxu0
      %v2286 = vadd.f32 %v2125, %v2285
      %v2287 = vpop.f32.mrf.mxu0
      %2288 = vmatprep.mubr.bf16.mxu0 %v1072
      %2289 = vmatmul.mubr.bf16.gmra.mxu0 %v1071
      %v2290 = vpop.f32.mrf.mxu0
      %v2291 = vadd.f32 %v2130, %v2290
      %v2292 = vpop.f32.mrf.mxu0
      %v2293 = vpop.f32.mrf.mxu0
      %v2294 = vadd.f32 %v2133, %v2293
      %v2295 = vpop.f32.mrf.mxu0
      %2296 = vmatprep.mubr.bf16.mxu0 %v1081
      %2297 = vmatmul.mubr.bf16.gmra.mxu0 %v1080
      %v2298 = vpop.f32.mrf.mxu0
      %v2299 = vadd.f32 %v2138, %v2298
      %v2300 = vpop.f32.mrf.mxu0
      %v2301 = vpop.f32.mrf.mxu0
      %v2302 = vadd.f32 %v2141, %v2301
      %v2303 = vpop.f32.mrf.mxu0
      %2304 = vmatprep.mubr.bf16.mxu0 %v1090
      %2305 = vmatmul.mubr.bf16.gmra.mxu0 %v1089
      %v2306 = vpop.f32.mrf.mxu0
      %v2307 = vadd.f32 %v2146, %v2306
      %v2308 = vpop.f32.mrf.mxu0
      %v2309 = vpop.f32.mrf.mxu0
      %v2310 = vadd.f32 %v2149, %v2309
      %v2311 = vpop.f32.mrf.mxu0
      %2312 = vmatprep.mubr.bf16.mxu0 %v1099
      %2313 = vmatmul.mubr.bf16.gmra.mxu0 %v1098
      %v2314 = vpop.f32.mrf.mxu0
      %v2315 = vadd.f32 %v2154, %v2314
      %v2316 = vpop.f32.mrf.mxu0
      %v2317 = vpop.f32.mrf.mxu0
      %v2318 = vadd.f32 %v2157, %v2317
      %v2319 = vpop.f32.mrf.mxu0
      %2320 = vdwg.mxu0
      %2321 = vmatprep.subr.bf16.mxu0 0
      %2322 = vmatpush1.bf16.msra.mxu0 %v1604
      %2323 = vmatprep.subr.bf16.mxu0 0
      %2324 = vmatpush1.bf16.msra.mxu0 %v1603
      %2325 = vmatprep.subr.bf16.mxu0 0
      %2326 = vmatpush1.bf16.msra.mxu0 %v1602
      %2327 = vmatprep.subr.bf16.mxu0 0
      %2328 = vmatpush1.bf16.msra.mxu0 %v1601
      %2329 = vmatprep.subr.bf16.mxu0 0
      %2330 = vmatpush1.bf16.msra.mxu0 %v1600
      %2331 = vmatprep.subr.bf16.mxu0 0
      %2332 = vmatpush1.bf16.msra.mxu0 %v1599
      %2333 = vmatprep.subr.bf16.mxu0 0
      %2334 = vmatpush1.bf16.msra.mxu0 %v1598
      %2335 = vmatprep.subr.bf16.mxu0 0
      %2336 = vmatpush1.bf16.msra.mxu0 %v1597
      %2337 = vmatprep.subr.bf16.mxu0 0
      %2338 = vmatpush2.bf16.msra.mxu0 0
      %2339 = vmatprep.subr.bf16.mxu0 0
      %2340 = vmatpush2.bf16.msra.mxu0 0
      %2341 = vmatprep.subr.bf16.mxu0 0
      %2342 = vmatpush2.bf16.msra.mxu0 0
      %2343 = vmatprep.subr.bf16.mxu0 0
      %2344 = vmatpush2.bf16.msra.mxu0 0
      %2345 = vmatprep.subr.bf16.mxu0 0
      %2346 = vmatpush2.bf16.msra.mxu0 0
      %2347 = vmatprep.subr.bf16.mxu0 0
      %2348 = vmatpush2.bf16.msra.mxu0 0
      %2349 = vmatprep.subr.bf16.mxu0 0
      %2350 = vmatpush2.bf16.msra.mxu0 0
      %2351 = vmatprep.subr.bf16.mxu0 0
      %2352 = vmatpush2.bf16.msra.mxu0 0
      %2353 = vmatprep.mubr.bf16.mxu0 0
      %2354 = vmatmul.mubr.bf16.gmra.mxu0 %v965
      %v2355 = vpop.f32.mrf.mxu0
      %v2356 = vadd.f32 %v2195, %v2355
      %v2357 = vpop.f32.mrf.mxu0
      %v2358 = vpop.f32.mrf.mxu0
      %v2359 = vadd.f32 %v2198, %v2358
      %v2360 = vpop.f32.mrf.mxu0
      %2361 = vmatprep.mubr.bf16.mxu0 0
      %2362 = vmatmul.mubr.bf16.gmra.mxu0 %v974
      %v2363 = vpop.f32.mrf.mxu0
      %v2364 = vadd.f32 %v2203, %v2363
      %v2365 = vpop.f32.mrf.mxu0
      %v2366 = vpop.f32.mrf.mxu0
      %v2367 = vadd.f32 %v2206, %v2366
      %v2368 = vpop.f32.mrf.mxu0
      %2369 = vmatprep.mubr.bf16.mxu0 0
      %2370 = vmatmul.mubr.bf16.gmra.mxu0 %v983
      %v2371 = vpop.f32.mrf.mxu0
      %v2372 = vadd.f32 %v2211, %v2371
      %v2373 = vpop.f32.mrf.mxu0
      %v2374 = vpop.f32.mrf.mxu0
      %v2375 = vadd.f32 %v2214, %v2374
      %v2376 = vpop.f32.mrf.mxu0
      %2377 = vmatprep.mubr.bf16.mxu0 0
      %2378 = vmatmul.mubr.bf16.gmra.mxu0 %v992
      %v2379 = vpop.f32.mrf.mxu0
      %v2380 = vadd.f32 %v2219, %v2379
      %v2381 = vpop.f32.mrf.mxu0
      %v2382 = vpop.f32.mrf.mxu0
      %v2383 = vadd.f32 %v2222, %v2382
      %v2384 = vpop.f32.mrf.mxu0
      %2385 = vmatprep.mubr.bf16.mxu0 0
      %2386 = vmatmul.mubr.bf16.gmra.mxu0 %v1001
      %v2387 = vpop.f32.mrf.mxu0
      %v2388 = vadd.f32 %v2227, %v2387
      %v2389 = vpop.f32.mrf.mxu0
      %v2390 = vpop.f32.mrf.mxu0
      %v2391 = vadd.f32 %v2230, %v2390
      %v2392 = vpop.f32.mrf.mxu0
      %2393 = vmatprep.mubr.bf16.mxu0 0
      %2394 = vmatmul.mubr.bf16.gmra.mxu0 %v1010
      %v2395 = vpop.f32.mrf.mxu0
      %v2396 = vadd.f32 %v2235, %v2395
      %v2397 = vpop.f32.mrf.mxu0
      %v2398 = vpop.f32.mrf.mxu0
      %v2399 = vadd.f32 %v2238, %v2398
      %v2400 = vpop.f32.mrf.mxu0
      %2401 = vmatprep.mubr.bf16.mxu0 0
      %2402 = vmatmul.mubr.bf16.gmra.mxu0 %v1019
      %v2403 = vpop.f32.mrf.mxu0
      %v2404 = vadd.f32 %v2243, %v2403
      %v2405 = vpop.f32.mrf.mxu0
      %v2406 = vpop.f32.mrf.mxu0
      %v2407 = vadd.f32 %v2246, %v2406
      %v2408 = vpop.f32.mrf.mxu0
      %2409 = vmatprep.mubr.bf16.mxu0 0
      %2410 = vmatmul.mubr.bf16.gmra.mxu0 %v1028
      %v2411 = vpop.f32.mrf.mxu0
      %v2412 = vadd.f32 %v2251, %v2411
      %v2413 = vpop.f32.mrf.mxu0
      %v2414 = vpop.f32.mrf.mxu0
      %v2415 = vadd.f32 %v2254, %v2414
      %v2416 = vpop.f32.mrf.mxu0
      %2417 = vmatprep.mubr.bf16.mxu0 0
      %2418 = vmatmul.mubr.bf16.gmra.mxu0 %v1037
      %v2419 = vpop.f32.mrf.mxu0
      %v2420 = vadd.f32 %v2259, %v2419
      %v2421 = vpop.f32.mrf.mxu0
      %v2422 = vpop.f32.mrf.mxu0
      %v2423 = vadd.f32 %v2262, %v2422
      %v2424 = vpop.f32.mrf.mxu0
      %2425 = vmatprep.mubr.bf16.mxu0 0
      %2426 = vmatmul.mubr.bf16.gmra.mxu0 %v1046
      %v2427 = vpop.f32.mrf.mxu0
      %v2428 = vadd.f32 %v2267, %v2427
      %v2429 = vpop.f32.mrf.mxu0
      %v2430 = vpop.f32.mrf.mxu0
      %v2431 = vadd.f32 %v2270, %v2430
      %v2432 = vpop.f32.mrf.mxu0
      %2433 = vmatprep.mubr.bf16.mxu0 0
      %2434 = vmatmul.mubr.bf16.gmra.mxu0 %v1055
      %v2435 = vpop.f32.mrf.mxu0
      %v2436 = vadd.f32 %v2275, %v2435
      %v2437 = vpop.f32.mrf.mxu0
      %v2438 = vpop.f32.mrf.mxu0
      %v2439 = vadd.f32 %v2278, %v2438
      %v2440 = vpop.f32.mrf.mxu0
      %2441 = vmatprep.mubr.bf16.mxu0 0
      %2442 = vmatmul.mubr.bf16.gmra.mxu0 %v1064
      %v2443 = vpop.f32.mrf.mxu0
      %v2444 = vadd.f32 %v2283, %v2443
      %v2445 = vpop.f32.mrf.mxu0
      %v2446 = vpop.f32.mrf.mxu0
      %v2447 = vadd.f32 %v2286, %v2446
      %v2448 = vpop.f32.mrf.mxu0
      %2449 = vmatprep.mubr.bf16.mxu0 0
      %2450 = vmatmul.mubr.bf16.gmra.mxu0 %v1073
      %v2451 = vpop.f32.mrf.mxu0
      %v2452 = vadd.f32 %v2291, %v2451
      %v2453 = vpop.f32.mrf.mxu0
      %v2454 = vpop.f32.mrf.mxu0
      %v2455 = vadd.f32 %v2294, %v2454
      %v2456 = vpop.f32.mrf.mxu0
      %2457 = vmatprep.mubr.bf16.mxu0 0
      %2458 = vmatmul.mubr.bf16.gmra.mxu0 %v1082
      %v2459 = vpop.f32.mrf.mxu0
      %v2460 = vadd.f32 %v2299, %v2459
      %v2461 = vpop.f32.mrf.mxu0
      %v2462 = vpop.f32.mrf.mxu0
      %v2463 = vadd.f32 %v2302, %v2462
      %v2464 = vpop.f32.mrf.mxu0
      %2465 = vmatprep.mubr.bf16.mxu0 0
      %2466 = vmatmul.mubr.bf16.gmra.mxu0 %v1091
      %v2467 = vpop.f32.mrf.mxu0
      %v2468 = vadd.f32 %v2307, %v2467
      %v2469 = vpop.f32.mrf.mxu0
      %v2470 = vpop.f32.mrf.mxu0
      %v2471 = vadd.f32 %v2310, %v2470
      %v2472 = vpop.f32.mrf.mxu0
      %2473 = vmatprep.mubr.bf16.mxu0 0
      %2474 = vmatmul.mubr.bf16.gmra.mxu0 %v1100
      %v2475 = vpop.f32.mrf.mxu0
      %v2476 = vadd.f32 %v2315, %v2475
      %v2477 = vpop.f32.mrf.mxu0
      %v2478 = vpop.f32.mrf.mxu0
      %v2479 = vadd.f32 %v2318, %v2478
      %v2480 = vpop.f32.mrf.mxu0
      %2481 = vdwg.mxu0
      %v2482 = vld [vmem:[%s2] sm:$0x1]
      %v2484 = vlaneseq
      %v2485 = vshrl.u32 %v2484, 7
      %v2486 = vsub.s32 0, %v2485
      %v2487 = vrot.slane %v2482, %v2486
      %v2489 = vmul.f32 %v2356, %v2487
      %v2490 = vmul.f32 %v2359, %v2487
      %v2491 = vmul.f32 %v2364, %v2487
      %v2492 = vmul.f32 %v2367, %v2487
      %v2493 = vmul.f32 %v2372, %v2487
      %v2494 = vmul.f32 %v2375, %v2487
      %v2495 = vmul.f32 %v2380, %v2487
      %v2496 = vmul.f32 %v2383, %v2487
      %v2497 = vmul.f32 %v2388, %v2487
      %v2498 = vmul.f32 %v2391, %v2487
      %v2499 = vmul.f32 %v2396, %v2487
      %v2500 = vmul.f32 %v2399, %v2487
      %v2501 = vmul.f32 %v2404, %v2487
      %v2502 = vmul.f32 %v2407, %v2487
      %v2503 = vmul.f32 %v2412, %v2487
      %v2504 = vmul.f32 %v2415, %v2487
      %v2505 = vmul.f32 %v2420, %v2487
      %v2506 = vmul.f32 %v2423, %v2487
      %v2507 = vmul.f32 %v2428, %v2487
      %v2508 = vmul.f32 %v2431, %v2487
      %v2509 = vmul.f32 %v2436, %v2487
      %v2510 = vmul.f32 %v2439, %v2487
      %v2511 = vmul.f32 %v2444, %v2487
      %v2512 = vmul.f32 %v2447, %v2487
      %v2513 = vmul.f32 %v2452, %v2487
      %v2514 = vmul.f32 %v2455, %v2487
      %v2515 = vmul.f32 %v2460, %v2487
      %v2516 = vmul.f32 %v2463, %v2487
      %v2517 = vmul.f32 %v2468, %v2487
      %v2518 = vmul.f32 %v2471, %v2487
      %v2519 = vmul.f32 %v2476, %v2487
      %v2520 = vmul.f32 %v2479, %v2487
      %v2521 = vld [vmem:[%s3] sm:$0x1]
      %v2523 = vlaneseq
      %v2524 = vshrl.u32 %v2523, 7
      %v2525 = vsub.s32 0, %v2524
      %v2526 = vrot.slane %v2521, %v2525
      %v2528 = vadd.f32 %v2489, %v2526
      %v2529 = vadd.f32 %v2490, %v2526
      %v2530 = vadd.f32 %v2491, %v2526
      %v2531 = vadd.f32 %v2492, %v2526
      %v2532 = vadd.f32 %v2493, %v2526
      %v2533 = vadd.f32 %v2494, %v2526
      %v2534 = vadd.f32 %v2495, %v2526
      %v2535 = vadd.f32 %v2496, %v2526
      %v2536 = vadd.f32 %v2497, %v2526
      %v2537 = vadd.f32 %v2498, %v2526
      %v2538 = vadd.f32 %v2499, %v2526
      %v2539 = vadd.f32 %v2500, %v2526
      %v2540 = vadd.f32 %v2501, %v2526
      %v2541 = vadd.f32 %v2502, %v2526
      %v2542 = vadd.f32 %v2503, %v2526
      %v2543 = vadd.f32 %v2504, %v2526
      %v2544 = vadd.f32 %v2505, %v2526
      %v2545 = vadd.f32 %v2506, %v2526
      %v2546 = vadd.f32 %v2507, %v2526
      %v2547 = vadd.f32 %v2508, %v2526
      %v2548 = vadd.f32 %v2509, %v2526
      %v2549 = vadd.f32 %v2510, %v2526
      %v2550 = vadd.f32 %v2511, %v2526
      %v2551 = vadd.f32 %v2512, %v2526
      %v2552 = vadd.f32 %v2513, %v2526
      %v2553 = vadd.f32 %v2514, %v2526
      %v2554 = vadd.f32 %v2515, %v2526
      %v2555 = vadd.f32 %v2516, %v2526
      %v2556 = vadd.f32 %v2517, %v2526
      %v2557 = vadd.f32 %v2518, %v2526
      %v2558 = vadd.f32 %v2519, %v2526
      %v2559 = vadd.f32 %v2520, %v2526
      %v2560 = vmax.f32 %v2528, 0.0
      %v2561 = vmax.f32 %v2529, 0.0
      %v2562 = vmax.f32 %v2530, 0.0
      %v2563 = vmax.f32 %v2531, 0.0
      %v2564 = vmax.f32 %v2532, 0.0
      %v2565 = vmax.f32 %v2533, 0.0
      %v2566 = vmax.f32 %v2534, 0.0
      %v2567 = vmax.f32 %v2535, 0.0
      %v2568 = vmax.f32 %v2536, 0.0
      %v2569 = vmax.f32 %v2537, 0.0
      %v2570 = vmax.f32 %v2538, 0.0
      %v2571 = vmax.f32 %v2539, 0.0
      %v2572 = vmax.f32 %v2540, 0.0
      %v2573 = vmax.f32 %v2541, 0.0
      %v2574 = vmax.f32 %v2542, 0.0
      %v2575 = vmax.f32 %v2543, 0.0
      %v2576 = vmax.f32 %v2544, 0.0
      %v2577 = vmax.f32 %v2545, 0.0
      %v2578 = vmax.f32 %v2546, 0.0
      %v2579 = vmax.f32 %v2547, 0.0
      %v2580 = vmax.f32 %v2548, 0.0
      %v2581 = vmax.f32 %v2549, 0.0
      %v2582 = vmax.f32 %v2550, 0.0
      %v2583 = vmax.f32 %v2551, 0.0
      %v2584 = vmax.f32 %v2552, 0.0
      %v2585 = vmax.f32 %v2553, 0.0
      %v2586 = vmax.f32 %v2554, 0.0
      %v2587 = vmax.f32 %v2555, 0.0
      %v2588 = vmax.f32 %v2556, 0.0
      %v2589 = vmax.f32 %v2557, 0.0
      %v2590 = vmax.f32 %v2558, 0.0
      %v2591 = vmax.f32 %v2559, 0.0
      %v2592 = vpack.c.bf16 %v2561, %v2560
      %v2593 = vpack.c.bf16 %v2563, %v2562
      %v2594 = vpack.c.bf16 %v2565, %v2564
      %v2595 = vpack.c.bf16 %v2567, %v2566
      %v2596 = vpack.c.bf16 %v2569, %v2568
      %v2597 = vpack.c.bf16 %v2571, %v2570
      %v2598 = vpack.c.bf16 %v2573, %v2572
      %v2599 = vpack.c.bf16 %v2575, %v2574
      %v2600 = vpack.c.bf16 %v2577, %v2576
      %v2601 = vpack.c.bf16 %v2579, %v2578
      %v2602 = vpack.c.bf16 %v2581, %v2580
      %v2603 = vpack.c.bf16 %v2583, %v2582
      %v2604 = vpack.c.bf16 %v2585, %v2584
      %v2605 = vpack.c.bf16 %v2587, %v2586
      %v2606 = vpack.c.bf16 %v2589, %v2588
      %v2607 = vpack.c.bf16 %v2591, %v2590
      %v2624 = vunpack.c.l.b16 %v2592
      %v2625 = vunpack.c.h.b16 %v2592
      %v2626 = vunpack.c.l.b16 %v2593
      %v2627 = vunpack.c.h.b16 %v2593
      %v2628 = vunpack.c.l.b16 %v2594
      %v2629 = vunpack.c.h.b16 %v2594
      %v2630 = vunpack.c.l.b16 %v2595
      %v2631 = vunpack.c.h.b16 %v2595
      %v2632 = vunpack.c.l.b16 %v2596
      %v2633 = vunpack.c.h.b16 %v2596
      %v2634 = vunpack.c.l.b16 %v2597
      %v2635 = vunpack.c.h.b16 %v2597
      %v2636 = vunpack.c.l.b16 %v2598
      %v2637 = vunpack.c.h.b16 %v2598
      %v2638 = vunpack.c.l.b16 %v2599
      %v2639 = vunpack.c.h.b16 %v2599
      %v2640 = vunpack.c.l.b16 %v2600
      %v2641 = vunpack.c.h.b16 %v2600
      %v2642 = vunpack.c.l.b16 %v2601
      %v2643 = vunpack.c.h.b16 %v2601
      %v2644 = vunpack.c.l.b16 %v2602
      %v2645 = vunpack.c.h.b16 %v2602
      %v2646 = vunpack.c.l.b16 %v2603
      %v2647 = vunpack.c.h.b16 %v2603
      %v2648 = vunpack.c.l.b16 %v2604
      %v2649 = vunpack.c.h.b16 %v2604
      %v2650 = vunpack.c.l.b16 %v2605
      %v2651 = vunpack.c.h.b16 %v2605
      %v2652 = vunpack.c.l.b16 %v2606
      %v2653 = vunpack.c.h.b16 %v2606
      %v2654 = vunpack.c.l.b16 %v2607
      %v2655 = vunpack.c.h.b16 %v2607
      %v2656 = vpack.c.b16 %v2624, %v2624
      %v2657 = vpack.c.b16 %v2625, %v2625
      %v2658 = vpack.c.b16 %v2626, %v2626
      %v2659 = vpack.c.b16 %v2627, %v2627
      %v2660 = vpack.c.b16 %v2628, %v2628
      %v2661 = vpack.c.b16 %v2629, %v2629
      %v2662 = vpack.c.b16 %v2630, %v2630
      %v2663 = vpack.c.b16 %v2631, %v2631
      %v2664 = vpack.c.b16 %v2632, %v2632
      %v2665 = vpack.c.b16 %v2633, %v2633
      %v2666 = vpack.c.b16 %v2634, %v2634
      %v2667 = vpack.c.b16 %v2635, %v2635
      %v2668 = vpack.c.b16 %v2636, %v2636
      %v2669 = vpack.c.b16 %v2637, %v2637
      %v2670 = vpack.c.b16 %v2638, %v2638
      %v2671 = vpack.c.b16 %v2639, %v2639
      %v2672 = vpack.c.b16 %v2640, %v2640
      %v2673 = vpack.c.b16 %v2641, %v2641
      %v2674 = vpack.c.b16 %v2642, %v2642
      %v2675 = vpack.c.b16 %v2643, %v2643
      %v2676 = vpack.c.b16 %v2644, %v2644
      %v2677 = vpack.c.b16 %v2645, %v2645
      %v2678 = vpack.c.b16 %v2646, %v2646
      %v2679 = vpack.c.b16 %v2647, %v2647
      %v2680 = vpack.c.b16 %v2648, %v2648
      %v2681 = vpack.c.b16 %v2649, %v2649
      %v2682 = vpack.c.b16 %v2650, %v2650
      %v2683 = vpack.c.b16 %v2651, %v2651
      %v2684 = vpack.c.b16 %v2652, %v2652
      %v2685 = vpack.c.b16 %v2653, %v2653
      %v2686 = vpack.c.b16 %v2654, %v2654
      %v2687 = vpack.c.b16 %v2655, %v2655
      %2720 = vst [vmem:[%s202] sm:$0xf] %v2656
      %2721 = vst [vmem:[%s202 + $0x4] sm:$0xf] %v2657
      %2722 = vst [vmem:[%s202 + $0x8] sm:$0xf] %v2658
      %2723 = vst [vmem:[%s202 + $0xc] sm:$0xf] %v2659
      %2724 = vst [vmem:[%s202 + $0x10] sm:$0xf] %v2660
      %2725 = vst [vmem:[%s202 + $0x14] sm:$0xf] %v2661
      %2726 = vst [vmem:[%s202 + $0x18] sm:$0xf] %v2662
      %2727 = vst [vmem:[%s202 + $0x1c] sm:$0xf] %v2663
      %2728 = vst [vmem:[%s202 + $0x20] sm:$0xf] %v2664
      %2729 = vst [vmem:[%s202 + $0x24] sm:$0xf] %v2665
      %2730 = vst [vmem:[%s202 + $0x28] sm:$0xf] %v2666
      %2731 = vst [vmem:[%s202 + $0x2c] sm:$0xf] %v2667
      %2732 = vst [vmem:[%s202 + $0x30] sm:$0xf] %v2668
      %2733 = vst [vmem:[%s202 + $0x34] sm:$0xf] %v2669
      %2734 = vst [vmem:[%s202 + $0x38] sm:$0xf] %v2670
      %2735 = vst [vmem:[%s202 + $0x3c] sm:$0xf] %v2671
      %2736 = vst [vmem:[%s202 + $0x40] sm:$0xf] %v2672
      %2737 = vst [vmem:[%s202 + $0x44] sm:$0xf] %v2673
      %2738 = vst [vmem:[%s202 + $0x48] sm:$0xf] %v2674
      %2739 = vst [vmem:[%s202 + $0x4c] sm:$0xf] %v2675
      %2740 = vst [vmem:[%s202 + $0x50] sm:$0xf] %v2676
      %2741 = vst [vmem:[%s202 + $0x54] sm:$0xf] %v2677
      %2742 = vst [vmem:[%s202 + $0x58] sm:$0xf] %v2678
      %2743 = vst [vmem:[%s202 + $0x5c] sm:$0xf] %v2679
      %2744 = vst [vmem:[%s202 + $0x60] sm:$0xf] %v2680
      %2745 = vst [vmem:[%s202 + $0x64] sm:$0xf] %v2681
      %2746 = vst [vmem:[%s202 + $0x68] sm:$0xf] %v2682
      %2747 = vst [vmem:[%s202 + $0x6c] sm:$0xf] %v2683
      %2748 = vst [vmem:[%s202 + $0x70] sm:$0xf] %v2684
      %2749 = vst [vmem:[%s202 + $0x74] sm:$0xf] %v2685
      %2750 = vst [vmem:[%s202 + $0x78] sm:$0xf] %v2686
      %2751 = vst [vmem:[%s202 + $0x7c] sm:$0xf] %v2687
      %s2752 = smul.u32 32, %s15
      %p2753 = scmp.lt.s32.totalorder %s2752, 63
      %s2754 = scalar_select %p2753, %s2752, 63
      %s2755 = smul.addr %s2754, 4
      %s2756 = scalar_lea.vmem %s4, %s2755
      // Predicated region
      $region37: #{deeplab_forward.10} parent=35 // pred_check
        %p2757 = pneg %p122
      $region38: #{deeplab_forward.10} parent=35 // pred_check_branch
        %2759 = sbr.rel (%p2757) target = $region40
      $region39: #{deeplab_forward.10} parent=35 // pred_region
        %s2760 = smul.u32 32, %s15
      $region40: #{deeplab_forward.10} parent=35 // pred_fallthru
        _
    $region36: #{deeplab_forward.10} parent=5 // pred_fallthru
      _
    %p2761 = scmp.le.s32.totalorder 2, %s10
    // Predicated region
    $region41: #{deeplab_forward.10} parent=5 // pred_check
      %p2762 = pneg %p2761
    $region42: #{deeplab_forward.10} parent=5 // pred_check_branch
      %2764 = sbr.rel (%p2762) target = $region44
    $region43: #{deeplab_forward.10} parent=5 // pred_region
      %s2765 = ssub.s32 %s10, 2
      // Predicated region
      $region45: #{deeplab_forward.10} parent=43 // pred_check
        %p2766 = pneg %p128
      $region46: #{deeplab_forward.10} parent=43 // pred_check_branch
        %2768 = sbr.rel (%p2766) target = $region48
      $region47: #{deeplab_forward.10} parent=43 // pred_region
        %s2769 = smul.u32 32, %s16
        %p2770 = scmp.lt.s32.totalorder %s2769, 63
        %s2771 = scalar_select %p2770, %s2769, 63
        %s2772 = smul.addr %s2771, 4
        %s2773 = scalar_lea.vmem %s4, %s2772
      $region48: #{deeplab_forward.10} parent=43 // pred_fallthru
        _
    $region44: #{deeplab_forward.10} parent=5 // pred_fallthru
      _
  $region6: #{deeplab_forward.10} parent=0 // loop_footer
    %s14 = sadd.s32 1, %s10
  $region7: #{deeplab_forward.10} parent=0 // loop_footer_branch
    %9 = sbr.rel target = $region3
  $region8: #{deeplab_forward.10} parent=0 // loop_exit
    _

// kernel: deeplab_forward.12
$region0: #{deeplab_forward.12}
  #allocation0 [shape = 'u32[]', space=smem, size = 0x4, offset = 0x4, fixed_abs, tag = 'smem constant byte address 0x4 - core index']
  #allocation1 [shape = 'u32[144,128]{1,0:T(1,128)}', space=vmem, size = 0x12000, scoped, tag = 'internal scratch']
  %s0 = inlined_call_operand.vmem [shape: bf16[32,1152], index: 0, kind: input, shape index: {}]
  %s1 = inlined_call_operand.vmem [shape: bf16[1152,128], index: 1, kind: input, shape index: {}]
  %s2 = inlined_call_operand.vmem [shape: f32[1,128], index: 2, kind: input, shape index: {}]
  %s3 = inlined_call_operand.vmem [shape: f32[1,128], index: 3, kind: input, shape index: {}]
  %s4 = inlined_call_operand.vmem [shape: bf16[32,128], index: 4, kind: output, shape index: {}]
  %s5 = sld [smem:[#allocation0]]
  $region26: #{deeplab_forward.12} parent=0
    _
  %s7 = ssub.s32 1, %s5
  %s8 = scalar_select 0, %s7, %s5
  // Predicated region
  $region2: #{deeplab_forward.12} parent=0 // pred_check
    _
  $region3: #{deeplab_forward.12} parent=0 // pred_check_branch
    %10 = sbr.rel (0) target = $region5
  $region4: #{deeplab_forward.12} parent=0 // pred_region
    _
  $region5: #{deeplab_forward.12} parent=0 // pred_fallthru
    _
  // Predicated region
  $region6: #{deeplab_forward.12} parent=0 // pred_check
    _
  $region7: #{deeplab_forward.12} parent=0 // pred_check_branch
    %12 = sbr.rel (0) target = $region9
  $region8: #{deeplab_forward.12} parent=0 // pred_region
    _
  $region9: #{deeplab_forward.12} parent=0 // pred_fallthru
    _
  // Predicated region
  $region10: #{deeplab_forward.12} parent=0 // pred_check
    _
  $region11: #{deeplab_forward.12} parent=0 // pred_check_branch
    %14 = sbr.rel (0) target = $region13
  $region12: #{deeplab_forward.12} parent=0 // pred_region
    _
  $region13: #{deeplab_forward.12} parent=0 // pred_fallthru
    _
  // Predicated region
  $region14: #{deeplab_forward.12} parent=0 // pred_check
    _
  $region15: #{deeplab_forward.12} parent=0 // pred_check_branch
    %16 = sbr.rel (0) target = $region17
  $region16: #{deeplab_forward.12} parent=0 // pred_region
    _
  $region17: #{deeplab_forward.12} parent=0 // pred_fallthru
    _
  %v18 = vld [vmem:[%s0] sm:$0xff]
  %v19 = vld [vmem:[%s0 + $0x8] sm:$0xff]
  %v20 = vld [vmem:[%s0 + $0x10] sm:$0xff]
  %v21 = vld [vmem:[%s0 + $0x18] sm:$0xff]
  %v22 = vld [vmem:[%s0 + $0x20] sm:$0xf]
  %v23 = vld [vmem:[%s0 + $0x24] sm:$0xff]
  %v24 = vld [vmem:[%s0 + $0x2c] sm:$0xff]
  %v25 = vld [vmem:[%s0 + $0x34] sm:$0xff]
  %v26 = vld [vmem:[%s0 + $0x3c] sm:$0xff]
  %v27 = vld [vmem:[%s0 + $0x44] sm:$0xf]
  %v28 = vld [vmem:[%s0 + $0x48] sm:$0xff]
  %v29 = vld [vmem:[%s0 + $0x50] sm:$0xff]
  %v30 = vld [vmem:[%s0 + $0x58] sm:$0xff]
  %v31 = vld [vmem:[%s0 + $0x60] sm:$0xff]
  %v32 = vld [vmem:[%s0 + $0x68] sm:$0xf]
  %v33 = vld [vmem:[%s0 + $0x6c] sm:$0xff]
  %v34 = vld [vmem:[%s0 + $0x74] sm:$0xff]
  %v35 = vld [vmem:[%s0 + $0x7c] sm:$0xff]
  %v36 = vld [vmem:[%s0 + $0x84] sm:$0xff]
  %v37 = vld [vmem:[%s0 + $0x8c] sm:$0xf]
  %v38 = vld [vmem:[%s1] sm:$0xf]
  %v39 = vld [vmem:[%s1 + $0x4] sm:$0xf]
  %v40 = vld [vmem:[%s1 + $0x8] sm:$0xf]
  %v41 = vld [vmem:[%s1 + $0xc] sm:$0xf]
  %v42 = vld [vmem:[%s1 + $0x10] sm:$0xf]
  %v43 = vld [vmem:[%s1 + $0x14] sm:$0xf]
  %v44 = vld [vmem:[%s1 + $0x18] sm:$0xf]
  %v45 = vld [vmem:[%s1 + $0x1c] sm:$0xf]
  %v46 = vld [vmem:[%s1 + $0x20] sm:$0xf]
  %v47 = vld [vmem:[%s1 + $0x24] sm:$0xf]
  %v48 = vld [vmem:[%s1 + $0x28] sm:$0xf]
  %v49 = vld [vmem:[%s1 + $0x2c] sm:$0xf]
  %v50 = vld [vmem:[%s1 + $0x30] sm:$0xf]
  %v51 = vld [vmem:[%s1 + $0x34] sm:$0xf]
  %v52 = vld [vmem:[%s1 + $0x38] sm:$0xf]
  %v53 = vld [vmem:[%s1 + $0x3c] sm:$0xf]
  %v54 = vld [vmem:[%s1 + $0x40] sm:$0xf]
  %v55 = vld [vmem:[%s1 + $0x44] sm:$0xf]
  %v56 = vld [vmem:[%s1 + $0x48] sm:$0xf]
  %v57 = vld [vmem:[%s1 + $0x4c] sm:$0xf]
  %v58 = vld [vmem:[%s1 + $0x50] sm:$0xf]
  %v59 = vld [vmem:[%s1 + $0x54] sm:$0xf]
  %v60 = vld [vmem:[%s1 + $0x58] sm:$0xf]
  %v61 = vld [vmem:[%s1 + $0x5c] sm:$0xf]
  %v62 = vld [vmem:[%s1 + $0x60] sm:$0xf]
  %v63 = vld [vmem:[%s1 + $0x64] sm:$0xf]
  %v64 = vld [vmem:[%s1 + $0x68] sm:$0xf]
  %v65 = vld [vmem:[%s1 + $0x6c] sm:$0xf]
  %v66 = vld [vmem:[%s1 + $0x70] sm:$0xf]
  %v67 = vld [vmem:[%s1 + $0x74] sm:$0xf]
  %v68 = vld [vmem:[%s1 + $0x78] sm:$0xf]
  %v69 = vld [vmem:[%s1 + $0x7c] sm:$0xf]
  %v70 = vld [vmem:[%s1 + $0x80] sm:$0xf]
  %v71 = vld [vmem:[%s1 + $0x84] sm:$0xf]
  %v72 = vld [vmem:[%s1 + $0x88] sm:$0xf]
  %v73 = vld [vmem:[%s1 + $0x8c] sm:$0xf]
  %v74 = vld [vmem:[%s1 + $0x90] sm:$0xf]
  %v75 = vld [vmem:[%s1 + $0x94] sm:$0xf]
  %v76 = vld [vmem:[%s1 + $0x98] sm:$0xf]
  %v77 = vld [vmem:[%s1 + $0x9c] sm:$0xf]
  %v78 = vld [vmem:[%s1 + $0xa0] sm:$0xf]
  %v79 = vld [vmem:[%s1 + $0xa4] sm:$0xf]
  %v80 = vld [vmem:[%s1 + $0xa8] sm:$0xf]
  %v81 = vld [vmem:[%s1 + $0xac] sm:$0xf]
  %v82 = vld [vmem:[%s1 + $0xb0] sm:$0xf]
  %v83 = vld [vmem:[%s1 + $0xb4] sm:$0xf]
  %v84 = vld [vmem:[%s1 + $0xb8] sm:$0xf]
  %v85 = vld [vmem:[%s1 + $0xbc] sm:$0xf]
  %v86 = vld [vmem:[%s1 + $0xc0] sm:$0xf]
  %v87 = vld [vmem:[%s1 + $0xc4] sm:$0xf]
  %v88 = vld [vmem:[%s1 + $0xc8] sm:$0xf]
  %v89 = vld [vmem:[%s1 + $0xcc] sm:$0xf]
  %v90 = vld [vmem:[%s1 + $0xd0] sm:$0xf]
  %v91 = vld [vmem:[%s1 + $0xd4] sm:$0xf]
  %v92 = vld [vmem:[%s1 + $0xd8] sm:$0xf]
  %v93 = vld [vmem:[%s1 + $0xdc] sm:$0xf]
  %v94 = vld [vmem:[%s1 + $0xe0] sm:$0xf]
  %v95 = vld [vmem:[%s1 + $0xe4] sm:$0xf]
  %v96 = vld [vmem:[%s1 + $0xe8] sm:$0xf]
  %v97 = vld [vmem:[%s1 + $0xec] sm:$0xf]
  %v98 = vld [vmem:[%s1 + $0xf0] sm:$0xf]
  %v99 = vld [vmem:[%s1 + $0xf4] sm:$0xf]
  %v100 = vld [vmem:[%s1 + $0xf8] sm:$0xf]
  %v101 = vld [vmem:[%s1 + $0xfc] sm:$0xf]
  %v102 = vld [vmem:[%s1 + $0x100] sm:$0xf]
  %v103 = vld [vmem:[%s1 + $0x104] sm:$0xf]
  %v104 = vld [vmem:[%s1 + $0x108] sm:$0xf]
  %v105 = vld [vmem:[%s1 + $0x10c] sm:$0xf]
  %v106 = vld [vmem:[%s1 + $0x110] sm:$0xf]
  %v107 = vld [vmem:[%s1 + $0x114] sm:$0xf]
  %v108 = vld [vmem:[%s1 + $0x118] sm:$0xf]
  %v109 = vld [vmem:[%s1 + $0x11c] sm:$0xf]
  %v110 = vld [vmem:[%s1 + $0x120] sm:$0xf]
  %v111 = vld [vmem:[%s1 + $0x124] sm:$0xf]
  %v112 = vld [vmem:[%s1 + $0x128] sm:$0xf]
  %v113 = vld [vmem:[%s1 + $0x12c] sm:$0xf]
  %v114 = vld [vmem:[%s1 + $0x130] sm:$0xf]
  %v115 = vld [vmem:[%s1 + $0x134] sm:$0xf]
  %v116 = vld [vmem:[%s1 + $0x138] sm:$0xf]
  %v117 = vld [vmem:[%s1 + $0x13c] sm:$0xf]
  %v118 = vld [vmem:[%s1 + $0x140] sm:$0xf]
  %v119 = vld [vmem:[%s1 + $0x144] sm:$0xf]
  %v120 = vld [vmem:[%s1 + $0x148] sm:$0xf]
  %v121 = vld [vmem:[%s1 + $0x14c] sm:$0xf]
  %v122 = vld [vmem:[%s1 + $0x150] sm:$0xf]
  %v123 = vld [vmem:[%s1 + $0x154] sm:$0xf]
  %v124 = vld [vmem:[%s1 + $0x158] sm:$0xf]
  %v125 = vld [vmem:[%s1 + $0x15c] sm:$0xf]
  %v126 = vld [vmem:[%s1 + $0x160] sm:$0xf]
  %v127 = vld [vmem:[%s1 + $0x164] sm:$0xf]
  %v128 = vld [vmem:[%s1 + $0x168] sm:$0xf]
  %v129 = vld [vmem:[%s1 + $0x16c] sm:$0xf]
  %v130 = vld [vmem:[%s1 + $0x170] sm:$0xf]
  %v131 = vld [vmem:[%s1 + $0x174] sm:$0xf]
  %v132 = vld [vmem:[%s1 + $0x178] sm:$0xf]
  %v133 = vld [vmem:[%s1 + $0x17c] sm:$0xf]
  %v134 = vld [vmem:[%s1 + $0x180] sm:$0xf]
  %v135 = vld [vmem:[%s1 + $0x184] sm:$0xf]
  %v136 = vld [vmem:[%s1 + $0x188] sm:$0xf]
  %v137 = vld [vmem:[%s1 + $0x18c] sm:$0xf]
  %v138 = vld [vmem:[%s1 + $0x190] sm:$0xf]
  %v139 = vld [vmem:[%s1 + $0x194] sm:$0xf]
  %v140 = vld [vmem:[%s1 + $0x198] sm:$0xf]
  %v141 = vld [vmem:[%s1 + $0x19c] sm:$0xf]
  %v142 = vld [vmem:[%s1 + $0x1a0] sm:$0xf]
  %v143 = vld [vmem:[%s1 + $0x1a4] sm:$0xf]
  %v144 = vld [vmem:[%s1 + $0x1a8] sm:$0xf]
  %v145 = vld [vmem:[%s1 + $0x1ac] sm:$0xf]
  %v146 = vld [vmem:[%s1 + $0x1b0] sm:$0xf]
  %v147 = vld [vmem:[%s1 + $0x1b4] sm:$0xf]
  %v148 = vld [vmem:[%s1 + $0x1b8] sm:$0xf]
  %v149 = vld [vmem:[%s1 + $0x1bc] sm:$0xf]
  %v150 = vld [vmem:[%s1 + $0x1c0] sm:$0xf]
  %v151 = vld [vmem:[%s1 + $0x1c4] sm:$0xf]
  %v152 = vld [vmem:[%s1 + $0x1c8] sm:$0xf]
  %v153 = vld [vmem:[%s1 + $0x1cc] sm:$0xf]
  %v154 = vld [vmem:[%s1 + $0x1d0] sm:$0xf]
  %v155 = vld [vmem:[%s1 + $0x1d4] sm:$0xf]
  %v156 = vld [vmem:[%s1 + $0x1d8] sm:$0xf]
  %v157 = vld [vmem:[%s1 + $0x1dc] sm:$0xf]
  %v158 = vld [vmem:[%s1 + $0x1e0] sm:$0xf]
  %v159 = vld [vmem:[%s1 + $0x1e4] sm:$0xf]
  %v160 = vld [vmem:[%s1 + $0x1e8] sm:$0xf]
  %v161 = vld [vmem:[%s1 + $0x1ec] sm:$0xf]
  %v162 = vld [vmem:[%s1 + $0x1f0] sm:$0xf]
  %v163 = vld [vmem:[%s1 + $0x1f4] sm:$0xf]
  %v164 = vld [vmem:[%s1 + $0x1f8] sm:$0xf]
  %v165 = vld [vmem:[%s1 + $0x1fc] sm:$0xf]
  %v166 = vld [vmem:[%s1 + $0x200] sm:$0xf]
  %v167 = vld [vmem:[%s1 + $0x204] sm:$0xf]
  %v168 = vld [vmem:[%s1 + $0x208] sm:$0xf]
  %v169 = vld [vmem:[%s1 + $0x20c] sm:$0xf]
  %v170 = vld [vmem:[%s1 + $0x210] sm:$0xf]
  %v171 = vld [vmem:[%s1 + $0x214] sm:$0xf]
  %v172 = vld [vmem:[%s1 + $0x218] sm:$0xf]
  %v173 = vld [vmem:[%s1 + $0x21c] sm:$0xf]
  %v174 = vld [vmem:[%s1 + $0x220] sm:$0xf]
  %v175 = vld [vmem:[%s1 + $0x224] sm:$0xf]
  %v176 = vld [vmem:[%s1 + $0x228] sm:$0xf]
  %v177 = vld [vmem:[%s1 + $0x22c] sm:$0xf]
  %v178 = vld [vmem:[%s1 + $0x230] sm:$0xf]
  %v179 = vld [vmem:[%s1 + $0x234] sm:$0xf]
  %v180 = vld [vmem:[%s1 + $0x238] sm:$0xf]
  %v181 = vld [vmem:[%s1 + $0x23c] sm:$0xf]
  %v202 = vunpack.c.l.b16 %v18
  %v203 = vunpack.c.h.b16 %v18
  %v204 = vunpack.c.l.b16 %v19
  %v205 = vunpack.c.h.b16 %v19
  %v206 = vunpack.c.l.b16 %v20
  %v207 = vunpack.c.h.b16 %v20
  %v208 = vunpack.c.l.b16 %v21
  %v209 = vunpack.c.h.b16 %v21
  %v210 = vunpack.c.l.b16 %v22
  %v211 = vunpack.c.l.b16 %v23
  %v212 = vunpack.c.h.b16 %v23
  %v213 = vunpack.c.l.b16 %v24
  %v214 = vunpack.c.h.b16 %v24
  %v215 = vunpack.c.l.b16 %v25
  %v216 = vunpack.c.h.b16 %v25
  %v217 = vunpack.c.l.b16 %v26
  %v218 = vunpack.c.h.b16 %v26
  %v219 = vunpack.c.l.b16 %v27
  %v220 = vunpack.c.l.b16 %v28
  %v221 = vunpack.c.h.b16 %v28
  %v222 = vunpack.c.l.b16 %v29
  %v223 = vunpack.c.h.b16 %v29
  %v224 = vunpack.c.l.b16 %v30
  %v225 = vunpack.c.h.b16 %v30
  %v226 = vunpack.c.l.b16 %v31
  %v227 = vunpack.c.h.b16 %v31
  %v228 = vunpack.c.l.b16 %v32
  %v229 = vunpack.c.l.b16 %v33
  %v230 = vunpack.c.h.b16 %v33
  %v231 = vunpack.c.l.b16 %v34
  %v232 = vunpack.c.h.b16 %v34
  %v233 = vunpack.c.l.b16 %v35
  %v234 = vunpack.c.h.b16 %v35
  %v235 = vunpack.c.l.b16 %v36
  %v236 = vunpack.c.h.b16 %v36
  %v237 = vunpack.c.l.b16 %v37
  %v238 = vpack.c.b16 %v211, %v202
  %v239 = vpack.c.b16 %v212, %v203
  %v240 = vpack.c.b16 %v213, %v204
  %v241 = vpack.c.b16 %v214, %v205
  %v242 = vpack.c.b16 %v215, %v206
  %v243 = vpack.c.b16 %v216, %v207
  %v244 = vpack.c.b16 %v217, %v208
  %v245 = vpack.c.b16 %v218, %v209
  %v246 = vpack.c.b16 %v219, %v210
  %v247 = vpack.c.b16 %v229, %v220
  %v248 = vpack.c.b16 %v230, %v221
  %v249 = vpack.c.b16 %v231, %v222
  %v250 = vpack.c.b16 %v232, %v223
  %v251 = vpack.c.b16 %v233, %v224
  %v252 = vpack.c.b16 %v234, %v225
  %v253 = vpack.c.b16 %v235, %v226
  %v254 = vpack.c.b16 %v236, %v227
  %v255 = vpack.c.b16 %v237, %v228
  %v418 = vunpack.c.l.b16 %v38
  %v419 = vunpack.c.l.b16 %v39
  %v420 = vunpack.c.l.b16 %v40
  %v421 = vunpack.c.l.b16 %v41
  %v422 = vunpack.c.l.b16 %v42
  %v423 = vunpack.c.l.b16 %v43
  %v424 = vunpack.c.l.b16 %v44
  %v425 = vunpack.c.l.b16 %v45
  %v426 = vunpack.c.l.b16 %v46
  %v427 = vunpack.c.l.b16 %v47
  %v428 = vunpack.c.l.b16 %v48
  %v429 = vunpack.c.l.b16 %v49
  %v430 = vunpack.c.l.b16 %v50
  %v431 = vunpack.c.l.b16 %v51
  %v432 = vunpack.c.l.b16 %v52
  %v433 = vunpack.c.l.b16 %v53
  %v434 = vunpack.c.l.b16 %v54
  %v435 = vunpack.c.l.b16 %v55
  %v436 = vunpack.c.l.b16 %v56
  %v437 = vunpack.c.l.b16 %v57
  %v438 = vunpack.c.l.b16 %v58
  %v439 = vunpack.c.l.b16 %v59
  %v440 = vunpack.c.l.b16 %v60
  %v441 = vunpack.c.l.b16 %v61
  %v442 = vunpack.c.l.b16 %v62
  %v443 = vunpack.c.l.b16 %v63
  %v444 = vunpack.c.l.b16 %v64
  %v445 = vunpack.c.l.b16 %v65
  %v446 = vunpack.c.l.b16 %v66
  %v447 = vunpack.c.l.b16 %v67
  %v448 = vunpack.c.l.b16 %v68
  %v449 = vunpack.c.l.b16 %v69
  %v450 = vunpack.c.l.b16 %v70
  %v451 = vunpack.c.l.b16 %v71
  %v452 = vunpack.c.l.b16 %v72
  %v453 = vunpack.c.l.b16 %v73
  %v454 = vunpack.c.l.b16 %v74
  %v455 = vunpack.c.l.b16 %v75
  %v456 = vunpack.c.l.b16 %v76
  %v457 = vunpack.c.l.b16 %v77
  %v458 = vunpack.c.l.b16 %v78
  %v459 = vunpack.c.l.b16 %v79
  %v460 = vunpack.c.l.b16 %v80
  %v461 = vunpack.c.l.b16 %v81
  %v462 = vunpack.c.l.b16 %v82
  %v463 = vunpack.c.l.b16 %v83
  %v464 = vunpack.c.l.b16 %v84
  %v465 = vunpack.c.l.b16 %v85
  %v466 = vunpack.c.l.b16 %v86
  %v467 = vunpack.c.l.b16 %v87
  %v468 = vunpack.c.l.b16 %v88
  %v469 = vunpack.c.l.b16 %v89
  %v470 = vunpack.c.l.b16 %v90
  %v471 = vunpack.c.l.b16 %v91
  %v472 = vunpack.c.l.b16 %v92
  %v473 = vunpack.c.l.b16 %v93
  %v474 = vunpack.c.l.b16 %v94
  %v475 = vunpack.c.l.b16 %v95
  %v476 = vunpack.c.l.b16 %v96
  %v477 = vunpack.c.l.b16 %v97
  %v478 = vunpack.c.l.b16 %v98
  %v479 = vunpack.c.l.b16 %v99
  %v480 = vunpack.c.l.b16 %v100
  %v481 = vunpack.c.l.b16 %v101
  %v482 = vunpack.c.l.b16 %v102
  %v483 = vunpack.c.l.b16 %v103
  %v484 = vunpack.c.l.b16 %v104
  %v485 = vunpack.c.l.b16 %v105
  %v486 = vunpack.c.l.b16 %v106
  %v487 = vunpack.c.l.b16 %v107
  %v488 = vunpack.c.l.b16 %v108
  %v489 = vunpack.c.l.b16 %v109
  %v490 = vunpack.c.l.b16 %v110
  %v491 = vunpack.c.l.b16 %v111
  %v492 = vunpack.c.l.b16 %v112
  %v493 = vunpack.c.l.b16 %v113
  %v494 = vunpack.c.l.b16 %v114
  %v495 = vunpack.c.l.b16 %v115
  %v496 = vunpack.c.l.b16 %v116
  %v497 = vunpack.c.l.b16 %v117
  %v498 = vunpack.c.l.b16 %v118
  %v499 = vunpack.c.l.b16 %v119
  %v500 = vunpack.c.l.b16 %v120
  %v501 = vunpack.c.l.b16 %v121
  %v502 = vunpack.c.l.b16 %v122
  %v503 = vunpack.c.l.b16 %v123
  %v504 = vunpack.c.l.b16 %v124
  %v505 = vunpack.c.l.b16 %v125
  %v506 = vunpack.c.l.b16 %v126
  %v507 = vunpack.c.l.b16 %v127
  %v508 = vunpack.c.l.b16 %v128
  %v509 = vunpack.c.l.b16 %v129
  %v510 = vunpack.c.l.b16 %v130
  %v511 = vunpack.c.l.b16 %v131
  %v512 = vunpack.c.l.b16 %v132
  %v513 = vunpack.c.l.b16 %v133
  %v514 = vunpack.c.l.b16 %v134
  %v515 = vunpack.c.l.b16 %v135
  %v516 = vunpack.c.l.b16 %v136
  %v517 = vunpack.c.l.b16 %v137
  %v518 = vunpack.c.l.b16 %v138
  %v519 = vunpack.c.l.b16 %v139
  %v520 = vunpack.c.l.b16 %v140
  %v521 = vunpack.c.l.b16 %v141
  %v522 = vunpack.c.l.b16 %v142
  %v523 = vunpack.c.l.b16 %v143
  %v524 = vunpack.c.l.b16 %v144
  %v525 = vunpack.c.l.b16 %v145
  %v526 = vunpack.c.l.b16 %v146
  %v527 = vunpack.c.l.b16 %v147
  %v528 = vunpack.c.l.b16 %v148
  %v529 = vunpack.c.l.b16 %v149
  %v530 = vunpack.c.l.b16 %v150
  %v531 = vunpack.c.l.b16 %v151
  %v532 = vunpack.c.l.b16 %v152
  %v533 = vunpack.c.l.b16 %v153
  %v534 = vunpack.c.l.b16 %v154
  %v535 = vunpack.c.l.b16 %v155
  %v536 = vunpack.c.l.b16 %v156
  %v537 = vunpack.c.l.b16 %v157
  %v538 = vunpack.c.l.b16 %v158
  %v539 = vunpack.c.l.b16 %v159
  %v540 = vunpack.c.l.b16 %v160
  %v541 = vunpack.c.l.b16 %v161
  %v542 = vunpack.c.l.b16 %v162
  %v543 = vunpack.c.l.b16 %v163
  %v544 = vunpack.c.l.b16 %v164
  %v545 = vunpack.c.l.b16 %v165
  %v546 = vunpack.c.l.b16 %v166
  %v547 = vunpack.c.l.b16 %v167
  %v548 = vunpack.c.l.b16 %v168
  %v549 = vunpack.c.l.b16 %v169
  %v550 = vunpack.c.l.b16 %v170
  %v551 = vunpack.c.l.b16 %v171
  %v552 = vunpack.c.l.b16 %v172
  %v553 = vunpack.c.l.b16 %v173
  %v554 = vunpack.c.l.b16 %v174
  %v555 = vunpack.c.l.b16 %v175
  %v556 = vunpack.c.l.b16 %v176
  %v557 = vunpack.c.l.b16 %v177
  %v558 = vunpack.c.l.b16 %v178
  %v559 = vunpack.c.l.b16 %v179
  %v560 = vunpack.c.l.b16 %v180
  %v561 = vunpack.c.l.b16 %v181
  %v562 = vpack.c.b16 %v419, %v418
  %v563 = vpack.c.b16 %v421, %v420
  %v564 = vpack.c.b16 %v423, %v422
  %v565 = vpack.c.b16 %v425, %v424
  %v566 = vpack.c.b16 %v427, %v426
  %v567 = vpack.c.b16 %v429, %v428
  %v568 = vpack.c.b16 %v431, %v430
  %v569 = vpack.c.b16 %v433, %v432
  %v570 = vpack.c.b16 %v435, %v434
  %v571 = vpack.c.b16 %v437, %v436
  %v572 = vpack.c.b16 %v439, %v438
  %v573 = vpack.c.b16 %v441, %v440
  %v574 = vpack.c.b16 %v443, %v442
  %v575 = vpack.c.b16 %v445, %v444
  %v576 = vpack.c.b16 %v447, %v446
  %v577 = vpack.c.b16 %v449, %v448
  %v578 = vpack.c.b16 %v451, %v450
  %v579 = vpack.c.b16 %v453, %v452
  %v580 = vpack.c.b16 %v455, %v454
  %v581 = vpack.c.b16 %v457, %v456
  %v582 = vpack.c.b16 %v459, %v458
  %v583 = vpack.c.b16 %v461, %v460
  %v584 = vpack.c.b16 %v463, %v462
  %v585 = vpack.c.b16 %v465, %v464
  %v586 = vpack.c.b16 %v467, %v466
  %v587 = vpack.c.b16 %v469, %v468
  %v588 = vpack.c.b16 %v471, %v470
  %v589 = vpack.c.b16 %v473, %v472
  %v590 = vpack.c.b16 %v475, %v474
  %v591 = vpack.c.b16 %v477, %v476
  %v592 = vpack.c.b16 %v479, %v478
  %v593 = vpack.c.b16 %v481, %v480
  %v594 = vpack.c.b16 %v483, %v482
  %v595 = vpack.c.b16 %v485, %v484
  %v596 = vpack.c.b16 %v487, %v486
  %v597 = vpack.c.b16 %v489, %v488
  %v598 = vpack.c.b16 %v491, %v490
  %v599 = vpack.c.b16 %v493, %v492
  %v600 = vpack.c.b16 %v495, %v494
  %v601 = vpack.c.b16 %v497, %v496
  %v602 = vpack.c.b16 %v499, %v498
  %v603 = vpack.c.b16 %v501, %v500
  %v604 = vpack.c.b16 %v503, %v502
  %v605 = vpack.c.b16 %v505, %v504
  %v606 = vpack.c.b16 %v507, %v506
  %v607 = vpack.c.b16 %v509, %v508
  %v608 = vpack.c.b16 %v511, %v510
  %v609 = vpack.c.b16 %v513, %v512
  %v610 = vpack.c.b16 %v515, %v514
  %v611 = vpack.c.b16 %v517, %v516
  %v612 = vpack.c.b16 %v519, %v518
  %v613 = vpack.c.b16 %v521, %v520
  %v614 = vpack.c.b16 %v523, %v522
  %v615 = vpack.c.b16 %v525, %v524
  %v616 = vpack.c.b16 %v527, %v526
  %v617 = vpack.c.b16 %v529, %v528
  %v618 = vpack.c.b16 %v531, %v530
  %v619 = vpack.c.b16 %v533, %v532
  %v620 = vpack.c.b16 %v535, %v534
  %v621 = vpack.c.b16 %v537, %v536
  %v622 = vpack.c.b16 %v539, %v538
  %v623 = vpack.c.b16 %v541, %v540
  %v624 = vpack.c.b16 %v543, %v542
  %v625 = vpack.c.b16 %v545, %v544
  %v626 = vpack.c.b16 %v547, %v546
  %v627 = vpack.c.b16 %v549, %v548
  %v628 = vpack.c.b16 %v551, %v550
  %v629 = vpack.c.b16 %v553, %v552
  %v630 = vpack.c.b16 %v555, %v554
  %v631 = vpack.c.b16 %v557, %v556
  %v632 = vpack.c.b16 %v559, %v558
  %v633 = vpack.c.b16 %v561, %v560
  %706 = vmatprep.subr.bf16.mxu0 0
  %707 = vmatpush1.bf16.msra.mxu0 %v569
  %708 = vmatprep.subr.bf16.mxu0 0
  %709 = vmatpush1.bf16.msra.mxu0 %v568
  %710 = vmatprep.subr.bf16.mxu0 0
  %711 = vmatpush1.bf16.msra.mxu0 %v567
  %712 = vmatprep.subr.bf16.mxu0 0
  %713 = vmatpush1.bf16.msra.mxu0 %v566
  %714 = vmatprep.subr.bf16.mxu0 0
  %715 = vmatpush1.bf16.msra.mxu0 %v565
  %716 = vmatprep.subr.bf16.mxu0 0
  %717 = vmatpush1.bf16.msra.mxu0 %v564
  %718 = vmatprep.subr.bf16.mxu0 0
  %719 = vmatpush1.bf16.msra.mxu0 %v563
  %720 = vmatprep.subr.bf16.mxu0 0
  %721 = vmatpush1.bf16.msra.mxu0 %v562
  %722 = vmatprep.subr.bf16.mxu0 0
  %723 = vmatpush2.bf16.msra.mxu0 %v577
  %724 = vmatprep.subr.bf16.mxu0 0
  %725 = vmatpush2.bf16.msra.mxu0 %v576
  %726 = vmatprep.subr.bf16.mxu0 0
  %727 = vmatpush2.bf16.msra.mxu0 %v575
  %728 = vmatprep.subr.bf16.mxu0 0
  %729 = vmatpush2.bf16.msra.mxu0 %v574
  %730 = vmatprep.subr.bf16.mxu0 0
  %731 = vmatpush2.bf16.msra.mxu0 %v573
  %732 = vmatprep.subr.bf16.mxu0 0
  %733 = vmatpush2.bf16.msra.mxu0 %v572
  %734 = vmatprep.subr.bf16.mxu0 0
  %735 = vmatpush2.bf16.msra.mxu0 %v571
  %736 = vmatprep.subr.bf16.mxu0 0
  %737 = vmatpush2.bf16.msra.mxu0 %v570
  %738 = vmatprep.mubr.bf16.mxu0 %v239
  %739 = vmatmul.mubr.bf16.gmra.mxu0 %v238
  %v740 = vpop.f32.mrf.mxu0
  %v741 = vadd.f32 0.0, %v740
  %v742 = vpop.f32.mrf.mxu0
  %v743 = vpop.f32.mrf.mxu0
  %v744 = vadd.f32 0.0, %v743
  %v745 = vpop.f32.mrf.mxu0
  %746 = vmatprep.mubr.bf16.mxu0 %v248
  %747 = vmatmul.mubr.bf16.gmra.mxu0 %v247
  %v748 = vpop.f32.mrf.mxu0
  %v749 = vadd.f32 0.0, %v748
  %v750 = vpop.f32.mrf.mxu0
  %v751 = vpop.f32.mrf.mxu0
  %v752 = vadd.f32 0.0, %v751
  %v753 = vpop.f32.mrf.mxu0
  %754 = vdwg.mxu0
  %755 = vmatprep.subr.bf16.mxu0 0
  %756 = vmatpush1.bf16.msra.mxu0 %v585
  %757 = vmatprep.subr.bf16.mxu0 0
  %758 = vmatpush1.bf16.msra.mxu0 %v584
  %759 = vmatprep.subr.bf16.mxu0 0
  %760 = vmatpush1.bf16.msra.mxu0 %v583
  %761 = vmatprep.subr.bf16.mxu0 0
  %762 = vmatpush1.bf16.msra.mxu0 %v582
  %763 = vmatprep.subr.bf16.mxu0 0
  %764 = vmatpush1.bf16.msra.mxu0 %v581
  %765 = vmatprep.subr.bf16.mxu0 0
  %766 = vmatpush1.bf16.msra.mxu0 %v580
  %767 = vmatprep.subr.bf16.mxu0 0
  %768 = vmatpush1.bf16.msra.mxu0 %v579
  %769 = vmatprep.subr.bf16.mxu0 0
  %770 = vmatpush1.bf16.msra.mxu0 %v578
  %771 = vmatprep.subr.bf16.mxu0 0
  %772 = vmatpush2.bf16.msra.mxu0 %v593
  %773 = vmatprep.subr.bf16.mxu0 0
  %774 = vmatpush2.bf16.msra.mxu0 %v592
  %775 = vmatprep.subr.bf16.mxu0 0
  %776 = vmatpush2.bf16.msra.mxu0 %v591
  %777 = vmatprep.subr.bf16.mxu0 0
  %778 = vmatpush2.bf16.msra.mxu0 %v590
  %779 = vmatprep.subr.bf16.mxu0 0
  %780 = vmatpush2.bf16.msra.mxu0 %v589
  %781 = vmatprep.subr.bf16.mxu0 0
  %782 = vmatpush2.bf16.msra.mxu0 %v588
  %783 = vmatprep.subr.bf16.mxu0 0
  %784 = vmatpush2.bf16.msra.mxu0 %v587
  %785 = vmatprep.subr.bf16.mxu0 0
  %786 = vmatpush2.bf16.msra.mxu0 %v586
  %787 = vmatprep.mubr.bf16.mxu0 %v241
  %788 = vmatmul.mubr.bf16.gmra.mxu0 %v240
  %v789 = vpop.f32.mrf.mxu0
  %v790 = vadd.f32 %v741, %v789
  %v791 = vpop.f32.mrf.mxu0
  %v792 = vpop.f32.mrf.mxu0
  %v793 = vadd.f32 %v744, %v792
  %v794 = vpop.f32.mrf.mxu0
  %795 = vmatprep.mubr.bf16.mxu0 %v250
  %796 = vmatmul.mubr.bf16.gmra.mxu0 %v249
  %v797 = vpop.f32.mrf.mxu0
  %v798 = vadd.f32 %v749, %v797
  %v799 = vpop.f32.mrf.mxu0
  %v800 = vpop.f32.mrf.mxu0
  %v801 = vadd.f32 %v752, %v800
  %v802 = vpop.f32.mrf.mxu0
  %803 = vdwg.mxu0
  %804 = vmatprep.subr.bf16.mxu0 0
  %805 = vmatpush1.bf16.msra.mxu0 %v601
  %806 = vmatprep.subr.bf16.mxu0 0
  %807 = vmatpush1.bf16.msra.mxu0 %v600
  %808 = vmatprep.subr.bf16.mxu0 0
  %809 = vmatpush1.bf16.msra.mxu0 %v599
  %810 = vmatprep.subr.bf16.mxu0 0
  %811 = vmatpush1.bf16.msra.mxu0 %v598
  %812 = vmatprep.subr.bf16.mxu0 0
  %813 = vmatpush1.bf16.msra.mxu0 %v597
  %814 = vmatprep.subr.bf16.mxu0 0
  %815 = vmatpush1.bf16.msra.mxu0 %v596
  %816 = vmatprep.subr.bf16.mxu0 0
  %817 = vmatpush1.bf16.msra.mxu0 %v595
  %818 = vmatprep.subr.bf16.mxu0 0
  %819 = vmatpush1.bf16.msra.mxu0 %v594
  %820 = vmatprep.subr.bf16.mxu0 0
  %821 = vmatpush2.bf16.msra.mxu0 %v609
  %822 = vmatprep.subr.bf16.mxu0 0
  %823 = vmatpush2.bf16.msra.mxu0 %v608
  %824 = vmatprep.subr.bf16.mxu0 0
  %825 = vmatpush2.bf16.msra.mxu0 %v607
  %826 = vmatprep.subr.bf16.mxu0 0
  %827 = vmatpush2.bf16.msra.mxu0 %v606
  %828 = vmatprep.subr.bf16.mxu0 0
  %829 = vmatpush2.bf16.msra.mxu0 %v605
  %830 = vmatprep.subr.bf16.mxu0 0
  %831 = vmatpush2.bf16.msra.mxu0 %v604
  %832 = vmatprep.subr.bf16.mxu0 0
  %833 = vmatpush2.bf16.msra.mxu0 %v603
  %834 = vmatprep.subr.bf16.mxu0 0
  %835 = vmatpush2.bf16.msra.mxu0 %v602
  %836 = vmatprep.mubr.bf16.mxu0 %v243
  %837 = vmatmul.mubr.bf16.gmra.mxu0 %v242
  %v838 = vpop.f32.mrf.mxu0
  %v839 = vadd.f32 %v790, %v838
  %v840 = vpop.f32.mrf.mxu0
  %v841 = vpop.f32.mrf.mxu0
  %v842 = vadd.f32 %v793, %v841
  %v843 = vpop.f32.mrf.mxu0
  %844 = vmatprep.mubr.bf16.mxu0 %v252
  %845 = vmatmul.mubr.bf16.gmra.mxu0 %v251
  %v846 = vpop.f32.mrf.mxu0
  %v847 = vadd.f32 %v798, %v846
  %v848 = vpop.f32.mrf.mxu0
  %v849 = vpop.f32.mrf.mxu0
  %v850 = vadd.f32 %v801, %v849
  %v851 = vpop.f32.mrf.mxu0
  %852 = vdwg.mxu0
  %853 = vmatprep.subr.bf16.mxu0 0
  %854 = vmatpush1.bf16.msra.mxu0 %v617
  %855 = vmatprep.subr.bf16.mxu0 0
  %856 = vmatpush1.bf16.msra.mxu0 %v616
  %857 = vmatprep.subr.bf16.mxu0 0
  %858 = vmatpush1.bf16.msra.mxu0 %v615
  %859 = vmatprep.subr.bf16.mxu0 0
  %860 = vmatpush1.bf16.msra.mxu0 %v614
  %861 = vmatprep.subr.bf16.mxu0 0
  %862 = vmatpush1.bf16.msra.mxu0 %v613
  %863 = vmatprep.subr.bf16.mxu0 0
  %864 = vmatpush1.bf16.msra.mxu0 %v612
  %865 = vmatprep.subr.bf16.mxu0 0
  %866 = vmatpush1.bf16.msra.mxu0 %v611
  %867 = vmatprep.subr.bf16.mxu0 0
  %868 = vmatpush1.bf16.msra.mxu0 %v610
  %869 = vmatprep.subr.bf16.mxu0 0
  %870 = vmatpush2.bf16.msra.mxu0 %v625
  %871 = vmatprep.subr.bf16.mxu0 0
  %872 = vmatpush2.bf16.msra.mxu0 %v624
  %873 = vmatprep.subr.bf16.mxu0 0
  %874 = vmatpush2.bf16.msra.mxu0 %v623
  %875 = vmatprep.subr.bf16.mxu0 0
  %876 = vmatpush2.bf16.msra.mxu0 %v622
  %877 = vmatprep.subr.bf16.mxu0 0
  %878 = vmatpush2.bf16.msra.mxu0 %v621
  %879 = vmatprep.subr.bf16.mxu0 0
  %880 = vmatpush2.bf16.msra.mxu0 %v620
  %881 = vmatprep.subr.bf16.mxu0 0
  %882 = vmatpush2.bf16.msra.mxu0 %v619
  %883 = vmatprep.subr.bf16.mxu0 0
  %884 = vmatpush2.bf16.msra.mxu0 %v618
  %885 = vmatprep.mubr.bf16.mxu0 %v245
  %886 = vmatmul.mubr.bf16.gmra.mxu0 %v244
  %v887 = vpop.f32.mrf.mxu0
  %v888 = vadd.f32 %v839, %v887
  %v889 = vpop.f32.mrf.mxu0
  %v890 = vpop.f32.mrf.mxu0
  %v891 = vadd.f32 %v842, %v890
  %v892 = vpop.f32.mrf.mxu0
  %893 = vmatprep.mubr.bf16.mxu0 %v254
  %894 = vmatmul.mubr.bf16.gmra.mxu0 %v253
  %v895 = vpop.f32.mrf.mxu0
  %v896 = vadd.f32 %v847, %v895
  %v897 = vpop.f32.mrf.mxu0
  %v898 = vpop.f32.mrf.mxu0
  %v899 = vadd.f32 %v850, %v898
  %v900 = vpop.f32.mrf.mxu0
  %901 = vdwg.mxu0
  %902 = vmatprep.subr.bf16.mxu0 0
  %903 = vmatpush1.bf16.msra.mxu0 %v633
  %904 = vmatprep.subr.bf16.mxu0 0
  %905 = vmatpush1.bf16.msra.mxu0 %v632
  %906 = vmatprep.subr.bf16.mxu0 0
  %907 = vmatpush1.bf16.msra.mxu0 %v631
  %908 = vmatprep.subr.bf16.mxu0 0
  %909 = vmatpush1.bf16.msra.mxu0 %v630
  %910 = vmatprep.subr.bf16.mxu0 0
  %911 = vmatpush1.bf16.msra.mxu0 %v629
  %912 = vmatprep.subr.bf16.mxu0 0
  %913 = vmatpush1.bf16.msra.mxu0 %v628
  %914 = vmatprep.subr.bf16.mxu0 0
  %915 = vmatpush1.bf16.msra.mxu0 %v627
  %916 = vmatprep.subr.bf16.mxu0 0
  %917 = vmatpush1.bf16.msra.mxu0 %v626
  %918 = vmatprep.subr.bf16.mxu0 0
  %919 = vmatpush2.bf16.msra.mxu0 0
  %920 = vmatprep.subr.bf16.mxu0 0
  %921 = vmatpush2.bf16.msra.mxu0 0
  %922 = vmatprep.subr.bf16.mxu0 0
  %923 = vmatpush2.bf16.msra.mxu0 0
  %924 = vmatprep.subr.bf16.mxu0 0
  %925 = vmatpush2.bf16.msra.mxu0 0
  %926 = vmatprep.subr.bf16.mxu0 0
  %927 = vmatpush2.bf16.msra.mxu0 0
  %928 = vmatprep.subr.bf16.mxu0 0
  %929 = vmatpush2.bf16.msra.mxu0 0
  %930 = vmatprep.subr.bf16.mxu0 0
  %931 = vmatpush2.bf16.msra.mxu0 0
  %932 = vmatprep.subr.bf16.mxu0 0
  %933 = vmatpush2.bf16.msra.mxu0 0
  %934 = vmatprep.mubr.bf16.mxu0 0
  %935 = vmatmul.mubr.bf16.gmra.mxu0 %v246
  %v936 = vpop.f32.mrf.mxu0
  %v937 = vadd.f32 %v888, %v936
  %v938 = vpop.f32.mrf.mxu0
  %v939 = vpop.f32.mrf.mxu0
  %v940 = vadd.f32 %v891, %v939
  %v941 = vpop.f32.mrf.mxu0
  %942 = vmatprep.mubr.bf16.mxu0 0
  %943 = vmatmul.mubr.bf16.gmra.mxu0 %v255
  %v944 = vpop.f32.mrf.mxu0
  %v945 = vadd.f32 %v896, %v944
  %v946 = vpop.f32.mrf.mxu0
  %v947 = vpop.f32.mrf.mxu0
  %v948 = vadd.f32 %v899, %v947
  %v949 = vpop.f32.mrf.mxu0
  %950 = vdwg.mxu0
  %v951 = vld [vmem:[%s2] sm:$0x1]
  %v953 = vlaneseq
  %v954 = vshrl.u32 %v953, 7
  %v955 = vsub.s32 0, %v954
  %v956 = vrot.slane %v951, %v955
  %v958 = vmul.f32 %v937, %v956
  %v959 = vmul.f32 %v940, %v956
  %v960 = vmul.f32 %v945, %v956
  %v961 = vmul.f32 %v948, %v956
  %v962 = vld [vmem:[%s3] sm:$0x1]
  %v964 = vlaneseq
  %v965 = vshrl.u32 %v964, 7
  %v966 = vsub.s32 0, %v965
  %v967 = vrot.slane %v962, %v966
  %v969 = vadd.f32 %v958, %v967
  %v970 = vadd.f32 %v959, %v967
  %v971 = vadd.f32 %v960, %v967
  %v972 = vadd.f32 %v961, %v967
  %v973 = vmax.f32 %v969, 0.0
  %v974 = vmax.f32 %v970, 0.0
  %v975 = vmax.f32 %v971, 0.0
  %v976 = vmax.f32 %v972, 0.0
  %v977 = vpack.c.bf16 %v974, %v973
  %v978 = vpack.c.bf16 %v976, %v975
  %v981 = vunpack.c.l.b16 %v977
  %v982 = vunpack.c.h.b16 %v977
  %v983 = vunpack.c.l.b16 %v978
  %v984 = vunpack.c.h.b16 %v978
  %v985 = vpack.c.b16 %v981, %v981
  %v986 = vpack.c.b16 %v982, %v982
  %v987 = vpack.c.b16 %v983, %v983
  %v988 = vpack.c.b16 %v984, %v984
  %993 = vst [vmem:[%s4] sm:$0xf] %v985
  %994 = vst [vmem:[%s4 + $0x4] sm:$0xf] %v986
  %995 = vst [vmem:[%s4 + $0x8] sm:$0xf] %v987
  %996 = vst [vmem:[%s4 + $0xc] sm:$0xf] %v988
  // Predicated region
  $region18: #{deeplab_forward.12} parent=0 // pred_check
    _
  $region19: #{deeplab_forward.12} parent=0 // pred_check_branch
    %998 = sbr.rel (0) target = $region21
  $region20: #{deeplab_forward.12} parent=0 // pred_region
    _
  $region21: #{deeplab_forward.12} parent=0 // pred_fallthru
    _
  // Predicated region
  $region22: #{deeplab_forward.12} parent=0 // pred_check
    _
  $region23: #{deeplab_forward.12} parent=0 // pred_check_branch
    %1000 = sbr.rel (0) target = $region25
  $region24: #{deeplab_forward.12} parent=0 // pred_region
    _
  $region25: #{deeplab_forward.12} parent=0 // pred_fallthru
    _

// kernel: deeplab_forward.15
$region0: #{deeplab_forward.15}
  #allocation0 [shape = 'u32[]', space=smem, size = 0x4, offset = 0x4, fixed_abs, tag = 'smem constant byte address 0x4 - core index']
  #allocation1 [shape = 'u32[144,128]{1,0:T(1,128)}', space=vmem, size = 0x12000, scoped, tag = 'internal scratch']
  %s0 = inlined_call_operand.vmem [shape: bf16[128,128], index: 0, kind: input, shape index: {}]
  %s1 = inlined_call_operand.vmem [shape: bf16[128,128], index: 1, kind: input, shape index: {}]
  %s2 = inlined_call_operand.vmem [shape: f32[1,128], index: 2, kind: input, shape index: {}]
  %s3 = inlined_call_operand.vmem [shape: f32[1,128], index: 3, kind: input, shape index: {}]
  %s4 = inlined_call_operand.vmem [shape: bf16[128,128], index: 4, kind: output, shape index: {}]
  %s5 = sld [smem:[#allocation0]]
  $region26: #{deeplab_forward.15} parent=0
    _
  %s7 = ssub.s32 1, %s5
  %s8 = scalar_select 0, %s7, %s5
  // Predicated region
  $region2: #{deeplab_forward.15} parent=0 // pred_check
    _
  $region3: #{deeplab_forward.15} parent=0 // pred_check_branch
    %10 = sbr.rel (0) target = $region5
  $region4: #{deeplab_forward.15} parent=0 // pred_region
    _
  $region5: #{deeplab_forward.15} parent=0 // pred_fallthru
    _
  // Predicated region
  $region6: #{deeplab_forward.15} parent=0 // pred_check
    _
  $region7: #{deeplab_forward.15} parent=0 // pred_check_branch
    %12 = sbr.rel (0) target = $region9
  $region8: #{deeplab_forward.15} parent=0 // pred_region
    _
  $region9: #{deeplab_forward.15} parent=0 // pred_fallthru
    _
  // Predicated region
  $region10: #{deeplab_forward.15} parent=0 // pred_check
    _
  $region11: #{deeplab_forward.15} parent=0 // pred_check_branch
    %14 = sbr.rel (0) target = $region13
  $region12: #{deeplab_forward.15} parent=0 // pred_region
    _
  $region13: #{deeplab_forward.15} parent=0 // pred_fallthru
    _
  // Predicated region
  $region14: #{deeplab_forward.15} parent=0 // pred_check
    _
  $region15: #{deeplab_forward.15} parent=0 // pred_check_branch
    %16 = sbr.rel (0) target = $region17
  $region16: #{deeplab_forward.15} parent=0 // pred_region
    _
  $region17: #{deeplab_forward.15} parent=0 // pred_fallthru
    _
  %v18 = vld [vmem:[%s0] sm:$0xf]
  %v19 = vld [vmem:[%s0 + $0x4] sm:$0xf]
  %v20 = vld [vmem:[%s0 + $0x8] sm:$0xf]
  %v21 = vld [vmem:[%s0 + $0xc] sm:$0xf]
  %v22 = vld [vmem:[%s0 + $0x10] sm:$0xf]
  %v23 = vld [vmem:[%s0 + $0x14] sm:$0xf]
  %v24 = vld [vmem:[%s0 + $0x18] sm:$0xf]
  %v25 = vld [vmem:[%s0 + $0x1c] sm:$0xf]
  %v26 = vld [vmem:[%s0 + $0x20] sm:$0xf]
  %v27 = vld [vmem:[%s0 + $0x24] sm:$0xf]
  %v28 = vld [vmem:[%s0 + $0x28] sm:$0xf]
  %v29 = vld [vmem:[%s0 + $0x2c] sm:$0xf]
  %v30 = vld [vmem:[%s0 + $0x30] sm:$0xf]
  %v31 = vld [vmem:[%s0 + $0x34] sm:$0xf]
  %v32 = vld [vmem:[%s0 + $0x38] sm:$0xf]
  %v33 = vld [vmem:[%s0 + $0x3c] sm:$0xf]
  %v34 = vld [vmem:[%s1] sm:$0xf]
  %v35 = vld [vmem:[%s1 + $0x4] sm:$0xf]
  %v36 = vld [vmem:[%s1 + $0x8] sm:$0xf]
  %v37 = vld [vmem:[%s1 + $0xc] sm:$0xf]
  %v38 = vld [vmem:[%s1 + $0x10] sm:$0xf]
  %v39 = vld [vmem:[%s1 + $0x14] sm:$0xf]
  %v40 = vld [vmem:[%s1 + $0x18] sm:$0xf]
  %v41 = vld [vmem:[%s1 + $0x1c] sm:$0xf]
  %v42 = vld [vmem:[%s1 + $0x20] sm:$0xf]
  %v43 = vld [vmem:[%s1 + $0x24] sm:$0xf]
  %v44 = vld [vmem:[%s1 + $0x28] sm:$0xf]
  %v45 = vld [vmem:[%s1 + $0x2c] sm:$0xf]
  %v46 = vld [vmem:[%s1 + $0x30] sm:$0xf]
  %v47 = vld [vmem:[%s1 + $0x34] sm:$0xf]
  %v48 = vld [vmem:[%s1 + $0x38] sm:$0xf]
  %v49 = vld [vmem:[%s1 + $0x3c] sm:$0xf]
  %v66 = vunpack.c.l.b16 %v18
  %v67 = vunpack.c.l.b16 %v19
  %v68 = vunpack.c.l.b16 %v20
  %v69 = vunpack.c.l.b16 %v21
  %v70 = vunpack.c.l.b16 %v22
  %v71 = vunpack.c.l.b16 %v23
  %v72 = vunpack.c.l.b16 %v24
  %v73 = vunpack.c.l.b16 %v25
  %v74 = vunpack.c.l.b16 %v26
  %v75 = vunpack.c.l.b16 %v27
  %v76 = vunpack.c.l.b16 %v28
  %v77 = vunpack.c.l.b16 %v29
  %v78 = vunpack.c.l.b16 %v30
  %v79 = vunpack.c.l.b16 %v31
  %v80 = vunpack.c.l.b16 %v32
  %v81 = vunpack.c.l.b16 %v33
  %v82 = vpack.c.b16 %v67, %v66
  %v83 = vpack.c.b16 %v69, %v68
  %v84 = vpack.c.b16 %v71, %v70
  %v85 = vpack.c.b16 %v73, %v72
  %v86 = vpack.c.b16 %v75, %v74
  %v87 = vpack.c.b16 %v77, %v76
  %v88 = vpack.c.b16 %v79, %v78
  %v89 = vpack.c.b16 %v81, %v80
  %v114 = vunpack.c.l.b16 %v34
  %v115 = vunpack.c.l.b16 %v35
  %v116 = vunpack.c.l.b16 %v36
  %v117 = vunpack.c.l.b16 %v37
  %v118 = vunpack.c.l.b16 %v38
  %v119 = vunpack.c.l.b16 %v39
  %v120 = vunpack.c.l.b16 %v40
  %v121 = vunpack.c.l.b16 %v41
  %v122 = vunpack.c.l.b16 %v42
  %v123 = vunpack.c.l.b16 %v43
  %v124 = vunpack.c.l.b16 %v44
  %v125 = vunpack.c.l.b16 %v45
  %v126 = vunpack.c.l.b16 %v46
  %v127 = vunpack.c.l.b16 %v47
  %v128 = vunpack.c.l.b16 %v48
  %v129 = vunpack.c.l.b16 %v49
  %v130 = vpack.c.b16 %v115, %v114
  %v131 = vpack.c.b16 %v117, %v116
  %v132 = vpack.c.b16 %v119, %v118
  %v133 = vpack.c.b16 %v121, %v120
  %v134 = vpack.c.b16 %v123, %v122
  %v135 = vpack.c.b16 %v125, %v124
  %v136 = vpack.c.b16 %v127, %v126
  %v137 = vpack.c.b16 %v129, %v128
  %146 = vmatprep.subr.bf16.mxu0 0
  %147 = vmatpush1.bf16.msra.mxu0 %v137
  %148 = vmatprep.subr.bf16.mxu0 0
  %149 = vmatpush1.bf16.msra.mxu0 %v136
  %150 = vmatprep.subr.bf16.mxu0 0
  %151 = vmatpush1.bf16.msra.mxu0 %v135
  %152 = vmatprep.subr.bf16.mxu0 0
  %153 = vmatpush1.bf16.msra.mxu0 %v134
  %154 = vmatprep.subr.bf16.mxu0 0
  %155 = vmatpush1.bf16.msra.mxu0 %v133
  %156 = vmatprep.subr.bf16.mxu0 0
  %157 = vmatpush1.bf16.msra.mxu0 %v132
  %158 = vmatprep.subr.bf16.mxu0 0
  %159 = vmatpush1.bf16.msra.mxu0 %v131
  %160 = vmatprep.subr.bf16.mxu0 0
  %161 = vmatpush1.bf16.msra.mxu0 %v130
  %162 = vmatprep.subr.bf16.mxu0 0
  %163 = vmatpush2.bf16.msra.mxu0 0
  %164 = vmatprep.subr.bf16.mxu0 0
  %165 = vmatpush2.bf16.msra.mxu0 0
  %166 = vmatprep.subr.bf16.mxu0 0
  %167 = vmatpush2.bf16.msra.mxu0 0
  %168 = vmatprep.subr.bf16.mxu0 0
  %169 = vmatpush2.bf16.msra.mxu0 0
  %170 = vmatprep.subr.bf16.mxu0 0
  %171 = vmatpush2.bf16.msra.mxu0 0
  %172 = vmatprep.subr.bf16.mxu0 0
  %173 = vmatpush2.bf16.msra.mxu0 0
  %174 = vmatprep.subr.bf16.mxu0 0
  %175 = vmatpush2.bf16.msra.mxu0 0
  %176 = vmatprep.subr.bf16.mxu0 0
  %177 = vmatpush2.bf16.msra.mxu0 0
  %178 = vmatprep.mubr.bf16.mxu0 0
  %179 = vmatmul.mubr.bf16.gmra.mxu0 %v82
  %v180 = vpop.f32.mrf.mxu0
  %v181 = vadd.f32 0.0, %v180
  %v182 = vpop.f32.mrf.mxu0
  %v183 = vpop.f32.mrf.mxu0
  %v184 = vadd.f32 0.0, %v183
  %v185 = vpop.f32.mrf.mxu0
  %186 = vmatprep.mubr.bf16.mxu0 0
  %187 = vmatmul.mubr.bf16.gmra.mxu0 %v83
  %v188 = vpop.f32.mrf.mxu0
  %v189 = vadd.f32 0.0, %v188
  %v190 = vpop.f32.mrf.mxu0
  %v191 = vpop.f32.mrf.mxu0
  %v192 = vadd.f32 0.0, %v191
  %v193 = vpop.f32.mrf.mxu0
  %194 = vmatprep.mubr.bf16.mxu0 0
  %195 = vmatmul.mubr.bf16.gmra.mxu0 %v84
  %v196 = vpop.f32.mrf.mxu0
  %v197 = vadd.f32 0.0, %v196
  %v198 = vpop.f32.mrf.mxu0
  %v199 = vpop.f32.mrf.mxu0
  %v200 = vadd.f32 0.0, %v199
  %v201 = vpop.f32.mrf.mxu0
  %202 = vmatprep.mubr.bf16.mxu0 0
  %203 = vmatmul.mubr.bf16.gmra.mxu0 %v85
  %v204 = vpop.f32.mrf.mxu0
  %v205 = vadd.f32 0.0, %v204
  %v206 = vpop.f32.mrf.mxu0
  %v207 = vpop.f32.mrf.mxu0
  %v208 = vadd.f32 0.0, %v207
  %v209 = vpop.f32.mrf.mxu0
  %210 = vmatprep.mubr.bf16.mxu0 0
  %211 = vmatmul.mubr.bf16.gmra.mxu0 %v86
  %v212 = vpop.f32.mrf.mxu0
  %v213 = vadd.f32 0.0, %v212
  %v214 = vpop.f32.mrf.mxu0
  %v215 = vpop.f32.mrf.mxu0
  %v216 = vadd.f32 0.0, %v215
  %v217 = vpop.f32.mrf.mxu0
  %218 = vmatprep.mubr.bf16.mxu0 0
  %219 = vmatmul.mubr.bf16.gmra.mxu0 %v87
  %v220 = vpop.f32.mrf.mxu0
  %v221 = vadd.f32 0.0, %v220
  %v222 = vpop.f32.mrf.mxu0
  %v223 = vpop.f32.mrf.mxu0
  %v224 = vadd.f32 0.0, %v223
  %v225 = vpop.f32.mrf.mxu0
  %226 = vmatprep.mubr.bf16.mxu0 0
  %227 = vmatmul.mubr.bf16.gmra.mxu0 %v88
  %v228 = vpop.f32.mrf.mxu0
  %v229 = vadd.f32 0.0, %v228
  %v230 = vpop.f32.mrf.mxu0
  %v231 = vpop.f32.mrf.mxu0
  %v232 = vadd.f32 0.0, %v231
  %v233 = vpop.f32.mrf.mxu0
  %234 = vmatprep.mubr.bf16.mxu0 0
  %235 = vmatmul.mubr.bf16.gmra.mxu0 %v89
  %v236 = vpop.f32.mrf.mxu0
  %v237 = vadd.f32 0.0, %v236
  %v238 = vpop.f32.mrf.mxu0
  %v239 = vpop.f32.mrf.mxu0
  %v240 = vadd.f32 0.0, %v239
  %v241 = vpop.f32.mrf.mxu0
  %242 = vdwg.mxu0
  %v243 = vld [vmem:[%s2] sm:$0x1]
  %v245 = vlaneseq
  %v246 = vshrl.u32 %v245, 7
  %v247 = vsub.s32 0, %v246
  %v248 = vrot.slane %v243, %v247
  %v250 = vmul.f32 %v181, %v248
  %v251 = vmul.f32 %v184, %v248
  %v252 = vmul.f32 %v189, %v248
  %v253 = vmul.f32 %v192, %v248
  %v254 = vmul.f32 %v197, %v248
  %v255 = vmul.f32 %v200, %v248
  %v256 = vmul.f32 %v205, %v248
  %v257 = vmul.f32 %v208, %v248
  %v258 = vmul.f32 %v213, %v248
  %v259 = vmul.f32 %v216, %v248
  %v260 = vmul.f32 %v221, %v248
  %v261 = vmul.f32 %v224, %v248
  %v262 = vmul.f32 %v229, %v248
  %v263 = vmul.f32 %v232, %v248
  %v264 = vmul.f32 %v237, %v248
  %v265 = vmul.f32 %v240, %v248
  %v266 = vld [vmem:[%s3] sm:$0x1]
  %v268 = vlaneseq
  %v269 = vshrl.u32 %v268, 7
  %v270 = vsub.s32 0, %v269
  %v271 = vrot.slane %v266, %v270
  %v273 = vadd.f32 %v250, %v271
  %v274 = vadd.f32 %v251, %v271
  %v275 = vadd.f32 %v252, %v271
  %v276 = vadd.f32 %v253, %v271
  %v277 = vadd.f32 %v254, %v271
  %v278 = vadd.f32 %v255, %v271
  %v279 = vadd.f32 %v256, %v271
  %v280 = vadd.f32 %v257, %v271
  %v281 = vadd.f32 %v258, %v271
  %v282 = vadd.f32 %v259, %v271
  %v283 = vadd.f32 %v260, %v271
  %v284 = vadd.f32 %v261, %v271
  %v285 = vadd.f32 %v262, %v271
  %v286 = vadd.f32 %v263, %v271
  %v287 = vadd.f32 %v264, %v271
  %v288 = vadd.f32 %v265, %v271
  %v289 = vmax.f32 %v273, 0.0
  %v290 = vmax.f32 %v274, 0.0
  %v291 = vmax.f32 %v275, 0.0
  %v292 = vmax.f32 %v276, 0.0
  %v293 = vmax.f32 %v277, 0.0
  %v294 = vmax.f32 %v278, 0.0
  %v295 = vmax.f32 %v279, 0.0
  %v296 = vmax.f32 %v280, 0.0
  %v297 = vmax.f32 %v281, 0.0
  %v298 = vmax.f32 %v282, 0.0
  %v299 = vmax.f32 %v283, 0.0
  %v300 = vmax.f32 %v284, 0.0
  %v301 = vmax.f32 %v285, 0.0
  %v302 = vmax.f32 %v286, 0.0
  %v303 = vmax.f32 %v287, 0.0
  %v304 = vmax.f32 %v288, 0.0
  %v305 = vpack.c.bf16 %v290, %v289
  %v306 = vpack.c.bf16 %v292, %v291
  %v307 = vpack.c.bf16 %v294, %v293
  %v308 = vpack.c.bf16 %v296, %v295
  %v309 = vpack.c.bf16 %v298, %v297
  %v310 = vpack.c.bf16 %v300, %v299
  %v311 = vpack.c.bf16 %v302, %v301
  %v312 = vpack.c.bf16 %v304, %v303
  %v321 = vunpack.c.l.b16 %v305
  %v322 = vunpack.c.h.b16 %v305
  %v323 = vunpack.c.l.b16 %v306
  %v324 = vunpack.c.h.b16 %v306
  %v325 = vunpack.c.l.b16 %v307
  %v326 = vunpack.c.h.b16 %v307
  %v327 = vunpack.c.l.b16 %v308
  %v328 = vunpack.c.h.b16 %v308
  %v329 = vunpack.c.l.b16 %v309
  %v330 = vunpack.c.h.b16 %v309
  %v331 = vunpack.c.l.b16 %v310
  %v332 = vunpack.c.h.b16 %v310
  %v333 = vunpack.c.l.b16 %v311
  %v334 = vunpack.c.h.b16 %v311
  %v335 = vunpack.c.l.b16 %v312
  %v336 = vunpack.c.h.b16 %v312
  %v337 = vpack.c.b16 %v321, %v321
  %v338 = vpack.c.b16 %v322, %v322
  %v339 = vpack.c.b16 %v323, %v323
  %v340 = vpack.c.b16 %v324, %v324
  %v341 = vpack.c.b16 %v325, %v325
  %v342 = vpack.c.b16 %v326, %v326
  %v343 = vpack.c.b16 %v327, %v327
  %v344 = vpack.c.b16 %v328, %v328
  %v345 = vpack.c.b16 %v329, %v329
  %v346 = vpack.c.b16 %v330, %v330
  %v347 = vpack.c.b16 %v331, %v331
  %v348 = vpack.c.b16 %v332, %v332
  %v349 = vpack.c.b16 %v333, %v333
  %v350 = vpack.c.b16 %v334, %v334
  %v351 = vpack.c.b16 %v335, %v335
  %v352 = vpack.c.b16 %v336, %v336
  %369 = vst [vmem:[%s4] sm:$0xf] %v337
  %370 = vst [vmem:[%s4 + $0x4] sm:$0xf] %v338
  %371 = vst [vmem:[%s4 + $0x8] sm:$0xf] %v339
  %372 = vst [vmem:[%s4 + $0xc] sm:$0xf] %v340
  %373 = vst [vmem:[%s4 + $0x10] sm:$0xf] %v341
  %374 = vst [vmem:[%s4 + $0x14] sm:$0xf] %v342
  %375 = vst [vmem:[%s4 + $0x18] sm:$0xf] %v343
  %376 = vst [vmem:[%s4 + $0x1c] sm:$0xf] %v344
  %377 = vst [vmem:[%s4 + $0x20] sm:$0xf] %v345
  %378 = vst [vmem:[%s4 + $0x24] sm:$0xf] %v346
  %379 = vst [vmem:[%s4 + $0x28] sm:$0xf] %v347
  %380 = vst [vmem:[%s4 + $0x2c] sm:$0xf] %v348
  %381 = vst [vmem:[%s4 + $0x30] sm:$0xf] %v349
  %382 = vst [vmem:[%s4 + $0x34] sm:$0xf] %v350
  %383 = vst [vmem:[%s4 + $0x38] sm:$0xf] %v351
  %384 = vst [vmem:[%s4 + $0x3c] sm:$0xf] %v352
  // Predicated region
  $region18: #{deeplab_forward.15} parent=0 // pred_check
    _
  $region19: #{deeplab_forward.15} parent=0 // pred_check_branch
    %386 = sbr.rel (0) target = $region21
  $region20: #{deeplab_forward.15} parent=0 // pred_region
    _
  $region21: #{deeplab_forward.15} parent=0 // pred_fallthru
    _
  // Predicated region
  $region22: #{deeplab_forward.15} parent=0 // pred_check
    _
  $region23: #{deeplab_forward.15} parent=0 // pred_check_branch
    %388 = sbr.rel (0) target = $region25
  $region24: #{deeplab_forward.15} parent=0 // pred_region
    _
  $region25: #{deeplab_forward.15} parent=0 // pred_fallthru
    _

// kernel: deeplab_forward.16
$region0: #{deeplab_forward.16}
  #allocation0 [shape = 'u32[]', space=smem, size = 0x4, offset = 0x4, fixed_abs, tag = 'smem constant byte address 0x4 - core index']
  #allocation1 [shape = 'u32[144,128]{1,0:T(1,128)}', space=vmem, size = 0x12000, scoped, tag = 'internal scratch']
  %s0 = inlined_call_operand.vmem [shape: bf16[64,4], index: 0, kind: input, shape index: {}]
  %s1 = inlined_call_operand.vmem [shape: bf16[2,4,128], index: 1, kind: input, shape index: {}]
  %s2 = inlined_call_operand.vmem [shape: bf16[2,64,128], index: 2, kind: output, shape index: {}]
  %s3 = sld [smem:[#allocation0]]
  $region41: #{deeplab_forward.16} parent=0
    _
  %s5 = ssub.s32 1, %s3
  %s6 = scalar_select 0, %s5, %s3
  loop: start=0, step=1, limit=4
  $region2: #{deeplab_forward.16} parent=0 // loop_pre_header
    _
  $region3: #{deeplab_forward.16} parent=0 // loop_header
    %s8 = sphi 0, %s12
    %p9 = scmp.ge.s32.totalorder %s8, 4
    %s15 = sphi 0, %s27
    %s16 = sphi 0, %s23
    %s17 = sphi 0, %s15
    %s18 = sphi 0, %s16
    %s19 = sphi 0, %s17
    %s20 = sphi 0, %s18
    %s30 = sphi 0, %s32
    %s33 = sphi 0, %s30
    %s34 = sphi 0, %s33
    %s50 = sphi 0, %s34
    %s56 = sphi 0, %s58
    %s59 = sphi 0, %s56
    %s60 = sphi 0, %s59
    %s76 = sphi 0, %s60
    %s84 = sphi 0, %s86
    %s87 = sphi 0, %s84
    %s88 = sphi 0, %s87
    %s104 = sphi 0, %s88
  $region4: #{deeplab_forward.16} parent=0 // loop_header_branch
    %11 = sbr.rel (%p9) target = $region8
  $region5: #{deeplab_forward.16} parent=0 // loop_body
    %s13 = ssub.s32 %s8, 1
    %s14 = ssub.s32 %s8, 2
    %s21 = sadd.s32 1, %s16
    %p22 = scmp.ge.s32.totalorder %s21, 1
    %s23 = scalar_select %p22, 0, %s21
    %s24 = sadd.s32 1, %s15
    %s25 = scalar_select %p22, %s24, %s15
    %p26 = scmp.ge.s32.totalorder %s25, 2
    %s27 = scalar_select %p26, 0, %s25
    %s28 = ssub.s32 %s16, %s23
    %p29 = scmp.eq.s32.totalorder %s28, 0
    %s31 = sadd.s32 %s30, 1
    %s32 = scalar_select %p29, %s30, %s31
    %p35 = pneg %p29
    %p36 = scmp.eq.s32.totalorder %s8, 1
    %p37 = por %p35, %p36
    %p38 = scmp.ne.s32.totalorder %s30, %s33
    %p39 = scmp.eq.s32.totalorder %s8, 0
    %p40 = por %p38, %p39
    %p41 = scmp.ne.s32.totalorder %s30, %s33
    %p42 = scmp.eq.s32.totalorder %s13, 1
    %p43 = por %p41, %p42
    %p44 = scmp.ne.s32.totalorder %s33, %s34
    %p45 = scmp.eq.s32.totalorder %s13, 0
    %p46 = por %p44, %p45
    %p47 = scmp.ne.s32.totalorder %s33, %s34
    %p48 = scmp.eq.s32.totalorder %s14, 1
    %p49 = por %p47, %p48
    %p51 = scmp.ne.s32.totalorder %s34, %s50
    %p52 = scmp.eq.s32.totalorder %s14, 0
    %p53 = por %p51, %p52
    %s54 = ssub.s32 %s15, %s27
    %p55 = scmp.eq.s32.totalorder %s54, 0
    %s57 = sadd.s32 %s56, 1
    %s58 = scalar_select %p55, %s56, %s57
    %p61 = pneg %p55
    %p62 = scmp.eq.s32.totalorder %s8, 1
    %p63 = por %p61, %p62
    %p64 = scmp.ne.s32.totalorder %s56, %s59
    %p65 = scmp.eq.s32.totalorder %s8, 0
    %p66 = por %p64, %p65
    %p67 = scmp.ne.s32.totalorder %s56, %s59
    %p68 = scmp.eq.s32.totalorder %s13, 1
    %p69 = por %p67, %p68
    %p70 = scmp.ne.s32.totalorder %s59, %s60
    %p71 = scmp.eq.s32.totalorder %s13, 0
    %p72 = por %p70, %p71
    %p73 = scmp.ne.s32.totalorder %s59, %s60
    %p74 = scmp.eq.s32.totalorder %s14, 1
    %p75 = por %p73, %p74
    %p77 = scmp.ne.s32.totalorder %s60, %s76
    %p78 = scmp.eq.s32.totalorder %s14, 0
    %p79 = por %p77, %p78
    %s80 = ssub.s32 %s15, %s27
    %s81 = ssub.s32 %s16, %s23
    %s82 = sor.u32 %s80, %s81
    %p83 = scmp.eq.s32.totalorder %s82, 0
    %s85 = sadd.s32 %s84, 1
    %s86 = scalar_select %p83, %s84, %s85
    %p89 = pneg %p83
    %p90 = scmp.eq.s32.totalorder %s8, 1
    %p91 = por %p89, %p90
    %p92 = scmp.ne.s32.totalorder %s84, %s87
    %p93 = scmp.eq.s32.totalorder %s8, 0
    %p94 = por %p92, %p93
    %p95 = scmp.ne.s32.totalorder %s84, %s87
    %p96 = scmp.eq.s32.totalorder %s13, 1
    %p97 = por %p95, %p96
    %p98 = scmp.ne.s32.totalorder %s87, %s88
    %p99 = scmp.eq.s32.totalorder %s13, 0
    %p100 = por %p98, %p99
    %p101 = scmp.ne.s32.totalorder %s87, %s88
    %p102 = scmp.eq.s32.totalorder %s14, 1
    %p103 = por %p101, %p102
    %p105 = scmp.ne.s32.totalorder %s88, %s104
    %p106 = scmp.eq.s32.totalorder %s14, 0
    %p107 = por %p105, %p106
    %p108 = scmp.le.s32.totalorder 1, %s8
    %p109 = scmp.lt.s32.totalorder %s8, 3
    %p110 = pnand %p108, %p109
    %p111 = pneg %p110
    // Predicated region
    $region9: #{deeplab_forward.16} parent=5 // pred_check
      _
    $region10: #{deeplab_forward.16} parent=5 // pred_check_branch
      %113 = sbr.rel (%p110) target = $region12
    $region11: #{deeplab_forward.16} parent=5 // pred_region
      %s114 = ssub.s32 %s8, 1
      // Predicated region
      $region13: #{deeplab_forward.16} parent=11 // pred_check
        %p115 = pneg %p46
      $region14: #{deeplab_forward.16} parent=11 // pred_check_branch
        %117 = sbr.rel (%p115) target = $region16
      $region15: #{deeplab_forward.16} parent=11 // pred_region
        %s118 = smul.u32 8, %s18
        %p119 = scmp.lt.s32.totalorder %s118, 7
        %s120 = scalar_select %p119, %s118, 7
        %s121 = smul.addr %s120, 4
        %s122 = scalar_lea.vmem %s0, %s121
        %s123 = smul.u32 8, %s18
      $region16: #{deeplab_forward.16} parent=11 // pred_fallthru
        _
    $region12: #{deeplab_forward.16} parent=5 // pred_fallthru
      _
    %p124 = scmp.lt.s32.totalorder %s8, 2
    // Predicated region
    $region17: #{deeplab_forward.16} parent=5 // pred_check
      %p125 = pneg %p124
    $region18: #{deeplab_forward.16} parent=5 // pred_check_branch
      %127 = sbr.rel (%p125) target = $region20
    $region19: #{deeplab_forward.16} parent=5 // pred_region
      // Predicated region
      $region21: #{deeplab_forward.16} parent=19 // pred_check
        %p128 = pneg %p66
      $region22: #{deeplab_forward.16} parent=19 // pred_check_branch
        %130 = sbr.rel (%p128) target = $region24
      $region23: #{deeplab_forward.16} parent=19 // pred_region
        %p131 = scmp.lt.s32.totalorder %s15, 1
        %s132 = scalar_select %p131, %s15, 1
        %s133 = smul.addr %s132, 2
        %s134 = scalar_lea.vmem %s1, %s133
      $region24: #{deeplab_forward.16} parent=19 // pred_fallthru
        _
    $region20: #{deeplab_forward.16} parent=5 // pred_fallthru
      _
    %p135 = scmp.le.s32.totalorder 1, %s8
    %p136 = scmp.lt.s32.totalorder %s8, 3
    %p137 = pnand %p135, %p136
    %p138 = pneg %p137
    // Predicated region
    $region25: #{deeplab_forward.16} parent=5 // pred_check
      _
    $region26: #{deeplab_forward.16} parent=5 // pred_check_branch
      %140 = sbr.rel (%p137) target = $region28
    $region27: #{deeplab_forward.16} parent=5 // pred_region
      %s141 = ssub.s32 %s8, 1
      %s142 = smul.u32 8, %s18
      %p143 = scmp.lt.s32.totalorder %s142, 7
      %s144 = scalar_select %p143, %s142, 7
      %s145 = smul.addr %s144, 4
      %s146 = scalar_lea.vmem %s0, %s145
      %p147 = pneg %p46
      %p148 = pneg %p43
      %p149 = scmp.lt.s32.totalorder %s17, 1
      %s150 = scalar_select %p149, %s17, 1
      %s151 = smul.addr %s150, 2
      %s152 = scalar_lea.vmem %s1, %s151
      %p153 = pneg %p72
      %p154 = pneg %p69
      %p155 = pneg %p100
      %p156 = pneg %p97
      %s157 = smul.u32 8, %s18
      %p158 = scmp.lt.s32.totalorder %s17, 1
      %s159 = scalar_select %p158, %s17, 1
      %p160 = scmp.lt.s32.totalorder %s157, 7
      %s161 = scalar_select %p160, %s157, 7
      %s162 = smul.addr %s159, 8
      %s163 = sadd.s32 %s161, %s162
      %s164 = smul.addr %s163, 4
      %s165 = scalar_lea.vmem %s2, %s164
      %s166 = smul.u32 8, %s18
      %p167 = scmp.lt.s32.totalorder %s166, 7
      %s168 = scalar_select %p167, %s166, 7
      %s169 = smul.addr %s168, 4
      %s170 = scalar_lea.vmem %s0, %s169
      %s171 = smul.u32 8, %s18
      %p172 = scmp.lt.s32.totalorder %s17, 1
      %s173 = scalar_select %p172, %s17, 1
      %s174 = smul.addr %s173, 2
      %s175 = scalar_lea.vmem %s1, %s174
      %s176 = smul.u32 8, %s18
      %p177 = scmp.lt.s32.totalorder %s17, 1
      %s178 = scalar_select %p177, %s17, 1
      %p179 = scmp.lt.s32.totalorder %s176, 7
      %s180 = scalar_select %p179, %s176, 7
      %s181 = smul.addr %s178, 8
      %s182 = sadd.s32 %s180, %s181
      %s183 = smul.addr %s182, 4
      %s184 = scalar_lea.vmem %s2, %s183
      %s185 = smul.u32 8, %s18
      %v187 = vld [vmem:[%s170] sm:$0xf]
      %v188 = vld [vmem:[%s170 + $0x4] sm:$0xf]
      %v189 = vld [vmem:[%s170 + $0x8] sm:$0xf]
      %v190 = vld [vmem:[%s170 + $0xc] sm:$0xf]
      %v191 = vld [vmem:[%s170 + $0x10] sm:$0xf]
      %v192 = vld [vmem:[%s170 + $0x14] sm:$0xf]
      %v193 = vld [vmem:[%s170 + $0x18] sm:$0xf]
      %v194 = vld [vmem:[%s170 + $0x1c] sm:$0xf]
      %v195 = vld [vmem:[%s175] sm:$0x3]
      %v204 = vunpack.c.l.b16 %v187
      %v205 = vunpack.c.l.b16 %v188
      %v206 = vunpack.c.l.b16 %v189
      %v207 = vunpack.c.l.b16 %v190
      %v208 = vunpack.c.l.b16 %v191
      %v209 = vunpack.c.l.b16 %v192
      %v210 = vunpack.c.l.b16 %v193
      %v211 = vunpack.c.l.b16 %v194
      %v212 = vpack.c.b16 %v205, %v204
      %v213 = vpack.c.b16 %v207, %v206
      %v214 = vpack.c.b16 %v209, %v208
      %v215 = vpack.c.b16 %v211, %v210
      %vm216 = vcmask 31744
      %v218 = vsel %vm216, %v212, 0
      %v221 = vsel %vm216, %v213, 0
      %v224 = vsel %vm216, %v214, 0
      %v227 = vsel %vm216, %v215, 0
      %vm229 = vcmask 1041408
      %v231 = vsel %vm229, %v195, 0
      %233 = vmatprep.subr.bf16.mxu0 0
      %234 = vmatpush1.bf16.msra.mxu0 0
      %235 = vmatprep.subr.bf16.mxu0 0
      %236 = vmatpush1.bf16.msra.mxu0 0
      %237 = vmatprep.subr.bf16.mxu0 0
      %238 = vmatpush1.bf16.msra.mxu0 0
      %239 = vmatprep.subr.bf16.mxu0 0
      %240 = vmatpush1.bf16.msra.mxu0 0
      %241 = vmatprep.subr.bf16.mxu0 0
      %242 = vmatpush1.bf16.msra.mxu0 0
      %243 = vmatprep.subr.bf16.mxu0 0
      %244 = vmatpush1.bf16.msra.mxu0 0
      %245 = vmatprep.subr.bf16.mxu0 0
      %246 = vmatpush1.bf16.msra.mxu0 0
      %247 = vmatprep.subr.bf16.mxu0 0
      %248 = vmatpush1.bf16.msra.mxu0 %v231
      %249 = vmatprep.subr.bf16.mxu0 0
      %250 = vmatpush2.bf16.msra.mxu0 0
      %251 = vmatprep.subr.bf16.mxu0 0
      %252 = vmatpush2.bf16.msra.mxu0 0
      %253 = vmatprep.subr.bf16.mxu0 0
      %254 = vmatpush2.bf16.msra.mxu0 0
      %255 = vmatprep.subr.bf16.mxu0 0
      %256 = vmatpush2.bf16.msra.mxu0 0
      %257 = vmatprep.subr.bf16.mxu0 0
      %258 = vmatpush2.bf16.msra.mxu0 0
      %259 = vmatprep.subr.bf16.mxu0 0
      %260 = vmatpush2.bf16.msra.mxu0 0
      %261 = vmatprep.subr.bf16.mxu0 0
      %262 = vmatpush2.bf16.msra.mxu0 0
      %263 = vmatprep.subr.bf16.mxu0 0
      %264 = vmatpush2.bf16.msra.mxu0 0
      %265 = vmatprep.mubr.bf16.mxu0 0
      %266 = vmatmul.mubr.bf16.gmra.mxu0 %v218
      %v267 = vpop.f32.mrf.mxu0
      %v268 = vadd.f32 0.0, %v267
      %v269 = vpop.f32.mrf.mxu0
      %v270 = vpop.f32.mrf.mxu0
      %v271 = vadd.f32 0.0, %v270
      %v272 = vpop.f32.mrf.mxu0
      %273 = vmatprep.mubr.bf16.mxu0 0
      %274 = vmatmul.mubr.bf16.gmra.mxu0 %v221
      %v275 = vpop.f32.mrf.mxu0
      %v276 = vadd.f32 0.0, %v275
      %v277 = vpop.f32.mrf.mxu0
      %v278 = vpop.f32.mrf.mxu0
      %v279 = vadd.f32 0.0, %v278
      %v280 = vpop.f32.mrf.mxu0
      %281 = vmatprep.mubr.bf16.mxu0 0
      %282 = vmatmul.mubr.bf16.gmra.mxu0 %v224
      %v283 = vpop.f32.mrf.mxu0
      %v284 = vadd.f32 0.0, %v283
      %v285 = vpop.f32.mrf.mxu0
      %v286 = vpop.f32.mrf.mxu0
      %v287 = vadd.f32 0.0, %v286
      %v288 = vpop.f32.mrf.mxu0
      %289 = vmatprep.mubr.bf16.mxu0 0
      %290 = vmatmul.mubr.bf16.gmra.mxu0 %v227
      %v291 = vpop.f32.mrf.mxu0
      %v292 = vadd.f32 0.0, %v291
      %v293 = vpop.f32.mrf.mxu0
      %v294 = vpop.f32.mrf.mxu0
      %v295 = vadd.f32 0.0, %v294
      %v296 = vpop.f32.mrf.mxu0
      %297 = vdwg.mxu0
      %v298 = vpack.c.bf16 %v271, %v268
      %v299 = vpack.c.bf16 %v279, %v276
      %v300 = vpack.c.bf16 %v287, %v284
      %v301 = vpack.c.bf16 %v295, %v292
      %v306 = vunpack.c.l.b16 %v298
      %v307 = vunpack.c.h.b16 %v298
      %v308 = vunpack.c.l.b16 %v299
      %v309 = vunpack.c.h.b16 %v299
      %v310 = vunpack.c.l.b16 %v300
      %v311 = vunpack.c.h.b16 %v300
      %v312 = vunpack.c.l.b16 %v301
      %v313 = vunpack.c.h.b16 %v301
      %v314 = vpack.c.b16 %v306, %v306
      %v315 = vpack.c.b16 %v307, %v307
      %v316 = vpack.c.b16 %v308, %v308
      %v317 = vpack.c.b16 %v309, %v309
      %v318 = vpack.c.b16 %v310, %v310
      %v319 = vpack.c.b16 %v311, %v311
      %v320 = vpack.c.b16 %v312, %v312
      %v321 = vpack.c.b16 %v313, %v313
      %330 = vst [vmem:[%s184] sm:$0xf] %v314
      %331 = vst [vmem:[%s184 + $0x4] sm:$0xf] %v315
      %332 = vst [vmem:[%s184 + $0x8] sm:$0xf] %v316
      %333 = vst [vmem:[%s184 + $0xc] sm:$0xf] %v317
      %334 = vst [vmem:[%s184 + $0x10] sm:$0xf] %v318
      %335 = vst [vmem:[%s184 + $0x14] sm:$0xf] %v319
      %336 = vst [vmem:[%s184 + $0x18] sm:$0xf] %v320
      %337 = vst [vmem:[%s184 + $0x1c] sm:$0xf] %v321
      %s338 = smul.u32 8, %s18
      %p339 = scmp.lt.s32.totalorder %s17, 1
      %s340 = scalar_select %p339, %s17, 1
      %p341 = scmp.lt.s32.totalorder %s338, 7
      %s342 = scalar_select %p341, %s338, 7
      %s343 = smul.addr %s340, 8
      %s344 = sadd.s32 %s342, %s343
      %s345 = smul.addr %s344, 4
      %s346 = scalar_lea.vmem %s2, %s345
      // Predicated region
      $region29: #{deeplab_forward.16} parent=27 // pred_check
        %p347 = pneg %p97
      $region30: #{deeplab_forward.16} parent=27 // pred_check_branch
        %349 = sbr.rel (%p347) target = $region32
      $region31: #{deeplab_forward.16} parent=27 // pred_region
        %s350 = smul.u32 8, %s18
      $region32: #{deeplab_forward.16} parent=27 // pred_fallthru
        _
    $region28: #{deeplab_forward.16} parent=5 // pred_fallthru
      _
    %p351 = scmp.le.s32.totalorder 2, %s8
    // Predicated region
    $region33: #{deeplab_forward.16} parent=5 // pred_check
      %p352 = pneg %p351
    $region34: #{deeplab_forward.16} parent=5 // pred_check_branch
      %354 = sbr.rel (%p352) target = $region36
    $region35: #{deeplab_forward.16} parent=5 // pred_region
      %s355 = ssub.s32 %s8, 2
      // Predicated region
      $region37: #{deeplab_forward.16} parent=35 // pred_check
        %p356 = pneg %p103
      $region38: #{deeplab_forward.16} parent=35 // pred_check_branch
        %358 = sbr.rel (%p356) target = $region40
      $region39: #{deeplab_forward.16} parent=35 // pred_region
        %s359 = smul.u32 8, %s20
        %p360 = scmp.lt.s32.totalorder %s19, 1
        %s361 = scalar_select %p360, %s19, 1
        %p362 = scmp.lt.s32.totalorder %s359, 7
        %s363 = scalar_select %p362, %s359, 7
        %s364 = smul.addr %s361, 8
        %s365 = sadd.s32 %s363, %s364
        %s366 = smul.addr %s365, 4
        %s367 = scalar_lea.vmem %s2, %s366
      $region40: #{deeplab_forward.16} parent=35 // pred_fallthru
        _
    $region36: #{deeplab_forward.16} parent=5 // pred_fallthru
      _
  $region6: #{deeplab_forward.16} parent=0 // loop_footer
    %s12 = sadd.s32 1, %s8
  $region7: #{deeplab_forward.16} parent=0 // loop_footer_branch
    %7 = sbr.rel target = $region3
  $region8: #{deeplab_forward.16} parent=0 // loop_exit
    _

// kernel: deeplab_forward.13
$region0: #{deeplab_forward.13}
  #allocation0 [shape = 'u32[]', space=smem, size = 0x4, offset = 0x4, fixed_abs, tag = 'smem constant byte address 0x4 - core index']
  #allocation1 [shape = 'u32[144,128]{1,0:T(1,128)}', space=vmem, size = 0x12000, scoped, tag = 'internal scratch']
  %s0 = inlined_call_operand.vmem [shape: bf16[8,1152], index: 0, kind: input, shape index: {}]
  %s1 = inlined_call_operand.vmem [shape: bf16[1152,128], index: 1, kind: input, shape index: {}]
  %s2 = inlined_call_operand.vmem [shape: f32[1,128], index: 2, kind: input, shape index: {}]
  %s3 = inlined_call_operand.vmem [shape: f32[1,128], index: 3, kind: input, shape index: {}]
  %s4 = inlined_call_operand.vmem [shape: bf16[8,128], index: 4, kind: output, shape index: {}]
  %s5 = sld [smem:[#allocation0]]
  $region26: #{deeplab_forward.13} parent=0
    _
  %s7 = ssub.s32 1, %s5
  %s8 = scalar_select 0, %s7, %s5
  // Predicated region
  $region2: #{deeplab_forward.13} parent=0 // pred_check
    _
  $region3: #{deeplab_forward.13} parent=0 // pred_check_branch
    %10 = sbr.rel (0) target = $region5
  $region4: #{deeplab_forward.13} parent=0 // pred_region
    _
  $region5: #{deeplab_forward.13} parent=0 // pred_fallthru
    _
  // Predicated region
  $region6: #{deeplab_forward.13} parent=0 // pred_check
    _
  $region7: #{deeplab_forward.13} parent=0 // pred_check_branch
    %12 = sbr.rel (0) target = $region9
  $region8: #{deeplab_forward.13} parent=0 // pred_region
    _
  $region9: #{deeplab_forward.13} parent=0 // pred_fallthru
    _
  // Predicated region
  $region10: #{deeplab_forward.13} parent=0 // pred_check
    _
  $region11: #{deeplab_forward.13} parent=0 // pred_check_branch
    %14 = sbr.rel (0) target = $region13
  $region12: #{deeplab_forward.13} parent=0 // pred_region
    _
  $region13: #{deeplab_forward.13} parent=0 // pred_fallthru
    _
  // Predicated region
  $region14: #{deeplab_forward.13} parent=0 // pred_check
    _
  $region15: #{deeplab_forward.13} parent=0 // pred_check_branch
    %16 = sbr.rel (0) target = $region17
  $region16: #{deeplab_forward.13} parent=0 // pred_region
    _
  $region17: #{deeplab_forward.13} parent=0 // pred_fallthru
    _
  %v18 = vld [vmem:[%s0] sm:$0xff]
  %v19 = vld [vmem:[%s0 + $0x8] sm:$0xff]
  %v20 = vld [vmem:[%s0 + $0x10] sm:$0xff]
  %v21 = vld [vmem:[%s0 + $0x18] sm:$0xff]
  %v22 = vld [vmem:[%s0 + $0x20] sm:$0xf]
  %v23 = vld [vmem:[%s1] sm:$0xf]
  %v24 = vld [vmem:[%s1 + $0x4] sm:$0xf]
  %v25 = vld [vmem:[%s1 + $0x8] sm:$0xf]
  %v26 = vld [vmem:[%s1 + $0xc] sm:$0xf]
  %v27 = vld [vmem:[%s1 + $0x10] sm:$0xf]
  %v28 = vld [vmem:[%s1 + $0x14] sm:$0xf]
  %v29 = vld [vmem:[%s1 + $0x18] sm:$0xf]
  %v30 = vld [vmem:[%s1 + $0x1c] sm:$0xf]
  %v31 = vld [vmem:[%s1 + $0x20] sm:$0xf]
  %v32 = vld [vmem:[%s1 + $0x24] sm:$0xf]
  %v33 = vld [vmem:[%s1 + $0x28] sm:$0xf]
  %v34 = vld [vmem:[%s1 + $0x2c] sm:$0xf]
  %v35 = vld [vmem:[%s1 + $0x30] sm:$0xf]
  %v36 = vld [vmem:[%s1 + $0x34] sm:$0xf]
  %v37 = vld [vmem:[%s1 + $0x38] sm:$0xf]
  %v38 = vld [vmem:[%s1 + $0x3c] sm:$0xf]
  %v39 = vld [vmem:[%s1 + $0x40] sm:$0xf]
  %v40 = vld [vmem:[%s1 + $0x44] sm:$0xf]
  %v41 = vld [vmem:[%s1 + $0x48] sm:$0xf]
  %v42 = vld [vmem:[%s1 + $0x4c] sm:$0xf]
  %v43 = vld [vmem:[%s1 + $0x50] sm:$0xf]
  %v44 = vld [vmem:[%s1 + $0x54] sm:$0xf]
  %v45 = vld [vmem:[%s1 + $0x58] sm:$0xf]
  %v46 = vld [vmem:[%s1 + $0x5c] sm:$0xf]
  %v47 = vld [vmem:[%s1 + $0x60] sm:$0xf]
  %v48 = vld [vmem:[%s1 + $0x64] sm:$0xf]
  %v49 = vld [vmem:[%s1 + $0x68] sm:$0xf]
  %v50 = vld [vmem:[%s1 + $0x6c] sm:$0xf]
  %v51 = vld [vmem:[%s1 + $0x70] sm:$0xf]
  %v52 = vld [vmem:[%s1 + $0x74] sm:$0xf]
  %v53 = vld [vmem:[%s1 + $0x78] sm:$0xf]
  %v54 = vld [vmem:[%s1 + $0x7c] sm:$0xf]
  %v55 = vld [vmem:[%s1 + $0x80] sm:$0xf]
  %v56 = vld [vmem:[%s1 + $0x84] sm:$0xf]
  %v57 = vld [vmem:[%s1 + $0x88] sm:$0xf]
  %v58 = vld [vmem:[%s1 + $0x8c] sm:$0xf]
  %v59 = vld [vmem:[%s1 + $0x90] sm:$0xf]
  %v60 = vld [vmem:[%s1 + $0x94] sm:$0xf]
  %v61 = vld [vmem:[%s1 + $0x98] sm:$0xf]
  %v62 = vld [vmem:[%s1 + $0x9c] sm:$0xf]
  %v63 = vld [vmem:[%s1 + $0xa0] sm:$0xf]
  %v64 = vld [vmem:[%s1 + $0xa4] sm:$0xf]
  %v65 = vld [vmem:[%s1 + $0xa8] sm:$0xf]
  %v66 = vld [vmem:[%s1 + $0xac] sm:$0xf]
  %v67 = vld [vmem:[%s1 + $0xb0] sm:$0xf]
  %v68 = vld [vmem:[%s1 + $0xb4] sm:$0xf]
  %v69 = vld [vmem:[%s1 + $0xb8] sm:$0xf]
  %v70 = vld [vmem:[%s1 + $0xbc] sm:$0xf]
  %v71 = vld [vmem:[%s1 + $0xc0] sm:$0xf]
  %v72 = vld [vmem:[%s1 + $0xc4] sm:$0xf]
  %v73 = vld [vmem:[%s1 + $0xc8] sm:$0xf]
  %v74 = vld [vmem:[%s1 + $0xcc] sm:$0xf]
  %v75 = vld [vmem:[%s1 + $0xd0] sm:$0xf]
  %v76 = vld [vmem:[%s1 + $0xd4] sm:$0xf]
  %v77 = vld [vmem:[%s1 + $0xd8] sm:$0xf]
  %v78 = vld [vmem:[%s1 + $0xdc] sm:$0xf]
  %v79 = vld [vmem:[%s1 + $0xe0] sm:$0xf]
  %v80 = vld [vmem:[%s1 + $0xe4] sm:$0xf]
  %v81 = vld [vmem:[%s1 + $0xe8] sm:$0xf]
  %v82 = vld [vmem:[%s1 + $0xec] sm:$0xf]
  %v83 = vld [vmem:[%s1 + $0xf0] sm:$0xf]
  %v84 = vld [vmem:[%s1 + $0xf4] sm:$0xf]
  %v85 = vld [vmem:[%s1 + $0xf8] sm:$0xf]
  %v86 = vld [vmem:[%s1 + $0xfc] sm:$0xf]
  %v87 = vld [vmem:[%s1 + $0x100] sm:$0xf]
  %v88 = vld [vmem:[%s1 + $0x104] sm:$0xf]
  %v89 = vld [vmem:[%s1 + $0x108] sm:$0xf]
  %v90 = vld [vmem:[%s1 + $0x10c] sm:$0xf]
  %v91 = vld [vmem:[%s1 + $0x110] sm:$0xf]
  %v92 = vld [vmem:[%s1 + $0x114] sm:$0xf]
  %v93 = vld [vmem:[%s1 + $0x118] sm:$0xf]
  %v94 = vld [vmem:[%s1 + $0x11c] sm:$0xf]
  %v95 = vld [vmem:[%s1 + $0x120] sm:$0xf]
  %v96 = vld [vmem:[%s1 + $0x124] sm:$0xf]
  %v97 = vld [vmem:[%s1 + $0x128] sm:$0xf]
  %v98 = vld [vmem:[%s1 + $0x12c] sm:$0xf]
  %v99 = vld [vmem:[%s1 + $0x130] sm:$0xf]
  %v100 = vld [vmem:[%s1 + $0x134] sm:$0xf]
  %v101 = vld [vmem:[%s1 + $0x138] sm:$0xf]
  %v102 = vld [vmem:[%s1 + $0x13c] sm:$0xf]
  %v103 = vld [vmem:[%s1 + $0x140] sm:$0xf]
  %v104 = vld [vmem:[%s1 + $0x144] sm:$0xf]
  %v105 = vld [vmem:[%s1 + $0x148] sm:$0xf]
  %v106 = vld [vmem:[%s1 + $0x14c] sm:$0xf]
  %v107 = vld [vmem:[%s1 + $0x150] sm:$0xf]
  %v108 = vld [vmem:[%s1 + $0x154] sm:$0xf]
  %v109 = vld [vmem:[%s1 + $0x158] sm:$0xf]
  %v110 = vld [vmem:[%s1 + $0x15c] sm:$0xf]
  %v111 = vld [vmem:[%s1 + $0x160] sm:$0xf]
  %v112 = vld [vmem:[%s1 + $0x164] sm:$0xf]
  %v113 = vld [vmem:[%s1 + $0x168] sm:$0xf]
  %v114 = vld [vmem:[%s1 + $0x16c] sm:$0xf]
  %v115 = vld [vmem:[%s1 + $0x170] sm:$0xf]
  %v116 = vld [vmem:[%s1 + $0x174] sm:$0xf]
  %v117 = vld [vmem:[%s1 + $0x178] sm:$0xf]
  %v118 = vld [vmem:[%s1 + $0x17c] sm:$0xf]
  %v119 = vld [vmem:[%s1 + $0x180] sm:$0xf]
  %v120 = vld [vmem:[%s1 + $0x184] sm:$0xf]
  %v121 = vld [vmem:[%s1 + $0x188] sm:$0xf]
  %v122 = vld [vmem:[%s1 + $0x18c] sm:$0xf]
  %v123 = vld [vmem:[%s1 + $0x190] sm:$0xf]
  %v124 = vld [vmem:[%s1 + $0x194] sm:$0xf]
  %v125 = vld [vmem:[%s1 + $0x198] sm:$0xf]
  %v126 = vld [vmem:[%s1 + $0x19c] sm:$0xf]
  %v127 = vld [vmem:[%s1 + $0x1a0] sm:$0xf]
  %v128 = vld [vmem:[%s1 + $0x1a4] sm:$0xf]
  %v129 = vld [vmem:[%s1 + $0x1a8] sm:$0xf]
  %v130 = vld [vmem:[%s1 + $0x1ac] sm:$0xf]
  %v131 = vld [vmem:[%s1 + $0x1b0] sm:$0xf]
  %v132 = vld [vmem:[%s1 + $0x1b4] sm:$0xf]
  %v133 = vld [vmem:[%s1 + $0x1b8] sm:$0xf]
  %v134 = vld [vmem:[%s1 + $0x1bc] sm:$0xf]
  %v135 = vld [vmem:[%s1 + $0x1c0] sm:$0xf]
  %v136 = vld [vmem:[%s1 + $0x1c4] sm:$0xf]
  %v137 = vld [vmem:[%s1 + $0x1c8] sm:$0xf]
  %v138 = vld [vmem:[%s1 + $0x1cc] sm:$0xf]
  %v139 = vld [vmem:[%s1 + $0x1d0] sm:$0xf]
  %v140 = vld [vmem:[%s1 + $0x1d4] sm:$0xf]
  %v141 = vld [vmem:[%s1 + $0x1d8] sm:$0xf]
  %v142 = vld [vmem:[%s1 + $0x1dc] sm:$0xf]
  %v143 = vld [vmem:[%s1 + $0x1e0] sm:$0xf]
  %v144 = vld [vmem:[%s1 + $0x1e4] sm:$0xf]
  %v145 = vld [vmem:[%s1 + $0x1e8] sm:$0xf]
  %v146 = vld [vmem:[%s1 + $0x1ec] sm:$0xf]
  %v147 = vld [vmem:[%s1 + $0x1f0] sm:$0xf]
  %v148 = vld [vmem:[%s1 + $0x1f4] sm:$0xf]
  %v149 = vld [vmem:[%s1 + $0x1f8] sm:$0xf]
  %v150 = vld [vmem:[%s1 + $0x1fc] sm:$0xf]
  %v151 = vld [vmem:[%s1 + $0x200] sm:$0xf]
  %v152 = vld [vmem:[%s1 + $0x204] sm:$0xf]
  %v153 = vld [vmem:[%s1 + $0x208] sm:$0xf]
  %v154 = vld [vmem:[%s1 + $0x20c] sm:$0xf]
  %v155 = vld [vmem:[%s1 + $0x210] sm:$0xf]
  %v156 = vld [vmem:[%s1 + $0x214] sm:$0xf]
  %v157 = vld [vmem:[%s1 + $0x218] sm:$0xf]
  %v158 = vld [vmem:[%s1 + $0x21c] sm:$0xf]
  %v159 = vld [vmem:[%s1 + $0x220] sm:$0xf]
  %v160 = vld [vmem:[%s1 + $0x224] sm:$0xf]
  %v161 = vld [vmem:[%s1 + $0x228] sm:$0xf]
  %v162 = vld [vmem:[%s1 + $0x22c] sm:$0xf]
  %v163 = vld [vmem:[%s1 + $0x230] sm:$0xf]
  %v164 = vld [vmem:[%s1 + $0x234] sm:$0xf]
  %v165 = vld [vmem:[%s1 + $0x238] sm:$0xf]
  %v166 = vld [vmem:[%s1 + $0x23c] sm:$0xf]
  %v172 = vunpack.c.l.b16 %v18
  %v173 = vunpack.c.h.b16 %v18
  %v174 = vunpack.c.l.b16 %v19
  %v175 = vunpack.c.h.b16 %v19
  %v176 = vunpack.c.l.b16 %v20
  %v177 = vunpack.c.h.b16 %v20
  %v178 = vunpack.c.l.b16 %v21
  %v179 = vunpack.c.h.b16 %v21
  %v180 = vunpack.c.l.b16 %v22
  %v181 = vpack.c.b16 %v172, %v172
  %v182 = vpack.c.b16 %v173, %v173
  %v183 = vpack.c.b16 %v174, %v174
  %v184 = vpack.c.b16 %v175, %v175
  %v185 = vpack.c.b16 %v176, %v176
  %v186 = vpack.c.b16 %v177, %v177
  %v187 = vpack.c.b16 %v178, %v178
  %v188 = vpack.c.b16 %v179, %v179
  %v189 = vpack.c.b16 %v180, %v180
  %v343 = vunpack.c.l.b16 %v23
  %v344 = vunpack.c.l.b16 %v24
  %v345 = vunpack.c.l.b16 %v25
  %v346 = vunpack.c.l.b16 %v26
  %v347 = vunpack.c.l.b16 %v27
  %v348 = vunpack.c.l.b16 %v28
  %v349 = vunpack.c.l.b16 %v29
  %v350 = vunpack.c.l.b16 %v30
  %v351 = vunpack.c.l.b16 %v31
  %v352 = vunpack.c.l.b16 %v32
  %v353 = vunpack.c.l.b16 %v33
  %v354 = vunpack.c.l.b16 %v34
  %v355 = vunpack.c.l.b16 %v35
  %v356 = vunpack.c.l.b16 %v36
  %v357 = vunpack.c.l.b16 %v37
  %v358 = vunpack.c.l.b16 %v38
  %v359 = vunpack.c.l.b16 %v39
  %v360 = vunpack.c.l.b16 %v40
  %v361 = vunpack.c.l.b16 %v41
  %v362 = vunpack.c.l.b16 %v42
  %v363 = vunpack.c.l.b16 %v43
  %v364 = vunpack.c.l.b16 %v44
  %v365 = vunpack.c.l.b16 %v45
  %v366 = vunpack.c.l.b16 %v46
  %v367 = vunpack.c.l.b16 %v47
  %v368 = vunpack.c.l.b16 %v48
  %v369 = vunpack.c.l.b16 %v49
  %v370 = vunpack.c.l.b16 %v50
  %v371 = vunpack.c.l.b16 %v51
  %v372 = vunpack.c.l.b16 %v52
  %v373 = vunpack.c.l.b16 %v53
  %v374 = vunpack.c.l.b16 %v54
  %v375 = vunpack.c.l.b16 %v55
  %v376 = vunpack.c.l.b16 %v56
  %v377 = vunpack.c.l.b16 %v57
  %v378 = vunpack.c.l.b16 %v58
  %v379 = vunpack.c.l.b16 %v59
  %v380 = vunpack.c.l.b16 %v60
  %v381 = vunpack.c.l.b16 %v61
  %v382 = vunpack.c.l.b16 %v62
  %v383 = vunpack.c.l.b16 %v63
  %v384 = vunpack.c.l.b16 %v64
  %v385 = vunpack.c.l.b16 %v65
  %v386 = vunpack.c.l.b16 %v66
  %v387 = vunpack.c.l.b16 %v67
  %v388 = vunpack.c.l.b16 %v68
  %v389 = vunpack.c.l.b16 %v69
  %v390 = vunpack.c.l.b16 %v70
  %v391 = vunpack.c.l.b16 %v71
  %v392 = vunpack.c.l.b16 %v72
  %v393 = vunpack.c.l.b16 %v73
  %v394 = vunpack.c.l.b16 %v74
  %v395 = vunpack.c.l.b16 %v75
  %v396 = vunpack.c.l.b16 %v76
  %v397 = vunpack.c.l.b16 %v77
  %v398 = vunpack.c.l.b16 %v78
  %v399 = vunpack.c.l.b16 %v79
  %v400 = vunpack.c.l.b16 %v80
  %v401 = vunpack.c.l.b16 %v81
  %v402 = vunpack.c.l.b16 %v82
  %v403 = vunpack.c.l.b16 %v83
  %v404 = vunpack.c.l.b16 %v84
  %v405 = vunpack.c.l.b16 %v85
  %v406 = vunpack.c.l.b16 %v86
  %v407 = vunpack.c.l.b16 %v87
  %v408 = vunpack.c.l.b16 %v88
  %v409 = vunpack.c.l.b16 %v89
  %v410 = vunpack.c.l.b16 %v90
  %v411 = vunpack.c.l.b16 %v91
  %v412 = vunpack.c.l.b16 %v92
  %v413 = vunpack.c.l.b16 %v93
  %v414 = vunpack.c.l.b16 %v94
  %v415 = vunpack.c.l.b16 %v95
  %v416 = vunpack.c.l.b16 %v96
  %v417 = vunpack.c.l.b16 %v97
  %v418 = vunpack.c.l.b16 %v98
  %v419 = vunpack.c.l.b16 %v99
  %v420 = vunpack.c.l.b16 %v100
  %v421 = vunpack.c.l.b16 %v101
  %v422 = vunpack.c.l.b16 %v102
  %v423 = vunpack.c.l.b16 %v103
  %v424 = vunpack.c.l.b16 %v104
  %v425 = vunpack.c.l.b16 %v105
  %v426 = vunpack.c.l.b16 %v106
  %v427 = vunpack.c.l.b16 %v107
  %v428 = vunpack.c.l.b16 %v108
  %v429 = vunpack.c.l.b16 %v109
  %v430 = vunpack.c.l.b16 %v110
  %v431 = vunpack.c.l.b16 %v111
  %v432 = vunpack.c.l.b16 %v112
  %v433 = vunpack.c.l.b16 %v113
  %v434 = vunpack.c.l.b16 %v114
  %v435 = vunpack.c.l.b16 %v115
  %v436 = vunpack.c.l.b16 %v116
  %v437 = vunpack.c.l.b16 %v117
  %v438 = vunpack.c.l.b16 %v118
  %v439 = vunpack.c.l.b16 %v119
  %v440 = vunpack.c.l.b16 %v120
  %v441 = vunpack.c.l.b16 %v121
  %v442 = vunpack.c.l.b16 %v122
  %v443 = vunpack.c.l.b16 %v123
  %v444 = vunpack.c.l.b16 %v124
  %v445 = vunpack.c.l.b16 %v125
  %v446 = vunpack.c.l.b16 %v126
  %v447 = vunpack.c.l.b16 %v127
  %v448 = vunpack.c.l.b16 %v128
  %v449 = vunpack.c.l.b16 %v129
  %v450 = vunpack.c.l.b16 %v130
  %v451 = vunpack.c.l.b16 %v131
  %v452 = vunpack.c.l.b16 %v132
  %v453 = vunpack.c.l.b16 %v133
  %v454 = vunpack.c.l.b16 %v134
  %v455 = vunpack.c.l.b16 %v135
  %v456 = vunpack.c.l.b16 %v136
  %v457 = vunpack.c.l.b16 %v137
  %v458 = vunpack.c.l.b16 %v138
  %v459 = vunpack.c.l.b16 %v139
  %v460 = vunpack.c.l.b16 %v140
  %v461 = vunpack.c.l.b16 %v141
  %v462 = vunpack.c.l.b16 %v142
  %v463 = vunpack.c.l.b16 %v143
  %v464 = vunpack.c.l.b16 %v144
  %v465 = vunpack.c.l.b16 %v145
  %v466 = vunpack.c.l.b16 %v146
  %v467 = vunpack.c.l.b16 %v147
  %v468 = vunpack.c.l.b16 %v148
  %v469 = vunpack.c.l.b16 %v149
  %v470 = vunpack.c.l.b16 %v150
  %v471 = vunpack.c.l.b16 %v151
  %v472 = vunpack.c.l.b16 %v152
  %v473 = vunpack.c.l.b16 %v153
  %v474 = vunpack.c.l.b16 %v154
  %v475 = vunpack.c.l.b16 %v155
  %v476 = vunpack.c.l.b16 %v156
  %v477 = vunpack.c.l.b16 %v157
  %v478 = vunpack.c.l.b16 %v158
  %v479 = vunpack.c.l.b16 %v159
  %v480 = vunpack.c.l.b16 %v160
  %v481 = vunpack.c.l.b16 %v161
  %v482 = vunpack.c.l.b16 %v162
  %v483 = vunpack.c.l.b16 %v163
  %v484 = vunpack.c.l.b16 %v164
  %v485 = vunpack.c.l.b16 %v165
  %v486 = vunpack.c.l.b16 %v166
  %v487 = vpack.c.b16 %v344, %v343
  %v488 = vpack.c.b16 %v346, %v345
  %v489 = vpack.c.b16 %v348, %v347
  %v490 = vpack.c.b16 %v350, %v349
  %v491 = vpack.c.b16 %v352, %v351
  %v492 = vpack.c.b16 %v354, %v353
  %v493 = vpack.c.b16 %v356, %v355
  %v494 = vpack.c.b16 %v358, %v357
  %v495 = vpack.c.b16 %v360, %v359
  %v496 = vpack.c.b16 %v362, %v361
  %v497 = vpack.c.b16 %v364, %v363
  %v498 = vpack.c.b16 %v366, %v365
  %v499 = vpack.c.b16 %v368, %v367
  %v500 = vpack.c.b16 %v370, %v369
  %v501 = vpack.c.b16 %v372, %v371
  %v502 = vpack.c.b16 %v374, %v373
  %v503 = vpack.c.b16 %v376, %v375
  %v504 = vpack.c.b16 %v378, %v377
  %v505 = vpack.c.b16 %v380, %v379
  %v506 = vpack.c.b16 %v382, %v381
  %v507 = vpack.c.b16 %v384, %v383
  %v508 = vpack.c.b16 %v386, %v385
  %v509 = vpack.c.b16 %v388, %v387
  %v510 = vpack.c.b16 %v390, %v389
  %v511 = vpack.c.b16 %v392, %v391
  %v512 = vpack.c.b16 %v394, %v393
  %v513 = vpack.c.b16 %v396, %v395
  %v514 = vpack.c.b16 %v398, %v397
  %v515 = vpack.c.b16 %v400, %v399
  %v516 = vpack.c.b16 %v402, %v401
  %v517 = vpack.c.b16 %v404, %v403
  %v518 = vpack.c.b16 %v406, %v405
  %v519 = vpack.c.b16 %v408, %v407
  %v520 = vpack.c.b16 %v410, %v409
  %v521 = vpack.c.b16 %v412, %v411
  %v522 = vpack.c.b16 %v414, %v413
  %v523 = vpack.c.b16 %v416, %v415
  %v524 = vpack.c.b16 %v418, %v417
  %v525 = vpack.c.b16 %v420, %v419
  %v526 = vpack.c.b16 %v422, %v421
  %v527 = vpack.c.b16 %v424, %v423
  %v528 = vpack.c.b16 %v426, %v425
  %v529 = vpack.c.b16 %v428, %v427
  %v530 = vpack.c.b16 %v430, %v429
  %v531 = vpack.c.b16 %v432, %v431
  %v532 = vpack.c.b16 %v434, %v433
  %v533 = vpack.c.b16 %v436, %v435
  %v534 = vpack.c.b16 %v438, %v437
  %v535 = vpack.c.b16 %v440, %v439
  %v536 = vpack.c.b16 %v442, %v441
  %v537 = vpack.c.b16 %v444, %v443
  %v538 = vpack.c.b16 %v446, %v445
  %v539 = vpack.c.b16 %v448, %v447
  %v540 = vpack.c.b16 %v450, %v449
  %v541 = vpack.c.b16 %v452, %v451
  %v542 = vpack.c.b16 %v454, %v453
  %v543 = vpack.c.b16 %v456, %v455
  %v544 = vpack.c.b16 %v458, %v457
  %v545 = vpack.c.b16 %v460, %v459
  %v546 = vpack.c.b16 %v462, %v461
  %v547 = vpack.c.b16 %v464, %v463
  %v548 = vpack.c.b16 %v466, %v465
  %v549 = vpack.c.b16 %v468, %v467
  %v550 = vpack.c.b16 %v470, %v469
  %v551 = vpack.c.b16 %v472, %v471
  %v552 = vpack.c.b16 %v474, %v473
  %v553 = vpack.c.b16 %v476, %v475
  %v554 = vpack.c.b16 %v478, %v477
  %v555 = vpack.c.b16 %v480, %v479
  %v556 = vpack.c.b16 %v482, %v481
  %v557 = vpack.c.b16 %v484, %v483
  %v558 = vpack.c.b16 %v486, %v485
  %631 = vmatprep.subr.bf16.mxu0 0
  %632 = vmatpush1.bf16.msra.mxu0 %v494
  %633 = vmatprep.subr.bf16.mxu0 0
  %634 = vmatpush1.bf16.msra.mxu0 %v493
  %635 = vmatprep.subr.bf16.mxu0 0
  %636 = vmatpush1.bf16.msra.mxu0 %v492
  %637 = vmatprep.subr.bf16.mxu0 0
  %638 = vmatpush1.bf16.msra.mxu0 %v491
  %639 = vmatprep.subr.bf16.mxu0 0
  %640 = vmatpush1.bf16.msra.mxu0 %v490
  %641 = vmatprep.subr.bf16.mxu0 0
  %642 = vmatpush1.bf16.msra.mxu0 %v489
  %643 = vmatprep.subr.bf16.mxu0 0
  %644 = vmatpush1.bf16.msra.mxu0 %v488
  %645 = vmatprep.subr.bf16.mxu0 0
  %646 = vmatpush1.bf16.msra.mxu0 %v487
  %647 = vmatprep.subr.bf16.mxu0 0
  %648 = vmatpush2.bf16.msra.mxu0 %v502
  %649 = vmatprep.subr.bf16.mxu0 0
  %650 = vmatpush2.bf16.msra.mxu0 %v501
  %651 = vmatprep.subr.bf16.mxu0 0
  %652 = vmatpush2.bf16.msra.mxu0 %v500
  %653 = vmatprep.subr.bf16.mxu0 0
  %654 = vmatpush2.bf16.msra.mxu0 %v499
  %655 = vmatprep.subr.bf16.mxu0 0
  %656 = vmatpush2.bf16.msra.mxu0 %v498
  %657 = vmatprep.subr.bf16.mxu0 0
  %658 = vmatpush2.bf16.msra.mxu0 %v497
  %659 = vmatprep.subr.bf16.mxu0 0
  %660 = vmatpush2.bf16.msra.mxu0 %v496
  %661 = vmatprep.subr.bf16.mxu0 0
  %662 = vmatpush2.bf16.msra.mxu0 %v495
  %663 = vmatprep.mubr.bf16.mxu0 %v182
  %664 = vmatmul.mubr.bf16.gmra.mxu0 %v181
  %v665 = vpop.f32.mrf.mxu0
  %v666 = vadd.f32 0.0, %v665
  %v667 = vpop.f32.mrf.mxu0
  %v668 = vpop.f32.mrf.mxu0
  %v669 = vpop.f32.mrf.mxu0
  %670 = vdwg.mxu0
  %671 = vmatprep.subr.bf16.mxu0 0
  %672 = vmatpush1.bf16.msra.mxu0 %v510
  %673 = vmatprep.subr.bf16.mxu0 0
  %674 = vmatpush1.bf16.msra.mxu0 %v509
  %675 = vmatprep.subr.bf16.mxu0 0
  %676 = vmatpush1.bf16.msra.mxu0 %v508
  %677 = vmatprep.subr.bf16.mxu0 0
  %678 = vmatpush1.bf16.msra.mxu0 %v507
  %679 = vmatprep.subr.bf16.mxu0 0
  %680 = vmatpush1.bf16.msra.mxu0 %v506
  %681 = vmatprep.subr.bf16.mxu0 0
  %682 = vmatpush1.bf16.msra.mxu0 %v505
  %683 = vmatprep.subr.bf16.mxu0 0
  %684 = vmatpush1.bf16.msra.mxu0 %v504
  %685 = vmatprep.subr.bf16.mxu0 0
  %686 = vmatpush1.bf16.msra.mxu0 %v503
  %687 = vmatprep.subr.bf16.mxu0 0
  %688 = vmatpush2.bf16.msra.mxu0 %v518
  %689 = vmatprep.subr.bf16.mxu0 0
  %690 = vmatpush2.bf16.msra.mxu0 %v517
  %691 = vmatprep.subr.bf16.mxu0 0
  %692 = vmatpush2.bf16.msra.mxu0 %v516
  %693 = vmatprep.subr.bf16.mxu0 0
  %694 = vmatpush2.bf16.msra.mxu0 %v515
  %695 = vmatprep.subr.bf16.mxu0 0
  %696 = vmatpush2.bf16.msra.mxu0 %v514
  %697 = vmatprep.subr.bf16.mxu0 0
  %698 = vmatpush2.bf16.msra.mxu0 %v513
  %699 = vmatprep.subr.bf16.mxu0 0
  %700 = vmatpush2.bf16.msra.mxu0 %v512
  %701 = vmatprep.subr.bf16.mxu0 0
  %702 = vmatpush2.bf16.msra.mxu0 %v511
  %703 = vmatprep.mubr.bf16.mxu0 %v184
  %704 = vmatmul.mubr.bf16.gmra.mxu0 %v183
  %v705 = vpop.f32.mrf.mxu0
  %v706 = vadd.f32 %v666, %v705
  %v707 = vpop.f32.mrf.mxu0
  %v708 = vpop.f32.mrf.mxu0
  %v709 = vpop.f32.mrf.mxu0
  %710 = vdwg.mxu0
  %711 = vmatprep.subr.bf16.mxu0 0
  %712 = vmatpush1.bf16.msra.mxu0 %v526
  %713 = vmatprep.subr.bf16.mxu0 0
  %714 = vmatpush1.bf16.msra.mxu0 %v525
  %715 = vmatprep.subr.bf16.mxu0 0
  %716 = vmatpush1.bf16.msra.mxu0 %v524
  %717 = vmatprep.subr.bf16.mxu0 0
  %718 = vmatpush1.bf16.msra.mxu0 %v523
  %719 = vmatprep.subr.bf16.mxu0 0
  %720 = vmatpush1.bf16.msra.mxu0 %v522
  %721 = vmatprep.subr.bf16.mxu0 0
  %722 = vmatpush1.bf16.msra.mxu0 %v521
  %723 = vmatprep.subr.bf16.mxu0 0
  %724 = vmatpush1.bf16.msra.mxu0 %v520
  %725 = vmatprep.subr.bf16.mxu0 0
  %726 = vmatpush1.bf16.msra.mxu0 %v519
  %727 = vmatprep.subr.bf16.mxu0 0
  %728 = vmatpush2.bf16.msra.mxu0 %v534
  %729 = vmatprep.subr.bf16.mxu0 0
  %730 = vmatpush2.bf16.msra.mxu0 %v533
  %731 = vmatprep.subr.bf16.mxu0 0
  %732 = vmatpush2.bf16.msra.mxu0 %v532
  %733 = vmatprep.subr.bf16.mxu0 0
  %734 = vmatpush2.bf16.msra.mxu0 %v531
  %735 = vmatprep.subr.bf16.mxu0 0
  %736 = vmatpush2.bf16.msra.mxu0 %v530
  %737 = vmatprep.subr.bf16.mxu0 0
  %738 = vmatpush2.bf16.msra.mxu0 %v529
  %739 = vmatprep.subr.bf16.mxu0 0
  %740 = vmatpush2.bf16.msra.mxu0 %v528
  %741 = vmatprep.subr.bf16.mxu0 0
  %742 = vmatpush2.bf16.msra.mxu0 %v527
  %743 = vmatprep.mubr.bf16.mxu0 %v186
  %744 = vmatmul.mubr.bf16.gmra.mxu0 %v185
  %v745 = vpop.f32.mrf.mxu0
  %v746 = vadd.f32 %v706, %v745
  %v747 = vpop.f32.mrf.mxu0
  %v748 = vpop.f32.mrf.mxu0
  %v749 = vpop.f32.mrf.mxu0
  %750 = vdwg.mxu0
  %751 = vmatprep.subr.bf16.mxu0 0
  %752 = vmatpush1.bf16.msra.mxu0 %v542
  %753 = vmatprep.subr.bf16.mxu0 0
  %754 = vmatpush1.bf16.msra.mxu0 %v541
  %755 = vmatprep.subr.bf16.mxu0 0
  %756 = vmatpush1.bf16.msra.mxu0 %v540
  %757 = vmatprep.subr.bf16.mxu0 0
  %758 = vmatpush1.bf16.msra.mxu0 %v539
  %759 = vmatprep.subr.bf16.mxu0 0
  %760 = vmatpush1.bf16.msra.mxu0 %v538
  %761 = vmatprep.subr.bf16.mxu0 0
  %762 = vmatpush1.bf16.msra.mxu0 %v537
  %763 = vmatprep.subr.bf16.mxu0 0
  %764 = vmatpush1.bf16.msra.mxu0 %v536
  %765 = vmatprep.subr.bf16.mxu0 0
  %766 = vmatpush1.bf16.msra.mxu0 %v535
  %767 = vmatprep.subr.bf16.mxu0 0
  %768 = vmatpush2.bf16.msra.mxu0 %v550
  %769 = vmatprep.subr.bf16.mxu0 0
  %770 = vmatpush2.bf16.msra.mxu0 %v549
  %771 = vmatprep.subr.bf16.mxu0 0
  %772 = vmatpush2.bf16.msra.mxu0 %v548
  %773 = vmatprep.subr.bf16.mxu0 0
  %774 = vmatpush2.bf16.msra.mxu0 %v547
  %775 = vmatprep.subr.bf16.mxu0 0
  %776 = vmatpush2.bf16.msra.mxu0 %v546
  %777 = vmatprep.subr.bf16.mxu0 0
  %778 = vmatpush2.bf16.msra.mxu0 %v545
  %779 = vmatprep.subr.bf16.mxu0 0
  %780 = vmatpush2.bf16.msra.mxu0 %v544
  %781 = vmatprep.subr.bf16.mxu0 0
  %782 = vmatpush2.bf16.msra.mxu0 %v543
  %783 = vmatprep.mubr.bf16.mxu0 %v188
  %784 = vmatmul.mubr.bf16.gmra.mxu0 %v187
  %v785 = vpop.f32.mrf.mxu0
  %v786 = vadd.f32 %v746, %v785
  %v787 = vpop.f32.mrf.mxu0
  %v788 = vpop.f32.mrf.mxu0
  %v789 = vpop.f32.mrf.mxu0
  %790 = vdwg.mxu0
  %791 = vmatprep.subr.bf16.mxu0 0
  %792 = vmatpush1.bf16.msra.mxu0 %v558
  %793 = vmatprep.subr.bf16.mxu0 0
  %794 = vmatpush1.bf16.msra.mxu0 %v557
  %795 = vmatprep.subr.bf16.mxu0 0
  %796 = vmatpush1.bf16.msra.mxu0 %v556
  %797 = vmatprep.subr.bf16.mxu0 0
  %798 = vmatpush1.bf16.msra.mxu0 %v555
  %799 = vmatprep.subr.bf16.mxu0 0
  %800 = vmatpush1.bf16.msra.mxu0 %v554
  %801 = vmatprep.subr.bf16.mxu0 0
  %802 = vmatpush1.bf16.msra.mxu0 %v553
  %803 = vmatprep.subr.bf16.mxu0 0
  %804 = vmatpush1.bf16.msra.mxu0 %v552
  %805 = vmatprep.subr.bf16.mxu0 0
  %806 = vmatpush1.bf16.msra.mxu0 %v551
  %807 = vmatprep.subr.bf16.mxu0 0
  %808 = vmatpush2.bf16.msra.mxu0 0
  %809 = vmatprep.subr.bf16.mxu0 0
  %810 = vmatpush2.bf16.msra.mxu0 0
  %811 = vmatprep.subr.bf16.mxu0 0
  %812 = vmatpush2.bf16.msra.mxu0 0
  %813 = vmatprep.subr.bf16.mxu0 0
  %814 = vmatpush2.bf16.msra.mxu0 0
  %815 = vmatprep.subr.bf16.mxu0 0
  %816 = vmatpush2.bf16.msra.mxu0 0
  %817 = vmatprep.subr.bf16.mxu0 0
  %818 = vmatpush2.bf16.msra.mxu0 0
  %819 = vmatprep.subr.bf16.mxu0 0
  %820 = vmatpush2.bf16.msra.mxu0 0
  %821 = vmatprep.subr.bf16.mxu0 0
  %822 = vmatpush2.bf16.msra.mxu0 0
  %823 = vmatprep.mubr.bf16.mxu0 0
  %824 = vmatmul.mubr.bf16.gmra.mxu0 %v189
  %v825 = vpop.f32.mrf.mxu0
  %v826 = vadd.f32 %v786, %v825
  %v827 = vpop.f32.mrf.mxu0
  %v828 = vpop.f32.mrf.mxu0
  %v829 = vpop.f32.mrf.mxu0
  %830 = vdwg.mxu0
  %v831 = vld [vmem:[%s2] sm:$0x1]
  %v833 = vlaneseq
  %v834 = vshrl.u32 %v833, 7
  %v835 = vsub.s32 0, %v834
  %v836 = vrot.slane %v831, %v835
  %v838 = vmul.f32 %v826, %v836
  %v839 = vld [vmem:[%s3] sm:$0x1]
  %v841 = vlaneseq
  %v842 = vshrl.u32 %v841, 7
  %v843 = vsub.s32 0, %v842
  %v844 = vrot.slane %v839, %v843
  %v846 = vadd.f32 %v838, %v844
  %v847 = vmax.f32 %v846, 0.0
  %v848 = vpack.c.bf16 %v847, %v847
  %849 = vst [vmem:[%s4] sm:$0xf] %v848
  // Predicated region
  $region18: #{deeplab_forward.13} parent=0 // pred_check
    _
  $region19: #{deeplab_forward.13} parent=0 // pred_check_branch
    %851 = sbr.rel (0) target = $region21
  $region20: #{deeplab_forward.13} parent=0 // pred_region
    _
  $region21: #{deeplab_forward.13} parent=0 // pred_fallthru
    _
  // Predicated region
  $region22: #{deeplab_forward.13} parent=0 // pred_check
    _
  $region23: #{deeplab_forward.13} parent=0 // pred_check_branch
    %853 = sbr.rel (0) target = $region25
  $region24: #{deeplab_forward.13} parent=0 // pred_region
    _
  $region25: #{deeplab_forward.13} parent=0 // pred_fallthru
    _

// kernel: deeplab_forward.14
$region0: #{deeplab_forward.14}
  #allocation0 [shape = 'u32[]', space=smem, size = 0x4, offset = 0x4, fixed_abs, tag = 'smem constant byte address 0x4 - core index']
  #allocation1 [shape = 'u32[144,128]{1,0:T(1,128)}', space=vmem, size = 0x12000, scoped, tag = 'internal scratch']
  %s0 = inlined_call_operand.vmem [shape: bf16[8,128], index: 0, kind: input, shape index: {}]
  %s1 = inlined_call_operand.vmem [shape: bf16[8,128], index: 1, kind: input, shape index: {}]
  %s2 = inlined_call_operand.vmem [shape: bf16[5,128,128], index: 2, kind: input, shape index: {}]
  %s3 = inlined_call_operand.vmem [shape: f32[5,1,128], index: 3, kind: input, shape index: {}]
  %s4 = inlined_call_operand.vmem [shape: f32[5,1,128], index: 4, kind: input, shape index: {}]
  %s5 = inlined_call_operand.vmem [shape: bf16[5,128,128], index: 5, kind: input, shape index: {}]
  %s6 = inlined_call_operand.vmem [shape: f32[1,128], index: 6, kind: input, shape index: {}]
  %s7 = inlined_call_operand.vmem [shape: f32[1,128], index: 7, kind: input, shape index: {}]
  %s8 = inlined_call_operand.vmem [shape: bf16[8,128], index: 8, kind: output, shape index: {}]
  %s9 = sld [smem:[#allocation0]]
  $region42: #{deeplab_forward.14} parent=0
    _
  %s11 = ssub.s32 1, %s9
  %s12 = scalar_select 0, %s11, %s9
  // Predicated region
  $region2: #{deeplab_forward.14} parent=0 // pred_check
    _
  $region3: #{deeplab_forward.14} parent=0 // pred_check_branch
    %14 = sbr.rel (0) target = $region5
  $region4: #{deeplab_forward.14} parent=0 // pred_region
    _
  $region5: #{deeplab_forward.14} parent=0 // pred_fallthru
    _
  // Predicated region
  $region6: #{deeplab_forward.14} parent=0 // pred_check
    _
  $region7: #{deeplab_forward.14} parent=0 // pred_check_branch
    %16 = sbr.rel (0) target = $region9
  $region8: #{deeplab_forward.14} parent=0 // pred_region
    _
  $region9: #{deeplab_forward.14} parent=0 // pred_fallthru
    _
  // Predicated region
  $region10: #{deeplab_forward.14} parent=0 // pred_check
    _
  $region11: #{deeplab_forward.14} parent=0 // pred_check_branch
    %18 = sbr.rel (0) target = $region13
  $region12: #{deeplab_forward.14} parent=0 // pred_region
    _
  $region13: #{deeplab_forward.14} parent=0 // pred_fallthru
    _
  // Predicated region
  $region14: #{deeplab_forward.14} parent=0 // pred_check
    _
  $region15: #{deeplab_forward.14} parent=0 // pred_check_branch
    %20 = sbr.rel (0) target = $region17
  $region16: #{deeplab_forward.14} parent=0 // pred_region
    _
  $region17: #{deeplab_forward.14} parent=0 // pred_fallthru
    _
  // Predicated region
  $region18: #{deeplab_forward.14} parent=0 // pred_check
    _
  $region19: #{deeplab_forward.14} parent=0 // pred_check_branch
    %22 = sbr.rel (0) target = $region21
  $region20: #{deeplab_forward.14} parent=0 // pred_region
    _
  $region21: #{deeplab_forward.14} parent=0 // pred_fallthru
    _
  // Predicated region
  $region22: #{deeplab_forward.14} parent=0 // pred_check
    _
  $region23: #{deeplab_forward.14} parent=0 // pred_check_branch
    %24 = sbr.rel (0) target = $region25
  $region24: #{deeplab_forward.14} parent=0 // pred_region
    _
  $region25: #{deeplab_forward.14} parent=0 // pred_fallthru
    _
  // Predicated region
  $region26: #{deeplab_forward.14} parent=0 // pred_check
    _
  $region27: #{deeplab_forward.14} parent=0 // pred_check_branch
    %26 = sbr.rel (0) target = $region29
  $region28: #{deeplab_forward.14} parent=0 // pred_region
    _
  $region29: #{deeplab_forward.14} parent=0 // pred_fallthru
    _
  // Predicated region
  $region30: #{deeplab_forward.14} parent=0 // pred_check
    _
  $region31: #{deeplab_forward.14} parent=0 // pred_check_branch
    %28 = sbr.rel (0) target = $region33
  $region32: #{deeplab_forward.14} parent=0 // pred_region
    _
  $region33: #{deeplab_forward.14} parent=0 // pred_fallthru
    _
  %v30 = vld [vmem:[%s0] sm:$0xf]
  %v31 = vld [vmem:[%s1] sm:$0xf]
  %v32 = vld [vmem:[%s2] sm:$0xf]
  %v33 = vld [vmem:[%s2 + $0x4] sm:$0xf]
  %v34 = vld [vmem:[%s2 + $0x8] sm:$0xf]
  %v35 = vld [vmem:[%s2 + $0xc] sm:$0xf]
  %v36 = vld [vmem:[%s2 + $0x10] sm:$0xf]
  %v37 = vld [vmem:[%s2 + $0x14] sm:$0xf]
  %v38 = vld [vmem:[%s2 + $0x18] sm:$0xf]
  %v39 = vld [vmem:[%s2 + $0x1c] sm:$0xf]
  %v40 = vld [vmem:[%s2 + $0x20] sm:$0xf]
  %v41 = vld [vmem:[%s2 + $0x24] sm:$0xf]
  %v42 = vld [vmem:[%s2 + $0x28] sm:$0xf]
  %v43 = vld [vmem:[%s2 + $0x2c] sm:$0xf]
  %v44 = vld [vmem:[%s2 + $0x30] sm:$0xf]
  %v45 = vld [vmem:[%s2 + $0x34] sm:$0xf]
  %v46 = vld [vmem:[%s2 + $0x38] sm:$0xf]
  %v47 = vld [vmem:[%s2 + $0x3c] sm:$0xf]
  %v64 = vunpack.c.l.b16 %v32
  %v65 = vunpack.c.l.b16 %v33
  %v66 = vunpack.c.l.b16 %v34
  %v67 = vunpack.c.l.b16 %v35
  %v68 = vunpack.c.l.b16 %v36
  %v69 = vunpack.c.l.b16 %v37
  %v70 = vunpack.c.l.b16 %v38
  %v71 = vunpack.c.l.b16 %v39
  %v72 = vunpack.c.l.b16 %v40
  %v73 = vunpack.c.l.b16 %v41
  %v74 = vunpack.c.l.b16 %v42
  %v75 = vunpack.c.l.b16 %v43
  %v76 = vunpack.c.l.b16 %v44
  %v77 = vunpack.c.l.b16 %v45
  %v78 = vunpack.c.l.b16 %v46
  %v79 = vunpack.c.l.b16 %v47
  %v80 = vpack.c.b16 %v65, %v64
  %v81 = vpack.c.b16 %v67, %v66
  %v82 = vpack.c.b16 %v69, %v68
  %v83 = vpack.c.b16 %v71, %v70
  %v84 = vpack.c.b16 %v73, %v72
  %v85 = vpack.c.b16 %v75, %v74
  %v86 = vpack.c.b16 %v77, %v76
  %v87 = vpack.c.b16 %v79, %v78
  %96 = vmatprep.subr.bf16.mxu0 0
  %97 = vmatpush1.bf16.msra.mxu0 %v87
  %98 = vmatprep.subr.bf16.mxu0 0
  %99 = vmatpush1.bf16.msra.mxu0 %v86
  %100 = vmatprep.subr.bf16.mxu0 0
  %101 = vmatpush1.bf16.msra.mxu0 %v85
  %102 = vmatprep.subr.bf16.mxu0 0
  %103 = vmatpush1.bf16.msra.mxu0 %v84
  %104 = vmatprep.subr.bf16.mxu0 0
  %105 = vmatpush1.bf16.msra.mxu0 %v83
  %106 = vmatprep.subr.bf16.mxu0 0
  %107 = vmatpush1.bf16.msra.mxu0 %v82
  %108 = vmatprep.subr.bf16.mxu0 0
  %109 = vmatpush1.bf16.msra.mxu0 %v81
  %110 = vmatprep.subr.bf16.mxu0 0
  %111 = vmatpush1.bf16.msra.mxu0 %v80
  %112 = vmatprep.subr.bf16.mxu0 0
  %113 = vmatpush2.bf16.msra.mxu0 0
  %114 = vmatprep.subr.bf16.mxu0 0
  %115 = vmatpush2.bf16.msra.mxu0 0
  %116 = vmatprep.subr.bf16.mxu0 0
  %117 = vmatpush2.bf16.msra.mxu0 0
  %118 = vmatprep.subr.bf16.mxu0 0
  %119 = vmatpush2.bf16.msra.mxu0 0
  %120 = vmatprep.subr.bf16.mxu0 0
  %121 = vmatpush2.bf16.msra.mxu0 0
  %122 = vmatprep.subr.bf16.mxu0 0
  %123 = vmatpush2.bf16.msra.mxu0 0
  %124 = vmatprep.subr.bf16.mxu0 0
  %125 = vmatpush2.bf16.msra.mxu0 0
  %126 = vmatprep.subr.bf16.mxu0 0
  %127 = vmatpush2.bf16.msra.mxu0 0
  %128 = vmatprep.mubr.bf16.mxu0 0
  %129 = vmatmul.mubr.bf16.gmra.mxu0 %v30
  %v130 = vpop.f32.mrf.mxu0
  %v131 = vadd.f32 0.0, %v130
  %v132 = vpop.f32.mrf.mxu0
  %v133 = vpop.f32.mrf.mxu0
  %v134 = vpop.f32.mrf.mxu0
  %135 = vdwg.mxu0
  %v136 = vld [vmem:[%s3] sm:$0x1]
  %v138 = vlaneseq
  %v139 = vshrl.u32 %v138, 7
  %v140 = vsub.s32 0, %v139
  %v141 = vrot.slane %v136, %v140
  %v143 = vmul.f32 %v131, %v141
  %v144 = vld [vmem:[%s4] sm:$0x1]
  %v146 = vlaneseq
  %v147 = vshrl.u32 %v146, 7
  %v148 = vsub.s32 0, %v147
  %v149 = vrot.slane %v144, %v148
  %v151 = vadd.f32 %v143, %v149
  %v152 = vmax.f32 %v151, 0.0
  %v153 = vpack.c.bf16 %v152, %v152
  %v154 = vld [vmem:[%s5] sm:$0xf]
  %v155 = vld [vmem:[%s5 + $0x4] sm:$0xf]
  %v156 = vld [vmem:[%s5 + $0x8] sm:$0xf]
  %v157 = vld [vmem:[%s5 + $0xc] sm:$0xf]
  %v158 = vld [vmem:[%s5 + $0x10] sm:$0xf]
  %v159 = vld [vmem:[%s5 + $0x14] sm:$0xf]
  %v160 = vld [vmem:[%s5 + $0x18] sm:$0xf]
  %v161 = vld [vmem:[%s5 + $0x1c] sm:$0xf]
  %v162 = vld [vmem:[%s5 + $0x20] sm:$0xf]
  %v163 = vld [vmem:[%s5 + $0x24] sm:$0xf]
  %v164 = vld [vmem:[%s5 + $0x28] sm:$0xf]
  %v165 = vld [vmem:[%s5 + $0x2c] sm:$0xf]
  %v166 = vld [vmem:[%s5 + $0x30] sm:$0xf]
  %v167 = vld [vmem:[%s5 + $0x34] sm:$0xf]
  %v168 = vld [vmem:[%s5 + $0x38] sm:$0xf]
  %v169 = vld [vmem:[%s5 + $0x3c] sm:$0xf]
  %s170 = scalar_lea.vmem %s2, 64
  %v171 = vld [vmem:[%s170] sm:$0xf]
  %v172 = vld [vmem:[%s170 + $0x4] sm:$0xf]
  %v173 = vld [vmem:[%s170 + $0x8] sm:$0xf]
  %v174 = vld [vmem:[%s170 + $0xc] sm:$0xf]
  %v175 = vld [vmem:[%s170 + $0x10] sm:$0xf]
  %v176 = vld [vmem:[%s170 + $0x14] sm:$0xf]
  %v177 = vld [vmem:[%s170 + $0x18] sm:$0xf]
  %v178 = vld [vmem:[%s170 + $0x1c] sm:$0xf]
  %v179 = vld [vmem:[%s170 + $0x20] sm:$0xf]
  %v180 = vld [vmem:[%s170 + $0x24] sm:$0xf]
  %v181 = vld [vmem:[%s170 + $0x28] sm:$0xf]
  %v182 = vld [vmem:[%s170 + $0x2c] sm:$0xf]
  %v183 = vld [vmem:[%s170 + $0x30] sm:$0xf]
  %v184 = vld [vmem:[%s170 + $0x34] sm:$0xf]
  %v185 = vld [vmem:[%s170 + $0x38] sm:$0xf]
  %v186 = vld [vmem:[%s170 + $0x3c] sm:$0xf]
  %v203 = vunpack.c.l.b16 %v171
  %v204 = vunpack.c.l.b16 %v172
  %v205 = vunpack.c.l.b16 %v173
  %v206 = vunpack.c.l.b16 %v174
  %v207 = vunpack.c.l.b16 %v175
  %v208 = vunpack.c.l.b16 %v176
  %v209 = vunpack.c.l.b16 %v177
  %v210 = vunpack.c.l.b16 %v178
  %v211 = vunpack.c.l.b16 %v179
  %v212 = vunpack.c.l.b16 %v180
  %v213 = vunpack.c.l.b16 %v181
  %v214 = vunpack.c.l.b16 %v182
  %v215 = vunpack.c.l.b16 %v183
  %v216 = vunpack.c.l.b16 %v184
  %v217 = vunpack.c.l.b16 %v185
  %v218 = vunpack.c.l.b16 %v186
  %v219 = vpack.c.b16 %v204, %v203
  %v220 = vpack.c.b16 %v206, %v205
  %v221 = vpack.c.b16 %v208, %v207
  %v222 = vpack.c.b16 %v210, %v209
  %v223 = vpack.c.b16 %v212, %v211
  %v224 = vpack.c.b16 %v214, %v213
  %v225 = vpack.c.b16 %v216, %v215
  %v226 = vpack.c.b16 %v218, %v217
  %235 = vmatprep.subr.bf16.mxu0 0
  %236 = vmatpush1.bf16.msra.mxu0 %v226
  %237 = vmatprep.subr.bf16.mxu0 0
  %238 = vmatpush1.bf16.msra.mxu0 %v225
  %239 = vmatprep.subr.bf16.mxu0 0
  %240 = vmatpush1.bf16.msra.mxu0 %v224
  %241 = vmatprep.subr.bf16.mxu0 0
  %242 = vmatpush1.bf16.msra.mxu0 %v223
  %243 = vmatprep.subr.bf16.mxu0 0
  %244 = vmatpush1.bf16.msra.mxu0 %v222
  %245 = vmatprep.subr.bf16.mxu0 0
  %246 = vmatpush1.bf16.msra.mxu0 %v221
  %247 = vmatprep.subr.bf16.mxu0 0
  %248 = vmatpush1.bf16.msra.mxu0 %v220
  %249 = vmatprep.subr.bf16.mxu0 0
  %250 = vmatpush1.bf16.msra.mxu0 %v219
  %251 = vmatprep.subr.bf16.mxu0 0
  %252 = vmatpush2.bf16.msra.mxu0 0
  %253 = vmatprep.subr.bf16.mxu0 0
  %254 = vmatpush2.bf16.msra.mxu0 0
  %255 = vmatprep.subr.bf16.mxu0 0
  %256 = vmatpush2.bf16.msra.mxu0 0
  %257 = vmatprep.subr.bf16.mxu0 0
  %258 = vmatpush2.bf16.msra.mxu0 0
  %259 = vmatprep.subr.bf16.mxu0 0
  %260 = vmatpush2.bf16.msra.mxu0 0
  %261 = vmatprep.subr.bf16.mxu0 0
  %262 = vmatpush2.bf16.msra.mxu0 0
  %263 = vmatprep.subr.bf16.mxu0 0
  %264 = vmatpush2.bf16.msra.mxu0 0
  %265 = vmatprep.subr.bf16.mxu0 0
  %266 = vmatpush2.bf16.msra.mxu0 0
  %267 = vmatprep.mubr.bf16.mxu0 0
  %268 = vmatmul.mubr.bf16.gmra.mxu0 %v30
  %v269 = vpop.f32.mrf.mxu0
  %v270 = vadd.f32 0.0, %v269
  %v271 = vpop.f32.mrf.mxu0
  %v272 = vpop.f32.mrf.mxu0
  %v273 = vpop.f32.mrf.mxu0
  %274 = vdwg.mxu0
  %s275 = scalar_lea.vmem %s3, 1
  %v276 = vld [vmem:[%s275] sm:$0x1]
  %v278 = vlaneseq
  %v279 = vshrl.u32 %v278, 7
  %v280 = vsub.s32 0, %v279
  %v281 = vrot.slane %v276, %v280
  %v283 = vmul.f32 %v270, %v281
  %s284 = scalar_lea.vmem %s4, 1
  %v285 = vld [vmem:[%s284] sm:$0x1]
  %v287 = vlaneseq
  %v288 = vshrl.u32 %v287, 7
  %v289 = vsub.s32 0, %v288
  %v290 = vrot.slane %v285, %v289
  %v292 = vadd.f32 %v283, %v290
  %v293 = vmax.f32 %v292, 0.0
  %v294 = vpack.c.bf16 %v293, %v293
  %s295 = scalar_lea.vmem %s5, 64
  %v296 = vld [vmem:[%s295] sm:$0xf]
  %v297 = vld [vmem:[%s295 + $0x4] sm:$0xf]
  %v298 = vld [vmem:[%s295 + $0x8] sm:$0xf]
  %v299 = vld [vmem:[%s295 + $0xc] sm:$0xf]
  %v300 = vld [vmem:[%s295 + $0x10] sm:$0xf]
  %v301 = vld [vmem:[%s295 + $0x14] sm:$0xf]
  %v302 = vld [vmem:[%s295 + $0x18] sm:$0xf]
  %v303 = vld [vmem:[%s295 + $0x1c] sm:$0xf]
  %v304 = vld [vmem:[%s295 + $0x20] sm:$0xf]
  %v305 = vld [vmem:[%s295 + $0x24] sm:$0xf]
  %v306 = vld [vmem:[%s295 + $0x28] sm:$0xf]
  %v307 = vld [vmem:[%s295 + $0x2c] sm:$0xf]
  %v308 = vld [vmem:[%s295 + $0x30] sm:$0xf]
  %v309 = vld [vmem:[%s295 + $0x34] sm:$0xf]
  %v310 = vld [vmem:[%s295 + $0x38] sm:$0xf]
  %v311 = vld [vmem:[%s295 + $0x3c] sm:$0xf]
  %v328 = vunpack.c.l.b16 %v296
  %v329 = vunpack.c.l.b16 %v297
  %v330 = vunpack.c.l.b16 %v298
  %v331 = vunpack.c.l.b16 %v299
  %v332 = vunpack.c.l.b16 %v300
  %v333 = vunpack.c.l.b16 %v301
  %v334 = vunpack.c.l.b16 %v302
  %v335 = vunpack.c.l.b16 %v303
  %v336 = vunpack.c.l.b16 %v304
  %v337 = vunpack.c.l.b16 %v305
  %v338 = vunpack.c.l.b16 %v306
  %v339 = vunpack.c.l.b16 %v307
  %v340 = vunpack.c.l.b16 %v308
  %v341 = vunpack.c.l.b16 %v309
  %v342 = vunpack.c.l.b16 %v310
  %v343 = vunpack.c.l.b16 %v311
  %v344 = vpack.c.b16 %v329, %v328
  %v345 = vpack.c.b16 %v331, %v330
  %v346 = vpack.c.b16 %v333, %v332
  %v347 = vpack.c.b16 %v335, %v334
  %v348 = vpack.c.b16 %v337, %v336
  %v349 = vpack.c.b16 %v339, %v338
  %v350 = vpack.c.b16 %v341, %v340
  %v351 = vpack.c.b16 %v343, %v342
  %360 = vmatprep.subr.bf16.mxu0 0
  %361 = vmatpush1.bf16.msra.mxu0 %v351
  %362 = vmatprep.subr.bf16.mxu0 0
  %363 = vmatpush1.bf16.msra.mxu0 %v350
  %364 = vmatprep.subr.bf16.mxu0 0
  %365 = vmatpush1.bf16.msra.mxu0 %v349
  %366 = vmatprep.subr.bf16.mxu0 0
  %367 = vmatpush1.bf16.msra.mxu0 %v348
  %368 = vmatprep.subr.bf16.mxu0 0
  %369 = vmatpush1.bf16.msra.mxu0 %v347
  %370 = vmatprep.subr.bf16.mxu0 0
  %371 = vmatpush1.bf16.msra.mxu0 %v346
  %372 = vmatprep.subr.bf16.mxu0 0
  %373 = vmatpush1.bf16.msra.mxu0 %v345
  %374 = vmatprep.subr.bf16.mxu0 0
  %375 = vmatpush1.bf16.msra.mxu0 %v344
  %376 = vmatprep.subr.bf16.mxu0 0
  %377 = vmatpush2.bf16.msra.mxu0 0
  %378 = vmatprep.subr.bf16.mxu0 0
  %379 = vmatpush2.bf16.msra.mxu0 0
  %380 = vmatprep.subr.bf16.mxu0 0
  %381 = vmatpush2.bf16.msra.mxu0 0
  %382 = vmatprep.subr.bf16.mxu0 0
  %383 = vmatpush2.bf16.msra.mxu0 0
  %384 = vmatprep.subr.bf16.mxu0 0
  %385 = vmatpush2.bf16.msra.mxu0 0
  %386 = vmatprep.subr.bf16.mxu0 0
  %387 = vmatpush2.bf16.msra.mxu0 0
  %388 = vmatprep.subr.bf16.mxu0 0
  %389 = vmatpush2.bf16.msra.mxu0 0
  %390 = vmatprep.subr.bf16.mxu0 0
  %391 = vmatpush2.bf16.msra.mxu0 0
  %392 = vmatprep.mubr.bf16.mxu0 0
  %393 = vmatmul.mubr.bf16.gmra.mxu0 %v294
  %v394 = vpop.f32.mrf.mxu0
  %v395 = vadd.f32 0.0, %v394
  %v396 = vpop.f32.mrf.mxu0
  %v397 = vpop.f32.mrf.mxu0
  %v398 = vpop.f32.mrf.mxu0
  %399 = vdwg.mxu0
  %v416 = vunpack.c.l.b16 %v154
  %v417 = vunpack.c.l.b16 %v155
  %v418 = vunpack.c.l.b16 %v156
  %v419 = vunpack.c.l.b16 %v157
  %v420 = vunpack.c.l.b16 %v158
  %v421 = vunpack.c.l.b16 %v159
  %v422 = vunpack.c.l.b16 %v160
  %v423 = vunpack.c.l.b16 %v161
  %v424 = vunpack.c.l.b16 %v162
  %v425 = vunpack.c.l.b16 %v163
  %v426 = vunpack.c.l.b16 %v164
  %v427 = vunpack.c.l.b16 %v165
  %v428 = vunpack.c.l.b16 %v166
  %v429 = vunpack.c.l.b16 %v167
  %v430 = vunpack.c.l.b16 %v168
  %v431 = vunpack.c.l.b16 %v169
  %v432 = vpack.c.b16 %v417, %v416
  %v433 = vpack.c.b16 %v419, %v418
  %v434 = vpack.c.b16 %v421, %v420
  %v435 = vpack.c.b16 %v423, %v422
  %v436 = vpack.c.b16 %v425, %v424
  %v437 = vpack.c.b16 %v427, %v426
  %v438 = vpack.c.b16 %v429, %v428
  %v439 = vpack.c.b16 %v431, %v430
  %448 = vmatprep.subr.bf16.mxu0 0
  %449 = vmatpush1.bf16.msra.mxu0 %v439
  %450 = vmatprep.subr.bf16.mxu0 0
  %451 = vmatpush1.bf16.msra.mxu0 %v438
  %452 = vmatprep.subr.bf16.mxu0 0
  %453 = vmatpush1.bf16.msra.mxu0 %v437
  %454 = vmatprep.subr.bf16.mxu0 0
  %455 = vmatpush1.bf16.msra.mxu0 %v436
  %456 = vmatprep.subr.bf16.mxu0 0
  %457 = vmatpush1.bf16.msra.mxu0 %v435
  %458 = vmatprep.subr.bf16.mxu0 0
  %459 = vmatpush1.bf16.msra.mxu0 %v434
  %460 = vmatprep.subr.bf16.mxu0 0
  %461 = vmatpush1.bf16.msra.mxu0 %v433
  %462 = vmatprep.subr.bf16.mxu0 0
  %463 = vmatpush1.bf16.msra.mxu0 %v432
  %464 = vmatprep.subr.bf16.mxu0 0
  %465 = vmatpush2.bf16.msra.mxu0 0
  %466 = vmatprep.subr.bf16.mxu0 0
  %467 = vmatpush2.bf16.msra.mxu0 0
  %468 = vmatprep.subr.bf16.mxu0 0
  %469 = vmatpush2.bf16.msra.mxu0 0
  %470 = vmatprep.subr.bf16.mxu0 0
  %471 = vmatpush2.bf16.msra.mxu0 0
  %472 = vmatprep.subr.bf16.mxu0 0
  %473 = vmatpush2.bf16.msra.mxu0 0
  %474 = vmatprep.subr.bf16.mxu0 0
  %475 = vmatpush2.bf16.msra.mxu0 0
  %476 = vmatprep.subr.bf16.mxu0 0
  %477 = vmatpush2.bf16.msra.mxu0 0
  %478 = vmatprep.subr.bf16.mxu0 0
  %479 = vmatpush2.bf16.msra.mxu0 0
  %480 = vmatprep.mubr.bf16.mxu0 0
  %481 = vmatmul.mubr.bf16.gmra.mxu0 %v153
  %v482 = vpop.f32.mrf.mxu0
  %v483 = vadd.f32 %v395, %v482
  %v484 = vpop.f32.mrf.mxu0
  %v485 = vpop.f32.mrf.mxu0
  %v486 = vpop.f32.mrf.mxu0
  %487 = vdwg.mxu0
  %s488 = scalar_lea.vmem %s2, 128
  %v489 = vld [vmem:[%s488] sm:$0xf]
  %v490 = vld [vmem:[%s488 + $0x4] sm:$0xf]
  %v491 = vld [vmem:[%s488 + $0x8] sm:$0xf]
  %v492 = vld [vmem:[%s488 + $0xc] sm:$0xf]
  %v493 = vld [vmem:[%s488 + $0x10] sm:$0xf]
  %v494 = vld [vmem:[%s488 + $0x14] sm:$0xf]
  %v495 = vld [vmem:[%s488 + $0x18] sm:$0xf]
  %v496 = vld [vmem:[%s488 + $0x1c] sm:$0xf]
  %v497 = vld [vmem:[%s488 + $0x20] sm:$0xf]
  %v498 = vld [vmem:[%s488 + $0x24] sm:$0xf]
  %v499 = vld [vmem:[%s488 + $0x28] sm:$0xf]
  %v500 = vld [vmem:[%s488 + $0x2c] sm:$0xf]
  %v501 = vld [vmem:[%s488 + $0x30] sm:$0xf]
  %v502 = vld [vmem:[%s488 + $0x34] sm:$0xf]
  %v503 = vld [vmem:[%s488 + $0x38] sm:$0xf]
  %v504 = vld [vmem:[%s488 + $0x3c] sm:$0xf]
  %v521 = vunpack.c.l.b16 %v489
  %v522 = vunpack.c.l.b16 %v490
  %v523 = vunpack.c.l.b16 %v491
  %v524 = vunpack.c.l.b16 %v492
  %v525 = vunpack.c.l.b16 %v493
  %v526 = vunpack.c.l.b16 %v494
  %v527 = vunpack.c.l.b16 %v495
  %v528 = vunpack.c.l.b16 %v496
  %v529 = vunpack.c.l.b16 %v497
  %v530 = vunpack.c.l.b16 %v498
  %v531 = vunpack.c.l.b16 %v499
  %v532 = vunpack.c.l.b16 %v500
  %v533 = vunpack.c.l.b16 %v501
  %v534 = vunpack.c.l.b16 %v502
  %v535 = vunpack.c.l.b16 %v503
  %v536 = vunpack.c.l.b16 %v504
  %v537 = vpack.c.b16 %v522, %v521
  %v538 = vpack.c.b16 %v524, %v523
  %v539 = vpack.c.b16 %v526, %v525
  %v540 = vpack.c.b16 %v528, %v527
  %v541 = vpack.c.b16 %v530, %v529
  %v542 = vpack.c.b16 %v532, %v531
  %v543 = vpack.c.b16 %v534, %v533
  %v544 = vpack.c.b16 %v536, %v535
  %553 = vmatprep.subr.bf16.mxu0 0
  %554 = vmatpush1.bf16.msra.mxu0 %v544
  %555 = vmatprep.subr.bf16.mxu0 0
  %556 = vmatpush1.bf16.msra.mxu0 %v543
  %557 = vmatprep.subr.bf16.mxu0 0
  %558 = vmatpush1.bf16.msra.mxu0 %v542
  %559 = vmatprep.subr.bf16.mxu0 0
  %560 = vmatpush1.bf16.msra.mxu0 %v541
  %561 = vmatprep.subr.bf16.mxu0 0
  %562 = vmatpush1.bf16.msra.mxu0 %v540
  %563 = vmatprep.subr.bf16.mxu0 0
  %564 = vmatpush1.bf16.msra.mxu0 %v539
  %565 = vmatprep.subr.bf16.mxu0 0
  %566 = vmatpush1.bf16.msra.mxu0 %v538
  %567 = vmatprep.subr.bf16.mxu0 0
  %568 = vmatpush1.bf16.msra.mxu0 %v537
  %569 = vmatprep.subr.bf16.mxu0 0
  %570 = vmatpush2.bf16.msra.mxu0 0
  %571 = vmatprep.subr.bf16.mxu0 0
  %572 = vmatpush2.bf16.msra.mxu0 0
  %573 = vmatprep.subr.bf16.mxu0 0
  %574 = vmatpush2.bf16.msra.mxu0 0
  %575 = vmatprep.subr.bf16.mxu0 0
  %576 = vmatpush2.bf16.msra.mxu0 0
  %577 = vmatprep.subr.bf16.mxu0 0
  %578 = vmatpush2.bf16.msra.mxu0 0
  %579 = vmatprep.subr.bf16.mxu0 0
  %580 = vmatpush2.bf16.msra.mxu0 0
  %581 = vmatprep.subr.bf16.mxu0 0
  %582 = vmatpush2.bf16.msra.mxu0 0
  %583 = vmatprep.subr.bf16.mxu0 0
  %584 = vmatpush2.bf16.msra.mxu0 0
  %585 = vmatprep.mubr.bf16.mxu0 0
  %586 = vmatmul.mubr.bf16.gmra.mxu0 %v30
  %v587 = vpop.f32.mrf.mxu0
  %v588 = vadd.f32 0.0, %v587
  %v589 = vpop.f32.mrf.mxu0
  %v590 = vpop.f32.mrf.mxu0
  %v591 = vpop.f32.mrf.mxu0
  %592 = vdwg.mxu0
  %s593 = scalar_lea.vmem %s3, 2
  %v594 = vld [vmem:[%s593] sm:$0x1]
  %v596 = vlaneseq
  %v597 = vshrl.u32 %v596, 7
  %v598 = vsub.s32 0, %v597
  %v599 = vrot.slane %v594, %v598
  %v601 = vmul.f32 %v588, %v599
  %s602 = scalar_lea.vmem %s4, 2
  %v603 = vld [vmem:[%s602] sm:$0x1]
  %v605 = vlaneseq
  %v606 = vshrl.u32 %v605, 7
  %v607 = vsub.s32 0, %v606
  %v608 = vrot.slane %v603, %v607
  %v610 = vadd.f32 %v601, %v608
  %v611 = vmax.f32 %v610, 0.0
  %v612 = vpack.c.bf16 %v611, %v611
  %s613 = scalar_lea.vmem %s5, 128
  %v614 = vld [vmem:[%s613] sm:$0xf]
  %v615 = vld [vmem:[%s613 + $0x4] sm:$0xf]
  %v616 = vld [vmem:[%s613 + $0x8] sm:$0xf]
  %v617 = vld [vmem:[%s613 + $0xc] sm:$0xf]
  %v618 = vld [vmem:[%s613 + $0x10] sm:$0xf]
  %v619 = vld [vmem:[%s613 + $0x14] sm:$0xf]
  %v620 = vld [vmem:[%s613 + $0x18] sm:$0xf]
  %v621 = vld [vmem:[%s613 + $0x1c] sm:$0xf]
  %v622 = vld [vmem:[%s613 + $0x20] sm:$0xf]
  %v623 = vld [vmem:[%s613 + $0x24] sm:$0xf]
  %v624 = vld [vmem:[%s613 + $0x28] sm:$0xf]
  %v625 = vld [vmem:[%s613 + $0x2c] sm:$0xf]
  %v626 = vld [vmem:[%s613 + $0x30] sm:$0xf]
  %v627 = vld [vmem:[%s613 + $0x34] sm:$0xf]
  %v628 = vld [vmem:[%s613 + $0x38] sm:$0xf]
  %v629 = vld [vmem:[%s613 + $0x3c] sm:$0xf]
  %v646 = vunpack.c.l.b16 %v614
  %v647 = vunpack.c.l.b16 %v615
  %v648 = vunpack.c.l.b16 %v616
  %v649 = vunpack.c.l.b16 %v617
  %v650 = vunpack.c.l.b16 %v618
  %v651 = vunpack.c.l.b16 %v619
  %v652 = vunpack.c.l.b16 %v620
  %v653 = vunpack.c.l.b16 %v621
  %v654 = vunpack.c.l.b16 %v622
  %v655 = vunpack.c.l.b16 %v623
  %v656 = vunpack.c.l.b16 %v624
  %v657 = vunpack.c.l.b16 %v625
  %v658 = vunpack.c.l.b16 %v626
  %v659 = vunpack.c.l.b16 %v627
  %v660 = vunpack.c.l.b16 %v628
  %v661 = vunpack.c.l.b16 %v629
  %v662 = vpack.c.b16 %v647, %v646
  %v663 = vpack.c.b16 %v649, %v648
  %v664 = vpack.c.b16 %v651, %v650
  %v665 = vpack.c.b16 %v653, %v652
  %v666 = vpack.c.b16 %v655, %v654
  %v667 = vpack.c.b16 %v657, %v656
  %v668 = vpack.c.b16 %v659, %v658
  %v669 = vpack.c.b16 %v661, %v660
  %678 = vmatprep.subr.bf16.mxu0 0
  %679 = vmatpush1.bf16.msra.mxu0 %v669
  %680 = vmatprep.subr.bf16.mxu0 0
  %681 = vmatpush1.bf16.msra.mxu0 %v668
  %682 = vmatprep.subr.bf16.mxu0 0
  %683 = vmatpush1.bf16.msra.mxu0 %v667
  %684 = vmatprep.subr.bf16.mxu0 0
  %685 = vmatpush1.bf16.msra.mxu0 %v666
  %686 = vmatprep.subr.bf16.mxu0 0
  %687 = vmatpush1.bf16.msra.mxu0 %v665
  %688 = vmatprep.subr.bf16.mxu0 0
  %689 = vmatpush1.bf16.msra.mxu0 %v664
  %690 = vmatprep.subr.bf16.mxu0 0
  %691 = vmatpush1.bf16.msra.mxu0 %v663
  %692 = vmatprep.subr.bf16.mxu0 0
  %693 = vmatpush1.bf16.msra.mxu0 %v662
  %694 = vmatprep.subr.bf16.mxu0 0
  %695 = vmatpush2.bf16.msra.mxu0 0
  %696 = vmatprep.subr.bf16.mxu0 0
  %697 = vmatpush2.bf16.msra.mxu0 0
  %698 = vmatprep.subr.bf16.mxu0 0
  %699 = vmatpush2.bf16.msra.mxu0 0
  %700 = vmatprep.subr.bf16.mxu0 0
  %701 = vmatpush2.bf16.msra.mxu0 0
  %702 = vmatprep.subr.bf16.mxu0 0
  %703 = vmatpush2.bf16.msra.mxu0 0
  %704 = vmatprep.subr.bf16.mxu0 0
  %705 = vmatpush2.bf16.msra.mxu0 0
  %706 = vmatprep.subr.bf16.mxu0 0
  %707 = vmatpush2.bf16.msra.mxu0 0
  %708 = vmatprep.subr.bf16.mxu0 0
  %709 = vmatpush2.bf16.msra.mxu0 0
  %710 = vmatprep.mubr.bf16.mxu0 0
  %711 = vmatmul.mubr.bf16.gmra.mxu0 %v612
  %v712 = vpop.f32.mrf.mxu0
  %v713 = vadd.f32 0.0, %v712
  %v714 = vpop.f32.mrf.mxu0
  %v715 = vpop.f32.mrf.mxu0
  %v716 = vpop.f32.mrf.mxu0
  %717 = vdwg.mxu0
  %v718 = vadd.f32 %v483, %v713
  %s719 = scalar_lea.vmem %s2, 192
  %v720 = vld [vmem:[%s719] sm:$0xf]
  %v721 = vld [vmem:[%s719 + $0x4] sm:$0xf]
  %v722 = vld [vmem:[%s719 + $0x8] sm:$0xf]
  %v723 = vld [vmem:[%s719 + $0xc] sm:$0xf]
  %v724 = vld [vmem:[%s719 + $0x10] sm:$0xf]
  %v725 = vld [vmem:[%s719 + $0x14] sm:$0xf]
  %v726 = vld [vmem:[%s719 + $0x18] sm:$0xf]
  %v727 = vld [vmem:[%s719 + $0x1c] sm:$0xf]
  %v728 = vld [vmem:[%s719 + $0x20] sm:$0xf]
  %v729 = vld [vmem:[%s719 + $0x24] sm:$0xf]
  %v730 = vld [vmem:[%s719 + $0x28] sm:$0xf]
  %v731 = vld [vmem:[%s719 + $0x2c] sm:$0xf]
  %v732 = vld [vmem:[%s719 + $0x30] sm:$0xf]
  %v733 = vld [vmem:[%s719 + $0x34] sm:$0xf]
  %v734 = vld [vmem:[%s719 + $0x38] sm:$0xf]
  %v735 = vld [vmem:[%s719 + $0x3c] sm:$0xf]
  %v752 = vunpack.c.l.b16 %v720
  %v753 = vunpack.c.l.b16 %v721
  %v754 = vunpack.c.l.b16 %v722
  %v755 = vunpack.c.l.b16 %v723
  %v756 = vunpack.c.l.b16 %v724
  %v757 = vunpack.c.l.b16 %v725
  %v758 = vunpack.c.l.b16 %v726
  %v759 = vunpack.c.l.b16 %v727
  %v760 = vunpack.c.l.b16 %v728
  %v761 = vunpack.c.l.b16 %v729
  %v762 = vunpack.c.l.b16 %v730
  %v763 = vunpack.c.l.b16 %v731
  %v764 = vunpack.c.l.b16 %v732
  %v765 = vunpack.c.l.b16 %v733
  %v766 = vunpack.c.l.b16 %v734
  %v767 = vunpack.c.l.b16 %v735
  %v768 = vpack.c.b16 %v753, %v752
  %v769 = vpack.c.b16 %v755, %v754
  %v770 = vpack.c.b16 %v757, %v756
  %v771 = vpack.c.b16 %v759, %v758
  %v772 = vpack.c.b16 %v761, %v760
  %v773 = vpack.c.b16 %v763, %v762
  %v774 = vpack.c.b16 %v765, %v764
  %v775 = vpack.c.b16 %v767, %v766
  %784 = vmatprep.subr.bf16.mxu0 0
  %785 = vmatpush1.bf16.msra.mxu0 %v775
  %786 = vmatprep.subr.bf16.mxu0 0
  %787 = vmatpush1.bf16.msra.mxu0 %v774
  %788 = vmatprep.subr.bf16.mxu0 0
  %789 = vmatpush1.bf16.msra.mxu0 %v773
  %790 = vmatprep.subr.bf16.mxu0 0
  %791 = vmatpush1.bf16.msra.mxu0 %v772
  %792 = vmatprep.subr.bf16.mxu0 0
  %793 = vmatpush1.bf16.msra.mxu0 %v771
  %794 = vmatprep.subr.bf16.mxu0 0
  %795 = vmatpush1.bf16.msra.mxu0 %v770
  %796 = vmatprep.subr.bf16.mxu0 0
  %797 = vmatpush1.bf16.msra.mxu0 %v769
  %798 = vmatprep.subr.bf16.mxu0 0
  %799 = vmatpush1.bf16.msra.mxu0 %v768
  %800 = vmatprep.subr.bf16.mxu0 0
  %801 = vmatpush2.bf16.msra.mxu0 0
  %802 = vmatprep.subr.bf16.mxu0 0
  %803 = vmatpush2.bf16.msra.mxu0 0
  %804 = vmatprep.subr.bf16.mxu0 0
  %805 = vmatpush2.bf16.msra.mxu0 0
  %806 = vmatprep.subr.bf16.mxu0 0
  %807 = vmatpush2.bf16.msra.mxu0 0
  %808 = vmatprep.subr.bf16.mxu0 0
  %809 = vmatpush2.bf16.msra.mxu0 0
  %810 = vmatprep.subr.bf16.mxu0 0
  %811 = vmatpush2.bf16.msra.mxu0 0
  %812 = vmatprep.subr.bf16.mxu0 0
  %813 = vmatpush2.bf16.msra.mxu0 0
  %814 = vmatprep.subr.bf16.mxu0 0
  %815 = vmatpush2.bf16.msra.mxu0 0
  %816 = vmatprep.mubr.bf16.mxu0 0
  %817 = vmatmul.mubr.bf16.gmra.mxu0 %v30
  %v818 = vpop.f32.mrf.mxu0
  %v819 = vadd.f32 0.0, %v818
  %v820 = vpop.f32.mrf.mxu0
  %v821 = vpop.f32.mrf.mxu0
  %v822 = vpop.f32.mrf.mxu0
  %823 = vdwg.mxu0
  %s824 = scalar_lea.vmem %s3, 3
  %v825 = vld [vmem:[%s824] sm:$0x1]
  %v827 = vlaneseq
  %v828 = vshrl.u32 %v827, 7
  %v829 = vsub.s32 0, %v828
  %v830 = vrot.slane %v825, %v829
  %v832 = vmul.f32 %v819, %v830
  %s833 = scalar_lea.vmem %s4, 3
  %v834 = vld [vmem:[%s833] sm:$0x1]
  %v836 = vlaneseq
  %v837 = vshrl.u32 %v836, 7
  %v838 = vsub.s32 0, %v837
  %v839 = vrot.slane %v834, %v838
  %v841 = vadd.f32 %v832, %v839
  %v842 = vmax.f32 %v841, 0.0
  %v843 = vpack.c.bf16 %v842, %v842
  %s844 = scalar_lea.vmem %s5, 192
  %v845 = vld [vmem:[%s844] sm:$0xf]
  %v846 = vld [vmem:[%s844 + $0x4] sm:$0xf]
  %v847 = vld [vmem:[%s844 + $0x8] sm:$0xf]
  %v848 = vld [vmem:[%s844 + $0xc] sm:$0xf]
  %v849 = vld [vmem:[%s844 + $0x10] sm:$0xf]
  %v850 = vld [vmem:[%s844 + $0x14] sm:$0xf]
  %v851 = vld [vmem:[%s844 + $0x18] sm:$0xf]
  %v852 = vld [vmem:[%s844 + $0x1c] sm:$0xf]
  %v853 = vld [vmem:[%s844 + $0x20] sm:$0xf]
  %v854 = vld [vmem:[%s844 + $0x24] sm:$0xf]
  %v855 = vld [vmem:[%s844 + $0x28] sm:$0xf]
  %v856 = vld [vmem:[%s844 + $0x2c] sm:$0xf]
  %v857 = vld [vmem:[%s844 + $0x30] sm:$0xf]
  %v858 = vld [vmem:[%s844 + $0x34] sm:$0xf]
  %v859 = vld [vmem:[%s844 + $0x38] sm:$0xf]
  %v860 = vld [vmem:[%s844 + $0x3c] sm:$0xf]
  %v877 = vunpack.c.l.b16 %v845
  %v878 = vunpack.c.l.b16 %v846
  %v879 = vunpack.c.l.b16 %v847
  %v880 = vunpack.c.l.b16 %v848
  %v881 = vunpack.c.l.b16 %v849
  %v882 = vunpack.c.l.b16 %v850
  %v883 = vunpack.c.l.b16 %v851
  %v884 = vunpack.c.l.b16 %v852
  %v885 = vunpack.c.l.b16 %v853
  %v886 = vunpack.c.l.b16 %v854
  %v887 = vunpack.c.l.b16 %v855
  %v888 = vunpack.c.l.b16 %v856
  %v889 = vunpack.c.l.b16 %v857
  %v890 = vunpack.c.l.b16 %v858
  %v891 = vunpack.c.l.b16 %v859
  %v892 = vunpack.c.l.b16 %v860
  %v893 = vpack.c.b16 %v878, %v877
  %v894 = vpack.c.b16 %v880, %v879
  %v895 = vpack.c.b16 %v882, %v881
  %v896 = vpack.c.b16 %v884, %v883
  %v897 = vpack.c.b16 %v886, %v885
  %v898 = vpack.c.b16 %v888, %v887
  %v899 = vpack.c.b16 %v890, %v889
  %v900 = vpack.c.b16 %v892, %v891
  %909 = vmatprep.subr.bf16.mxu0 0
  %910 = vmatpush1.bf16.msra.mxu0 %v900
  %911 = vmatprep.subr.bf16.mxu0 0
  %912 = vmatpush1.bf16.msra.mxu0 %v899
  %913 = vmatprep.subr.bf16.mxu0 0
  %914 = vmatpush1.bf16.msra.mxu0 %v898
  %915 = vmatprep.subr.bf16.mxu0 0
  %916 = vmatpush1.bf16.msra.mxu0 %v897
  %917 = vmatprep.subr.bf16.mxu0 0
  %918 = vmatpush1.bf16.msra.mxu0 %v896
  %919 = vmatprep.subr.bf16.mxu0 0
  %920 = vmatpush1.bf16.msra.mxu0 %v895
  %921 = vmatprep.subr.bf16.mxu0 0
  %922 = vmatpush1.bf16.msra.mxu0 %v894
  %923 = vmatprep.subr.bf16.mxu0 0
  %924 = vmatpush1.bf16.msra.mxu0 %v893
  %925 = vmatprep.subr.bf16.mxu0 0
  %926 = vmatpush2.bf16.msra.mxu0 0
  %927 = vmatprep.subr.bf16.mxu0 0
  %928 = vmatpush2.bf16.msra.mxu0 0
  %929 = vmatprep.subr.bf16.mxu0 0
  %930 = vmatpush2.bf16.msra.mxu0 0
  %931 = vmatprep.subr.bf16.mxu0 0
  %932 = vmatpush2.bf16.msra.mxu0 0
  %933 = vmatprep.subr.bf16.mxu0 0
  %934 = vmatpush2.bf16.msra.mxu0 0
  %935 = vmatprep.subr.bf16.mxu0 0
  %936 = vmatpush2.bf16.msra.mxu0 0
  %937 = vmatprep.subr.bf16.mxu0 0
  %938 = vmatpush2.bf16.msra.mxu0 0
  %939 = vmatprep.subr.bf16.mxu0 0
  %940 = vmatpush2.bf16.msra.mxu0 0
  %941 = vmatprep.mubr.bf16.mxu0 0
  %942 = vmatmul.mubr.bf16.gmra.mxu0 %v843
  %v943 = vpop.f32.mrf.mxu0
  %v944 = vadd.f32 0.0, %v943
  %v945 = vpop.f32.mrf.mxu0
  %v946 = vpop.f32.mrf.mxu0
  %v947 = vpop.f32.mrf.mxu0
  %948 = vdwg.mxu0
  %v949 = vadd.f32 %v718, %v944
  %s950 = scalar_lea.vmem %s2, 256
  %v951 = vld [vmem:[%s950] sm:$0xf]
  %v952 = vld [vmem:[%s950 + $0x4] sm:$0xf]
  %v953 = vld [vmem:[%s950 + $0x8] sm:$0xf]
  %v954 = vld [vmem:[%s950 + $0xc] sm:$0xf]
  %v955 = vld [vmem:[%s950 + $0x10] sm:$0xf]
  %v956 = vld [vmem:[%s950 + $0x14] sm:$0xf]
  %v957 = vld [vmem:[%s950 + $0x18] sm:$0xf]
  %v958 = vld [vmem:[%s950 + $0x1c] sm:$0xf]
  %v959 = vld [vmem:[%s950 + $0x20] sm:$0xf]
  %v960 = vld [vmem:[%s950 + $0x24] sm:$0xf]
  %v961 = vld [vmem:[%s950 + $0x28] sm:$0xf]
  %v962 = vld [vmem:[%s950 + $0x2c] sm:$0xf]
  %v963 = vld [vmem:[%s950 + $0x30] sm:$0xf]
  %v964 = vld [vmem:[%s950 + $0x34] sm:$0xf]
  %v965 = vld [vmem:[%s950 + $0x38] sm:$0xf]
  %v966 = vld [vmem:[%s950 + $0x3c] sm:$0xf]
  %v983 = vunpack.c.l.b16 %v951
  %v984 = vunpack.c.l.b16 %v952
  %v985 = vunpack.c.l.b16 %v953
  %v986 = vunpack.c.l.b16 %v954
  %v987 = vunpack.c.l.b16 %v955
  %v988 = vunpack.c.l.b16 %v956
  %v989 = vunpack.c.l.b16 %v957
  %v990 = vunpack.c.l.b16 %v958
  %v991 = vunpack.c.l.b16 %v959
  %v992 = vunpack.c.l.b16 %v960
  %v993 = vunpack.c.l.b16 %v961
  %v994 = vunpack.c.l.b16 %v962
  %v995 = vunpack.c.l.b16 %v963
  %v996 = vunpack.c.l.b16 %v964
  %v997 = vunpack.c.l.b16 %v965
  %v998 = vunpack.c.l.b16 %v966
  %v999 = vpack.c.b16 %v984, %v983
  %v1000 = vpack.c.b16 %v986, %v985
  %v1001 = vpack.c.b16 %v988, %v987
  %v1002 = vpack.c.b16 %v990, %v989
  %v1003 = vpack.c.b16 %v992, %v991
  %v1004 = vpack.c.b16 %v994, %v993
  %v1005 = vpack.c.b16 %v996, %v995
  %v1006 = vpack.c.b16 %v998, %v997
  %1015 = vmatprep.subr.bf16.mxu0 0
  %1016 = vmatpush1.bf16.msra.mxu0 %v1006
  %1017 = vmatprep.subr.bf16.mxu0 0
  %1018 = vmatpush1.bf16.msra.mxu0 %v1005
  %1019 = vmatprep.subr.bf16.mxu0 0
  %1020 = vmatpush1.bf16.msra.mxu0 %v1004
  %1021 = vmatprep.subr.bf16.mxu0 0
  %1022 = vmatpush1.bf16.msra.mxu0 %v1003
  %1023 = vmatprep.subr.bf16.mxu0 0
  %1024 = vmatpush1.bf16.msra.mxu0 %v1002
  %1025 = vmatprep.subr.bf16.mxu0 0
  %1026 = vmatpush1.bf16.msra.mxu0 %v1001
  %1027 = vmatprep.subr.bf16.mxu0 0
  %1028 = vmatpush1.bf16.msra.mxu0 %v1000
  %1029 = vmatprep.subr.bf16.mxu0 0
  %1030 = vmatpush1.bf16.msra.mxu0 %v999
  %1031 = vmatprep.subr.bf16.mxu0 0
  %1032 = vmatpush2.bf16.msra.mxu0 0
  %1033 = vmatprep.subr.bf16.mxu0 0
  %1034 = vmatpush2.bf16.msra.mxu0 0
  %1035 = vmatprep.subr.bf16.mxu0 0
  %1036 = vmatpush2.bf16.msra.mxu0 0
  %1037 = vmatprep.subr.bf16.mxu0 0
  %1038 = vmatpush2.bf16.msra.mxu0 0
  %1039 = vmatprep.subr.bf16.mxu0 0
  %1040 = vmatpush2.bf16.msra.mxu0 0
  %1041 = vmatprep.subr.bf16.mxu0 0
  %1042 = vmatpush2.bf16.msra.mxu0 0
  %1043 = vmatprep.subr.bf16.mxu0 0
  %1044 = vmatpush2.bf16.msra.mxu0 0
  %1045 = vmatprep.subr.bf16.mxu0 0
  %1046 = vmatpush2.bf16.msra.mxu0 0
  %1047 = vmatprep.mubr.bf16.mxu0 0
  %1048 = vmatmul.mubr.bf16.gmra.mxu0 %v31
  %v1049 = vpop.f32.mrf.mxu0
  %v1050 = vadd.f32 0.0, %v1049
  %v1051 = vpop.f32.mrf.mxu0
  %v1052 = vpop.f32.mrf.mxu0
  %v1053 = vpop.f32.mrf.mxu0
  %1054 = vdwg.mxu0
  %s1055 = scalar_lea.vmem %s3, 4
  %v1056 = vld [vmem:[%s1055] sm:$0x1]
  %v1058 = vlaneseq
  %v1059 = vshrl.u32 %v1058, 7
  %v1060 = vsub.s32 0, %v1059
  %v1061 = vrot.slane %v1056, %v1060
  %v1063 = vmul.f32 %v1050, %v1061
  %s1064 = scalar_lea.vmem %s4, 4
  %v1065 = vld [vmem:[%s1064] sm:$0x1]
  %v1067 = vlaneseq
  %v1068 = vshrl.u32 %v1067, 7
  %v1069 = vsub.s32 0, %v1068
  %v1070 = vrot.slane %v1065, %v1069
  %v1072 = vadd.f32 %v1063, %v1070
  %v1073 = vmax.f32 %v1072, 0.0
  %v1074 = vpack.c.bf16 %v1073, %v1073
  %s1075 = scalar_lea.vmem %s5, 256
  %v1076 = vld [vmem:[%s1075] sm:$0xf]
  %v1077 = vld [vmem:[%s1075 + $0x4] sm:$0xf]
  %v1078 = vld [vmem:[%s1075 + $0x8] sm:$0xf]
  %v1079 = vld [vmem:[%s1075 + $0xc] sm:$0xf]
  %v1080 = vld [vmem:[%s1075 + $0x10] sm:$0xf]
  %v1081 = vld [vmem:[%s1075 + $0x14] sm:$0xf]
  %v1082 = vld [vmem:[%s1075 + $0x18] sm:$0xf]
  %v1083 = vld [vmem:[%s1075 + $0x1c] sm:$0xf]
  %v1084 = vld [vmem:[%s1075 + $0x20] sm:$0xf]
  %v1085 = vld [vmem:[%s1075 + $0x24] sm:$0xf]
  %v1086 = vld [vmem:[%s1075 + $0x28] sm:$0xf]
  %v1087 = vld [vmem:[%s1075 + $0x2c] sm:$0xf]
  %v1088 = vld [vmem:[%s1075 + $0x30] sm:$0xf]
  %v1089 = vld [vmem:[%s1075 + $0x34] sm:$0xf]
  %v1090 = vld [vmem:[%s1075 + $0x38] sm:$0xf]
  %v1091 = vld [vmem:[%s1075 + $0x3c] sm:$0xf]
  %v1108 = vunpack.c.l.b16 %v1076
  %v1109 = vunpack.c.l.b16 %v1077
  %v1110 = vunpack.c.l.b16 %v1078
  %v1111 = vunpack.c.l.b16 %v1079
  %v1112 = vunpack.c.l.b16 %v1080
  %v1113 = vunpack.c.l.b16 %v1081
  %v1114 = vunpack.c.l.b16 %v1082
  %v1115 = vunpack.c.l.b16 %v1083
  %v1116 = vunpack.c.l.b16 %v1084
  %v1117 = vunpack.c.l.b16 %v1085
  %v1118 = vunpack.c.l.b16 %v1086
  %v1119 = vunpack.c.l.b16 %v1087
  %v1120 = vunpack.c.l.b16 %v1088
  %v1121 = vunpack.c.l.b16 %v1089
  %v1122 = vunpack.c.l.b16 %v1090
  %v1123 = vunpack.c.l.b16 %v1091
  %v1124 = vpack.c.b16 %v1109, %v1108
  %v1125 = vpack.c.b16 %v1111, %v1110
  %v1126 = vpack.c.b16 %v1113, %v1112
  %v1127 = vpack.c.b16 %v1115, %v1114
  %v1128 = vpack.c.b16 %v1117, %v1116
  %v1129 = vpack.c.b16 %v1119, %v1118
  %v1130 = vpack.c.b16 %v1121, %v1120
  %v1131 = vpack.c.b16 %v1123, %v1122
  %1140 = vmatprep.subr.bf16.mxu0 0
  %1141 = vmatpush1.bf16.msra.mxu0 %v1131
  %1142 = vmatprep.subr.bf16.mxu0 0
  %1143 = vmatpush1.bf16.msra.mxu0 %v1130
  %1144 = vmatprep.subr.bf16.mxu0 0
  %1145 = vmatpush1.bf16.msra.mxu0 %v1129
  %1146 = vmatprep.subr.bf16.mxu0 0
  %1147 = vmatpush1.bf16.msra.mxu0 %v1128
  %1148 = vmatprep.subr.bf16.mxu0 0
  %1149 = vmatpush1.bf16.msra.mxu0 %v1127
  %1150 = vmatprep.subr.bf16.mxu0 0
  %1151 = vmatpush1.bf16.msra.mxu0 %v1126
  %1152 = vmatprep.subr.bf16.mxu0 0
  %1153 = vmatpush1.bf16.msra.mxu0 %v1125
  %1154 = vmatprep.subr.bf16.mxu0 0
  %1155 = vmatpush1.bf16.msra.mxu0 %v1124
  %1156 = vmatprep.subr.bf16.mxu0 0
  %1157 = vmatpush2.bf16.msra.mxu0 0
  %1158 = vmatprep.subr.bf16.mxu0 0
  %1159 = vmatpush2.bf16.msra.mxu0 0
  %1160 = vmatprep.subr.bf16.mxu0 0
  %1161 = vmatpush2.bf16.msra.mxu0 0
  %1162 = vmatprep.subr.bf16.mxu0 0
  %1163 = vmatpush2.bf16.msra.mxu0 0
  %1164 = vmatprep.subr.bf16.mxu0 0
  %1165 = vmatpush2.bf16.msra.mxu0 0
  %1166 = vmatprep.subr.bf16.mxu0 0
  %1167 = vmatpush2.bf16.msra.mxu0 0
  %1168 = vmatprep.subr.bf16.mxu0 0
  %1169 = vmatpush2.bf16.msra.mxu0 0
  %1170 = vmatprep.subr.bf16.mxu0 0
  %1171 = vmatpush2.bf16.msra.mxu0 0
  %1172 = vmatprep.mubr.bf16.mxu0 0
  %1173 = vmatmul.mubr.bf16.gmra.mxu0 %v1074
  %v1174 = vpop.f32.mrf.mxu0
  %v1175 = vadd.f32 0.0, %v1174
  %v1176 = vpop.f32.mrf.mxu0
  %v1177 = vpop.f32.mrf.mxu0
  %v1178 = vpop.f32.mrf.mxu0
  %1179 = vdwg.mxu0
  %v1180 = vadd.f32 %v949, %v1175
  %v1181 = vld [vmem:[%s6] sm:$0x1]
  %v1183 = vlaneseq
  %v1184 = vshrl.u32 %v1183, 7
  %v1185 = vsub.s32 0, %v1184
  %v1186 = vrot.slane %v1181, %v1185
  %v1188 = vmul.f32 %v1180, %v1186
  %v1189 = vld [vmem:[%s7] sm:$0x1]
  %v1191 = vlaneseq
  %v1192 = vshrl.u32 %v1191, 7
  %v1193 = vsub.s32 0, %v1192
  %v1194 = vrot.slane %v1189, %v1193
  %v1196 = vadd.f32 %v1188, %v1194
  %v1197 = vmax.f32 %v1196, 0.0
  %v1198 = vpack.c.bf16 %v1197, %v1197
  %1199 = vst [vmem:[%s8] sm:$0xf] %v1198
  // Predicated region
  $region34: #{deeplab_forward.14} parent=0 // pred_check
    _
  $region35: #{deeplab_forward.14} parent=0 // pred_check_branch
    %1201 = sbr.rel (0) target = $region37
  $region36: #{deeplab_forward.14} parent=0 // pred_region
    _
  $region37: #{deeplab_forward.14} parent=0 // pred_fallthru
    _
  // Predicated region
  $region38: #{deeplab_forward.14} parent=0 // pred_check
    _
  $region39: #{deeplab_forward.14} parent=0 // pred_check_branch
    %1203 = sbr.rel (0) target = $region41
  $region40: #{deeplab_forward.14} parent=0 // pred_region
    _
  $region41: #{deeplab_forward.14} parent=0 // pred_fallthru
    _

// kernel: deeplab_forward.19
$region0: #{deeplab_forward.19}
  #allocation0 [shape = 'u32[]', space=smem, size = 0x4, offset = 0x4, fixed_abs, tag = 'smem constant byte address 0x4 - core index']
  #allocation1 [shape = 'u32[144,128]{1,0:T(1,128)}', space=vmem, size = 0x12000, scoped, tag = 'internal scratch']
  %s0 = inlined_call_operand.vmem [shape: bf16[1024,64], index: 0, kind: input, shape index: {}]
  %s1 = inlined_call_operand.vmem [shape: bf16[2,64,128], index: 1, kind: input, shape index: {}]
  %s2 = inlined_call_operand.hbm [shape: f32[2,1024,128], index: 2, kind: output, shape index: {}]
  %s3 = sld [smem:[#allocation0]]
  $region41: #{deeplab_forward.19} parent=0
    _
  %s5 = ssub.s32 1, %s3
  %s6 = scalar_select 0, %s5, %s3
  $region1: #{deeplab_forward.19} parent=0
    #allocation2 [shape = 'u8[524288]{0}', space=vmem, size = 0x80000, scoped, tag = 'output window, operand 0']
    #allocation3 [shape = 's32[2]{0}', space=sflag, size = 0x8, scoped, tag = 'scoped memory for deeplab_forward.19']
    %7 = vsyncpa [#allocation3], 0
    %s8 = scalar_lea.sflag [#allocation3], 1
    %9 = vsyncpa %s8, 0
    loop: start=0, step=1, limit=6
    $region2: #{deeplab_forward.19} parent=1 // loop_pre_header
      _
    $region3: #{deeplab_forward.19} parent=1 // loop_header
      %s11 = sphi 0, %s15
      %p12 = scmp.ge.s32.totalorder %s11, 6
      %s18 = sphi 0, %s30
      %s19 = sphi 0, %s26
      %s20 = sphi 0, %s18
      %s21 = sphi 0, %s19
      %s22 = sphi 0, %s20
      %s23 = sphi 0, %s21
      %s33 = sphi 0, %s35
      %s36 = sphi 0, %s33
      %s37 = sphi 0, %s36
      %s53 = sphi 0, %s37
      %s59 = sphi 0, %s61
      %s62 = sphi 0, %s59
      %s63 = sphi 0, %s62
      %s79 = sphi 0, %s63
      %s87 = sphi 0, %s89
      %s90 = sphi 0, %s87
      %s91 = sphi 0, %s90
      %s107 = sphi 0, %s91
    $region4: #{deeplab_forward.19} parent=1 // loop_header_branch
      %14 = sbr.rel (%p12) target = $region8
    $region5: #{deeplab_forward.19} parent=1 // loop_body
      %s16 = ssub.s32 %s11, 1
      %s17 = ssub.s32 %s11, 2
      %s24 = sadd.s32 1, %s19
      %p25 = scmp.ge.s32.totalorder %s24, 2
      %s26 = scalar_select %p25, 0, %s24
      %s27 = sadd.s32 1, %s18
      %s28 = scalar_select %p25, %s27, %s18
      %p29 = scmp.ge.s32.totalorder %s28, 2
      %s30 = scalar_select %p29, 0, %s28
      %s31 = ssub.s32 %s19, %s26
      %p32 = scmp.eq.s32.totalorder %s31, 0
      %s34 = sadd.s32 %s33, 1
      %s35 = scalar_select %p32, %s33, %s34
      %p38 = pneg %p32
      %p39 = scmp.eq.s32.totalorder %s11, 3
      %p40 = por %p38, %p39
      %p41 = scmp.ne.s32.totalorder %s33, %s36
      %p42 = scmp.eq.s32.totalorder %s11, 0
      %p43 = por %p41, %p42
      %p44 = scmp.ne.s32.totalorder %s33, %s36
      %p45 = scmp.eq.s32.totalorder %s16, 3
      %p46 = por %p44, %p45
      %p47 = scmp.ne.s32.totalorder %s36, %s37
      %p48 = scmp.eq.s32.totalorder %s16, 0
      %p49 = por %p47, %p48
      %p50 = scmp.ne.s32.totalorder %s36, %s37
      %p51 = scmp.eq.s32.totalorder %s17, 3
      %p52 = por %p50, %p51
      %p54 = scmp.ne.s32.totalorder %s37, %s53
      %p55 = scmp.eq.s32.totalorder %s17, 0
      %p56 = por %p54, %p55
      %s57 = ssub.s32 %s18, %s30
      %p58 = scmp.eq.s32.totalorder %s57, 0
      %s60 = sadd.s32 %s59, 1
      %s61 = scalar_select %p58, %s59, %s60
      %p64 = pneg %p58
      %p65 = scmp.eq.s32.totalorder %s11, 3
      %p66 = por %p64, %p65
      %p67 = scmp.ne.s32.totalorder %s59, %s62
      %p68 = scmp.eq.s32.totalorder %s11, 0
      %p69 = por %p67, %p68
      %p70 = scmp.ne.s32.totalorder %s59, %s62
      %p71 = scmp.eq.s32.totalorder %s16, 3
      %p72 = por %p70, %p71
      %p73 = scmp.ne.s32.totalorder %s62, %s63
      %p74 = scmp.eq.s32.totalorder %s16, 0
      %p75 = por %p73, %p74
      %p76 = scmp.ne.s32.totalorder %s62, %s63
      %p77 = scmp.eq.s32.totalorder %s17, 3
      %p78 = por %p76, %p77
      %p80 = scmp.ne.s32.totalorder %s63, %s79
      %p81 = scmp.eq.s32.totalorder %s17, 0
      %p82 = por %p80, %p81
      %s83 = ssub.s32 %s18, %s30
      %s84 = ssub.s32 %s19, %s26
      %s85 = sor.u32 %s83, %s84
      %p86 = scmp.eq.s32.totalorder %s85, 0
      %s88 = sadd.s32 %s87, 1
      %s89 = scalar_select %p86, %s87, %s88
      %p92 = pneg %p86
      %p93 = scmp.eq.s32.totalorder %s11, 3
      %p94 = por %p92, %p93
      %p95 = scmp.ne.s32.totalorder %s87, %s90
      %p96 = scmp.eq.s32.totalorder %s11, 0
      %p97 = por %p95, %p96
      %p98 = scmp.ne.s32.totalorder %s87, %s90
      %p99 = scmp.eq.s32.totalorder %s16, 3
      %p100 = por %p98, %p99
      %p101 = scmp.ne.s32.totalorder %s90, %s91
      %p102 = scmp.eq.s32.totalorder %s16, 0
      %p103 = por %p101, %p102
      %p104 = scmp.ne.s32.totalorder %s90, %s91
      %p105 = scmp.eq.s32.totalorder %s17, 3
      %p106 = por %p104, %p105
      %p108 = scmp.ne.s32.totalorder %s91, %s107
      %p109 = scmp.eq.s32.totalorder %s17, 0
      %p110 = por %p108, %p109
      %p111 = scmp.le.s32.totalorder 1, %s11
      %p112 = scmp.lt.s32.totalorder %s11, 5
      %p113 = pnand %p111, %p112
      %p114 = pneg %p113
      // Predicated region
      $region9: #{deeplab_forward.19} parent=5 // pred_check
        _
      $region10: #{deeplab_forward.19} parent=5 // pred_check_branch
        %116 = sbr.rel (%p113) target = $region12
      $region11: #{deeplab_forward.19} parent=5 // pred_region
        %s117 = ssub.s32 %s11, 1
      $region12: #{deeplab_forward.19} parent=5 // pred_fallthru
        _
      %p118 = scmp.lt.s32.totalorder %s11, 4
      // Predicated region
      $region13: #{deeplab_forward.19} parent=5 // pred_check
        %p119 = pneg %p118
      $region14: #{deeplab_forward.19} parent=5 // pred_check_branch
        %121 = sbr.rel (%p119) target = $region16
      $region15: #{deeplab_forward.19} parent=5 // pred_region
        // Predicated region
        $region17: #{deeplab_forward.19} parent=15 // pred_check
          %p122 = pneg %p43
        $region18: #{deeplab_forward.19} parent=15 // pred_check_branch
          %124 = sbr.rel (%p122) target = $region20
        $region19: #{deeplab_forward.19} parent=15 // pred_region
          %s125 = smul.u32 64, %s19
          %p126 = scmp.lt.s32.totalorder %s125, 127
          %s127 = scalar_select %p126, %s125, 127
          %s128 = smul.addr %s127, 4
          %s129 = scalar_lea.vmem %s0, %s128
          %s130 = smul.u32 64, %s19
        $region20: #{deeplab_forward.19} parent=15 // pred_fallthru
          _
        // Predicated region
        $region21: #{deeplab_forward.19} parent=15 // pred_check
          %p131 = pneg %p69
        $region22: #{deeplab_forward.19} parent=15 // pred_check_branch
          %133 = sbr.rel (%p131) target = $region24
        $region23: #{deeplab_forward.19} parent=15 // pred_region
          %p134 = scmp.lt.s32.totalorder %s18, 1
          %s135 = scalar_select %p134, %s18, 1
          %s136 = smul.addr %s135, 8
          %s137 = smul.addr %s136, 4
          %s138 = scalar_lea.vmem %s1, %s137
        $region24: #{deeplab_forward.19} parent=15 // pred_fallthru
          _
      $region16: #{deeplab_forward.19} parent=5 // pred_fallthru
        _
      %p139 = scmp.le.s32.totalorder 1, %s11
      %p140 = scmp.lt.s32.totalorder %s11, 5
      %p141 = pnand %p139, %p140
      %p142 = pneg %p141
      // Predicated region
      $region25: #{deeplab_forward.19} parent=5 // pred_check
        _
      $region26: #{deeplab_forward.19} parent=5 // pred_check_branch
        %144 = sbr.rel (%p141) target = $region28
      $region27: #{deeplab_forward.19} parent=5 // pred_region
        %s145 = ssub.s32 %s11, 1
        %s146 = smul.u32 64, %s21
        %p147 = scmp.lt.s32.totalorder %s146, 127
        %s148 = scalar_select %p147, %s146, 127
        %s149 = smul.addr %s148, 4
        %s150 = scalar_lea.vmem %s0, %s149
        %p151 = pneg %p49
        %p152 = pneg %p46
        %p153 = scmp.lt.s32.totalorder %s20, 1
        %s154 = scalar_select %p153, %s20, 1
        %s155 = smul.addr %s154, 8
        %s156 = smul.addr %s155, 4
        %s157 = scalar_lea.vmem %s1, %s156
        %p158 = pneg %p75
        %p159 = pneg %p72
        %p160 = pneg %p103
        %p161 = pneg %p100
        %s162 = sand.u32 %s90, 1
        %s163 = scalar_lea.sflag [#allocation3], %s162
        %s164 = sand.u32 %s90, 1
        %s165 = smul.addr %s164, 512
        %s166 = scalar_lea.vmem [#allocation2], %s165
        %s167 = smul.u32 64, %s21
        %p168 = scmp.lt.s32.totalorder %s167, 127
        %s169 = scalar_select %p168, %s167, 127
        %s170 = smul.addr %s169, 4
        %s171 = scalar_lea.vmem %s0, %s170
        %s172 = smul.u32 64, %s21
        %p173 = scmp.lt.s32.totalorder %s20, 1
        %s174 = scalar_select %p173, %s20, 1
        %s175 = smul.addr %s174, 8
        %s176 = smul.addr %s175, 4
        %s177 = scalar_lea.vmem %s1, %s176
        %s178 = smul.u32 64, %s21
        %v180 = vld [vmem:[%s171] sm:$0xf]
        %v181 = vld [vmem:[%s171 + $0x4] sm:$0xf]
        %v182 = vld [vmem:[%s171 + $0x8] sm:$0xf]
        %v183 = vld [vmem:[%s171 + $0xc] sm:$0xf]
        %v184 = vld [vmem:[%s171 + $0x10] sm:$0xf]
        %v185 = vld [vmem:[%s171 + $0x14] sm:$0xf]
        %v186 = vld [vmem:[%s171 + $0x18] sm:$0xf]
        %v187 = vld [vmem:[%s171 + $0x1c] sm:$0xf]
        %v188 = vld [vmem:[%s171 + $0x20] sm:$0xf]
        %v189 = vld [vmem:[%s171 + $0x24] sm:$0xf]
        %v190 = vld [vmem:[%s171 + $0x28] sm:$0xf]
        %v191 = vld [vmem:[%s171 + $0x2c] sm:$0xf]
        %v192 = vld [vmem:[%s171 + $0x30] sm:$0xf]
        %v193 = vld [vmem:[%s171 + $0x34] sm:$0xf]
        %v194 = vld [vmem:[%s171 + $0x38] sm:$0xf]
        %v195 = vld [vmem:[%s171 + $0x3c] sm:$0xf]
        %v196 = vld [vmem:[%s171 + $0x40] sm:$0xf]
        %v197 = vld [vmem:[%s171 + $0x44] sm:$0xf]
        %v198 = vld [vmem:[%s171 + $0x48] sm:$0xf]
        %v199 = vld [vmem:[%s171 + $0x4c] sm:$0xf]
        %v200 = vld [vmem:[%s171 + $0x50] sm:$0xf]
        %v201 = vld [vmem:[%s171 + $0x54] sm:$0xf]
        %v202 = vld [vmem:[%s171 + $0x58] sm:$0xf]
        %v203 = vld [vmem:[%s171 + $0x5c] sm:$0xf]
        %v204 = vld [vmem:[%s171 + $0x60] sm:$0xf]
        %v205 = vld [vmem:[%s171 + $0x64] sm:$0xf]
        %v206 = vld [vmem:[%s171 + $0x68] sm:$0xf]
        %v207 = vld [vmem:[%s171 + $0x6c] sm:$0xf]
        %v208 = vld [vmem:[%s171 + $0x70] sm:$0xf]
        %v209 = vld [vmem:[%s171 + $0x74] sm:$0xf]
        %v210 = vld [vmem:[%s171 + $0x78] sm:$0xf]
        %v211 = vld [vmem:[%s171 + $0x7c] sm:$0xf]
        %v212 = vld [vmem:[%s171 + $0x80] sm:$0xf]
        %v213 = vld [vmem:[%s171 + $0x84] sm:$0xf]
        %v214 = vld [vmem:[%s171 + $0x88] sm:$0xf]
        %v215 = vld [vmem:[%s171 + $0x8c] sm:$0xf]
        %v216 = vld [vmem:[%s171 + $0x90] sm:$0xf]
        %v217 = vld [vmem:[%s171 + $0x94] sm:$0xf]
        %v218 = vld [vmem:[%s171 + $0x98] sm:$0xf]
        %v219 = vld [vmem:[%s171 + $0x9c] sm:$0xf]
        %v220 = vld [vmem:[%s171 + $0xa0] sm:$0xf]
        %v221 = vld [vmem:[%s171 + $0xa4] sm:$0xf]
        %v222 = vld [vmem:[%s171 + $0xa8] sm:$0xf]
        %v223 = vld [vmem:[%s171 + $0xac] sm:$0xf]
        %v224 = vld [vmem:[%s171 + $0xb0] sm:$0xf]
        %v225 = vld [vmem:[%s171 + $0xb4] sm:$0xf]
        %v226 = vld [vmem:[%s171 + $0xb8] sm:$0xf]
        %v227 = vld [vmem:[%s171 + $0xbc] sm:$0xf]
        %v228 = vld [vmem:[%s171 + $0xc0] sm:$0xf]
        %v229 = vld [vmem:[%s171 + $0xc4] sm:$0xf]
        %v230 = vld [vmem:[%s171 + $0xc8] sm:$0xf]
        %v231 = vld [vmem:[%s171 + $0xcc] sm:$0xf]
        %v232 = vld [vmem:[%s171 + $0xd0] sm:$0xf]
        %v233 = vld [vmem:[%s171 + $0xd4] sm:$0xf]
        %v234 = vld [vmem:[%s171 + $0xd8] sm:$0xf]
        %v235 = vld [vmem:[%s171 + $0xdc] sm:$0xf]
        %v236 = vld [vmem:[%s171 + $0xe0] sm:$0xf]
        %v237 = vld [vmem:[%s171 + $0xe4] sm:$0xf]
        %v238 = vld [vmem:[%s171 + $0xe8] sm:$0xf]
        %v239 = vld [vmem:[%s171 + $0xec] sm:$0xf]
        %v240 = vld [vmem:[%s171 + $0xf0] sm:$0xf]
        %v241 = vld [vmem:[%s171 + $0xf4] sm:$0xf]
        %v242 = vld [vmem:[%s171 + $0xf8] sm:$0xf]
        %v243 = vld [vmem:[%s171 + $0xfc] sm:$0xf]
        %v244 = vld [vmem:[%s177] sm:$0xf]
        %v245 = vld [vmem:[%s177 + $0x4] sm:$0xf]
        %v246 = vld [vmem:[%s177 + $0x8] sm:$0xf]
        %v247 = vld [vmem:[%s177 + $0xc] sm:$0xf]
        %v248 = vld [vmem:[%s177 + $0x10] sm:$0xf]
        %v249 = vld [vmem:[%s177 + $0x14] sm:$0xf]
        %v250 = vld [vmem:[%s177 + $0x18] sm:$0xf]
        %v251 = vld [vmem:[%s177 + $0x1c] sm:$0xf]
        %v316 = vunpack.c.l.b16 %v180
        %v317 = vunpack.c.l.b16 %v181
        %v318 = vunpack.c.l.b16 %v182
        %v319 = vunpack.c.l.b16 %v183
        %v320 = vunpack.c.l.b16 %v184
        %v321 = vunpack.c.l.b16 %v185
        %v322 = vunpack.c.l.b16 %v186
        %v323 = vunpack.c.l.b16 %v187
        %v324 = vunpack.c.l.b16 %v188
        %v325 = vunpack.c.l.b16 %v189
        %v326 = vunpack.c.l.b16 %v190
        %v327 = vunpack.c.l.b16 %v191
        %v328 = vunpack.c.l.b16 %v192
        %v329 = vunpack.c.l.b16 %v193
        %v330 = vunpack.c.l.b16 %v194
        %v331 = vunpack.c.l.b16 %v195
        %v332 = vunpack.c.l.b16 %v196
        %v333 = vunpack.c.l.b16 %v197
        %v334 = vunpack.c.l.b16 %v198
        %v335 = vunpack.c.l.b16 %v199
        %v336 = vunpack.c.l.b16 %v200
        %v337 = vunpack.c.l.b16 %v201
        %v338 = vunpack.c.l.b16 %v202
        %v339 = vunpack.c.l.b16 %v203
        %v340 = vunpack.c.l.b16 %v204
        %v341 = vunpack.c.l.b16 %v205
        %v342 = vunpack.c.l.b16 %v206
        %v343 = vunpack.c.l.b16 %v207
        %v344 = vunpack.c.l.b16 %v208
        %v345 = vunpack.c.l.b16 %v209
        %v346 = vunpack.c.l.b16 %v210
        %v347 = vunpack.c.l.b16 %v211
        %v348 = vunpack.c.l.b16 %v212
        %v349 = vunpack.c.l.b16 %v213
        %v350 = vunpack.c.l.b16 %v214
        %v351 = vunpack.c.l.b16 %v215
        %v352 = vunpack.c.l.b16 %v216
        %v353 = vunpack.c.l.b16 %v217
        %v354 = vunpack.c.l.b16 %v218
        %v355 = vunpack.c.l.b16 %v219
        %v356 = vunpack.c.l.b16 %v220
        %v357 = vunpack.c.l.b16 %v221
        %v358 = vunpack.c.l.b16 %v222
        %v359 = vunpack.c.l.b16 %v223
        %v360 = vunpack.c.l.b16 %v224
        %v361 = vunpack.c.l.b16 %v225
        %v362 = vunpack.c.l.b16 %v226
        %v363 = vunpack.c.l.b16 %v227
        %v364 = vunpack.c.l.b16 %v228
        %v365 = vunpack.c.l.b16 %v229
        %v366 = vunpack.c.l.b16 %v230
        %v367 = vunpack.c.l.b16 %v231
        %v368 = vunpack.c.l.b16 %v232
        %v369 = vunpack.c.l.b16 %v233
        %v370 = vunpack.c.l.b16 %v234
        %v371 = vunpack.c.l.b16 %v235
        %v372 = vunpack.c.l.b16 %v236
        %v373 = vunpack.c.l.b16 %v237
        %v374 = vunpack.c.l.b16 %v238
        %v375 = vunpack.c.l.b16 %v239
        %v376 = vunpack.c.l.b16 %v240
        %v377 = vunpack.c.l.b16 %v241
        %v378 = vunpack.c.l.b16 %v242
        %v379 = vunpack.c.l.b16 %v243
        %v380 = vpack.c.b16 %v317, %v316
        %v381 = vpack.c.b16 %v319, %v318
        %v382 = vpack.c.b16 %v321, %v320
        %v383 = vpack.c.b16 %v323, %v322
        %v384 = vpack.c.b16 %v325, %v324
        %v385 = vpack.c.b16 %v327, %v326
        %v386 = vpack.c.b16 %v329, %v328
        %v387 = vpack.c.b16 %v331, %v330
        %v388 = vpack.c.b16 %v333, %v332
        %v389 = vpack.c.b16 %v335, %v334
        %v390 = vpack.c.b16 %v337, %v336
        %v391 = vpack.c.b16 %v339, %v338
        %v392 = vpack.c.b16 %v341, %v340
        %v393 = vpack.c.b16 %v343, %v342
        %v394 = vpack.c.b16 %v345, %v344
        %v395 = vpack.c.b16 %v347, %v346
        %v396 = vpack.c.b16 %v349, %v348
        %v397 = vpack.c.b16 %v351, %v350
        %v398 = vpack.c.b16 %v353, %v352
        %v399 = vpack.c.b16 %v355, %v354
        %v400 = vpack.c.b16 %v357, %v356
        %v401 = vpack.c.b16 %v359, %v358
        %v402 = vpack.c.b16 %v361, %v360
        %v403 = vpack.c.b16 %v363, %v362
        %v404 = vpack.c.b16 %v365, %v364
        %v405 = vpack.c.b16 %v367, %v366
        %v406 = vpack.c.b16 %v369, %v368
        %v407 = vpack.c.b16 %v371, %v370
        %v408 = vpack.c.b16 %v373, %v372
        %v409 = vpack.c.b16 %v375, %v374
        %v410 = vpack.c.b16 %v377, %v376
        %v411 = vpack.c.b16 %v379, %v378
        %v420 = vunpack.c.l.b16 %v244
        %v421 = vunpack.c.l.b16 %v245
        %v422 = vunpack.c.l.b16 %v246
        %v423 = vunpack.c.l.b16 %v247
        %v424 = vunpack.c.l.b16 %v248
        %v425 = vunpack.c.l.b16 %v249
        %v426 = vunpack.c.l.b16 %v250
        %v427 = vunpack.c.l.b16 %v251
        %v428 = vpack.c.b16 %v421, %v420
        %v429 = vpack.c.b16 %v423, %v422
        %v430 = vpack.c.b16 %v425, %v424
        %v431 = vpack.c.b16 %v427, %v426
        %vm436 = vcmask 523264
        %v438 = vsel %vm436, %v380, 0
        %v441 = vsel %vm436, %v381, 0
        %v444 = vsel %vm436, %v382, 0
        %v447 = vsel %vm436, %v383, 0
        %v450 = vsel %vm436, %v384, 0
        %v453 = vsel %vm436, %v385, 0
        %v456 = vsel %vm436, %v386, 0
        %v459 = vsel %vm436, %v387, 0
        %v462 = vsel %vm436, %v388, 0
        %v465 = vsel %vm436, %v389, 0
        %v468 = vsel %vm436, %v390, 0
        %v471 = vsel %vm436, %v391, 0
        %v474 = vsel %vm436, %v392, 0
        %v477 = vsel %vm436, %v393, 0
        %v480 = vsel %vm436, %v394, 0
        %v483 = vsel %vm436, %v395, 0
        %v486 = vsel %vm436, %v396, 0
        %v489 = vsel %vm436, %v397, 0
        %v492 = vsel %vm436, %v398, 0
        %v495 = vsel %vm436, %v399, 0
        %v498 = vsel %vm436, %v400, 0
        %v501 = vsel %vm436, %v401, 0
        %v504 = vsel %vm436, %v402, 0
        %v507 = vsel %vm436, %v403, 0
        %v510 = vsel %vm436, %v404, 0
        %v513 = vsel %vm436, %v405, 0
        %v516 = vsel %vm436, %v406, 0
        %v519 = vsel %vm436, %v407, 0
        %v522 = vsel %vm436, %v408, 0
        %v525 = vsel %vm436, %v409, 0
        %v528 = vsel %vm436, %v410, 0
        %v531 = vsel %vm436, %v411, 0
        %533 = vmatprep.subr.bf16.mxu0 0
        %534 = vmatpush1.bf16.msra.mxu0 0
        %535 = vmatprep.subr.bf16.mxu0 0
        %536 = vmatpush1.bf16.msra.mxu0 0
        %537 = vmatprep.subr.bf16.mxu0 0
        %538 = vmatpush1.bf16.msra.mxu0 0
        %539 = vmatprep.subr.bf16.mxu0 0
        %540 = vmatpush1.bf16.msra.mxu0 0
        %541 = vmatprep.subr.bf16.mxu0 0
        %542 = vmatpush1.bf16.msra.mxu0 %v431
        %543 = vmatprep.subr.bf16.mxu0 0
        %544 = vmatpush1.bf16.msra.mxu0 %v430
        %545 = vmatprep.subr.bf16.mxu0 0
        %546 = vmatpush1.bf16.msra.mxu0 %v429
        %547 = vmatprep.subr.bf16.mxu0 0
        %548 = vmatpush1.bf16.msra.mxu0 %v428
        %549 = vmatprep.subr.bf16.mxu0 0
        %550 = vmatpush2.bf16.msra.mxu0 0
        %551 = vmatprep.subr.bf16.mxu0 0
        %552 = vmatpush2.bf16.msra.mxu0 0
        %553 = vmatprep.subr.bf16.mxu0 0
        %554 = vmatpush2.bf16.msra.mxu0 0
        %555 = vmatprep.subr.bf16.mxu0 0
        %556 = vmatpush2.bf16.msra.mxu0 0
        %557 = vmatprep.subr.bf16.mxu0 0
        %558 = vmatpush2.bf16.msra.mxu0 0
        %559 = vmatprep.subr.bf16.mxu0 0
        %560 = vmatpush2.bf16.msra.mxu0 0
        %561 = vmatprep.subr.bf16.mxu0 0
        %562 = vmatpush2.bf16.msra.mxu0 0
        %563 = vmatprep.subr.bf16.mxu0 0
        %564 = vmatpush2.bf16.msra.mxu0 0
        %565 = vmatprep.mubr.bf16.mxu0 0
        %566 = vmatmul.mubr.bf16.gmra.mxu0 %v438
        %v567 = vpop.f32.mrf.mxu0
        %v568 = vadd.f32 0.0, %v567
        %v569 = vpop.f32.mrf.mxu0
        %v570 = vpop.f32.mrf.mxu0
        %v571 = vadd.f32 0.0, %v570
        %v572 = vpop.f32.mrf.mxu0
        %573 = vmatprep.mubr.bf16.mxu0 0
        %574 = vmatmul.mubr.bf16.gmra.mxu0 %v441
        %v575 = vpop.f32.mrf.mxu0
        %v576 = vadd.f32 0.0, %v575
        %v577 = vpop.f32.mrf.mxu0
        %v578 = vpop.f32.mrf.mxu0
        %v579 = vadd.f32 0.0, %v578
        %v580 = vpop.f32.mrf.mxu0
        %581 = vmatprep.mubr.bf16.mxu0 0
        %582 = vmatmul.mubr.bf16.gmra.mxu0 %v444
        %v583 = vpop.f32.mrf.mxu0
        %v584 = vadd.f32 0.0, %v583
        %v585 = vpop.f32.mrf.mxu0
        %v586 = vpop.f32.mrf.mxu0
        %v587 = vadd.f32 0.0, %v586
        %v588 = vpop.f32.mrf.mxu0
        %589 = vmatprep.mubr.bf16.mxu0 0
        %590 = vmatmul.mubr.bf16.gmra.mxu0 %v447
        %v591 = vpop.f32.mrf.mxu0
        %v592 = vadd.f32 0.0, %v591
        %v593 = vpop.f32.mrf.mxu0
        %v594 = vpop.f32.mrf.mxu0
        %v595 = vadd.f32 0.0, %v594
        %v596 = vpop.f32.mrf.mxu0
        %597 = vmatprep.mubr.bf16.mxu0 0
        %598 = vmatmul.mubr.bf16.gmra.mxu0 %v450
        %v599 = vpop.f32.mrf.mxu0
        %v600 = vadd.f32 0.0, %v599
        %v601 = vpop.f32.mrf.mxu0
        %v602 = vpop.f32.mrf.mxu0
        %v603 = vadd.f32 0.0, %v602
        %v604 = vpop.f32.mrf.mxu0
        %605 = vmatprep.mubr.bf16.mxu0 0
        %606 = vmatmul.mubr.bf16.gmra.mxu0 %v453
        %v607 = vpop.f32.mrf.mxu0
        %v608 = vadd.f32 0.0, %v607
        %v609 = vpop.f32.mrf.mxu0
        %v610 = vpop.f32.mrf.mxu0
        %v611 = vadd.f32 0.0, %v610
        %v612 = vpop.f32.mrf.mxu0
        %613 = vmatprep.mubr.bf16.mxu0 0
        %614 = vmatmul.mubr.bf16.gmra.mxu0 %v456
        %v615 = vpop.f32.mrf.mxu0
        %v616 = vadd.f32 0.0, %v615
        %v617 = vpop.f32.mrf.mxu0
        %v618 = vpop.f32.mrf.mxu0
        %v619 = vadd.f32 0.0, %v618
        %v620 = vpop.f32.mrf.mxu0
        %621 = vmatprep.mubr.bf16.mxu0 0
        %622 = vmatmul.mubr.bf16.gmra.mxu0 %v459
        %v623 = vpop.f32.mrf.mxu0
        %v624 = vadd.f32 0.0, %v623
        %v625 = vpop.f32.mrf.mxu0
        %v626 = vpop.f32.mrf.mxu0
        %v627 = vadd.f32 0.0, %v626
        %v628 = vpop.f32.mrf.mxu0
        %629 = vmatprep.mubr.bf16.mxu0 0
        %630 = vmatmul.mubr.bf16.gmra.mxu0 %v462
        %v631 = vpop.f32.mrf.mxu0
        %v632 = vadd.f32 0.0, %v631
        %v633 = vpop.f32.mrf.mxu0
        %v634 = vpop.f32.mrf.mxu0
        %v635 = vadd.f32 0.0, %v634
        %v636 = vpop.f32.mrf.mxu0
        %637 = vmatprep.mubr.bf16.mxu0 0
        %638 = vmatmul.mubr.bf16.gmra.mxu0 %v465
        %v639 = vpop.f32.mrf.mxu0
        %v640 = vadd.f32 0.0, %v639
        %v641 = vpop.f32.mrf.mxu0
        %v642 = vpop.f32.mrf.mxu0
        %v643 = vadd.f32 0.0, %v642
        %v644 = vpop.f32.mrf.mxu0
        %645 = vmatprep.mubr.bf16.mxu0 0
        %646 = vmatmul.mubr.bf16.gmra.mxu0 %v468
        %v647 = vpop.f32.mrf.mxu0
        %v648 = vadd.f32 0.0, %v647
        %v649 = vpop.f32.mrf.mxu0
        %v650 = vpop.f32.mrf.mxu0
        %v651 = vadd.f32 0.0, %v650
        %v652 = vpop.f32.mrf.mxu0
        %653 = vmatprep.mubr.bf16.mxu0 0
        %654 = vmatmul.mubr.bf16.gmra.mxu0 %v471
        %v655 = vpop.f32.mrf.mxu0
        %v656 = vadd.f32 0.0, %v655
        %v657 = vpop.f32.mrf.mxu0
        %v658 = vpop.f32.mrf.mxu0
        %v659 = vadd.f32 0.0, %v658
        %v660 = vpop.f32.mrf.mxu0
        %661 = vmatprep.mubr.bf16.mxu0 0
        %662 = vmatmul.mubr.bf16.gmra.mxu0 %v474
        %v663 = vpop.f32.mrf.mxu0
        %v664 = vadd.f32 0.0, %v663
        %v665 = vpop.f32.mrf.mxu0
        %v666 = vpop.f32.mrf.mxu0
        %v667 = vadd.f32 0.0, %v666
        %v668 = vpop.f32.mrf.mxu0
        %669 = vmatprep.mubr.bf16.mxu0 0
        %670 = vmatmul.mubr.bf16.gmra.mxu0 %v477
        %v671 = vpop.f32.mrf.mxu0
        %v672 = vadd.f32 0.0, %v671
        %v673 = vpop.f32.mrf.mxu0
        %v674 = vpop.f32.mrf.mxu0
        %v675 = vadd.f32 0.0, %v674
        %v676 = vpop.f32.mrf.mxu0
        %677 = vmatprep.mubr.bf16.mxu0 0
        %678 = vmatmul.mubr.bf16.gmra.mxu0 %v480
        %v679 = vpop.f32.mrf.mxu0
        %v680 = vadd.f32 0.0, %v679
        %v681 = vpop.f32.mrf.mxu0
        %v682 = vpop.f32.mrf.mxu0
        %v683 = vadd.f32 0.0, %v682
        %v684 = vpop.f32.mrf.mxu0
        %685 = vmatprep.mubr.bf16.mxu0 0
        %686 = vmatmul.mubr.bf16.gmra.mxu0 %v483
        %v687 = vpop.f32.mrf.mxu0
        %v688 = vadd.f32 0.0, %v687
        %v689 = vpop.f32.mrf.mxu0
        %v690 = vpop.f32.mrf.mxu0
        %v691 = vadd.f32 0.0, %v690
        %v692 = vpop.f32.mrf.mxu0
        %693 = vmatprep.mubr.bf16.mxu0 0
        %694 = vmatmul.mubr.bf16.gmra.mxu0 %v486
        %v695 = vpop.f32.mrf.mxu0
        %v696 = vadd.f32 0.0, %v695
        %v697 = vpop.f32.mrf.mxu0
        %v698 = vpop.f32.mrf.mxu0
        %v699 = vadd.f32 0.0, %v698
        %v700 = vpop.f32.mrf.mxu0
        %701 = vmatprep.mubr.bf16.mxu0 0
        %702 = vmatmul.mubr.bf16.gmra.mxu0 %v489
        %v703 = vpop.f32.mrf.mxu0
        %v704 = vadd.f32 0.0, %v703
        %v705 = vpop.f32.mrf.mxu0
        %v706 = vpop.f32.mrf.mxu0
        %v707 = vadd.f32 0.0, %v706
        %v708 = vpop.f32.mrf.mxu0
        %709 = vmatprep.mubr.bf16.mxu0 0
        %710 = vmatmul.mubr.bf16.gmra.mxu0 %v492
        %v711 = vpop.f32.mrf.mxu0
        %v712 = vadd.f32 0.0, %v711
        %v713 = vpop.f32.mrf.mxu0
        %v714 = vpop.f32.mrf.mxu0
        %v715 = vadd.f32 0.0, %v714
        %v716 = vpop.f32.mrf.mxu0
        %717 = vmatprep.mubr.bf16.mxu0 0
        %718 = vmatmul.mubr.bf16.gmra.mxu0 %v495
        %v719 = vpop.f32.mrf.mxu0
        %v720 = vadd.f32 0.0, %v719
        %v721 = vpop.f32.mrf.mxu0
        %v722 = vpop.f32.mrf.mxu0
        %v723 = vadd.f32 0.0, %v722
        %v724 = vpop.f32.mrf.mxu0
        %725 = vmatprep.mubr.bf16.mxu0 0
        %726 = vmatmul.mubr.bf16.gmra.mxu0 %v498
        %v727 = vpop.f32.mrf.mxu0
        %v728 = vadd.f32 0.0, %v727
        %v729 = vpop.f32.mrf.mxu0
        %v730 = vpop.f32.mrf.mxu0
        %v731 = vadd.f32 0.0, %v730
        %v732 = vpop.f32.mrf.mxu0
        %733 = vmatprep.mubr.bf16.mxu0 0
        %734 = vmatmul.mubr.bf16.gmra.mxu0 %v501
        %v735 = vpop.f32.mrf.mxu0
        %v736 = vadd.f32 0.0, %v735
        %v737 = vpop.f32.mrf.mxu0
        %v738 = vpop.f32.mrf.mxu0
        %v739 = vadd.f32 0.0, %v738
        %v740 = vpop.f32.mrf.mxu0
        %741 = vmatprep.mubr.bf16.mxu0 0
        %742 = vmatmul.mubr.bf16.gmra.mxu0 %v504
        %v743 = vpop.f32.mrf.mxu0
        %v744 = vadd.f32 0.0, %v743
        %v745 = vpop.f32.mrf.mxu0
        %v746 = vpop.f32.mrf.mxu0
        %v747 = vadd.f32 0.0, %v746
        %v748 = vpop.f32.mrf.mxu0
        %749 = vmatprep.mubr.bf16.mxu0 0
        %750 = vmatmul.mubr.bf16.gmra.mxu0 %v507
        %v751 = vpop.f32.mrf.mxu0
        %v752 = vadd.f32 0.0, %v751
        %v753 = vpop.f32.mrf.mxu0
        %v754 = vpop.f32.mrf.mxu0
        %v755 = vadd.f32 0.0, %v754
        %v756 = vpop.f32.mrf.mxu0
        %757 = vmatprep.mubr.bf16.mxu0 0
        %758 = vmatmul.mubr.bf16.gmra.mxu0 %v510
        %v759 = vpop.f32.mrf.mxu0
        %v760 = vadd.f32 0.0, %v759
        %v761 = vpop.f32.mrf.mxu0
        %v762 = vpop.f32.mrf.mxu0
        %v763 = vadd.f32 0.0, %v762
        %v764 = vpop.f32.mrf.mxu0
        %765 = vmatprep.mubr.bf16.mxu0 0
        %766 = vmatmul.mubr.bf16.gmra.mxu0 %v513
        %v767 = vpop.f32.mrf.mxu0
        %v768 = vadd.f32 0.0, %v767
        %v769 = vpop.f32.mrf.mxu0
        %v770 = vpop.f32.mrf.mxu0
        %v771 = vadd.f32 0.0, %v770
        %v772 = vpop.f32.mrf.mxu0
        %773 = vmatprep.mubr.bf16.mxu0 0
        %774 = vmatmul.mubr.bf16.gmra.mxu0 %v516
        %v775 = vpop.f32.mrf.mxu0
        %v776 = vadd.f32 0.0, %v775
        %v777 = vpop.f32.mrf.mxu0
        %v778 = vpop.f32.mrf.mxu0
        %v779 = vadd.f32 0.0, %v778
        %v780 = vpop.f32.mrf.mxu0
        %781 = vmatprep.mubr.bf16.mxu0 0
        %782 = vmatmul.mubr.bf16.gmra.mxu0 %v519
        %v783 = vpop.f32.mrf.mxu0
        %v784 = vadd.f32 0.0, %v783
        %v785 = vpop.f32.mrf.mxu0
        %v786 = vpop.f32.mrf.mxu0
        %v787 = vadd.f32 0.0, %v786
        %v788 = vpop.f32.mrf.mxu0
        %789 = vmatprep.mubr.bf16.mxu0 0
        %790 = vmatmul.mubr.bf16.gmra.mxu0 %v522
        %v791 = vpop.f32.mrf.mxu0
        %v792 = vadd.f32 0.0, %v791
        %v793 = vpop.f32.mrf.mxu0
        %v794 = vpop.f32.mrf.mxu0
        %v795 = vadd.f32 0.0, %v794
        %v796 = vpop.f32.mrf.mxu0
        %797 = vmatprep.mubr.bf16.mxu0 0
        %798 = vmatmul.mubr.bf16.gmra.mxu0 %v525
        %v799 = vpop.f32.mrf.mxu0
        %v800 = vadd.f32 0.0, %v799
        %v801 = vpop.f32.mrf.mxu0
        %v802 = vpop.f32.mrf.mxu0
        %v803 = vadd.f32 0.0, %v802
        %v804 = vpop.f32.mrf.mxu0
        %805 = vmatprep.mubr.bf16.mxu0 0
        %806 = vmatmul.mubr.bf16.gmra.mxu0 %v528
        %v807 = vpop.f32.mrf.mxu0
        %v808 = vadd.f32 0.0, %v807
        %v809 = vpop.f32.mrf.mxu0
        %v810 = vpop.f32.mrf.mxu0
        %v811 = vadd.f32 0.0, %v810
        %v812 = vpop.f32.mrf.mxu0
        %813 = vmatprep.mubr.bf16.mxu0 0
        %814 = vmatmul.mubr.bf16.gmra.mxu0 %v531
        %v815 = vpop.f32.mrf.mxu0
        %v816 = vadd.f32 0.0, %v815
        %v817 = vpop.f32.mrf.mxu0
        %v818 = vpop.f32.mrf.mxu0
        %v819 = vadd.f32 0.0, %v818
        %v820 = vpop.f32.mrf.mxu0
        %821 = vdwg.mxu0
        %822 = vst [vmem:[%s166] sm:$0xff] %v568
        %823 = vst [vmem:[%s166 + $0x8] sm:$0xff] %v571
        %824 = vst [vmem:[%s166 + $0x10] sm:$0xff] %v576
        %825 = vst [vmem:[%s166 + $0x18] sm:$0xff] %v579
        %826 = vst [vmem:[%s166 + $0x20] sm:$0xff] %v584
        %827 = vst [vmem:[%s166 + $0x28] sm:$0xff] %v587
        %828 = vst [vmem:[%s166 + $0x30] sm:$0xff] %v592
        %829 = vst [vmem:[%s166 + $0x38] sm:$0xff] %v595
        %830 = vst [vmem:[%s166 + $0x40] sm:$0xff] %v600
        %831 = vst [vmem:[%s166 + $0x48] sm:$0xff] %v603
        %832 = vst [vmem:[%s166 + $0x50] sm:$0xff] %v608
        %833 = vst [vmem:[%s166 + $0x58] sm:$0xff] %v611
        %834 = vst [vmem:[%s166 + $0x60] sm:$0xff] %v616
        %835 = vst [vmem:[%s166 + $0x68] sm:$0xff] %v619
        %836 = vst [vmem:[%s166 + $0x70] sm:$0xff] %v624
        %837 = vst [vmem:[%s166 + $0x78] sm:$0xff] %v627
        %838 = vst [vmem:[%s166 + $0x80] sm:$0xff] %v632
        %839 = vst [vmem:[%s166 + $0x88] sm:$0xff] %v635
        %840 = vst [vmem:[%s166 + $0x90] sm:$0xff] %v640
        %841 = vst [vmem:[%s166 + $0x98] sm:$0xff] %v643
        %842 = vst [vmem:[%s166 + $0xa0] sm:$0xff] %v648
        %843 = vst [vmem:[%s166 + $0xa8] sm:$0xff] %v651
        %844 = vst [vmem:[%s166 + $0xb0] sm:$0xff] %v656
        %845 = vst [vmem:[%s166 + $0xb8] sm:$0xff] %v659
        %846 = vst [vmem:[%s166 + $0xc0] sm:$0xff] %v664
        %847 = vst [vmem:[%s166 + $0xc8] sm:$0xff] %v667
        %848 = vst [vmem:[%s166 + $0xd0] sm:$0xff] %v672
        %849 = vst [vmem:[%s166 + $0xd8] sm:$0xff] %v675
        %850 = vst [vmem:[%s166 + $0xe0] sm:$0xff] %v680
        %851 = vst [vmem:[%s166 + $0xe8] sm:$0xff] %v683
        %852 = vst [vmem:[%s166 + $0xf0] sm:$0xff] %v688
        %853 = vst [vmem:[%s166 + $0xf8] sm:$0xff] %v691
        %854 = vst [vmem:[%s166 + $0x100] sm:$0xff] %v696
        %855 = vst [vmem:[%s166 + $0x108] sm:$0xff] %v699
        %856 = vst [vmem:[%s166 + $0x110] sm:$0xff] %v704
        %857 = vst [vmem:[%s166 + $0x118] sm:$0xff] %v707
        %858 = vst [vmem:[%s166 + $0x120] sm:$0xff] %v712
        %859 = vst [vmem:[%s166 + $0x128] sm:$0xff] %v715
        %860 = vst [vmem:[%s166 + $0x130] sm:$0xff] %v720
        %861 = vst [vmem:[%s166 + $0x138] sm:$0xff] %v723
        %862 = vst [vmem:[%s166 + $0x140] sm:$0xff] %v728
        %863 = vst [vmem:[%s166 + $0x148] sm:$0xff] %v731
        %864 = vst [vmem:[%s166 + $0x150] sm:$0xff] %v736
        %865 = vst [vmem:[%s166 + $0x158] sm:$0xff] %v739
        %866 = vst [vmem:[%s166 + $0x160] sm:$0xff] %v744
        %867 = vst [vmem:[%s166 + $0x168] sm:$0xff] %v747
        %868 = vst [vmem:[%s166 + $0x170] sm:$0xff] %v752
        %869 = vst [vmem:[%s166 + $0x178] sm:$0xff] %v755
        %870 = vst [vmem:[%s166 + $0x180] sm:$0xff] %v760
        %871 = vst [vmem:[%s166 + $0x188] sm:$0xff] %v763
        %872 = vst [vmem:[%s166 + $0x190] sm:$0xff] %v768
        %873 = vst [vmem:[%s166 + $0x198] sm:$0xff] %v771
        %874 = vst [vmem:[%s166 + $0x1a0] sm:$0xff] %v776
        %875 = vst [vmem:[%s166 + $0x1a8] sm:$0xff] %v779
        %876 = vst [vmem:[%s166 + $0x1b0] sm:$0xff] %v784
        %877 = vst [vmem:[%s166 + $0x1b8] sm:$0xff] %v787
        %878 = vst [vmem:[%s166 + $0x1c0] sm:$0xff] %v792
        %879 = vst [vmem:[%s166 + $0x1c8] sm:$0xff] %v795
        %880 = vst [vmem:[%s166 + $0x1d0] sm:$0xff] %v800
        %881 = vst [vmem:[%s166 + $0x1d8] sm:$0xff] %v803
        %882 = vst [vmem:[%s166 + $0x1e0] sm:$0xff] %v808
        %883 = vst [vmem:[%s166 + $0x1e8] sm:$0xff] %v811
        %884 = vst [vmem:[%s166 + $0x1f0] sm:$0xff] %v816
        %885 = vst [vmem:[%s166 + $0x1f8] sm:$0xff] %v819
        %s886 = sand.u32 %s90, 1
        %s887 = scalar_lea.sflag [#allocation3], %s886
        %s888 = sand.u32 %s90, 1
        %s889 = smul.addr %s888, 512
        %s890 = scalar_lea.vmem [#allocation2], %s889
        // Predicated region
        $region29: #{deeplab_forward.19} parent=27 // pred_check
          %p891 = pneg %p100
        $region30: #{deeplab_forward.19} parent=27 // pred_check_branch
          %893 = sbr.rel (%p891) target = $region32
        $region31: #{deeplab_forward.19} parent=27 // pred_region
          %s894 = smul.u32 64, %s21
          %s896 = ssub.s32 8192, 8192
          %897 = vsyncadd %s887, %s896
          %s898 = smul.addr %s20, 128
          %s899 = sadd.s32 %s894, %s898
          %s900 = smul.addr %s899, 128
          %s901 = scalar_lea.hbm %s2, %s900
          %s902 = sshll.u32 %s890, 4
          %s903 = int_to_ptr.vmem [resolvable:$true] %s902
          %908 = dma.vmem_to_hbm [thread:$0]  %s903, 8192, %s901, %s887, 128, 128, 8
        $region32: #{deeplab_forward.19} parent=27 // pred_fallthru
          _
      $region28: #{deeplab_forward.19} parent=5 // pred_fallthru
        _
      %p909 = scmp.le.s32.totalorder 2, %s11
      // Predicated region
      $region33: #{deeplab_forward.19} parent=5 // pred_check
        %p910 = pneg %p909
      $region34: #{deeplab_forward.19} parent=5 // pred_check_branch
        %912 = sbr.rel (%p910) target = $region36
      $region35: #{deeplab_forward.19} parent=5 // pred_region
        %s913 = ssub.s32 %s11, 2
        // Predicated region
        $region37: #{deeplab_forward.19} parent=35 // pred_check
          %p914 = pneg %p106
        $region38: #{deeplab_forward.19} parent=35 // pred_check_branch
          %916 = sbr.rel (%p914) target = $region40
        $region39: #{deeplab_forward.19} parent=35 // pred_region
          %s917 = sand.u32 %s91, 1
          %s918 = scalar_lea.sflag [#allocation3], %s917
          %s919 = sand.u32 %s91, 1
          %s920 = smul.addr %s919, 512
          %s921 = scalar_lea.vmem [#allocation2], %s920
          %922 = dma.done %s918, 8192
        $region40: #{deeplab_forward.19} parent=35 // pred_fallthru
          _
      $region36: #{deeplab_forward.19} parent=5 // pred_fallthru
        _
    $region6: #{deeplab_forward.19} parent=1 // loop_footer
      %s15 = sadd.s32 1, %s11
    $region7: #{deeplab_forward.19} parent=1 // loop_footer_branch
      %10 = sbr.rel target = $region3
    $region8: #{deeplab_forward.19} parent=1 // loop_exit
      _
    %923 = vsyncpa [#allocation3], 1
    %s924 = scalar_lea.sflag [#allocation3], 1
    %925 = vsyncpa %s924, 1

// kernel: deeplab_forward.18
$region0: #{deeplab_forward.18}
  #allocation0 [shape = 'u32[]', space=smem, size = 0x4, offset = 0x4, fixed_abs, tag = 'smem constant byte address 0x4 - core index']
  #allocation1 [shape = 'u32[144,128]{1,0:T(1,128)}', space=vmem, size = 0x12000, scoped, tag = 'internal scratch']
  %s0 = inlined_call_operand.vmem [shape: bf16[128,1152], index: 0, kind: input, shape index: {}]
  %s1 = inlined_call_operand.vmem [shape: bf16[1152,128], index: 1, kind: input, shape index: {}]
  %s2 = inlined_call_operand.vmem [shape: f32[1,128], index: 2, kind: input, shape index: {}]
  %s3 = inlined_call_operand.vmem [shape: f32[1,128], index: 3, kind: input, shape index: {}]
  %s4 = inlined_call_operand.vmem [shape: bf16[128,128], index: 4, kind: input, shape index: {}]
  %s5 = inlined_call_operand.vmem [shape: f32[1,128], index: 5, kind: input, shape index: {}]
  %s6 = inlined_call_operand.vmem [shape: f32[1,128], index: 6, kind: input, shape index: {}]
  %s7 = inlined_call_operand.vmem [shape: bf16[128,128], index: 7, kind: output, shape index: {}]
  %s8 = sld [smem:[#allocation0]]
  $region38: #{deeplab_forward.18} parent=0
    _
  %s10 = ssub.s32 1, %s8
  %s11 = scalar_select 0, %s10, %s8
  // Predicated region
  $region2: #{deeplab_forward.18} parent=0 // pred_check
    _
  $region3: #{deeplab_forward.18} parent=0 // pred_check_branch
    %13 = sbr.rel (0) target = $region5
  $region4: #{deeplab_forward.18} parent=0 // pred_region
    _
  $region5: #{deeplab_forward.18} parent=0 // pred_fallthru
    _
  // Predicated region
  $region6: #{deeplab_forward.18} parent=0 // pred_check
    _
  $region7: #{deeplab_forward.18} parent=0 // pred_check_branch
    %15 = sbr.rel (0) target = $region9
  $region8: #{deeplab_forward.18} parent=0 // pred_region
    _
  $region9: #{deeplab_forward.18} parent=0 // pred_fallthru
    _
  // Predicated region
  $region10: #{deeplab_forward.18} parent=0 // pred_check
    _
  $region11: #{deeplab_forward.18} parent=0 // pred_check_branch
    %17 = sbr.rel (0) target = $region13
  $region12: #{deeplab_forward.18} parent=0 // pred_region
    _
  $region13: #{deeplab_forward.18} parent=0 // pred_fallthru
    _
  // Predicated region
  $region14: #{deeplab_forward.18} parent=0 // pred_check
    _
  $region15: #{deeplab_forward.18} parent=0 // pred_check_branch
    %19 = sbr.rel (0) target = $region17
  $region16: #{deeplab_forward.18} parent=0 // pred_region
    _
  $region17: #{deeplab_forward.18} parent=0 // pred_fallthru
    _
  // Predicated region
  $region18: #{deeplab_forward.18} parent=0 // pred_check
    _
  $region19: #{deeplab_forward.18} parent=0 // pred_check_branch
    %21 = sbr.rel (0) target = $region21
  $region20: #{deeplab_forward.18} parent=0 // pred_region
    _
  $region21: #{deeplab_forward.18} parent=0 // pred_fallthru
    _
  // Predicated region
  $region22: #{deeplab_forward.18} parent=0 // pred_check
    _
  $region23: #{deeplab_forward.18} parent=0 // pred_check_branch
    %23 = sbr.rel (0) target = $region25
  $region24: #{deeplab_forward.18} parent=0 // pred_region
    _
  $region25: #{deeplab_forward.18} parent=0 // pred_fallthru
    _
  // Predicated region
  $region26: #{deeplab_forward.18} parent=0 // pred_check
    _
  $region27: #{deeplab_forward.18} parent=0 // pred_check_branch
    %25 = sbr.rel (0) target = $region29
  $region28: #{deeplab_forward.18} parent=0 // pred_region
    _
  $region29: #{deeplab_forward.18} parent=0 // pred_fallthru
    _
  %v27 = vld [vmem:[%s0] sm:$0xff]
  %v28 = vld [vmem:[%s0 + $0x8] sm:$0xff]
  %v29 = vld [vmem:[%s0 + $0x10] sm:$0xff]
  %v30 = vld [vmem:[%s0 + $0x18] sm:$0xff]
  %v31 = vld [vmem:[%s0 + $0x20] sm:$0xf]
  %v32 = vld [vmem:[%s0 + $0x24] sm:$0xff]
  %v33 = vld [vmem:[%s0 + $0x2c] sm:$0xff]
  %v34 = vld [vmem:[%s0 + $0x34] sm:$0xff]
  %v35 = vld [vmem:[%s0 + $0x3c] sm:$0xff]
  %v36 = vld [vmem:[%s0 + $0x44] sm:$0xf]
  %v37 = vld [vmem:[%s0 + $0x48] sm:$0xff]
  %v38 = vld [vmem:[%s0 + $0x50] sm:$0xff]
  %v39 = vld [vmem:[%s0 + $0x58] sm:$0xff]
  %v40 = vld [vmem:[%s0 + $0x60] sm:$0xff]
  %v41 = vld [vmem:[%s0 + $0x68] sm:$0xf]
  %v42 = vld [vmem:[%s0 + $0x6c] sm:$0xff]
  %v43 = vld [vmem:[%s0 + $0x74] sm:$0xff]
  %v44 = vld [vmem:[%s0 + $0x7c] sm:$0xff]
  %v45 = vld [vmem:[%s0 + $0x84] sm:$0xff]
  %v46 = vld [vmem:[%s0 + $0x8c] sm:$0xf]
  %v47 = vld [vmem:[%s0 + $0x90] sm:$0xff]
  %v48 = vld [vmem:[%s0 + $0x98] sm:$0xff]
  %v49 = vld [vmem:[%s0 + $0xa0] sm:$0xff]
  %v50 = vld [vmem:[%s0 + $0xa8] sm:$0xff]
  %v51 = vld [vmem:[%s0 + $0xb0] sm:$0xf]
  %v52 = vld [vmem:[%s0 + $0xb4] sm:$0xff]
  %v53 = vld [vmem:[%s0 + $0xbc] sm:$0xff]
  %v54 = vld [vmem:[%s0 + $0xc4] sm:$0xff]
  %v55 = vld [vmem:[%s0 + $0xcc] sm:$0xff]
  %v56 = vld [vmem:[%s0 + $0xd4] sm:$0xf]
  %v57 = vld [vmem:[%s0 + $0xd8] sm:$0xff]
  %v58 = vld [vmem:[%s0 + $0xe0] sm:$0xff]
  %v59 = vld [vmem:[%s0 + $0xe8] sm:$0xff]
  %v60 = vld [vmem:[%s0 + $0xf0] sm:$0xff]
  %v61 = vld [vmem:[%s0 + $0xf8] sm:$0xf]
  %v62 = vld [vmem:[%s0 + $0xfc] sm:$0xff]
  %v63 = vld [vmem:[%s0 + $0x104] sm:$0xff]
  %v64 = vld [vmem:[%s0 + $0x10c] sm:$0xff]
  %v65 = vld [vmem:[%s0 + $0x114] sm:$0xff]
  %v66 = vld [vmem:[%s0 + $0x11c] sm:$0xf]
  %v67 = vld [vmem:[%s0 + $0x120] sm:$0xff]
  %v68 = vld [vmem:[%s0 + $0x128] sm:$0xff]
  %v69 = vld [vmem:[%s0 + $0x130] sm:$0xff]
  %v70 = vld [vmem:[%s0 + $0x138] sm:$0xff]
  %v71 = vld [vmem:[%s0 + $0x140] sm:$0xf]
  %v72 = vld [vmem:[%s0 + $0x144] sm:$0xff]
  %v73 = vld [vmem:[%s0 + $0x14c] sm:$0xff]
  %v74 = vld [vmem:[%s0 + $0x154] sm:$0xff]
  %v75 = vld [vmem:[%s0 + $0x15c] sm:$0xff]
  %v76 = vld [vmem:[%s0 + $0x164] sm:$0xf]
  %v77 = vld [vmem:[%s0 + $0x168] sm:$0xff]
  %v78 = vld [vmem:[%s0 + $0x170] sm:$0xff]
  %v79 = vld [vmem:[%s0 + $0x178] sm:$0xff]
  %v80 = vld [vmem:[%s0 + $0x180] sm:$0xff]
  %v81 = vld [vmem:[%s0 + $0x188] sm:$0xf]
  %v82 = vld [vmem:[%s0 + $0x18c] sm:$0xff]
  %v83 = vld [vmem:[%s0 + $0x194] sm:$0xff]
  %v84 = vld [vmem:[%s0 + $0x19c] sm:$0xff]
  %v85 = vld [vmem:[%s0 + $0x1a4] sm:$0xff]
  %v86 = vld [vmem:[%s0 + $0x1ac] sm:$0xf]
  %v87 = vld [vmem:[%s0 + $0x1b0] sm:$0xff]
  %v88 = vld [vmem:[%s0 + $0x1b8] sm:$0xff]
  %v89 = vld [vmem:[%s0 + $0x1c0] sm:$0xff]
  %v90 = vld [vmem:[%s0 + $0x1c8] sm:$0xff]
  %v91 = vld [vmem:[%s0 + $0x1d0] sm:$0xf]
  %v92 = vld [vmem:[%s0 + $0x1d4] sm:$0xff]
  %v93 = vld [vmem:[%s0 + $0x1dc] sm:$0xff]
  %v94 = vld [vmem:[%s0 + $0x1e4] sm:$0xff]
  %v95 = vld [vmem:[%s0 + $0x1ec] sm:$0xff]
  %v96 = vld [vmem:[%s0 + $0x1f4] sm:$0xf]
  %v97 = vld [vmem:[%s0 + $0x1f8] sm:$0xff]
  %v98 = vld [vmem:[%s0 + $0x200] sm:$0xff]
  %v99 = vld [vmem:[%s0 + $0x208] sm:$0xff]
  %v100 = vld [vmem:[%s0 + $0x210] sm:$0xff]
  %v101 = vld [vmem:[%s0 + $0x218] sm:$0xf]
  %v102 = vld [vmem:[%s0 + $0x21c] sm:$0xff]
  %v103 = vld [vmem:[%s0 + $0x224] sm:$0xff]
  %v104 = vld [vmem:[%s0 + $0x22c] sm:$0xff]
  %v105 = vld [vmem:[%s0 + $0x234] sm:$0xff]
  %v106 = vld [vmem:[%s0 + $0x23c] sm:$0xf]
  %v107 = vld [vmem:[%s1] sm:$0xf]
  %v108 = vld [vmem:[%s1 + $0x4] sm:$0xf]
  %v109 = vld [vmem:[%s1 + $0x8] sm:$0xf]
  %v110 = vld [vmem:[%s1 + $0xc] sm:$0xf]
  %v111 = vld [vmem:[%s1 + $0x10] sm:$0xf]
  %v112 = vld [vmem:[%s1 + $0x14] sm:$0xf]
  %v113 = vld [vmem:[%s1 + $0x18] sm:$0xf]
  %v114 = vld [vmem:[%s1 + $0x1c] sm:$0xf]
  %v115 = vld [vmem:[%s1 + $0x20] sm:$0xf]
  %v116 = vld [vmem:[%s1 + $0x24] sm:$0xf]
  %v117 = vld [vmem:[%s1 + $0x28] sm:$0xf]
  %v118 = vld [vmem:[%s1 + $0x2c] sm:$0xf]
  %v119 = vld [vmem:[%s1 + $0x30] sm:$0xf]
  %v120 = vld [vmem:[%s1 + $0x34] sm:$0xf]
  %v121 = vld [vmem:[%s1 + $0x38] sm:$0xf]
  %v122 = vld [vmem:[%s1 + $0x3c] sm:$0xf]
  %v123 = vld [vmem:[%s1 + $0x40] sm:$0xf]
  %v124 = vld [vmem:[%s1 + $0x44] sm:$0xf]
  %v125 = vld [vmem:[%s1 + $0x48] sm:$0xf]
  %v126 = vld [vmem:[%s1 + $0x4c] sm:$0xf]
  %v127 = vld [vmem:[%s1 + $0x50] sm:$0xf]
  %v128 = vld [vmem:[%s1 + $0x54] sm:$0xf]
  %v129 = vld [vmem:[%s1 + $0x58] sm:$0xf]
  %v130 = vld [vmem:[%s1 + $0x5c] sm:$0xf]
  %v131 = vld [vmem:[%s1 + $0x60] sm:$0xf]
  %v132 = vld [vmem:[%s1 + $0x64] sm:$0xf]
  %v133 = vld [vmem:[%s1 + $0x68] sm:$0xf]
  %v134 = vld [vmem:[%s1 + $0x6c] sm:$0xf]
  %v135 = vld [vmem:[%s1 + $0x70] sm:$0xf]
  %v136 = vld [vmem:[%s1 + $0x74] sm:$0xf]
  %v137 = vld [vmem:[%s1 + $0x78] sm:$0xf]
  %v138 = vld [vmem:[%s1 + $0x7c] sm:$0xf]
  %v139 = vld [vmem:[%s1 + $0x80] sm:$0xf]
  %v140 = vld [vmem:[%s1 + $0x84] sm:$0xf]
  %v141 = vld [vmem:[%s1 + $0x88] sm:$0xf]
  %v142 = vld [vmem:[%s1 + $0x8c] sm:$0xf]
  %v143 = vld [vmem:[%s1 + $0x90] sm:$0xf]
  %v144 = vld [vmem:[%s1 + $0x94] sm:$0xf]
  %v145 = vld [vmem:[%s1 + $0x98] sm:$0xf]
  %v146 = vld [vmem:[%s1 + $0x9c] sm:$0xf]
  %v147 = vld [vmem:[%s1 + $0xa0] sm:$0xf]
  %v148 = vld [vmem:[%s1 + $0xa4] sm:$0xf]
  %v149 = vld [vmem:[%s1 + $0xa8] sm:$0xf]
  %v150 = vld [vmem:[%s1 + $0xac] sm:$0xf]
  %v151 = vld [vmem:[%s1 + $0xb0] sm:$0xf]
  %v152 = vld [vmem:[%s1 + $0xb4] sm:$0xf]
  %v153 = vld [vmem:[%s1 + $0xb8] sm:$0xf]
  %v154 = vld [vmem:[%s1 + $0xbc] sm:$0xf]
  %v155 = vld [vmem:[%s1 + $0xc0] sm:$0xf]
  %v156 = vld [vmem:[%s1 + $0xc4] sm:$0xf]
  %v157 = vld [vmem:[%s1 + $0xc8] sm:$0xf]
  %v158 = vld [vmem:[%s1 + $0xcc] sm:$0xf]
  %v159 = vld [vmem:[%s1 + $0xd0] sm:$0xf]
  %v160 = vld [vmem:[%s1 + $0xd4] sm:$0xf]
  %v161 = vld [vmem:[%s1 + $0xd8] sm:$0xf]
  %v162 = vld [vmem:[%s1 + $0xdc] sm:$0xf]
  %v163 = vld [vmem:[%s1 + $0xe0] sm:$0xf]
  %v164 = vld [vmem:[%s1 + $0xe4] sm:$0xf]
  %v165 = vld [vmem:[%s1 + $0xe8] sm:$0xf]
  %v166 = vld [vmem:[%s1 + $0xec] sm:$0xf]
  %v167 = vld [vmem:[%s1 + $0xf0] sm:$0xf]
  %v168 = vld [vmem:[%s1 + $0xf4] sm:$0xf]
  %v169 = vld [vmem:[%s1 + $0xf8] sm:$0xf]
  %v170 = vld [vmem:[%s1 + $0xfc] sm:$0xf]
  %v171 = vld [vmem:[%s1 + $0x100] sm:$0xf]
  %v172 = vld [vmem:[%s1 + $0x104] sm:$0xf]
  %v173 = vld [vmem:[%s1 + $0x108] sm:$0xf]
  %v174 = vld [vmem:[%s1 + $0x10c] sm:$0xf]
  %v175 = vld [vmem:[%s1 + $0x110] sm:$0xf]
  %v176 = vld [vmem:[%s1 + $0x114] sm:$0xf]
  %v177 = vld [vmem:[%s1 + $0x118] sm:$0xf]
  %v178 = vld [vmem:[%s1 + $0x11c] sm:$0xf]
  %v179 = vld [vmem:[%s1 + $0x120] sm:$0xf]
  %v180 = vld [vmem:[%s1 + $0x124] sm:$0xf]
  %v181 = vld [vmem:[%s1 + $0x128] sm:$0xf]
  %v182 = vld [vmem:[%s1 + $0x12c] sm:$0xf]
  %v183 = vld [vmem:[%s1 + $0x130] sm:$0xf]
  %v184 = vld [vmem:[%s1 + $0x134] sm:$0xf]
  %v185 = vld [vmem:[%s1 + $0x138] sm:$0xf]
  %v186 = vld [vmem:[%s1 + $0x13c] sm:$0xf]
  %v187 = vld [vmem:[%s1 + $0x140] sm:$0xf]
  %v188 = vld [vmem:[%s1 + $0x144] sm:$0xf]
  %v189 = vld [vmem:[%s1 + $0x148] sm:$0xf]
  %v190 = vld [vmem:[%s1 + $0x14c] sm:$0xf]
  %v191 = vld [vmem:[%s1 + $0x150] sm:$0xf]
  %v192 = vld [vmem:[%s1 + $0x154] sm:$0xf]
  %v193 = vld [vmem:[%s1 + $0x158] sm:$0xf]
  %v194 = vld [vmem:[%s1 + $0x15c] sm:$0xf]
  %v195 = vld [vmem:[%s1 + $0x160] sm:$0xf]
  %v196 = vld [vmem:[%s1 + $0x164] sm:$0xf]
  %v197 = vld [vmem:[%s1 + $0x168] sm:$0xf]
  %v198 = vld [vmem:[%s1 + $0x16c] sm:$0xf]
  %v199 = vld [vmem:[%s1 + $0x170] sm:$0xf]
  %v200 = vld [vmem:[%s1 + $0x174] sm:$0xf]
  %v201 = vld [vmem:[%s1 + $0x178] sm:$0xf]
  %v202 = vld [vmem:[%s1 + $0x17c] sm:$0xf]
  %v203 = vld [vmem:[%s1 + $0x180] sm:$0xf]
  %v204 = vld [vmem:[%s1 + $0x184] sm:$0xf]
  %v205 = vld [vmem:[%s1 + $0x188] sm:$0xf]
  %v206 = vld [vmem:[%s1 + $0x18c] sm:$0xf]
  %v207 = vld [vmem:[%s1 + $0x190] sm:$0xf]
  %v208 = vld [vmem:[%s1 + $0x194] sm:$0xf]
  %v209 = vld [vmem:[%s1 + $0x198] sm:$0xf]
  %v210 = vld [vmem:[%s1 + $0x19c] sm:$0xf]
  %v211 = vld [vmem:[%s1 + $0x1a0] sm:$0xf]
  %v212 = vld [vmem:[%s1 + $0x1a4] sm:$0xf]
  %v213 = vld [vmem:[%s1 + $0x1a8] sm:$0xf]
  %v214 = vld [vmem:[%s1 + $0x1ac] sm:$0xf]
  %v215 = vld [vmem:[%s1 + $0x1b0] sm:$0xf]
  %v216 = vld [vmem:[%s1 + $0x1b4] sm:$0xf]
  %v217 = vld [vmem:[%s1 + $0x1b8] sm:$0xf]
  %v218 = vld [vmem:[%s1 + $0x1bc] sm:$0xf]
  %v219 = vld [vmem:[%s1 + $0x1c0] sm:$0xf]
  %v220 = vld [vmem:[%s1 + $0x1c4] sm:$0xf]
  %v221 = vld [vmem:[%s1 + $0x1c8] sm:$0xf]
  %v222 = vld [vmem:[%s1 + $0x1cc] sm:$0xf]
  %v223 = vld [vmem:[%s1 + $0x1d0] sm:$0xf]
  %v224 = vld [vmem:[%s1 + $0x1d4] sm:$0xf]
  %v225 = vld [vmem:[%s1 + $0x1d8] sm:$0xf]
  %v226 = vld [vmem:[%s1 + $0x1dc] sm:$0xf]
  %v227 = vld [vmem:[%s1 + $0x1e0] sm:$0xf]
  %v228 = vld [vmem:[%s1 + $0x1e4] sm:$0xf]
  %v229 = vld [vmem:[%s1 + $0x1e8] sm:$0xf]
  %v230 = vld [vmem:[%s1 + $0x1ec] sm:$0xf]
  %v231 = vld [vmem:[%s1 + $0x1f0] sm:$0xf]
  %v232 = vld [vmem:[%s1 + $0x1f4] sm:$0xf]
  %v233 = vld [vmem:[%s1 + $0x1f8] sm:$0xf]
  %v234 = vld [vmem:[%s1 + $0x1fc] sm:$0xf]
  %v235 = vld [vmem:[%s1 + $0x200] sm:$0xf]
  %v236 = vld [vmem:[%s1 + $0x204] sm:$0xf]
  %v237 = vld [vmem:[%s1 + $0x208] sm:$0xf]
  %v238 = vld [vmem:[%s1 + $0x20c] sm:$0xf]
  %v239 = vld [vmem:[%s1 + $0x210] sm:$0xf]
  %v240 = vld [vmem:[%s1 + $0x214] sm:$0xf]
  %v241 = vld [vmem:[%s1 + $0x218] sm:$0xf]
  %v242 = vld [vmem:[%s1 + $0x21c] sm:$0xf]
  %v243 = vld [vmem:[%s1 + $0x220] sm:$0xf]
  %v244 = vld [vmem:[%s1 + $0x224] sm:$0xf]
  %v245 = vld [vmem:[%s1 + $0x228] sm:$0xf]
  %v246 = vld [vmem:[%s1 + $0x22c] sm:$0xf]
  %v247 = vld [vmem:[%s1 + $0x230] sm:$0xf]
  %v248 = vld [vmem:[%s1 + $0x234] sm:$0xf]
  %v249 = vld [vmem:[%s1 + $0x238] sm:$0xf]
  %v250 = vld [vmem:[%s1 + $0x23c] sm:$0xf]
  %v331 = vunpack.c.l.b16 %v27
  %v332 = vunpack.c.h.b16 %v27
  %v333 = vunpack.c.l.b16 %v28
  %v334 = vunpack.c.h.b16 %v28
  %v335 = vunpack.c.l.b16 %v29
  %v336 = vunpack.c.h.b16 %v29
  %v337 = vunpack.c.l.b16 %v30
  %v338 = vunpack.c.h.b16 %v30
  %v339 = vunpack.c.l.b16 %v31
  %v340 = vunpack.c.l.b16 %v32
  %v341 = vunpack.c.h.b16 %v32
  %v342 = vunpack.c.l.b16 %v33
  %v343 = vunpack.c.h.b16 %v33
  %v344 = vunpack.c.l.b16 %v34
  %v345 = vunpack.c.h.b16 %v34
  %v346 = vunpack.c.l.b16 %v35
  %v347 = vunpack.c.h.b16 %v35
  %v348 = vunpack.c.l.b16 %v36
  %v349 = vunpack.c.l.b16 %v37
  %v350 = vunpack.c.h.b16 %v37
  %v351 = vunpack.c.l.b16 %v38
  %v352 = vunpack.c.h.b16 %v38
  %v353 = vunpack.c.l.b16 %v39
  %v354 = vunpack.c.h.b16 %v39
  %v355 = vunpack.c.l.b16 %v40
  %v356 = vunpack.c.h.b16 %v40
  %v357 = vunpack.c.l.b16 %v41
  %v358 = vunpack.c.l.b16 %v42
  %v359 = vunpack.c.h.b16 %v42
  %v360 = vunpack.c.l.b16 %v43
  %v361 = vunpack.c.h.b16 %v43
  %v362 = vunpack.c.l.b16 %v44
  %v363 = vunpack.c.h.b16 %v44
  %v364 = vunpack.c.l.b16 %v45
  %v365 = vunpack.c.h.b16 %v45
  %v366 = vunpack.c.l.b16 %v46
  %v367 = vunpack.c.l.b16 %v47
  %v368 = vunpack.c.h.b16 %v47
  %v369 = vunpack.c.l.b16 %v48
  %v370 = vunpack.c.h.b16 %v48
  %v371 = vunpack.c.l.b16 %v49
  %v372 = vunpack.c.h.b16 %v49
  %v373 = vunpack.c.l.b16 %v50
  %v374 = vunpack.c.h.b16 %v50
  %v375 = vunpack.c.l.b16 %v51
  %v376 = vunpack.c.l.b16 %v52
  %v377 = vunpack.c.h.b16 %v52
  %v378 = vunpack.c.l.b16 %v53
  %v379 = vunpack.c.h.b16 %v53
  %v380 = vunpack.c.l.b16 %v54
  %v381 = vunpack.c.h.b16 %v54
  %v382 = vunpack.c.l.b16 %v55
  %v383 = vunpack.c.h.b16 %v55
  %v384 = vunpack.c.l.b16 %v56
  %v385 = vunpack.c.l.b16 %v57
  %v386 = vunpack.c.h.b16 %v57
  %v387 = vunpack.c.l.b16 %v58
  %v388 = vunpack.c.h.b16 %v58
  %v389 = vunpack.c.l.b16 %v59
  %v390 = vunpack.c.h.b16 %v59
  %v391 = vunpack.c.l.b16 %v60
  %v392 = vunpack.c.h.b16 %v60
  %v393 = vunpack.c.l.b16 %v61
  %v394 = vunpack.c.l.b16 %v62
  %v395 = vunpack.c.h.b16 %v62
  %v396 = vunpack.c.l.b16 %v63
  %v397 = vunpack.c.h.b16 %v63
  %v398 = vunpack.c.l.b16 %v64
  %v399 = vunpack.c.h.b16 %v64
  %v400 = vunpack.c.l.b16 %v65
  %v401 = vunpack.c.h.b16 %v65
  %v402 = vunpack.c.l.b16 %v66
  %v403 = vunpack.c.l.b16 %v67
  %v404 = vunpack.c.h.b16 %v67
  %v405 = vunpack.c.l.b16 %v68
  %v406 = vunpack.c.h.b16 %v68
  %v407 = vunpack.c.l.b16 %v69
  %v408 = vunpack.c.h.b16 %v69
  %v409 = vunpack.c.l.b16 %v70
  %v410 = vunpack.c.h.b16 %v70
  %v411 = vunpack.c.l.b16 %v71
  %v412 = vunpack.c.l.b16 %v72
  %v413 = vunpack.c.h.b16 %v72
  %v414 = vunpack.c.l.b16 %v73
  %v415 = vunpack.c.h.b16 %v73
  %v416 = vunpack.c.l.b16 %v74
  %v417 = vunpack.c.h.b16 %v74
  %v418 = vunpack.c.l.b16 %v75
  %v419 = vunpack.c.h.b16 %v75
  %v420 = vunpack.c.l.b16 %v76
  %v421 = vunpack.c.l.b16 %v77
  %v422 = vunpack.c.h.b16 %v77
  %v423 = vunpack.c.l.b16 %v78
  %v424 = vunpack.c.h.b16 %v78
  %v425 = vunpack.c.l.b16 %v79
  %v426 = vunpack.c.h.b16 %v79
  %v427 = vunpack.c.l.b16 %v80
  %v428 = vunpack.c.h.b16 %v80
  %v429 = vunpack.c.l.b16 %v81
  %v430 = vunpack.c.l.b16 %v82
  %v431 = vunpack.c.h.b16 %v82
  %v432 = vunpack.c.l.b16 %v83
  %v433 = vunpack.c.h.b16 %v83
  %v434 = vunpack.c.l.b16 %v84
  %v435 = vunpack.c.h.b16 %v84
  %v436 = vunpack.c.l.b16 %v85
  %v437 = vunpack.c.h.b16 %v85
  %v438 = vunpack.c.l.b16 %v86
  %v439 = vunpack.c.l.b16 %v87
  %v440 = vunpack.c.h.b16 %v87
  %v441 = vunpack.c.l.b16 %v88
  %v442 = vunpack.c.h.b16 %v88
  %v443 = vunpack.c.l.b16 %v89
  %v444 = vunpack.c.h.b16 %v89
  %v445 = vunpack.c.l.b16 %v90
  %v446 = vunpack.c.h.b16 %v90
  %v447 = vunpack.c.l.b16 %v91
  %v448 = vunpack.c.l.b16 %v92
  %v449 = vunpack.c.h.b16 %v92
  %v450 = vunpack.c.l.b16 %v93
  %v451 = vunpack.c.h.b16 %v93
  %v452 = vunpack.c.l.b16 %v94
  %v453 = vunpack.c.h.b16 %v94
  %v454 = vunpack.c.l.b16 %v95
  %v455 = vunpack.c.h.b16 %v95
  %v456 = vunpack.c.l.b16 %v96
  %v457 = vunpack.c.l.b16 %v97
  %v458 = vunpack.c.h.b16 %v97
  %v459 = vunpack.c.l.b16 %v98
  %v460 = vunpack.c.h.b16 %v98
  %v461 = vunpack.c.l.b16 %v99
  %v462 = vunpack.c.h.b16 %v99
  %v463 = vunpack.c.l.b16 %v100
  %v464 = vunpack.c.h.b16 %v100
  %v465 = vunpack.c.l.b16 %v101
  %v466 = vunpack.c.l.b16 %v102
  %v467 = vunpack.c.h.b16 %v102
  %v468 = vunpack.c.l.b16 %v103
  %v469 = vunpack.c.h.b16 %v103
  %v470 = vunpack.c.l.b16 %v104
  %v471 = vunpack.c.h.b16 %v104
  %v472 = vunpack.c.l.b16 %v105
  %v473 = vunpack.c.h.b16 %v105
  %v474 = vunpack.c.l.b16 %v106
  %v475 = vpack.c.b16 %v340, %v331
  %v476 = vpack.c.b16 %v341, %v332
  %v477 = vpack.c.b16 %v342, %v333
  %v478 = vpack.c.b16 %v343, %v334
  %v479 = vpack.c.b16 %v344, %v335
  %v480 = vpack.c.b16 %v345, %v336
  %v481 = vpack.c.b16 %v346, %v337
  %v482 = vpack.c.b16 %v347, %v338
  %v483 = vpack.c.b16 %v348, %v339
  %v484 = vpack.c.b16 %v358, %v349
  %v485 = vpack.c.b16 %v359, %v350
  %v486 = vpack.c.b16 %v360, %v351
  %v487 = vpack.c.b16 %v361, %v352
  %v488 = vpack.c.b16 %v362, %v353
  %v489 = vpack.c.b16 %v363, %v354
  %v490 = vpack.c.b16 %v364, %v355
  %v491 = vpack.c.b16 %v365, %v356
  %v492 = vpack.c.b16 %v366, %v357
  %v493 = vpack.c.b16 %v376, %v367
  %v494 = vpack.c.b16 %v377, %v368
  %v495 = vpack.c.b16 %v378, %v369
  %v496 = vpack.c.b16 %v379, %v370
  %v497 = vpack.c.b16 %v380, %v371
  %v498 = vpack.c.b16 %v381, %v372
  %v499 = vpack.c.b16 %v382, %v373
  %v500 = vpack.c.b16 %v383, %v374
  %v501 = vpack.c.b16 %v384, %v375
  %v502 = vpack.c.b16 %v394, %v385
  %v503 = vpack.c.b16 %v395, %v386
  %v504 = vpack.c.b16 %v396, %v387
  %v505 = vpack.c.b16 %v397, %v388
  %v506 = vpack.c.b16 %v398, %v389
  %v507 = vpack.c.b16 %v399, %v390
  %v508 = vpack.c.b16 %v400, %v391
  %v509 = vpack.c.b16 %v401, %v392
  %v510 = vpack.c.b16 %v402, %v393
  %v511 = vpack.c.b16 %v412, %v403
  %v512 = vpack.c.b16 %v413, %v404
  %v513 = vpack.c.b16 %v414, %v405
  %v514 = vpack.c.b16 %v415, %v406
  %v515 = vpack.c.b16 %v416, %v407
  %v516 = vpack.c.b16 %v417, %v408
  %v517 = vpack.c.b16 %v418, %v409
  %v518 = vpack.c.b16 %v419, %v410
  %v519 = vpack.c.b16 %v420, %v411
  %v520 = vpack.c.b16 %v430, %v421
  %v521 = vpack.c.b16 %v431, %v422
  %v522 = vpack.c.b16 %v432, %v423
  %v523 = vpack.c.b16 %v433, %v424
  %v524 = vpack.c.b16 %v434, %v425
  %v525 = vpack.c.b16 %v435, %v426
  %v526 = vpack.c.b16 %v436, %v427
  %v527 = vpack.c.b16 %v437, %v428
  %v528 = vpack.c.b16 %v438, %v429
  %v529 = vpack.c.b16 %v448, %v439
  %v530 = vpack.c.b16 %v449, %v440
  %v531 = vpack.c.b16 %v450, %v441
  %v532 = vpack.c.b16 %v451, %v442
  %v533 = vpack.c.b16 %v452, %v443
  %v534 = vpack.c.b16 %v453, %v444
  %v535 = vpack.c.b16 %v454, %v445
  %v536 = vpack.c.b16 %v455, %v446
  %v537 = vpack.c.b16 %v456, %v447
  %v538 = vpack.c.b16 %v466, %v457
  %v539 = vpack.c.b16 %v467, %v458
  %v540 = vpack.c.b16 %v468, %v459
  %v541 = vpack.c.b16 %v469, %v460
  %v542 = vpack.c.b16 %v470, %v461
  %v543 = vpack.c.b16 %v471, %v462
  %v544 = vpack.c.b16 %v472, %v463
  %v545 = vpack.c.b16 %v473, %v464
  %v546 = vpack.c.b16 %v474, %v465
  %v763 = vunpack.c.l.b16 %v107
  %v764 = vunpack.c.l.b16 %v108
  %v765 = vunpack.c.l.b16 %v109
  %v766 = vunpack.c.l.b16 %v110
  %v767 = vunpack.c.l.b16 %v111
  %v768 = vunpack.c.l.b16 %v112
  %v769 = vunpack.c.l.b16 %v113
  %v770 = vunpack.c.l.b16 %v114
  %v771 = vunpack.c.l.b16 %v115
  %v772 = vunpack.c.l.b16 %v116
  %v773 = vunpack.c.l.b16 %v117
  %v774 = vunpack.c.l.b16 %v118
  %v775 = vunpack.c.l.b16 %v119
  %v776 = vunpack.c.l.b16 %v120
  %v777 = vunpack.c.l.b16 %v121
  %v778 = vunpack.c.l.b16 %v122
  %v779 = vunpack.c.l.b16 %v123
  %v780 = vunpack.c.l.b16 %v124
  %v781 = vunpack.c.l.b16 %v125
  %v782 = vunpack.c.l.b16 %v126
  %v783 = vunpack.c.l.b16 %v127
  %v784 = vunpack.c.l.b16 %v128
  %v785 = vunpack.c.l.b16 %v129
  %v786 = vunpack.c.l.b16 %v130
  %v787 = vunpack.c.l.b16 %v131
  %v788 = vunpack.c.l.b16 %v132
  %v789 = vunpack.c.l.b16 %v133
  %v790 = vunpack.c.l.b16 %v134
  %v791 = vunpack.c.l.b16 %v135
  %v792 = vunpack.c.l.b16 %v136
  %v793 = vunpack.c.l.b16 %v137
  %v794 = vunpack.c.l.b16 %v138
  %v795 = vunpack.c.l.b16 %v139
  %v796 = vunpack.c.l.b16 %v140
  %v797 = vunpack.c.l.b16 %v141
  %v798 = vunpack.c.l.b16 %v142
  %v799 = vunpack.c.l.b16 %v143
  %v800 = vunpack.c.l.b16 %v144
  %v801 = vunpack.c.l.b16 %v145
  %v802 = vunpack.c.l.b16 %v146
  %v803 = vunpack.c.l.b16 %v147
  %v804 = vunpack.c.l.b16 %v148
  %v805 = vunpack.c.l.b16 %v149
  %v806 = vunpack.c.l.b16 %v150
  %v807 = vunpack.c.l.b16 %v151
  %v808 = vunpack.c.l.b16 %v152
  %v809 = vunpack.c.l.b16 %v153
  %v810 = vunpack.c.l.b16 %v154
  %v811 = vunpack.c.l.b16 %v155
  %v812 = vunpack.c.l.b16 %v156
  %v813 = vunpack.c.l.b16 %v157
  %v814 = vunpack.c.l.b16 %v158
  %v815 = vunpack.c.l.b16 %v159
  %v816 = vunpack.c.l.b16 %v160
  %v817 = vunpack.c.l.b16 %v161
  %v818 = vunpack.c.l.b16 %v162
  %v819 = vunpack.c.l.b16 %v163
  %v820 = vunpack.c.l.b16 %v164
  %v821 = vunpack.c.l.b16 %v165
  %v822 = vunpack.c.l.b16 %v166
  %v823 = vunpack.c.l.b16 %v167
  %v824 = vunpack.c.l.b16 %v168
  %v825 = vunpack.c.l.b16 %v169
  %v826 = vunpack.c.l.b16 %v170
  %v827 = vunpack.c.l.b16 %v171
  %v828 = vunpack.c.l.b16 %v172
  %v829 = vunpack.c.l.b16 %v173
  %v830 = vunpack.c.l.b16 %v174
  %v831 = vunpack.c.l.b16 %v175
  %v832 = vunpack.c.l.b16 %v176
  %v833 = vunpack.c.l.b16 %v177
  %v834 = vunpack.c.l.b16 %v178
  %v835 = vunpack.c.l.b16 %v179
  %v836 = vunpack.c.l.b16 %v180
  %v837 = vunpack.c.l.b16 %v181
  %v838 = vunpack.c.l.b16 %v182
  %v839 = vunpack.c.l.b16 %v183
  %v840 = vunpack.c.l.b16 %v184
  %v841 = vunpack.c.l.b16 %v185
  %v842 = vunpack.c.l.b16 %v186
  %v843 = vunpack.c.l.b16 %v187
  %v844 = vunpack.c.l.b16 %v188
  %v845 = vunpack.c.l.b16 %v189
  %v846 = vunpack.c.l.b16 %v190
  %v847 = vunpack.c.l.b16 %v191
  %v848 = vunpack.c.l.b16 %v192
  %v849 = vunpack.c.l.b16 %v193
  %v850 = vunpack.c.l.b16 %v194
  %v851 = vunpack.c.l.b16 %v195
  %v852 = vunpack.c.l.b16 %v196
  %v853 = vunpack.c.l.b16 %v197
  %v854 = vunpack.c.l.b16 %v198
  %v855 = vunpack.c.l.b16 %v199
  %v856 = vunpack.c.l.b16 %v200
  %v857 = vunpack.c.l.b16 %v201
  %v858 = vunpack.c.l.b16 %v202
  %v859 = vunpack.c.l.b16 %v203
  %v860 = vunpack.c.l.b16 %v204
  %v861 = vunpack.c.l.b16 %v205
  %v862 = vunpack.c.l.b16 %v206
  %v863 = vunpack.c.l.b16 %v207
  %v864 = vunpack.c.l.b16 %v208
  %v865 = vunpack.c.l.b16 %v209
  %v866 = vunpack.c.l.b16 %v210
  %v867 = vunpack.c.l.b16 %v211
  %v868 = vunpack.c.l.b16 %v212
  %v869 = vunpack.c.l.b16 %v213
  %v870 = vunpack.c.l.b16 %v214
  %v871 = vunpack.c.l.b16 %v215
  %v872 = vunpack.c.l.b16 %v216
  %v873 = vunpack.c.l.b16 %v217
  %v874 = vunpack.c.l.b16 %v218
  %v875 = vunpack.c.l.b16 %v219
  %v876 = vunpack.c.l.b16 %v220
  %v877 = vunpack.c.l.b16 %v221
  %v878 = vunpack.c.l.b16 %v222
  %v879 = vunpack.c.l.b16 %v223
  %v880 = vunpack.c.l.b16 %v224
  %v881 = vunpack.c.l.b16 %v225
  %v882 = vunpack.c.l.b16 %v226
  %v883 = vunpack.c.l.b16 %v227
  %v884 = vunpack.c.l.b16 %v228
  %v885 = vunpack.c.l.b16 %v229
  %v886 = vunpack.c.l.b16 %v230
  %v887 = vunpack.c.l.b16 %v231
  %v888 = vunpack.c.l.b16 %v232
  %v889 = vunpack.c.l.b16 %v233
  %v890 = vunpack.c.l.b16 %v234
  %v891 = vunpack.c.l.b16 %v235
  %v892 = vunpack.c.l.b16 %v236
  %v893 = vunpack.c.l.b16 %v237
  %v894 = vunpack.c.l.b16 %v238
  %v895 = vunpack.c.l.b16 %v239
  %v896 = vunpack.c.l.b16 %v240
  %v897 = vunpack.c.l.b16 %v241
  %v898 = vunpack.c.l.b16 %v242
  %v899 = vunpack.c.l.b16 %v243
  %v900 = vunpack.c.l.b16 %v244
  %v901 = vunpack.c.l.b16 %v245
  %v902 = vunpack.c.l.b16 %v246
  %v903 = vunpack.c.l.b16 %v247
  %v904 = vunpack.c.l.b16 %v248
  %v905 = vunpack.c.l.b16 %v249
  %v906 = vunpack.c.l.b16 %v250
  %v907 = vpack.c.b16 %v764, %v763
  %v908 = vpack.c.b16 %v766, %v765
  %v909 = vpack.c.b16 %v768, %v767
  %v910 = vpack.c.b16 %v770, %v769
  %v911 = vpack.c.b16 %v772, %v771
  %v912 = vpack.c.b16 %v774, %v773
  %v913 = vpack.c.b16 %v776, %v775
  %v914 = vpack.c.b16 %v778, %v777
  %v915 = vpack.c.b16 %v780, %v779
  %v916 = vpack.c.b16 %v782, %v781
  %v917 = vpack.c.b16 %v784, %v783
  %v918 = vpack.c.b16 %v786, %v785
  %v919 = vpack.c.b16 %v788, %v787
  %v920 = vpack.c.b16 %v790, %v789
  %v921 = vpack.c.b16 %v792, %v791
  %v922 = vpack.c.b16 %v794, %v793
  %v923 = vpack.c.b16 %v796, %v795
  %v924 = vpack.c.b16 %v798, %v797
  %v925 = vpack.c.b16 %v800, %v799
  %v926 = vpack.c.b16 %v802, %v801
  %v927 = vpack.c.b16 %v804, %v803
  %v928 = vpack.c.b16 %v806, %v805
  %v929 = vpack.c.b16 %v808, %v807
  %v930 = vpack.c.b16 %v810, %v809
  %v931 = vpack.c.b16 %v812, %v811
  %v932 = vpack.c.b16 %v814, %v813
  %v933 = vpack.c.b16 %v816, %v815
  %v934 = vpack.c.b16 %v818, %v817
  %v935 = vpack.c.b16 %v820, %v819
  %v936 = vpack.c.b16 %v822, %v821
  %v937 = vpack.c.b16 %v824, %v823
  %v938 = vpack.c.b16 %v826, %v825
  %v939 = vpack.c.b16 %v828, %v827
  %v940 = vpack.c.b16 %v830, %v829
  %v941 = vpack.c.b16 %v832, %v831
  %v942 = vpack.c.b16 %v834, %v833
  %v943 = vpack.c.b16 %v836, %v835
  %v944 = vpack.c.b16 %v838, %v837
  %v945 = vpack.c.b16 %v840, %v839
  %v946 = vpack.c.b16 %v842, %v841
  %v947 = vpack.c.b16 %v844, %v843
  %v948 = vpack.c.b16 %v846, %v845
  %v949 = vpack.c.b16 %v848, %v847
  %v950 = vpack.c.b16 %v850, %v849
  %v951 = vpack.c.b16 %v852, %v851
  %v952 = vpack.c.b16 %v854, %v853
  %v953 = vpack.c.b16 %v856, %v855
  %v954 = vpack.c.b16 %v858, %v857
  %v955 = vpack.c.b16 %v860, %v859
  %v956 = vpack.c.b16 %v862, %v861
  %v957 = vpack.c.b16 %v864, %v863
  %v958 = vpack.c.b16 %v866, %v865
  %v959 = vpack.c.b16 %v868, %v867
  %v960 = vpack.c.b16 %v870, %v869
  %v961 = vpack.c.b16 %v872, %v871
  %v962 = vpack.c.b16 %v874, %v873
  %v963 = vpack.c.b16 %v876, %v875
  %v964 = vpack.c.b16 %v878, %v877
  %v965 = vpack.c.b16 %v880, %v879
  %v966 = vpack.c.b16 %v882, %v881
  %v967 = vpack.c.b16 %v884, %v883
  %v968 = vpack.c.b16 %v886, %v885
  %v969 = vpack.c.b16 %v888, %v887
  %v970 = vpack.c.b16 %v890, %v889
  %v971 = vpack.c.b16 %v892, %v891
  %v972 = vpack.c.b16 %v894, %v893
  %v973 = vpack.c.b16 %v896, %v895
  %v974 = vpack.c.b16 %v898, %v897
  %v975 = vpack.c.b16 %v900, %v899
  %v976 = vpack.c.b16 %v902, %v901
  %v977 = vpack.c.b16 %v904, %v903
  %v978 = vpack.c.b16 %v906, %v905
  %1051 = vmatprep.subr.bf16.mxu0 0
  %1052 = vmatpush1.bf16.msra.mxu0 %v914
  %1053 = vmatprep.subr.bf16.mxu0 0
  %1054 = vmatpush1.bf16.msra.mxu0 %v913
  %1055 = vmatprep.subr.bf16.mxu0 0
  %1056 = vmatpush1.bf16.msra.mxu0 %v912
  %1057 = vmatprep.subr.bf16.mxu0 0
  %1058 = vmatpush1.bf16.msra.mxu0 %v911
  %1059 = vmatprep.subr.bf16.mxu0 0
  %1060 = vmatpush1.bf16.msra.mxu0 %v910
  %1061 = vmatprep.subr.bf16.mxu0 0
  %1062 = vmatpush1.bf16.msra.mxu0 %v909
  %1063 = vmatprep.subr.bf16.mxu0 0
  %1064 = vmatpush1.bf16.msra.mxu0 %v908
  %1065 = vmatprep.subr.bf16.mxu0 0
  %1066 = vmatpush1.bf16.msra.mxu0 %v907
  %1067 = vmatprep.subr.bf16.mxu0 0
  %1068 = vmatpush2.bf16.msra.mxu0 %v922
  %1069 = vmatprep.subr.bf16.mxu0 0
  %1070 = vmatpush2.bf16.msra.mxu0 %v921
  %1071 = vmatprep.subr.bf16.mxu0 0
  %1072 = vmatpush2.bf16.msra.mxu0 %v920
  %1073 = vmatprep.subr.bf16.mxu0 0
  %1074 = vmatpush2.bf16.msra.mxu0 %v919
  %1075 = vmatprep.subr.bf16.mxu0 0
  %1076 = vmatpush2.bf16.msra.mxu0 %v918
  %1077 = vmatprep.subr.bf16.mxu0 0
  %1078 = vmatpush2.bf16.msra.mxu0 %v917
  %1079 = vmatprep.subr.bf16.mxu0 0
  %1080 = vmatpush2.bf16.msra.mxu0 %v916
  %1081 = vmatprep.subr.bf16.mxu0 0
  %1082 = vmatpush2.bf16.msra.mxu0 %v915
  %1083 = vmatprep.mubr.bf16.mxu0 %v476
  %1084 = vmatmul.mubr.bf16.gmra.mxu0 %v475
  %v1085 = vpop.f32.mrf.mxu0
  %v1086 = vadd.f32 0.0, %v1085
  %v1087 = vpop.f32.mrf.mxu0
  %v1088 = vpop.f32.mrf.mxu0
  %v1089 = vadd.f32 0.0, %v1088
  %v1090 = vpop.f32.mrf.mxu0
  %1091 = vmatprep.mubr.bf16.mxu0 %v485
  %1092 = vmatmul.mubr.bf16.gmra.mxu0 %v484
  %v1093 = vpop.f32.mrf.mxu0
  %v1094 = vadd.f32 0.0, %v1093
  %v1095 = vpop.f32.mrf.mxu0
  %v1096 = vpop.f32.mrf.mxu0
  %v1097 = vadd.f32 0.0, %v1096
  %v1098 = vpop.f32.mrf.mxu0
  %1099 = vmatprep.mubr.bf16.mxu0 %v494
  %1100 = vmatmul.mubr.bf16.gmra.mxu0 %v493
  %v1101 = vpop.f32.mrf.mxu0
  %v1102 = vadd.f32 0.0, %v1101
  %v1103 = vpop.f32.mrf.mxu0
  %v1104 = vpop.f32.mrf.mxu0
  %v1105 = vadd.f32 0.0, %v1104
  %v1106 = vpop.f32.mrf.mxu0
  %1107 = vmatprep.mubr.bf16.mxu0 %v503
  %1108 = vmatmul.mubr.bf16.gmra.mxu0 %v502
  %v1109 = vpop.f32.mrf.mxu0
  %v1110 = vadd.f32 0.0, %v1109
  %v1111 = vpop.f32.mrf.mxu0
  %v1112 = vpop.f32.mrf.mxu0
  %v1113 = vadd.f32 0.0, %v1112
  %v1114 = vpop.f32.mrf.mxu0
  %1115 = vmatprep.mubr.bf16.mxu0 %v512
  %1116 = vmatmul.mubr.bf16.gmra.mxu0 %v511
  %v1117 = vpop.f32.mrf.mxu0
  %v1118 = vadd.f32 0.0, %v1117
  %v1119 = vpop.f32.mrf.mxu0
  %v1120 = vpop.f32.mrf.mxu0
  %v1121 = vadd.f32 0.0, %v1120
  %v1122 = vpop.f32.mrf.mxu0
  %1123 = vmatprep.mubr.bf16.mxu0 %v521
  %1124 = vmatmul.mubr.bf16.gmra.mxu0 %v520
  %v1125 = vpop.f32.mrf.mxu0
  %v1126 = vadd.f32 0.0, %v1125
  %v1127 = vpop.f32.mrf.mxu0
  %v1128 = vpop.f32.mrf.mxu0
  %v1129 = vadd.f32 0.0, %v1128
  %v1130 = vpop.f32.mrf.mxu0
  %1131 = vmatprep.mubr.bf16.mxu0 %v530
  %1132 = vmatmul.mubr.bf16.gmra.mxu0 %v529
  %v1133 = vpop.f32.mrf.mxu0
  %v1134 = vadd.f32 0.0, %v1133
  %v1135 = vpop.f32.mrf.mxu0
  %v1136 = vpop.f32.mrf.mxu0
  %v1137 = vadd.f32 0.0, %v1136
  %v1138 = vpop.f32.mrf.mxu0
  %1139 = vmatprep.mubr.bf16.mxu0 %v539
  %1140 = vmatmul.mubr.bf16.gmra.mxu0 %v538
  %v1141 = vpop.f32.mrf.mxu0
  %v1142 = vadd.f32 0.0, %v1141
  %v1143 = vpop.f32.mrf.mxu0
  %v1144 = vpop.f32.mrf.mxu0
  %v1145 = vadd.f32 0.0, %v1144
  %v1146 = vpop.f32.mrf.mxu0
  %1147 = vdwg.mxu0
  %1148 = vmatprep.subr.bf16.mxu0 0
  %1149 = vmatpush1.bf16.msra.mxu0 %v930
  %1150 = vmatprep.subr.bf16.mxu0 0
  %1151 = vmatpush1.bf16.msra.mxu0 %v929
  %1152 = vmatprep.subr.bf16.mxu0 0
  %1153 = vmatpush1.bf16.msra.mxu0 %v928
  %1154 = vmatprep.subr.bf16.mxu0 0
  %1155 = vmatpush1.bf16.msra.mxu0 %v927
  %1156 = vmatprep.subr.bf16.mxu0 0
  %1157 = vmatpush1.bf16.msra.mxu0 %v926
  %1158 = vmatprep.subr.bf16.mxu0 0
  %1159 = vmatpush1.bf16.msra.mxu0 %v925
  %1160 = vmatprep.subr.bf16.mxu0 0
  %1161 = vmatpush1.bf16.msra.mxu0 %v924
  %1162 = vmatprep.subr.bf16.mxu0 0
  %1163 = vmatpush1.bf16.msra.mxu0 %v923
  %1164 = vmatprep.subr.bf16.mxu0 0
  %1165 = vmatpush2.bf16.msra.mxu0 %v938
  %1166 = vmatprep.subr.bf16.mxu0 0
  %1167 = vmatpush2.bf16.msra.mxu0 %v937
  %1168 = vmatprep.subr.bf16.mxu0 0
  %1169 = vmatpush2.bf16.msra.mxu0 %v936
  %1170 = vmatprep.subr.bf16.mxu0 0
  %1171 = vmatpush2.bf16.msra.mxu0 %v935
  %1172 = vmatprep.subr.bf16.mxu0 0
  %1173 = vmatpush2.bf16.msra.mxu0 %v934
  %1174 = vmatprep.subr.bf16.mxu0 0
  %1175 = vmatpush2.bf16.msra.mxu0 %v933
  %1176 = vmatprep.subr.bf16.mxu0 0
  %1177 = vmatpush2.bf16.msra.mxu0 %v932
  %1178 = vmatprep.subr.bf16.mxu0 0
  %1179 = vmatpush2.bf16.msra.mxu0 %v931
  %1180 = vmatprep.mubr.bf16.mxu0 %v478
  %1181 = vmatmul.mubr.bf16.gmra.mxu0 %v477
  %v1182 = vpop.f32.mrf.mxu0
  %v1183 = vadd.f32 %v1086, %v1182
  %v1184 = vpop.f32.mrf.mxu0
  %v1185 = vpop.f32.mrf.mxu0
  %v1186 = vadd.f32 %v1089, %v1185
  %v1187 = vpop.f32.mrf.mxu0
  %1188 = vmatprep.mubr.bf16.mxu0 %v487
  %1189 = vmatmul.mubr.bf16.gmra.mxu0 %v486
  %v1190 = vpop.f32.mrf.mxu0
  %v1191 = vadd.f32 %v1094, %v1190
  %v1192 = vpop.f32.mrf.mxu0
  %v1193 = vpop.f32.mrf.mxu0
  %v1194 = vadd.f32 %v1097, %v1193
  %v1195 = vpop.f32.mrf.mxu0
  %1196 = vmatprep.mubr.bf16.mxu0 %v496
  %1197 = vmatmul.mubr.bf16.gmra.mxu0 %v495
  %v1198 = vpop.f32.mrf.mxu0
  %v1199 = vadd.f32 %v1102, %v1198
  %v1200 = vpop.f32.mrf.mxu0
  %v1201 = vpop.f32.mrf.mxu0
  %v1202 = vadd.f32 %v1105, %v1201
  %v1203 = vpop.f32.mrf.mxu0
  %1204 = vmatprep.mubr.bf16.mxu0 %v505
  %1205 = vmatmul.mubr.bf16.gmra.mxu0 %v504
  %v1206 = vpop.f32.mrf.mxu0
  %v1207 = vadd.f32 %v1110, %v1206
  %v1208 = vpop.f32.mrf.mxu0
  %v1209 = vpop.f32.mrf.mxu0
  %v1210 = vadd.f32 %v1113, %v1209
  %v1211 = vpop.f32.mrf.mxu0
  %1212 = vmatprep.mubr.bf16.mxu0 %v514
  %1213 = vmatmul.mubr.bf16.gmra.mxu0 %v513
  %v1214 = vpop.f32.mrf.mxu0
  %v1215 = vadd.f32 %v1118, %v1214
  %v1216 = vpop.f32.mrf.mxu0
  %v1217 = vpop.f32.mrf.mxu0
  %v1218 = vadd.f32 %v1121, %v1217
  %v1219 = vpop.f32.mrf.mxu0
  %1220 = vmatprep.mubr.bf16.mxu0 %v523
  %1221 = vmatmul.mubr.bf16.gmra.mxu0 %v522
  %v1222 = vpop.f32.mrf.mxu0
  %v1223 = vadd.f32 %v1126, %v1222
  %v1224 = vpop.f32.mrf.mxu0
  %v1225 = vpop.f32.mrf.mxu0
  %v1226 = vadd.f32 %v1129, %v1225
  %v1227 = vpop.f32.mrf.mxu0
  %1228 = vmatprep.mubr.bf16.mxu0 %v532
  %1229 = vmatmul.mubr.bf16.gmra.mxu0 %v531
  %v1230 = vpop.f32.mrf.mxu0
  %v1231 = vadd.f32 %v1134, %v1230
  %v1232 = vpop.f32.mrf.mxu0
  %v1233 = vpop.f32.mrf.mxu0
  %v1234 = vadd.f32 %v1137, %v1233
  %v1235 = vpop.f32.mrf.mxu0
  %1236 = vmatprep.mubr.bf16.mxu0 %v541
  %1237 = vmatmul.mubr.bf16.gmra.mxu0 %v540
  %v1238 = vpop.f32.mrf.mxu0
  %v1239 = vadd.f32 %v1142, %v1238
  %v1240 = vpop.f32.mrf.mxu0
  %v1241 = vpop.f32.mrf.mxu0
  %v1242 = vadd.f32 %v1145, %v1241
  %v1243 = vpop.f32.mrf.mxu0
  %1244 = vdwg.mxu0
  %1245 = vmatprep.subr.bf16.mxu0 0
  %1246 = vmatpush1.bf16.msra.mxu0 %v946
  %1247 = vmatprep.subr.bf16.mxu0 0
  %1248 = vmatpush1.bf16.msra.mxu0 %v945
  %1249 = vmatprep.subr.bf16.mxu0 0
  %1250 = vmatpush1.bf16.msra.mxu0 %v944
  %1251 = vmatprep.subr.bf16.mxu0 0
  %1252 = vmatpush1.bf16.msra.mxu0 %v943
  %1253 = vmatprep.subr.bf16.mxu0 0
  %1254 = vmatpush1.bf16.msra.mxu0 %v942
  %1255 = vmatprep.subr.bf16.mxu0 0
  %1256 = vmatpush1.bf16.msra.mxu0 %v941
  %1257 = vmatprep.subr.bf16.mxu0 0
  %1258 = vmatpush1.bf16.msra.mxu0 %v940
  %1259 = vmatprep.subr.bf16.mxu0 0
  %1260 = vmatpush1.bf16.msra.mxu0 %v939
  %1261 = vmatprep.subr.bf16.mxu0 0
  %1262 = vmatpush2.bf16.msra.mxu0 %v954
  %1263 = vmatprep.subr.bf16.mxu0 0
  %1264 = vmatpush2.bf16.msra.mxu0 %v953
  %1265 = vmatprep.subr.bf16.mxu0 0
  %1266 = vmatpush2.bf16.msra.mxu0 %v952
  %1267 = vmatprep.subr.bf16.mxu0 0
  %1268 = vmatpush2.bf16.msra.mxu0 %v951
  %1269 = vmatprep.subr.bf16.mxu0 0
  %1270 = vmatpush2.bf16.msra.mxu0 %v950
  %1271 = vmatprep.subr.bf16.mxu0 0
  %1272 = vmatpush2.bf16.msra.mxu0 %v949
  %1273 = vmatprep.subr.bf16.mxu0 0
  %1274 = vmatpush2.bf16.msra.mxu0 %v948
  %1275 = vmatprep.subr.bf16.mxu0 0
  %1276 = vmatpush2.bf16.msra.mxu0 %v947
  %1277 = vmatprep.mubr.bf16.mxu0 %v480
  %1278 = vmatmul.mubr.bf16.gmra.mxu0 %v479
  %v1279 = vpop.f32.mrf.mxu0
  %v1280 = vadd.f32 %v1183, %v1279
  %v1281 = vpop.f32.mrf.mxu0
  %v1282 = vpop.f32.mrf.mxu0
  %v1283 = vadd.f32 %v1186, %v1282
  %v1284 = vpop.f32.mrf.mxu0
  %1285 = vmatprep.mubr.bf16.mxu0 %v489
  %1286 = vmatmul.mubr.bf16.gmra.mxu0 %v488
  %v1287 = vpop.f32.mrf.mxu0
  %v1288 = vadd.f32 %v1191, %v1287
  %v1289 = vpop.f32.mrf.mxu0
  %v1290 = vpop.f32.mrf.mxu0
  %v1291 = vadd.f32 %v1194, %v1290
  %v1292 = vpop.f32.mrf.mxu0
  %1293 = vmatprep.mubr.bf16.mxu0 %v498
  %1294 = vmatmul.mubr.bf16.gmra.mxu0 %v497
  %v1295 = vpop.f32.mrf.mxu0
  %v1296 = vadd.f32 %v1199, %v1295
  %v1297 = vpop.f32.mrf.mxu0
  %v1298 = vpop.f32.mrf.mxu0
  %v1299 = vadd.f32 %v1202, %v1298
  %v1300 = vpop.f32.mrf.mxu0
  %1301 = vmatprep.mubr.bf16.mxu0 %v507
  %1302 = vmatmul.mubr.bf16.gmra.mxu0 %v506
  %v1303 = vpop.f32.mrf.mxu0
  %v1304 = vadd.f32 %v1207, %v1303
  %v1305 = vpop.f32.mrf.mxu0
  %v1306 = vpop.f32.mrf.mxu0
  %v1307 = vadd.f32 %v1210, %v1306
  %v1308 = vpop.f32.mrf.mxu0
  %1309 = vmatprep.mubr.bf16.mxu0 %v516
  %1310 = vmatmul.mubr.bf16.gmra.mxu0 %v515
  %v1311 = vpop.f32.mrf.mxu0
  %v1312 = vadd.f32 %v1215, %v1311
  %v1313 = vpop.f32.mrf.mxu0
  %v1314 = vpop.f32.mrf.mxu0
  %v1315 = vadd.f32 %v1218, %v1314
  %v1316 = vpop.f32.mrf.mxu0
  %1317 = vmatprep.mubr.bf16.mxu0 %v525
  %1318 = vmatmul.mubr.bf16.gmra.mxu0 %v524
  %v1319 = vpop.f32.mrf.mxu0
  %v1320 = vadd.f32 %v1223, %v1319
  %v1321 = vpop.f32.mrf.mxu0
  %v1322 = vpop.f32.mrf.mxu0
  %v1323 = vadd.f32 %v1226, %v1322
  %v1324 = vpop.f32.mrf.mxu0
  %1325 = vmatprep.mubr.bf16.mxu0 %v534
  %1326 = vmatmul.mubr.bf16.gmra.mxu0 %v533
  %v1327 = vpop.f32.mrf.mxu0
  %v1328 = vadd.f32 %v1231, %v1327
  %v1329 = vpop.f32.mrf.mxu0
  %v1330 = vpop.f32.mrf.mxu0
  %v1331 = vadd.f32 %v1234, %v1330
  %v1332 = vpop.f32.mrf.mxu0
  %1333 = vmatprep.mubr.bf16.mxu0 %v543
  %1334 = vmatmul.mubr.bf16.gmra.mxu0 %v542
  %v1335 = vpop.f32.mrf.mxu0
  %v1336 = vadd.f32 %v1239, %v1335
  %v1337 = vpop.f32.mrf.mxu0
  %v1338 = vpop.f32.mrf.mxu0
  %v1339 = vadd.f32 %v1242, %v1338
  %v1340 = vpop.f32.mrf.mxu0
  %1341 = vdwg.mxu0
  %1342 = vmatprep.subr.bf16.mxu0 0
  %1343 = vmatpush1.bf16.msra.mxu0 %v962
  %1344 = vmatprep.subr.bf16.mxu0 0
  %1345 = vmatpush1.bf16.msra.mxu0 %v961
  %1346 = vmatprep.subr.bf16.mxu0 0
  %1347 = vmatpush1.bf16.msra.mxu0 %v960
  %1348 = vmatprep.subr.bf16.mxu0 0
  %1349 = vmatpush1.bf16.msra.mxu0 %v959
  %1350 = vmatprep.subr.bf16.mxu0 0
  %1351 = vmatpush1.bf16.msra.mxu0 %v958
  %1352 = vmatprep.subr.bf16.mxu0 0
  %1353 = vmatpush1.bf16.msra.mxu0 %v957
  %1354 = vmatprep.subr.bf16.mxu0 0
  %1355 = vmatpush1.bf16.msra.mxu0 %v956
  %1356 = vmatprep.subr.bf16.mxu0 0
  %1357 = vmatpush1.bf16.msra.mxu0 %v955
  %1358 = vmatprep.subr.bf16.mxu0 0
  %1359 = vmatpush2.bf16.msra.mxu0 %v970
  %1360 = vmatprep.subr.bf16.mxu0 0
  %1361 = vmatpush2.bf16.msra.mxu0 %v969
  %1362 = vmatprep.subr.bf16.mxu0 0
  %1363 = vmatpush2.bf16.msra.mxu0 %v968
  %1364 = vmatprep.subr.bf16.mxu0 0
  %1365 = vmatpush2.bf16.msra.mxu0 %v967
  %1366 = vmatprep.subr.bf16.mxu0 0
  %1367 = vmatpush2.bf16.msra.mxu0 %v966
  %1368 = vmatprep.subr.bf16.mxu0 0
  %1369 = vmatpush2.bf16.msra.mxu0 %v965
  %1370 = vmatprep.subr.bf16.mxu0 0
  %1371 = vmatpush2.bf16.msra.mxu0 %v964
  %1372 = vmatprep.subr.bf16.mxu0 0
  %1373 = vmatpush2.bf16.msra.mxu0 %v963
  %1374 = vmatprep.mubr.bf16.mxu0 %v482
  %1375 = vmatmul.mubr.bf16.gmra.mxu0 %v481
  %v1376 = vpop.f32.mrf.mxu0
  %v1377 = vadd.f32 %v1280, %v1376
  %v1378 = vpop.f32.mrf.mxu0
  %v1379 = vpop.f32.mrf.mxu0
  %v1380 = vadd.f32 %v1283, %v1379
  %v1381 = vpop.f32.mrf.mxu0
  %1382 = vmatprep.mubr.bf16.mxu0 %v491
  %1383 = vmatmul.mubr.bf16.gmra.mxu0 %v490
  %v1384 = vpop.f32.mrf.mxu0
  %v1385 = vadd.f32 %v1288, %v1384
  %v1386 = vpop.f32.mrf.mxu0
  %v1387 = vpop.f32.mrf.mxu0
  %v1388 = vadd.f32 %v1291, %v1387
  %v1389 = vpop.f32.mrf.mxu0
  %1390 = vmatprep.mubr.bf16.mxu0 %v500
  %1391 = vmatmul.mubr.bf16.gmra.mxu0 %v499
  %v1392 = vpop.f32.mrf.mxu0
  %v1393 = vadd.f32 %v1296, %v1392
  %v1394 = vpop.f32.mrf.mxu0
  %v1395 = vpop.f32.mrf.mxu0
  %v1396 = vadd.f32 %v1299, %v1395
  %v1397 = vpop.f32.mrf.mxu0
  %1398 = vmatprep.mubr.bf16.mxu0 %v509
  %1399 = vmatmul.mubr.bf16.gmra.mxu0 %v508
  %v1400 = vpop.f32.mrf.mxu0
  %v1401 = vadd.f32 %v1304, %v1400
  %v1402 = vpop.f32.mrf.mxu0
  %v1403 = vpop.f32.mrf.mxu0
  %v1404 = vadd.f32 %v1307, %v1403
  %v1405 = vpop.f32.mrf.mxu0
  %1406 = vmatprep.mubr.bf16.mxu0 %v518
  %1407 = vmatmul.mubr.bf16.gmra.mxu0 %v517
  %v1408 = vpop.f32.mrf.mxu0
  %v1409 = vadd.f32 %v1312, %v1408
  %v1410 = vpop.f32.mrf.mxu0
  %v1411 = vpop.f32.mrf.mxu0
  %v1412 = vadd.f32 %v1315, %v1411
  %v1413 = vpop.f32.mrf.mxu0
  %1414 = vmatprep.mubr.bf16.mxu0 %v527
  %1415 = vmatmul.mubr.bf16.gmra.mxu0 %v526
  %v1416 = vpop.f32.mrf.mxu0
  %v1417 = vadd.f32 %v1320, %v1416
  %v1418 = vpop.f32.mrf.mxu0
  %v1419 = vpop.f32.mrf.mxu0
  %v1420 = vadd.f32 %v1323, %v1419
  %v1421 = vpop.f32.mrf.mxu0
  %1422 = vmatprep.mubr.bf16.mxu0 %v536
  %1423 = vmatmul.mubr.bf16.gmra.mxu0 %v535
  %v1424 = vpop.f32.mrf.mxu0
  %v1425 = vadd.f32 %v1328, %v1424
  %v1426 = vpop.f32.mrf.mxu0
  %v1427 = vpop.f32.mrf.mxu0
  %v1428 = vadd.f32 %v1331, %v1427
  %v1429 = vpop.f32.mrf.mxu0
  %1430 = vmatprep.mubr.bf16.mxu0 %v545
  %1431 = vmatmul.mubr.bf16.gmra.mxu0 %v544
  %v1432 = vpop.f32.mrf.mxu0
  %v1433 = vadd.f32 %v1336, %v1432
  %v1434 = vpop.f32.mrf.mxu0
  %v1435 = vpop.f32.mrf.mxu0
  %v1436 = vadd.f32 %v1339, %v1435
  %v1437 = vpop.f32.mrf.mxu0
  %1438 = vdwg.mxu0
  %1439 = vmatprep.subr.bf16.mxu0 0
  %1440 = vmatpush1.bf16.msra.mxu0 %v978
  %1441 = vmatprep.subr.bf16.mxu0 0
  %1442 = vmatpush1.bf16.msra.mxu0 %v977
  %1443 = vmatprep.subr.bf16.mxu0 0
  %1444 = vmatpush1.bf16.msra.mxu0 %v976
  %1445 = vmatprep.subr.bf16.mxu0 0
  %1446 = vmatpush1.bf16.msra.mxu0 %v975
  %1447 = vmatprep.subr.bf16.mxu0 0
  %1448 = vmatpush1.bf16.msra.mxu0 %v974
  %1449 = vmatprep.subr.bf16.mxu0 0
  %1450 = vmatpush1.bf16.msra.mxu0 %v973
  %1451 = vmatprep.subr.bf16.mxu0 0
  %1452 = vmatpush1.bf16.msra.mxu0 %v972
  %1453 = vmatprep.subr.bf16.mxu0 0
  %1454 = vmatpush1.bf16.msra.mxu0 %v971
  %1455 = vmatprep.subr.bf16.mxu0 0
  %1456 = vmatpush2.bf16.msra.mxu0 0
  %1457 = vmatprep.subr.bf16.mxu0 0
  %1458 = vmatpush2.bf16.msra.mxu0 0
  %1459 = vmatprep.subr.bf16.mxu0 0
  %1460 = vmatpush2.bf16.msra.mxu0 0
  %1461 = vmatprep.subr.bf16.mxu0 0
  %1462 = vmatpush2.bf16.msra.mxu0 0
  %1463 = vmatprep.subr.bf16.mxu0 0
  %1464 = vmatpush2.bf16.msra.mxu0 0
  %1465 = vmatprep.subr.bf16.mxu0 0
  %1466 = vmatpush2.bf16.msra.mxu0 0
  %1467 = vmatprep.subr.bf16.mxu0 0
  %1468 = vmatpush2.bf16.msra.mxu0 0
  %1469 = vmatprep.subr.bf16.mxu0 0
  %1470 = vmatpush2.bf16.msra.mxu0 0
  %1471 = vmatprep.mubr.bf16.mxu0 0
  %1472 = vmatmul.mubr.bf16.gmra.mxu0 %v483
  %v1473 = vpop.f32.mrf.mxu0
  %v1474 = vadd.f32 %v1377, %v1473
  %v1475 = vpop.f32.mrf.mxu0
  %v1476 = vpop.f32.mrf.mxu0
  %v1477 = vadd.f32 %v1380, %v1476
  %v1478 = vpop.f32.mrf.mxu0
  %1479 = vmatprep.mubr.bf16.mxu0 0
  %1480 = vmatmul.mubr.bf16.gmra.mxu0 %v492
  %v1481 = vpop.f32.mrf.mxu0
  %v1482 = vadd.f32 %v1385, %v1481
  %v1483 = vpop.f32.mrf.mxu0
  %v1484 = vpop.f32.mrf.mxu0
  %v1485 = vadd.f32 %v1388, %v1484
  %v1486 = vpop.f32.mrf.mxu0
  %1487 = vmatprep.mubr.bf16.mxu0 0
  %1488 = vmatmul.mubr.bf16.gmra.mxu0 %v501
  %v1489 = vpop.f32.mrf.mxu0
  %v1490 = vadd.f32 %v1393, %v1489
  %v1491 = vpop.f32.mrf.mxu0
  %v1492 = vpop.f32.mrf.mxu0
  %v1493 = vadd.f32 %v1396, %v1492
  %v1494 = vpop.f32.mrf.mxu0
  %1495 = vmatprep.mubr.bf16.mxu0 0
  %1496 = vmatmul.mubr.bf16.gmra.mxu0 %v510
  %v1497 = vpop.f32.mrf.mxu0
  %v1498 = vadd.f32 %v1401, %v1497
  %v1499 = vpop.f32.mrf.mxu0
  %v1500 = vpop.f32.mrf.mxu0
  %v1501 = vadd.f32 %v1404, %v1500
  %v1502 = vpop.f32.mrf.mxu0
  %1503 = vmatprep.mubr.bf16.mxu0 0
  %1504 = vmatmul.mubr.bf16.gmra.mxu0 %v519
  %v1505 = vpop.f32.mrf.mxu0
  %v1506 = vadd.f32 %v1409, %v1505
  %v1507 = vpop.f32.mrf.mxu0
  %v1508 = vpop.f32.mrf.mxu0
  %v1509 = vadd.f32 %v1412, %v1508
  %v1510 = vpop.f32.mrf.mxu0
  %1511 = vmatprep.mubr.bf16.mxu0 0
  %1512 = vmatmul.mubr.bf16.gmra.mxu0 %v528
  %v1513 = vpop.f32.mrf.mxu0
  %v1514 = vadd.f32 %v1417, %v1513
  %v1515 = vpop.f32.mrf.mxu0
  %v1516 = vpop.f32.mrf.mxu0
  %v1517 = vadd.f32 %v1420, %v1516
  %v1518 = vpop.f32.mrf.mxu0
  %1519 = vmatprep.mubr.bf16.mxu0 0
  %1520 = vmatmul.mubr.bf16.gmra.mxu0 %v537
  %v1521 = vpop.f32.mrf.mxu0
  %v1522 = vadd.f32 %v1425, %v1521
  %v1523 = vpop.f32.mrf.mxu0
  %v1524 = vpop.f32.mrf.mxu0
  %v1525 = vadd.f32 %v1428, %v1524
  %v1526 = vpop.f32.mrf.mxu0
  %1527 = vmatprep.mubr.bf16.mxu0 0
  %1528 = vmatmul.mubr.bf16.gmra.mxu0 %v546
  %v1529 = vpop.f32.mrf.mxu0
  %v1530 = vadd.f32 %v1433, %v1529
  %v1531 = vpop.f32.mrf.mxu0
  %v1532 = vpop.f32.mrf.mxu0
  %v1533 = vadd.f32 %v1436, %v1532
  %v1534 = vpop.f32.mrf.mxu0
  %1535 = vdwg.mxu0
  %v1536 = vld [vmem:[%s2] sm:$0x1]
  %v1538 = vlaneseq
  %v1539 = vshrl.u32 %v1538, 7
  %v1540 = vsub.s32 0, %v1539
  %v1541 = vrot.slane %v1536, %v1540
  %v1543 = vmul.f32 %v1474, %v1541
  %v1544 = vmul.f32 %v1477, %v1541
  %v1545 = vmul.f32 %v1482, %v1541
  %v1546 = vmul.f32 %v1485, %v1541
  %v1547 = vmul.f32 %v1490, %v1541
  %v1548 = vmul.f32 %v1493, %v1541
  %v1549 = vmul.f32 %v1498, %v1541
  %v1550 = vmul.f32 %v1501, %v1541
  %v1551 = vmul.f32 %v1506, %v1541
  %v1552 = vmul.f32 %v1509, %v1541
  %v1553 = vmul.f32 %v1514, %v1541
  %v1554 = vmul.f32 %v1517, %v1541
  %v1555 = vmul.f32 %v1522, %v1541
  %v1556 = vmul.f32 %v1525, %v1541
  %v1557 = vmul.f32 %v1530, %v1541
  %v1558 = vmul.f32 %v1533, %v1541
  %v1559 = vld [vmem:[%s3] sm:$0x1]
  %v1561 = vlaneseq
  %v1562 = vshrl.u32 %v1561, 7
  %v1563 = vsub.s32 0, %v1562
  %v1564 = vrot.slane %v1559, %v1563
  %v1566 = vadd.f32 %v1543, %v1564
  %v1567 = vadd.f32 %v1544, %v1564
  %v1568 = vadd.f32 %v1545, %v1564
  %v1569 = vadd.f32 %v1546, %v1564
  %v1570 = vadd.f32 %v1547, %v1564
  %v1571 = vadd.f32 %v1548, %v1564
  %v1572 = vadd.f32 %v1549, %v1564
  %v1573 = vadd.f32 %v1550, %v1564
  %v1574 = vadd.f32 %v1551, %v1564
  %v1575 = vadd.f32 %v1552, %v1564
  %v1576 = vadd.f32 %v1553, %v1564
  %v1577 = vadd.f32 %v1554, %v1564
  %v1578 = vadd.f32 %v1555, %v1564
  %v1579 = vadd.f32 %v1556, %v1564
  %v1580 = vadd.f32 %v1557, %v1564
  %v1581 = vadd.f32 %v1558, %v1564
  %v1582 = vmax.f32 %v1566, 0.0
  %v1583 = vmax.f32 %v1567, 0.0
  %v1584 = vmax.f32 %v1568, 0.0
  %v1585 = vmax.f32 %v1569, 0.0
  %v1586 = vmax.f32 %v1570, 0.0
  %v1587 = vmax.f32 %v1571, 0.0
  %v1588 = vmax.f32 %v1572, 0.0
  %v1589 = vmax.f32 %v1573, 0.0
  %v1590 = vmax.f32 %v1574, 0.0
  %v1591 = vmax.f32 %v1575, 0.0
  %v1592 = vmax.f32 %v1576, 0.0
  %v1593 = vmax.f32 %v1577, 0.0
  %v1594 = vmax.f32 %v1578, 0.0
  %v1595 = vmax.f32 %v1579, 0.0
  %v1596 = vmax.f32 %v1580, 0.0
  %v1597 = vmax.f32 %v1581, 0.0
  %v1598 = vpack.c.bf16 %v1583, %v1582
  %v1599 = vpack.c.bf16 %v1585, %v1584
  %v1600 = vpack.c.bf16 %v1587, %v1586
  %v1601 = vpack.c.bf16 %v1589, %v1588
  %v1602 = vpack.c.bf16 %v1591, %v1590
  %v1603 = vpack.c.bf16 %v1593, %v1592
  %v1604 = vpack.c.bf16 %v1595, %v1594
  %v1605 = vpack.c.bf16 %v1597, %v1596
  %v1606 = vld [vmem:[%s4] sm:$0xf]
  %v1607 = vld [vmem:[%s4 + $0x4] sm:$0xf]
  %v1608 = vld [vmem:[%s4 + $0x8] sm:$0xf]
  %v1609 = vld [vmem:[%s4 + $0xc] sm:$0xf]
  %v1610 = vld [vmem:[%s4 + $0x10] sm:$0xf]
  %v1611 = vld [vmem:[%s4 + $0x14] sm:$0xf]
  %v1612 = vld [vmem:[%s4 + $0x18] sm:$0xf]
  %v1613 = vld [vmem:[%s4 + $0x1c] sm:$0xf]
  %v1614 = vld [vmem:[%s4 + $0x20] sm:$0xf]
  %v1615 = vld [vmem:[%s4 + $0x24] sm:$0xf]
  %v1616 = vld [vmem:[%s4 + $0x28] sm:$0xf]
  %v1617 = vld [vmem:[%s4 + $0x2c] sm:$0xf]
  %v1618 = vld [vmem:[%s4 + $0x30] sm:$0xf]
  %v1619 = vld [vmem:[%s4 + $0x34] sm:$0xf]
  %v1620 = vld [vmem:[%s4 + $0x38] sm:$0xf]
  %v1621 = vld [vmem:[%s4 + $0x3c] sm:$0xf]
  %v1638 = vunpack.c.l.b16 %v1606
  %v1639 = vunpack.c.l.b16 %v1607
  %v1640 = vunpack.c.l.b16 %v1608
  %v1641 = vunpack.c.l.b16 %v1609
  %v1642 = vunpack.c.l.b16 %v1610
  %v1643 = vunpack.c.l.b16 %v1611
  %v1644 = vunpack.c.l.b16 %v1612
  %v1645 = vunpack.c.l.b16 %v1613
  %v1646 = vunpack.c.l.b16 %v1614
  %v1647 = vunpack.c.l.b16 %v1615
  %v1648 = vunpack.c.l.b16 %v1616
  %v1649 = vunpack.c.l.b16 %v1617
  %v1650 = vunpack.c.l.b16 %v1618
  %v1651 = vunpack.c.l.b16 %v1619
  %v1652 = vunpack.c.l.b16 %v1620
  %v1653 = vunpack.c.l.b16 %v1621
  %v1654 = vpack.c.b16 %v1639, %v1638
  %v1655 = vpack.c.b16 %v1641, %v1640
  %v1656 = vpack.c.b16 %v1643, %v1642
  %v1657 = vpack.c.b16 %v1645, %v1644
  %v1658 = vpack.c.b16 %v1647, %v1646
  %v1659 = vpack.c.b16 %v1649, %v1648
  %v1660 = vpack.c.b16 %v1651, %v1650
  %v1661 = vpack.c.b16 %v1653, %v1652
  %1670 = vmatprep.subr.bf16.mxu0 0
  %1671 = vmatpush1.bf16.msra.mxu0 %v1661
  %1672 = vmatprep.subr.bf16.mxu0 0
  %1673 = vmatpush1.bf16.msra.mxu0 %v1660
  %1674 = vmatprep.subr.bf16.mxu0 0
  %1675 = vmatpush1.bf16.msra.mxu0 %v1659
  %1676 = vmatprep.subr.bf16.mxu0 0
  %1677 = vmatpush1.bf16.msra.mxu0 %v1658
  %1678 = vmatprep.subr.bf16.mxu0 0
  %1679 = vmatpush1.bf16.msra.mxu0 %v1657
  %1680 = vmatprep.subr.bf16.mxu0 0
  %1681 = vmatpush1.bf16.msra.mxu0 %v1656
  %1682 = vmatprep.subr.bf16.mxu0 0
  %1683 = vmatpush1.bf16.msra.mxu0 %v1655
  %1684 = vmatprep.subr.bf16.mxu0 0
  %1685 = vmatpush1.bf16.msra.mxu0 %v1654
  %1686 = vmatprep.subr.bf16.mxu0 0
  %1687 = vmatpush2.bf16.msra.mxu0 0
  %1688 = vmatprep.subr.bf16.mxu0 0
  %1689 = vmatpush2.bf16.msra.mxu0 0
  %1690 = vmatprep.subr.bf16.mxu0 0
  %1691 = vmatpush2.bf16.msra.mxu0 0
  %1692 = vmatprep.subr.bf16.mxu0 0
  %1693 = vmatpush2.bf16.msra.mxu0 0
  %1694 = vmatprep.subr.bf16.mxu0 0
  %1695 = vmatpush2.bf16.msra.mxu0 0
  %1696 = vmatprep.subr.bf16.mxu0 0
  %1697 = vmatpush2.bf16.msra.mxu0 0
  %1698 = vmatprep.subr.bf16.mxu0 0
  %1699 = vmatpush2.bf16.msra.mxu0 0
  %1700 = vmatprep.subr.bf16.mxu0 0
  %1701 = vmatpush2.bf16.msra.mxu0 0
  %1702 = vmatprep.mubr.bf16.mxu0 0
  %1703 = vmatmul.mubr.bf16.gmra.mxu0 %v1598
  %v1704 = vpop.f32.mrf.mxu0
  %v1705 = vadd.f32 0.0, %v1704
  %v1706 = vpop.f32.mrf.mxu0
  %v1707 = vpop.f32.mrf.mxu0
  %v1708 = vadd.f32 0.0, %v1707
  %v1709 = vpop.f32.mrf.mxu0
  %1710 = vmatprep.mubr.bf16.mxu0 0
  %1711 = vmatmul.mubr.bf16.gmra.mxu0 %v1599
  %v1712 = vpop.f32.mrf.mxu0
  %v1713 = vadd.f32 0.0, %v1712
  %v1714 = vpop.f32.mrf.mxu0
  %v1715 = vpop.f32.mrf.mxu0
  %v1716 = vadd.f32 0.0, %v1715
  %v1717 = vpop.f32.mrf.mxu0
  %1718 = vmatprep.mubr.bf16.mxu0 0
  %1719 = vmatmul.mubr.bf16.gmra.mxu0 %v1600
  %v1720 = vpop.f32.mrf.mxu0
  %v1721 = vadd.f32 0.0, %v1720
  %v1722 = vpop.f32.mrf.mxu0
  %v1723 = vpop.f32.mrf.mxu0
  %v1724 = vadd.f32 0.0, %v1723
  %v1725 = vpop.f32.mrf.mxu0
  %1726 = vmatprep.mubr.bf16.mxu0 0
  %1727 = vmatmul.mubr.bf16.gmra.mxu0 %v1601
  %v1728 = vpop.f32.mrf.mxu0
  %v1729 = vadd.f32 0.0, %v1728
  %v1730 = vpop.f32.mrf.mxu0
  %v1731 = vpop.f32.mrf.mxu0
  %v1732 = vadd.f32 0.0, %v1731
  %v1733 = vpop.f32.mrf.mxu0
  %1734 = vmatprep.mubr.bf16.mxu0 0
  %1735 = vmatmul.mubr.bf16.gmra.mxu0 %v1602
  %v1736 = vpop.f32.mrf.mxu0
  %v1737 = vadd.f32 0.0, %v1736
  %v1738 = vpop.f32.mrf.mxu0
  %v1739 = vpop.f32.mrf.mxu0
  %v1740 = vadd.f32 0.0, %v1739
  %v1741 = vpop.f32.mrf.mxu0
  %1742 = vmatprep.mubr.bf16.mxu0 0
  %1743 = vmatmul.mubr.bf16.gmra.mxu0 %v1603
  %v1744 = vpop.f32.mrf.mxu0
  %v1745 = vadd.f32 0.0, %v1744
  %v1746 = vpop.f32.mrf.mxu0
  %v1747 = vpop.f32.mrf.mxu0
  %v1748 = vadd.f32 0.0, %v1747
  %v1749 = vpop.f32.mrf.mxu0
  %1750 = vmatprep.mubr.bf16.mxu0 0
  %1751 = vmatmul.mubr.bf16.gmra.mxu0 %v1604
  %v1752 = vpop.f32.mrf.mxu0
  %v1753 = vadd.f32 0.0, %v1752
  %v1754 = vpop.f32.mrf.mxu0
  %v1755 = vpop.f32.mrf.mxu0
  %v1756 = vadd.f32 0.0, %v1755
  %v1757 = vpop.f32.mrf.mxu0
  %1758 = vmatprep.mubr.bf16.mxu0 0
  %1759 = vmatmul.mubr.bf16.gmra.mxu0 %v1605
  %v1760 = vpop.f32.mrf.mxu0
  %v1761 = vadd.f32 0.0, %v1760
  %v1762 = vpop.f32.mrf.mxu0
  %v1763 = vpop.f32.mrf.mxu0
  %v1764 = vadd.f32 0.0, %v1763
  %v1765 = vpop.f32.mrf.mxu0
  %1766 = vdwg.mxu0
  %v1767 = vld [vmem:[%s5] sm:$0x1]
  %v1769 = vlaneseq
  %v1770 = vshrl.u32 %v1769, 7
  %v1771 = vsub.s32 0, %v1770
  %v1772 = vrot.slane %v1767, %v1771
  %v1774 = vmul.f32 %v1705, %v1772
  %v1775 = vmul.f32 %v1708, %v1772
  %v1776 = vmul.f32 %v1713, %v1772
  %v1777 = vmul.f32 %v1716, %v1772
  %v1778 = vmul.f32 %v1721, %v1772
  %v1779 = vmul.f32 %v1724, %v1772
  %v1780 = vmul.f32 %v1729, %v1772
  %v1781 = vmul.f32 %v1732, %v1772
  %v1782 = vmul.f32 %v1737, %v1772
  %v1783 = vmul.f32 %v1740, %v1772
  %v1784 = vmul.f32 %v1745, %v1772
  %v1785 = vmul.f32 %v1748, %v1772
  %v1786 = vmul.f32 %v1753, %v1772
  %v1787 = vmul.f32 %v1756, %v1772
  %v1788 = vmul.f32 %v1761, %v1772
  %v1789 = vmul.f32 %v1764, %v1772
  %v1790 = vld [vmem:[%s6] sm:$0x1]
  %v1792 = vlaneseq
  %v1793 = vshrl.u32 %v1792, 7
  %v1794 = vsub.s32 0, %v1793
  %v1795 = vrot.slane %v1790, %v1794
  %v1797 = vadd.f32 %v1774, %v1795
  %v1798 = vadd.f32 %v1775, %v1795
  %v1799 = vadd.f32 %v1776, %v1795
  %v1800 = vadd.f32 %v1777, %v1795
  %v1801 = vadd.f32 %v1778, %v1795
  %v1802 = vadd.f32 %v1779, %v1795
  %v1803 = vadd.f32 %v1780, %v1795
  %v1804 = vadd.f32 %v1781, %v1795
  %v1805 = vadd.f32 %v1782, %v1795
  %v1806 = vadd.f32 %v1783, %v1795
  %v1807 = vadd.f32 %v1784, %v1795
  %v1808 = vadd.f32 %v1785, %v1795
  %v1809 = vadd.f32 %v1786, %v1795
  %v1810 = vadd.f32 %v1787, %v1795
  %v1811 = vadd.f32 %v1788, %v1795
  %v1812 = vadd.f32 %v1789, %v1795
  %v1813 = vpack.c.bf16 %v1798, %v1797
  %v1814 = vpack.c.bf16 %v1800, %v1799
  %v1815 = vpack.c.bf16 %v1802, %v1801
  %v1816 = vpack.c.bf16 %v1804, %v1803
  %v1817 = vpack.c.bf16 %v1806, %v1805
  %v1818 = vpack.c.bf16 %v1808, %v1807
  %v1819 = vpack.c.bf16 %v1810, %v1809
  %v1820 = vpack.c.bf16 %v1812, %v1811
  %v1829 = vunpack.c.l.b16 %v1813
  %v1830 = vunpack.c.h.b16 %v1813
  %v1831 = vunpack.c.l.b16 %v1814
  %v1832 = vunpack.c.h.b16 %v1814
  %v1833 = vunpack.c.l.b16 %v1815
  %v1834 = vunpack.c.h.b16 %v1815
  %v1835 = vunpack.c.l.b16 %v1816
  %v1836 = vunpack.c.h.b16 %v1816
  %v1837 = vunpack.c.l.b16 %v1817
  %v1838 = vunpack.c.h.b16 %v1817
  %v1839 = vunpack.c.l.b16 %v1818
  %v1840 = vunpack.c.h.b16 %v1818
  %v1841 = vunpack.c.l.b16 %v1819
  %v1842 = vunpack.c.h.b16 %v1819
  %v1843 = vunpack.c.l.b16 %v1820
  %v1844 = vunpack.c.h.b16 %v1820
  %v1845 = vpack.c.b16 %v1829, %v1829
  %v1846 = vpack.c.b16 %v1830, %v1830
  %v1847 = vpack.c.b16 %v1831, %v1831
  %v1848 = vpack.c.b16 %v1832, %v1832
  %v1849 = vpack.c.b16 %v1833, %v1833
  %v1850 = vpack.c.b16 %v1834, %v1834
  %v1851 = vpack.c.b16 %v1835, %v1835
  %v1852 = vpack.c.b16 %v1836, %v1836
  %v1853 = vpack.c.b16 %v1837, %v1837
  %v1854 = vpack.c.b16 %v1838, %v1838
  %v1855 = vpack.c.b16 %v1839, %v1839
  %v1856 = vpack.c.b16 %v1840, %v1840
  %v1857 = vpack.c.b16 %v1841, %v1841
  %v1858 = vpack.c.b16 %v1842, %v1842
  %v1859 = vpack.c.b16 %v1843, %v1843
  %v1860 = vpack.c.b16 %v1844, %v1844
  %1877 = vst [vmem:[%s7] sm:$0xf] %v1845
  %1878 = vst [vmem:[%s7 + $0x4] sm:$0xf] %v1846
  %1879 = vst [vmem:[%s7 + $0x8] sm:$0xf] %v1847
  %1880 = vst [vmem:[%s7 + $0xc] sm:$0xf] %v1848
  %1881 = vst [vmem:[%s7 + $0x10] sm:$0xf] %v1849
  %1882 = vst [vmem:[%s7 + $0x14] sm:$0xf] %v1850
  %1883 = vst [vmem:[%s7 + $0x18] sm:$0xf] %v1851
  %1884 = vst [vmem:[%s7 + $0x1c] sm:$0xf] %v1852
  %1885 = vst [vmem:[%s7 + $0x20] sm:$0xf] %v1853
  %1886 = vst [vmem:[%s7 + $0x24] sm:$0xf] %v1854
  %1887 = vst [vmem:[%s7 + $0x28] sm:$0xf] %v1855
  %1888 = vst [vmem:[%s7 + $0x2c] sm:$0xf] %v1856
  %1889 = vst [vmem:[%s7 + $0x30] sm:$0xf] %v1857
  %1890 = vst [vmem:[%s7 + $0x34] sm:$0xf] %v1858
  %1891 = vst [vmem:[%s7 + $0x38] sm:$0xf] %v1859
  %1892 = vst [vmem:[%s7 + $0x3c] sm:$0xf] %v1860
  // Predicated region
  $region30: #{deeplab_forward.18} parent=0 // pred_check
    _
  $region31: #{deeplab_forward.18} parent=0 // pred_check_branch
    %1894 = sbr.rel (0) target = $region33
  $region32: #{deeplab_forward.18} parent=0 // pred_region
    _
  $region33: #{deeplab_forward.18} parent=0 // pred_fallthru
    _
  // Predicated region
  $region34: #{deeplab_forward.18} parent=0 // pred_check
    _
  $region35: #{deeplab_forward.18} parent=0 // pred_check_branch
    %1896 = sbr.rel (0) target = $region37
  $region36: #{deeplab_forward.18} parent=0 // pred_region
    _
  $region37: #{deeplab_forward.18} parent=0 // pred_fallthru
    _

</llo_original>
